<compile_context>
chip_gen: v7x
topology: tpu7x:2x2x1
jax: 0.10.0
libtpu: 0.0.40
codegen_flags: <defaults>
</compile_context>

<pallas_src>
import math
import jax
import jax.numpy as jnp
from jax.experimental import pallas as pl
from jax.experimental.pallas import tpu as pltpu

# ----------------------------- constants ------------------------------------
NUMBER_OF_CARDS_PER_SUIT = 13
NUMBER_OF_AGENTS = 5
NUMBER_OF_POSSIBLE_STATES = 15

PASS_ACTION = 1
TWO_OF_HEARTS = 1
ACTION_SPACE = NUMBER_OF_CARDS_PER_SUIT + TWO_OF_HEARTS + PASS_ACTION        # 15
LAST_ACTION = 1
OTHER_PLAYERS_FEATURES = NUMBER_OF_AGENTS                                    # 5
THROWN_CARDS_FEATURES = NUMBER_OF_CARDS_PER_SUIT + 1                         # 14
DIM_INPUT = (NUMBER_OF_CARDS_PER_SUIT + TWO_OF_HEARTS + PASS_ACTION
             + ACTION_SPACE + THROWN_CARDS_FEATURES
             + OTHER_PLAYERS_FEATURES + LAST_ACTION)                         # 50
EMBEDDING_SIZE_OUTPUT = 16
LATENT_SPACE_NEXT_ACTION = 32
FINAL_DIM_INPUT = DIM_INPUT - 1 + EMBEDDING_SIZE_OUTPUT + LATENT_SPACE_NEXT_ACTION  # 97
NUM_EMB = NUMBER_OF_POSSIBLE_STATES + 2                                      # 17
NEURONS = 128                                                                # model == 'medium'
STATE_DIM = DIM_INPUT - 1                                                    # 49
# slab lane layout: [ state(49) | latent(32) | onehot(17) | zeros(30) ] = 128
ONEHOT_OFF = STATE_DIM + LATENT_SPACE_NEXT_ACTION                            # 81
PAD_LANES = NEURONS - (ONEHOT_OFF + NUM_EMB)                                 # 30
EPS = 1e-5


# ------------------------------ kernel --------------------------------------
def _ln(h, g, b):
    """Single-pass LayerNorm: var = E[x^2] - mu^2 (one fewer dependent reduce)."""
    mu = jnp.mean(h, axis=-1, keepdims=True)
    ms = jnp.mean(h * h, axis=-1, keepdims=True)
    return (h - mu) * jax.lax.rsqrt(ms - mu * mu + EPS) * g + b


def nnet_kernel(slab_ref, w1_ref, w2_ref, wh_ref, wo_ref, vec_ref, out_ref):
    slab = slab_ref[...]                       # (TB, 128) bf16, lane-dense

    vec = vec_ref[...]                         # (12, 256) f32 packed vectors
    b1, g1, be1 = vec[0:1, :NEURONS], vec[1:2, :NEURONS], vec[2:3, :NEURONS]
    gv, bev = vec[3:4, :NEURONS], vec[4:5, :NEURONS]
    gp, bep = vec[5:6, :NEURONS], vec[6:7, :NEURONS]
    b_out = vec[7:8, :NEURONS]
    b2, g2, be2, bh = vec[8:9], vec[9:10], vec[10:11], vec[11:12]

    # chore_part layer 1: single K=128 matmul (embedding branch folded into W1)
    h = jnp.dot(slab, w1_ref[...], preferred_element_type=jnp.float32) + b1
    h = jnp.maximum(_ln(h, g1, be1), 0.0)      # LayerNorm + ReLU; Dropout = id (eval)

    # chore_part layer 2: Linear(128,256) + LayerNorm + ReLU
    h = jnp.dot(h.astype(jnp.bfloat16), w2_ref[...],
                preferred_element_type=jnp.float32) + b2
    h = jnp.maximum(_ln(h, g2, be2), 0.0)      # (TB, 256)

    # fused head first layers: one (256,256) matmul, LN each 128-lane half
    heads = jnp.dot(h.astype(jnp.bfloat16), wh_ref[...],
                    preferred_element_type=jnp.float32) + bh
    v = jnp.maximum(_ln(heads[:, :NEURONS], gv, bev), 0.0)
    p = jnp.maximum(_ln(heads[:, NEURONS:], gp, bep), 0.0)

    # fused head output layers: two accumulating K=128 matmuls (no lane concat)
    #   col 0 = value, cols 1..15 = policy logits, cols 16..127 = 0
    out_ref[...] = (jnp.dot(v.astype(jnp.bfloat16), wo_ref[:NEURONS, :],
                            preferred_element_type=jnp.float32)
                    + jnp.dot(p.astype(jnp.bfloat16), wo_ref[NEURONS:, :],
                              preferred_element_type=jnp.float32)
                    + b_out)


# ------------------------------ wrapper -------------------------------------
def _round_up(n, m):
    return (n + m - 1) // m * m


def _build_slab(x, latent):
    """Lane-dense bf16 input slab [state | latent | onehot(la+1) | zeros]."""
    B = x.shape[0]
    state = x[:, :STATE_DIM]                                       # (B, 49)
    la = x[:, STATE_DIM].astype(jnp.int32) + 1                     # (B,) in [0,16]
    onehot = (la[:, None] == jnp.arange(NUM_EMB)[None, :]).astype(jnp.float32)
    slab = jnp.concatenate(
        [state, latent, onehot, jnp.zeros((B, PAD_LANES), jnp.float32)],
        axis=1)                                                    # (B, 128)
    return slab.astype(jnp.bfloat16)


def nnet_forward(x, latent, kp, *, batch_tile=512, even_grid_steps=False):
    """x: (B, 50) f32, latent: (B, 32) f32 -> (value (B,1), policy (B,15)).

    batch_tile=512 works on v5e/v6e/v7x (total VMEM footprint ~2-3 MiB).
    even_grid_steps=True keeps an even grid length so v7x's two TensorCores
    both get work when the batch spans multiple tiles.
    """
    B = x.shape[0]
    n_steps = max(1, -(-B // batch_tile))
    if even_grid_steps and n_steps % 2:
        n_steps += 1
    TB = _round_up(-(-B // n_steps), 8)
    B_pad = TB * n_steps

    slab = _build_slab(x, latent)                                  # (B, 128) bf16
    if B_pad != B:
        slab = jnp.pad(slab, ((0, B_pad - B), (0, 0)))             # padded rows: zeros

    row = lambda i: (i, 0)       # batch-tiled operands
    const = lambda i: (0, 0)     # weights: same block every step -> VMEM-resident

    out = pl.pallas_call(
        nnet_kernel,
        grid=(n_steps,),
        in_specs=[
            pl.BlockSpec((TB, NEURONS), row),
            pl.BlockSpec((NEURONS, NEURONS), const),
            pl.BlockSpec((NEURONS, 2 * NEURONS), const),
            pl.BlockSpec((2 * NEURONS, 2 * NEURONS), const),
            pl.BlockSpec((2 * NEURONS, NEURONS), const),
            pl.BlockSpec((12, 2 * NEURONS), const),
        ],
        out_specs=pl.BlockSpec((TB, NEURONS), row),
        out_shape=jax.ShapeDtypeStruct((B_pad, NEURONS), jnp.float32),
        compiler_params=pltpu.CompilerParams(
            dimension_semantics=("parallel",)),
    )(slab, kp["w1"], kp["w2"], kp["w_heads"], kp["w_out"], kp["vecs"])

    value = out[:B, 0:1]
    policy = out[:B, 1:1 + NUMBER_OF_POSSIBLE_STATES]
    return value, policy


# ----------------------- parameter init (hu init) ---------------------------
def _linear(key, fan_in, fan_out):
    kw, kb = jax.random.split(key)
    std = math.sqrt(2.0 / fan_in)
    w = std * jax.random.normal(kw, (fan_in, fan_out), jnp.float32)
    b = std * jax.random.normal(kb, (1, fan_out), jnp.float32)
    return w, b


def init_params(key):
    """Raw parameters in the original (PyTorch) layout."""
    k = jax.random.split(key, 8)
    p = {}
    p["emb_tab"] = jax.random.normal(k[0], (NUM_EMB, EMBEDDING_SIZE_OUTPUT), jnp.float32)
    p["emb_g"] = jnp.ones((1, EMBEDDING_SIZE_OUTPUT), jnp.float32)
    p["emb_b"] = jnp.zeros((1, EMBEDDING_SIZE_OUTPUT), jnp.float32)
    p["w1"], p["b1"] = _linear(k[1], FINAL_DIM_INPUT, NEURONS)          # (97,128)
    p["g1"] = jnp.ones((1, NEURONS), jnp.float32)
    p["be1"] = jnp.zeros((1, NEURONS), jnp.float32)
    p["w2"], p["b2"] = _linear(k[2], NEURONS, 2 * NEURONS)              # (128,256)
    p["g2"] = jnp.ones((1, 2 * NEURONS), jnp.float32)
    p["be2"] = jnp.zeros((1, 2 * NEURONS), jnp.float32)
    p["wv1"], p["bv1"] = _linear(k[3], 2 * NEURONS, NEURONS)
    p["gv"] = jnp.ones((1, NEURONS), jnp.float32)
    p["bev"] = jnp.zeros((1, NEURONS), jnp.float32)
    p["wv2"], p["bv2"] = _linear(k[4], NEURONS, 1)
    p["wp1"], p["bp1"] = _linear(k[5], 2 * NEURONS, NEURONS)
    p["gp"] = jnp.ones((1, NEURONS), jnp.float32)
    p["bep"] = jnp.zeros((1, NEURONS), jnp.float32)
    p["wp2"], p["bp2"] = _linear(k[6], NEURONS, NUMBER_OF_POSSIBLE_STATES)
    return p


def prepare_kernel_params(p):
    """Fold / fuse / pack / cast raw params into the kernel layout (offline)."""
    # Fold Embedding -> LayerNorm(affine) into T = LN(emb) @ W1_emb_rows (17,128),
    # then stack [W1_state | W1_latent | T | zeros] into a single (128,128) W1
    # matching the slab lane layout [state|latent|onehot|zeros].
    e = p["emb_tab"]
    mu = jnp.mean(e, axis=-1, keepdims=True)
    var = jnp.mean((e - mu) ** 2, axis=-1, keepdims=True)
    ln_e = (e - mu) * jax.lax.rsqrt(var + EPS) * p["emb_g"] + p["emb_b"]
    w1 = p["w1"]
    w1_state = w1[:STATE_DIM]                                       # (49,128)
    w1_emb = w1[STATE_DIM:STATE_DIM + EMBEDDING_SIZE_OUTPUT]        # (16,128)
    w1_lat = w1[STATE_DIM + EMBEDDING_SIZE_OUTPUT:]                 # (32,128)
    T = ln_e @ w1_emb                                               # (17,128)
    W1 = jnp.zeros((NEURONS, NEURONS), jnp.float32)
    W1 = W1.at[:STATE_DIM].set(w1_state)
    W1 = W1.at[STATE_DIM:ONEHOT_OFF].set(w1_lat)
    W1 = W1.at[ONEHOT_OFF:ONEHOT_OFF + NUM_EMB].set(T)              # rows 98..127 zero

    # Fused head first layers.
    W_heads = jnp.concatenate([p["wv1"], p["wp1"]], axis=1)         # (256, 256)
    b_heads = jnp.concatenate([p["bv1"], p["bp1"]], axis=1)         # (1, 256)

    # Fused, lane-dense head output layer: col 0 = value, cols 1..15 = policy.
    W_out = jnp.zeros((2 * NEURONS, NEURONS), jnp.float32)
    W_out = W_out.at[:NEURONS, 0:1].set(p["wv2"])
    W_out = W_out.at[NEURONS:, 1:1 + NUMBER_OF_POSSIBLE_STATES].set(p["wp2"])
    b_out = jnp.zeros((1, NEURONS), jnp.float32)
    b_out = b_out.at[:, 0:1].set(p["bv2"])
    b_out = b_out.at[:, 1:1 + NUMBER_OF_POSSIBLE_STATES].set(p["bp2"])

    # Pack all tiny (1,N) vectors into a single (12,256) slab
    # (128-wide vectors occupy the low lanes, zero-padded to 256).
    def pad128(v):
        return jnp.pad(v, ((0, 0), (0, NEURONS)))
    vecs = jnp.concatenate(
        [pad128(p["b1"]), pad128(p["g1"]), pad128(p["be1"]),
         pad128(p["gv"]), pad128(p["bev"]), pad128(p["gp"]), pad128(p["bep"]),
         pad128(b_out),
         p["b2"], p["g2"], p["be2"], b_heads], axis=0)              # (12,256)

    return {"w1": W1.astype(jnp.bfloat16),
            "w2": p["w2"].astype(jnp.bfloat16),
            "w_heads": W_heads.astype(jnp.bfloat16),
            "w_out": W_out.astype(jnp.bfloat16),
            "vecs": vecs.astype(jnp.float32)}


# ------------------------- pure-JAX references -------------------------------
def nnet_reference_fused(x, latent, kp):
    """Plain-JAX equivalent of exactly the kernel math (bf16 weights, f32 accum)."""
    slab = _build_slab(x, latent)
    vec = kp["vecs"]
    b1, g1, be1 = vec[0:1, :NEURONS], vec[1:2, :NEURONS], vec[2:3, :NEURONS]
    gv, bev = vec[3:4, :NEURONS], vec[4:5, :NEURONS]
    gp, bep = vec[5:6, :NEURONS], vec[6:7, :NEURONS]
    b_out = vec[7:8, :NEURONS]
    b2, g2, be2, bh = vec[8:9], vec[9:10], vec[10:11], vec[11:12]
    h = jnp.dot(slab, kp["w1"], preferred_element_type=jnp.float32) + b1
    h = jnp.maximum(_ln(h, g1, be1), 0.0)
    h = jnp.dot(h.astype(jnp.bfloat16), kp["w2"], preferred_element_type=jnp.float32) + b2
    h = jnp.maximum(_ln(h, g2, be2), 0.0)
    heads = jnp.dot(h.astype(jnp.bfloat16), kp["w_heads"],
                    preferred_element_type=jnp.float32) + bh
    v = jnp.maximum(_ln(heads[:, :NEURONS], gv, bev), 0.0)
    p = jnp.maximum(_ln(heads[:, NEURONS:], gp, bep), 0.0)
    out = (jnp.dot(v.astype(jnp.bfloat16), kp["w_out"][:NEURONS],
                   preferred_element_type=jnp.float32)
           + jnp.dot(p.astype(jnp.bfloat16), kp["w_out"][NEURONS:],
                     preferred_element_type=jnp.float32) + b_out)
    return out[:, 0:1], out[:, 1:1 + NUMBER_OF_POSSIBLE_STATES]


def nnet_reference_f32(x, latent, p):
    """Original (unfused) module math in f32 — validates the offline folding."""
    state = x[:, :STATE_DIM]
    la = x[:, STATE_DIM].astype(jnp.int32) + 1
    emb = _ln(p["emb_tab"][la], p["emb_g"], p["emb_b"])
    xl = jnp.concatenate([state, emb, latent], axis=1)
    h = jnp.maximum(_ln(xl @ p["w1"] + p["b1"], p["g1"], p["be1"]), 0.0)
    h = jnp.maximum(_ln(h @ p["w2"] + p["b2"], p["g2"], p["be2"]), 0.0)
    v = jnp.maximum(_ln(h @ p["wv1"] + p["bv1"], p["gv"], p["bev"]), 0.0)
    value = v @ p["wv2"] + p["bv2"]
    q = jnp.maximum(_ln(h @ p["wp1"] + p["bp1"], p["gp"], p["bep"]), 0.0)
    policy = q @ p["wp2"] + p["bp2"]
    return value, policy


# ------------------------------- main ----------------------------------------
if __name__ == "__main__":
    key = jax.random.PRNGKey(0)
    kpar, *input_keys = jax.random.split(key, 10)

    raw = init_params(kpar)
    kparams = prepare_kernel_params(raw)

    def make_inputs(kx_, kl_, ka_, B):
        # state features are float, last column is the last-action id in [-1, 15]
        state = jax.random.normal(kx_, (B, STATE_DIM), jnp.float32)
        la = jax.random.randint(ka_, (B, 1), -1, NUMBER_OF_POSSIBLE_STATES + 1)
        x = jnp.concatenate([state, la.astype(jnp.float32)], axis=1)
        latent = jax.random.normal(kl_, (B, LATENT_SPACE_NEXT_ACTION), jnp.float32)
        return x, latent

    fwd = jax.jit(lambda x, l: nnet_forward(x, l, kparams, batch_tile=512))

    batch_sizes = (512, 300, 10)
    for i, B in enumerate(batch_sizes):
        x, latent = make_inputs(*input_keys[3 * i:3 * i + 3], B)
        value, policy = fwd(x, latent)
        jax.block_until_ready((value, policy))
        assert value.shape == (B, 1)
        assert policy.shape == (B, NUMBER_OF_POSSIBLE_STATES)

        # Tight check: kernel == its exact plain-JAX (bf16-weight) equivalent.
        v_f, p_f = nnet_reference_fused(x, latent, kparams)
        assert jnp.allclose(value, v_f, atol=2e-3, rtol=2e-3)
        assert jnp.allclose(policy, p_f, atol=2e-3, rtol=2e-3)

        # Loose sanity check against the original unfused f32 math
        # (difference is bf16 weight/activation quantization only).
        v32, p32 = nnet_reference_f32(x, latent, raw)
        assert float(jnp.max(jnp.abs(value - v32))) < 0.2
        assert float(jnp.max(jnp.abs(policy - p32))) < 0.2

    print("KERNEL_OK")
</pallas_src>

<mosaic_0001>
module attributes {stable_mosaic.version = 11 : i64} {
  func.func @nnet_kernel(%arg0: i32, %arg1: memref<512x128xbf16, #tpu.memory_space<vmem>>, %arg2: memref<128x128xbf16, #tpu.memory_space<vmem>>, %arg3: memref<128x256xbf16, #tpu.memory_space<vmem>>, %arg4: memref<256x256xbf16, #tpu.memory_space<vmem>>, %arg5: memref<256x128xbf16, #tpu.memory_space<vmem>>, %arg6: memref<12x256xf32, #tpu.memory_space<vmem>>, %arg7: memref<512x128xf32, #tpu.memory_space<vmem>>) attributes {dimension_semantics = [#tpu.dimension_semantics<parallel>], iteration_bounds = array<i64: 1>, scalar_prefetch = 0 : i64, scratch_operands = 0 : i64, tpu.core_type = #tpu.core_type<tc>, window_params = [{transform_indices = @transform_0, window_bounds = array<i64: 512, 128>}, {pipeline_mode = #tpu.pipeline_mode<synchronous>, transform_indices = @transform_1, window_bounds = array<i64: 128, 128>}, {pipeline_mode = #tpu.pipeline_mode<synchronous>, transform_indices = @transform_2, window_bounds = array<i64: 128, 256>}, {pipeline_mode = #tpu.pipeline_mode<synchronous>, transform_indices = @transform_3, window_bounds = array<i64: 256, 256>}, {pipeline_mode = #tpu.pipeline_mode<synchronous>, transform_indices = @transform_4, window_bounds = array<i64: 256, 128>}, {pipeline_mode = #tpu.pipeline_mode<synchronous>, transform_indices = @transform_5, window_bounds = array<i64: 12, 256>}, {transform_indices = @transform_6, window_bounds = array<i64: 512, 128>}]} {
    %c0 = arith.constant 0 : index
    %c0_0 = arith.constant 0 : index
    %0 = vector.load %arg1[%c0, %c0_0] : memref<512x128xbf16, #tpu.memory_space<vmem>>, vector<512x128xbf16>
    %c0_1 = arith.constant 0 : index
    %c0_2 = arith.constant 0 : index
    %1 = vector.load %arg6[%c0_1, %c0_2] : memref<12x256xf32, #tpu.memory_space<vmem>>, vector<12x256xf32>
    %2 = vector.extract_strided_slice %1 {offsets = [0, 0], sizes = [1, 128], strides = [1, 1]} : vector<12x256xf32> to vector<1x128xf32>
    %3 = vector.extract_strided_slice %1 {offsets = [1, 0], sizes = [1, 128], strides = [1, 1]} : vector<12x256xf32> to vector<1x128xf32>
    %4 = vector.extract_strided_slice %1 {offsets = [2, 0], sizes = [1, 128], strides = [1, 1]} : vector<12x256xf32> to vector<1x128xf32>
    %5 = vector.extract_strided_slice %1 {offsets = [3, 0], sizes = [1, 128], strides = [1, 1]} : vector<12x256xf32> to vector<1x128xf32>
    %6 = vector.extract_strided_slice %1 {offsets = [4, 0], sizes = [1, 128], strides = [1, 1]} : vector<12x256xf32> to vector<1x128xf32>
    %7 = vector.extract_strided_slice %1 {offsets = [5, 0], sizes = [1, 128], strides = [1, 1]} : vector<12x256xf32> to vector<1x128xf32>
    %8 = vector.extract_strided_slice %1 {offsets = [6, 0], sizes = [1, 128], strides = [1, 1]} : vector<12x256xf32> to vector<1x128xf32>
    %9 = vector.extract_strided_slice %1 {offsets = [7, 0], sizes = [1, 128], strides = [1, 1]} : vector<12x256xf32> to vector<1x128xf32>
    %10 = vector.extract_strided_slice %1 {offsets = [8, 0], sizes = [1, 256], strides = [1, 1]} : vector<12x256xf32> to vector<1x256xf32>
    %11 = vector.extract_strided_slice %1 {offsets = [9, 0], sizes = [1, 256], strides = [1, 1]} : vector<12x256xf32> to vector<1x256xf32>
    %12 = vector.extract_strided_slice %1 {offsets = [10, 0], sizes = [1, 256], strides = [1, 1]} : vector<12x256xf32> to vector<1x256xf32>
    %13 = vector.extract_strided_slice %1 {offsets = [11, 0], sizes = [1, 256], strides = [1, 1]} : vector<12x256xf32> to vector<1x256xf32>
    %c0_3 = arith.constant 0 : index
    %c0_4 = arith.constant 0 : index
    %14 = vector.load %arg2[%c0_3, %c0_4] : memref<128x128xbf16, #tpu.memory_space<vmem>>, vector<128x128xbf16>
    %cst = arith.constant dense<0.000000e+00> : vector<512x128xf32>
    %15 = tpu.matmul %0, %14, %cst {dimension_numbers = #tpu.dot_dimension_numbers<[1], [0], [0], [1], [0, 0, 1, 1], [], []>} : vector<512x128xbf16>, vector<128x128xbf16>, vector<512x128xf32> -> vector<512x128xf32>
    %16 = vector.broadcast %2 : vector<1x128xf32> to vector<512x128xf32>
    %17 = arith.addf %15, %16 : vector<512x128xf32>
    %cst_5 = arith.constant dense<0.000000e+00> : vector<512xf32>
    %18 = vector.multi_reduction <add>, %17, %cst_5 [1] : vector<512x128xf32> to vector<512xf32>
    %19 = vector.shape_cast %18 : vector<512xf32> to vector<512x1xf32>
    %cst_6 = arith.constant 1.280000e+02 : f32
    %20 = vector.broadcast %cst_6 : f32 to vector<512x1xf32>
    %21 = arith.divf %19, %20 : vector<512x1xf32>
    %22 = arith.mulf %17, %17 : vector<512x128xf32>
    %cst_7 = arith.constant dense<0.000000e+00> : vector<512xf32>
    %23 = vector.multi_reduction <add>, %22, %cst_7 [1] : vector<512x128xf32> to vector<512xf32>
    %24 = vector.shape_cast %23 : vector<512xf32> to vector<512x1xf32>
    %cst_8 = arith.constant 1.280000e+02 : f32
    %25 = vector.broadcast %cst_8 : f32 to vector<512x1xf32>
    %26 = arith.divf %24, %25 : vector<512x1xf32>
    %27 = vector.broadcast %21 : vector<512x1xf32> to vector<512x128xf32>
    %28 = arith.subf %17, %27 : vector<512x128xf32>
    %29 = arith.mulf %21, %21 : vector<512x1xf32>
    %30 = arith.subf %26, %29 : vector<512x1xf32>
    %cst_9 = arith.constant 9.99999974E-6 : f32
    %31 = vector.broadcast %cst_9 : f32 to vector<512x1xf32>
    %32 = arith.addf %30, %31 : vector<512x1xf32>
    %33 = math.rsqrt %32 : vector<512x1xf32>
    %34 = vector.broadcast %33 : vector<512x1xf32> to vector<512x128xf32>
    %35 = arith.mulf %28, %34 : vector<512x128xf32>
    %36 = vector.broadcast %3 : vector<1x128xf32> to vector<512x128xf32>
    %37 = arith.mulf %35, %36 : vector<512x128xf32>
    %38 = vector.broadcast %4 : vector<1x128xf32> to vector<512x128xf32>
    %39 = arith.addf %37, %38 : vector<512x128xf32>
    %cst_10 = arith.constant 0.000000e+00 : f32
    %40 = vector.broadcast %cst_10 : f32 to vector<512x128xf32>
    %41 = arith.maximumf %39, %40 : vector<512x128xf32>
    %42 = arith.truncf %41 : vector<512x128xf32> to vector<512x128xbf16>
    %c0_11 = arith.constant 0 : index
    %c0_12 = arith.constant 0 : index
    %43 = vector.load %arg3[%c0_11, %c0_12] : memref<128x256xbf16, #tpu.memory_space<vmem>>, vector<128x256xbf16>
    %cst_13 = arith.constant dense<0.000000e+00> : vector<512x256xf32>
    %44 = tpu.matmul %42, %43, %cst_13 {dimension_numbers = #tpu.dot_dimension_numbers<[1], [0], [0], [1], [0, 0, 1, 1], [], []>} : vector<512x128xbf16>, vector<128x256xbf16>, vector<512x256xf32> -> vector<512x256xf32>
    %45 = vector.broadcast %10 : vector<1x256xf32> to vector<512x256xf32>
    %46 = arith.addf %44, %45 : vector<512x256xf32>
    %cst_14 = arith.constant dense<0.000000e+00> : vector<512xf32>
    %47 = vector.multi_reduction <add>, %46, %cst_14 [1] : vector<512x256xf32> to vector<512xf32>
    %48 = vector.shape_cast %47 : vector<512xf32> to vector<512x1xf32>
    %cst_15 = arith.constant 2.560000e+02 : f32
    %49 = vector.broadcast %cst_15 : f32 to vector<512x1xf32>
    %50 = arith.divf %48, %49 : vector<512x1xf32>
    %51 = arith.mulf %46, %46 : vector<512x256xf32>
    %cst_16 = arith.constant dense<0.000000e+00> : vector<512xf32>
    %52 = vector.multi_reduction <add>, %51, %cst_16 [1] : vector<512x256xf32> to vector<512xf32>
    %53 = vector.shape_cast %52 : vector<512xf32> to vector<512x1xf32>
    %cst_17 = arith.constant 2.560000e+02 : f32
    %54 = vector.broadcast %cst_17 : f32 to vector<512x1xf32>
    %55 = arith.divf %53, %54 : vector<512x1xf32>
    %56 = vector.broadcast %50 : vector<512x1xf32> to vector<512x256xf32>
    %57 = arith.subf %46, %56 : vector<512x256xf32>
    %58 = arith.mulf %50, %50 : vector<512x1xf32>
    %59 = arith.subf %55, %58 : vector<512x1xf32>
    %cst_18 = arith.constant 9.99999974E-6 : f32
    %60 = vector.broadcast %cst_18 : f32 to vector<512x1xf32>
    %61 = arith.addf %59, %60 : vector<512x1xf32>
    %62 = math.rsqrt %61 : vector<512x1xf32>
    %63 = vector.broadcast %62 : vector<512x1xf32> to vector<512x256xf32>
    %64 = arith.mulf %57, %63 : vector<512x256xf32>
    %65 = vector.broadcast %11 : vector<1x256xf32> to vector<512x256xf32>
    %66 = arith.mulf %64, %65 : vector<512x256xf32>
    %67 = vector.broadcast %12 : vector<1x256xf32> to vector<512x256xf32>
    %68 = arith.addf %66, %67 : vector<512x256xf32>
    %cst_19 = arith.constant 0.000000e+00 : f32
    %69 = vector.broadcast %cst_19 : f32 to vector<512x256xf32>
    %70 = arith.maximumf %68, %69 : vector<512x256xf32>
    %71 = arith.truncf %70 : vector<512x256xf32> to vector<512x256xbf16>
    %c0_20 = arith.constant 0 : index
    %c0_21 = arith.constant 0 : index
    %72 = vector.load %arg4[%c0_20, %c0_21] : memref<256x256xbf16, #tpu.memory_space<vmem>>, vector<256x256xbf16>
    %cst_22 = arith.constant dense<0.000000e+00> : vector<512x256xf32>
    %73 = tpu.matmul %71, %72, %cst_22 {dimension_numbers = #tpu.dot_dimension_numbers<[1], [0], [0], [1], [0, 0, 1, 1], [], []>} : vector<512x256xbf16>, vector<256x256xbf16>, vector<512x256xf32> -> vector<512x256xf32>
    %74 = vector.broadcast %13 : vector<1x256xf32> to vector<512x256xf32>
    %75 = arith.addf %73, %74 : vector<512x256xf32>
    %76 = vector.extract_strided_slice %75 {offsets = [0, 0], sizes = [512, 128], strides = [1, 1]} : vector<512x256xf32> to vector<512x128xf32>
    %cst_23 = arith.constant dense<0.000000e+00> : vector<512xf32>
    %77 = vector.multi_reduction <add>, %76, %cst_23 [1] : vector<512x128xf32> to vector<512xf32>
    %78 = vector.shape_cast %77 : vector<512xf32> to vector<512x1xf32>
    %cst_24 = arith.constant 1.280000e+02 : f32
    %79 = vector.broadcast %cst_24 : f32 to vector<512x1xf32>
    %80 = arith.divf %78, %79 : vector<512x1xf32>
    %81 = arith.mulf %76, %76 : vector<512x128xf32>
    %cst_25 = arith.constant dense<0.000000e+00> : vector<512xf32>
    %82 = vector.multi_reduction <add>, %81, %cst_25 [1] : vector<512x128xf32> to vector<512xf32>
    %83 = vector.shape_cast %82 : vector<512xf32> to vector<512x1xf32>
    %cst_26 = arith.constant 1.280000e+02 : f32
    %84 = vector.broadcast %cst_26 : f32 to vector<512x1xf32>
    %85 = arith.divf %83, %84 : vector<512x1xf32>
    %86 = vector.broadcast %80 : vector<512x1xf32> to vector<512x128xf32>
    %87 = arith.subf %76, %86 : vector<512x128xf32>
    %88 = arith.mulf %80, %80 : vector<512x1xf32>
    %89 = arith.subf %85, %88 : vector<512x1xf32>
    %cst_27 = arith.constant 9.99999974E-6 : f32
    %90 = vector.broadcast %cst_27 : f32 to vector<512x1xf32>
    %91 = arith.addf %89, %90 : vector<512x1xf32>
    %92 = math.rsqrt %91 : vector<512x1xf32>
    %93 = vector.broadcast %92 : vector<512x1xf32> to vector<512x128xf32>
    %94 = arith.mulf %87, %93 : vector<512x128xf32>
    %95 = vector.broadcast %5 : vector<1x128xf32> to vector<512x128xf32>
    %96 = arith.mulf %94, %95 : vector<512x128xf32>
    %97 = vector.broadcast %6 : vector<1x128xf32> to vector<512x128xf32>
    %98 = arith.addf %96, %97 : vector<512x128xf32>
    %cst_28 = arith.constant 0.000000e+00 : f32
    %99 = vector.broadcast %cst_28 : f32 to vector<512x128xf32>
    %100 = arith.maximumf %98, %99 : vector<512x128xf32>
    %101 = vector.extract_strided_slice %75 {offsets = [0, 128], sizes = [512, 128], strides = [1, 1]} : vector<512x256xf32> to vector<512x128xf32>
    %cst_29 = arith.constant dense<0.000000e+00> : vector<512xf32>
    %102 = vector.multi_reduction <add>, %101, %cst_29 [1] : vector<512x128xf32> to vector<512xf32>
    %103 = vector.shape_cast %102 : vector<512xf32> to vector<512x1xf32>
    %cst_30 = arith.constant 1.280000e+02 : f32
    %104 = vector.broadcast %cst_30 : f32 to vector<512x1xf32>
    %105 = arith.divf %103, %104 : vector<512x1xf32>
    %106 = arith.mulf %101, %101 : vector<512x128xf32>
    %cst_31 = arith.constant dense<0.000000e+00> : vector<512xf32>
    %107 = vector.multi_reduction <add>, %106, %cst_31 [1] : vector<512x128xf32> to vector<512xf32>
    %108 = vector.shape_cast %107 : vector<512xf32> to vector<512x1xf32>
    %cst_32 = arith.constant 1.280000e+02 : f32
    %109 = vector.broadcast %cst_32 : f32 to vector<512x1xf32>
    %110 = arith.divf %108, %109 : vector<512x1xf32>
    %111 = vector.broadcast %105 : vector<512x1xf32> to vector<512x128xf32>
    %112 = arith.subf %101, %111 : vector<512x128xf32>
    %113 = arith.mulf %105, %105 : vector<512x1xf32>
    %114 = arith.subf %110, %113 : vector<512x1xf32>
    %cst_33 = arith.constant 9.99999974E-6 : f32
    %115 = vector.broadcast %cst_33 : f32 to vector<512x1xf32>
    %116 = arith.addf %114, %115 : vector<512x1xf32>
    %117 = math.rsqrt %116 : vector<512x1xf32>
    %118 = vector.broadcast %117 : vector<512x1xf32> to vector<512x128xf32>
    %119 = arith.mulf %112, %118 : vector<512x128xf32>
    %120 = vector.broadcast %7 : vector<1x128xf32> to vector<512x128xf32>
    %121 = arith.mulf %119, %120 : vector<512x128xf32>
    %122 = vector.broadcast %8 : vector<1x128xf32> to vector<512x128xf32>
    %123 = arith.addf %121, %122 : vector<512x128xf32>
    %cst_34 = arith.constant 0.000000e+00 : f32
    %124 = vector.broadcast %cst_34 : f32 to vector<512x128xf32>
    %125 = arith.maximumf %123, %124 : vector<512x128xf32>
    %126 = arith.truncf %100 : vector<512x128xf32> to vector<512x128xbf16>
    %c0_35 = arith.constant 0 : index
    %c0_36 = arith.constant 0 : index
    %127 = vector.load %arg5[%c0_35, %c0_36] : memref<256x128xbf16, #tpu.memory_space<vmem>>, vector<128x128xbf16>
    %cst_37 = arith.constant dense<0.000000e+00> : vector<512x128xf32>
    %128 = tpu.matmul %126, %127, %cst_37 {dimension_numbers = #tpu.dot_dimension_numbers<[1], [0], [0], [1], [0, 0, 1, 1], [], []>} : vector<512x128xbf16>, vector<128x128xbf16>, vector<512x128xf32> -> vector<512x128xf32>
    %129 = arith.truncf %125 : vector<512x128xf32> to vector<512x128xbf16>
    %c128 = arith.constant 128 : index
    %c0_38 = arith.constant 0 : index
    %130 = vector.load %arg5[%c128, %c0_38] : memref<256x128xbf16, #tpu.memory_space<vmem>>, vector<128x128xbf16>
    %cst_39 = arith.constant dense<0.000000e+00> : vector<512x128xf32>
    %131 = tpu.matmul %129, %130, %cst_39 {dimension_numbers = #tpu.dot_dimension_numbers<[1], [0], [0], [1], [0, 0, 1, 1], [], []>} : vector<512x128xbf16>, vector<128x128xbf16>, vector<512x128xf32> -> vector<512x128xf32>
    %132 = arith.addf %128, %131 : vector<512x128xf32>
    %133 = vector.broadcast %9 : vector<1x128xf32> to vector<512x128xf32>
    %134 = arith.addf %132, %133 : vector<512x128xf32>
    %c0_40 = arith.constant 0 : index
    %c0_41 = arith.constant 0 : index
    %135 = vector.load %arg7[%c0_40, %c0_41] : memref<512x128xf32, #tpu.memory_space<vmem>>, vector<512x128xf32>
    tpu.vector_store %arg7[%c0_40, %c0_41], %134 {strides = array<i32>} : memref<512x128xf32, #tpu.memory_space<vmem>>, vector<512x128xf32>,
    return
  }
  func.func @transform_0(%arg0: i32) -> (i32, i32) {
    %c0_i32 = arith.constant 0 : i32
    %c0_i32_0 = arith.constant 0 : i32
    return %arg0, %c0_i32 : i32, i32
  }
  func.func @transform_1(%arg0: i32) -> (i32, i32) {
    %c0_i32 = arith.constant 0 : i32
    %c0_i32_0 = arith.constant 0 : i32
    %c0_i32_1 = arith.constant 0 : i32
    return %c0_i32, %c0_i32_0 : i32, i32
  }
  func.func @transform_2(%arg0: i32) -> (i32, i32) {
    %c0_i32 = arith.constant 0 : i32
    %c0_i32_0 = arith.constant 0 : i32
    %c0_i32_1 = arith.constant 0 : i32
    return %c0_i32, %c0_i32_0 : i32, i32
  }
  func.func @transform_3(%arg0: i32) -> (i32, i32) {
    %c0_i32 = arith.constant 0 : i32
    %c0_i32_0 = arith.constant 0 : i32
    %c0_i32_1 = arith.constant 0 : i32
    return %c0_i32, %c0_i32_0 : i32, i32
  }
  func.func @transform_4(%arg0: i32) -> (i32, i32) {
    %c0_i32 = arith.constant 0 : i32
    %c0_i32_0 = arith.constant 0 : i32
    %c0_i32_1 = arith.constant 0 : i32
    return %c0_i32, %c0_i32_0 : i32, i32
  }
  func.func @transform_5(%arg0: i32) -> (i32, i32) {
    %c0_i32 = arith.constant 0 : i32
    %c0_i32_0 = arith.constant 0 : i32
    %c0_i32_1 = arith.constant 0 : i32
    return %c0_i32, %c0_i32_0 : i32, i32
  }
  func.func @transform_6(%arg0: i32) -> (i32, i32) {
    %c0_i32 = arith.constant 0 : i32
    %c0_i32_0 = arith.constant 0 : i32
    return %arg0, %c0_i32 : i32, i32
  }
}

</mosaic_0001>

<llo_original>
// kernel: _lambda_.1
$region0: #{_lambda_.1}
  #allocation0 [shape = 'u32[]', space=smem, size = 0x4, offset = 0x4, fixed_abs, tag = 'smem constant byte address 0x4 - core index']
  #allocation1 [shape = 'u32[144,128]{1,0:T(1,128)}', space=vmem, size = 0x12000, scoped, tag = 'internal scratch']
  %s0 = inlined_call_operand.vmem [shape: bf16[512,128], index: 0, kind: input, shape index: {}]
  %s1 = inlined_call_operand.vmem [shape: bf16[128,128], index: 1, kind: input, shape index: {}]
  %s2 = inlined_call_operand.vmem [shape: bf16[128,256], index: 2, kind: input, shape index: {}]
  %s3 = inlined_call_operand.vmem [shape: bf16[256,256], index: 3, kind: input, shape index: {}]
  %s4 = inlined_call_operand.vmem [shape: bf16[256,128], index: 4, kind: input, shape index: {}]
  %s5 = inlined_call_operand.vmem [shape: f32[12,256], index: 5, kind: input, shape index: {}]
  %s6 = inlined_call_operand.vmem [shape: f32[512,128], index: 6, kind: output, shape index: {}]
  %s7 = sld [smem:[#allocation0]]
  $region34: #{_lambda_.1} parent=0
    _
  %s9 = ssub.s32 1, %s7
  %s10 = scalar_select 0, %s9, %s7
  // Predicated region
  $region2: #{_lambda_.1} parent=0 // pred_check
    _
  $region3: #{_lambda_.1} parent=0 // pred_check_branch
    %12 = sbr.rel (0) target = $region5
  $region4: #{_lambda_.1} parent=0 // pred_region
    _
  $region5: #{_lambda_.1} parent=0 // pred_fallthru
    _
  // Predicated region
  $region6: #{_lambda_.1} parent=0 // pred_check
    _
  $region7: #{_lambda_.1} parent=0 // pred_check_branch
    %14 = sbr.rel (0) target = $region9
  $region8: #{_lambda_.1} parent=0 // pred_region
    _
  $region9: #{_lambda_.1} parent=0 // pred_fallthru
    _
  // Predicated region
  $region10: #{_lambda_.1} parent=0 // pred_check
    _
  $region11: #{_lambda_.1} parent=0 // pred_check_branch
    %16 = sbr.rel (0) target = $region13
  $region12: #{_lambda_.1} parent=0 // pred_region
    _
  $region13: #{_lambda_.1} parent=0 // pred_fallthru
    _
  // Predicated region
  $region14: #{_lambda_.1} parent=0 // pred_check
    _
  $region15: #{_lambda_.1} parent=0 // pred_check_branch
    %18 = sbr.rel (0) target = $region17
  $region16: #{_lambda_.1} parent=0 // pred_region
    _
  $region17: #{_lambda_.1} parent=0 // pred_fallthru
    _
  // Predicated region
  $region18: #{_lambda_.1} parent=0 // pred_check
    _
  $region19: #{_lambda_.1} parent=0 // pred_check_branch
    %20 = sbr.rel (0) target = $region21
  $region20: #{_lambda_.1} parent=0 // pred_region
    _
  $region21: #{_lambda_.1} parent=0 // pred_fallthru
    _
  // Predicated region
  $region22: #{_lambda_.1} parent=0 // pred_check
    _
  $region23: #{_lambda_.1} parent=0 // pred_check_branch
    %22 = sbr.rel (0) target = $region25
  $region24: #{_lambda_.1} parent=0 // pred_region
    _
  $region25: #{_lambda_.1} parent=0 // pred_fallthru
    _
  %v24 = vld [vmem:[%s0] sm:$0xf]
  %v25 = vld [vmem:[%s0 + $0x4] sm:$0xf]
  %v26 = vld [vmem:[%s0 + $0x8] sm:$0xf]
  %v27 = vld [vmem:[%s0 + $0xc] sm:$0xf]
  %v28 = vld [vmem:[%s0 + $0x10] sm:$0xf]
  %v29 = vld [vmem:[%s0 + $0x14] sm:$0xf]
  %v30 = vld [vmem:[%s0 + $0x18] sm:$0xf]
  %v31 = vld [vmem:[%s0 + $0x1c] sm:$0xf]
  %v32 = vld [vmem:[%s0 + $0x20] sm:$0xf]
  %v33 = vld [vmem:[%s0 + $0x24] sm:$0xf]
  %v34 = vld [vmem:[%s0 + $0x28] sm:$0xf]
  %v35 = vld [vmem:[%s0 + $0x2c] sm:$0xf]
  %v36 = vld [vmem:[%s0 + $0x30] sm:$0xf]
  %v37 = vld [vmem:[%s0 + $0x34] sm:$0xf]
  %v38 = vld [vmem:[%s0 + $0x38] sm:$0xf]
  %v39 = vld [vmem:[%s0 + $0x3c] sm:$0xf]
  %v40 = vld [vmem:[%s0 + $0x40] sm:$0xf]
  %v41 = vld [vmem:[%s0 + $0x44] sm:$0xf]
  %v42 = vld [vmem:[%s0 + $0x48] sm:$0xf]
  %v43 = vld [vmem:[%s0 + $0x4c] sm:$0xf]
  %v44 = vld [vmem:[%s0 + $0x50] sm:$0xf]
  %v45 = vld [vmem:[%s0 + $0x54] sm:$0xf]
  %v46 = vld [vmem:[%s0 + $0x58] sm:$0xf]
  %v47 = vld [vmem:[%s0 + $0x5c] sm:$0xf]
  %v48 = vld [vmem:[%s0 + $0x60] sm:$0xf]
  %v49 = vld [vmem:[%s0 + $0x64] sm:$0xf]
  %v50 = vld [vmem:[%s0 + $0x68] sm:$0xf]
  %v51 = vld [vmem:[%s0 + $0x6c] sm:$0xf]
  %v52 = vld [vmem:[%s0 + $0x70] sm:$0xf]
  %v53 = vld [vmem:[%s0 + $0x74] sm:$0xf]
  %v54 = vld [vmem:[%s0 + $0x78] sm:$0xf]
  %v55 = vld [vmem:[%s0 + $0x7c] sm:$0xf]
  %v56 = vld [vmem:[%s0 + $0x80] sm:$0xf]
  %v57 = vld [vmem:[%s0 + $0x84] sm:$0xf]
  %v58 = vld [vmem:[%s0 + $0x88] sm:$0xf]
  %v59 = vld [vmem:[%s0 + $0x8c] sm:$0xf]
  %v60 = vld [vmem:[%s0 + $0x90] sm:$0xf]
  %v61 = vld [vmem:[%s0 + $0x94] sm:$0xf]
  %v62 = vld [vmem:[%s0 + $0x98] sm:$0xf]
  %v63 = vld [vmem:[%s0 + $0x9c] sm:$0xf]
  %v64 = vld [vmem:[%s0 + $0xa0] sm:$0xf]
  %v65 = vld [vmem:[%s0 + $0xa4] sm:$0xf]
  %v66 = vld [vmem:[%s0 + $0xa8] sm:$0xf]
  %v67 = vld [vmem:[%s0 + $0xac] sm:$0xf]
  %v68 = vld [vmem:[%s0 + $0xb0] sm:$0xf]
  %v69 = vld [vmem:[%s0 + $0xb4] sm:$0xf]
  %v70 = vld [vmem:[%s0 + $0xb8] sm:$0xf]
  %v71 = vld [vmem:[%s0 + $0xbc] sm:$0xf]
  %v72 = vld [vmem:[%s0 + $0xc0] sm:$0xf]
  %v73 = vld [vmem:[%s0 + $0xc4] sm:$0xf]
  %v74 = vld [vmem:[%s0 + $0xc8] sm:$0xf]
  %v75 = vld [vmem:[%s0 + $0xcc] sm:$0xf]
  %v76 = vld [vmem:[%s0 + $0xd0] sm:$0xf]
  %v77 = vld [vmem:[%s0 + $0xd4] sm:$0xf]
  %v78 = vld [vmem:[%s0 + $0xd8] sm:$0xf]
  %v79 = vld [vmem:[%s0 + $0xdc] sm:$0xf]
  %v80 = vld [vmem:[%s0 + $0xe0] sm:$0xf]
  %v81 = vld [vmem:[%s0 + $0xe4] sm:$0xf]
  %v82 = vld [vmem:[%s0 + $0xe8] sm:$0xf]
  %v83 = vld [vmem:[%s0 + $0xec] sm:$0xf]
  %v84 = vld [vmem:[%s0 + $0xf0] sm:$0xf]
  %v85 = vld [vmem:[%s0 + $0xf4] sm:$0xf]
  %v86 = vld [vmem:[%s0 + $0xf8] sm:$0xf]
  %v87 = vld [vmem:[%s0 + $0xfc] sm:$0xf]
  %v88 = vld [vmem:[%s5] sm:$0xff]
  %v89 = vld [vmem:[%s5 + $0x10] sm:$0xf]
  %v90 = vld [vmem:[%s5 + $0x18] sm:$0xf]
  %v91 = vld [vmem:[%s1] sm:$0xf]
  %v92 = vld [vmem:[%s1 + $0x4] sm:$0xf]
  %v93 = vld [vmem:[%s1 + $0x8] sm:$0xf]
  %v94 = vld [vmem:[%s1 + $0xc] sm:$0xf]
  %v95 = vld [vmem:[%s1 + $0x10] sm:$0xf]
  %v96 = vld [vmem:[%s1 + $0x14] sm:$0xf]
  %v97 = vld [vmem:[%s1 + $0x18] sm:$0xf]
  %v98 = vld [vmem:[%s1 + $0x1c] sm:$0xf]
  %v99 = vld [vmem:[%s1 + $0x20] sm:$0xf]
  %v100 = vld [vmem:[%s1 + $0x24] sm:$0xf]
  %v101 = vld [vmem:[%s1 + $0x28] sm:$0xf]
  %v102 = vld [vmem:[%s1 + $0x2c] sm:$0xf]
  %v103 = vld [vmem:[%s1 + $0x30] sm:$0xf]
  %v104 = vld [vmem:[%s1 + $0x34] sm:$0xf]
  %v105 = vld [vmem:[%s1 + $0x38] sm:$0xf]
  %v106 = vld [vmem:[%s1 + $0x3c] sm:$0xf]
  %v107 = vlaneseq
  %v108 = vshrl.u32 %v107, 7
  %v109 = vsub.s32 0, %v108
  %v110 = vrot.slane %v88, %v109
  %v175 = vunpack.c.l.b16 %v24
  %v176 = vunpack.c.l.b16 %v25
  %v177 = vunpack.c.l.b16 %v26
  %v178 = vunpack.c.l.b16 %v27
  %v179 = vunpack.c.l.b16 %v28
  %v180 = vunpack.c.l.b16 %v29
  %v181 = vunpack.c.l.b16 %v30
  %v182 = vunpack.c.l.b16 %v31
  %v183 = vunpack.c.l.b16 %v32
  %v184 = vunpack.c.l.b16 %v33
  %v185 = vunpack.c.l.b16 %v34
  %v186 = vunpack.c.l.b16 %v35
  %v187 = vunpack.c.l.b16 %v36
  %v188 = vunpack.c.l.b16 %v37
  %v189 = vunpack.c.l.b16 %v38
  %v190 = vunpack.c.l.b16 %v39
  %v191 = vunpack.c.l.b16 %v40
  %v192 = vunpack.c.l.b16 %v41
  %v193 = vunpack.c.l.b16 %v42
  %v194 = vunpack.c.l.b16 %v43
  %v195 = vunpack.c.l.b16 %v44
  %v196 = vunpack.c.l.b16 %v45
  %v197 = vunpack.c.l.b16 %v46
  %v198 = vunpack.c.l.b16 %v47
  %v199 = vunpack.c.l.b16 %v48
  %v200 = vunpack.c.l.b16 %v49
  %v201 = vunpack.c.l.b16 %v50
  %v202 = vunpack.c.l.b16 %v51
  %v203 = vunpack.c.l.b16 %v52
  %v204 = vunpack.c.l.b16 %v53
  %v205 = vunpack.c.l.b16 %v54
  %v206 = vunpack.c.l.b16 %v55
  %v207 = vunpack.c.l.b16 %v56
  %v208 = vunpack.c.l.b16 %v57
  %v209 = vunpack.c.l.b16 %v58
  %v210 = vunpack.c.l.b16 %v59
  %v211 = vunpack.c.l.b16 %v60
  %v212 = vunpack.c.l.b16 %v61
  %v213 = vunpack.c.l.b16 %v62
  %v214 = vunpack.c.l.b16 %v63
  %v215 = vunpack.c.l.b16 %v64
  %v216 = vunpack.c.l.b16 %v65
  %v217 = vunpack.c.l.b16 %v66
  %v218 = vunpack.c.l.b16 %v67
  %v219 = vunpack.c.l.b16 %v68
  %v220 = vunpack.c.l.b16 %v69
  %v221 = vunpack.c.l.b16 %v70
  %v222 = vunpack.c.l.b16 %v71
  %v223 = vunpack.c.l.b16 %v72
  %v224 = vunpack.c.l.b16 %v73
  %v225 = vunpack.c.l.b16 %v74
  %v226 = vunpack.c.l.b16 %v75
  %v227 = vunpack.c.l.b16 %v76
  %v228 = vunpack.c.l.b16 %v77
  %v229 = vunpack.c.l.b16 %v78
  %v230 = vunpack.c.l.b16 %v79
  %v231 = vunpack.c.l.b16 %v80
  %v232 = vunpack.c.l.b16 %v81
  %v233 = vunpack.c.l.b16 %v82
  %v234 = vunpack.c.l.b16 %v83
  %v235 = vunpack.c.l.b16 %v84
  %v236 = vunpack.c.l.b16 %v85
  %v237 = vunpack.c.l.b16 %v86
  %v238 = vunpack.c.l.b16 %v87
  %v239 = vpack.c.b16 %v176, %v175
  %v240 = vpack.c.b16 %v178, %v177
  %v241 = vpack.c.b16 %v180, %v179
  %v242 = vpack.c.b16 %v182, %v181
  %v243 = vpack.c.b16 %v184, %v183
  %v244 = vpack.c.b16 %v186, %v185
  %v245 = vpack.c.b16 %v188, %v187
  %v246 = vpack.c.b16 %v190, %v189
  %v247 = vpack.c.b16 %v192, %v191
  %v248 = vpack.c.b16 %v194, %v193
  %v249 = vpack.c.b16 %v196, %v195
  %v250 = vpack.c.b16 %v198, %v197
  %v251 = vpack.c.b16 %v200, %v199
  %v252 = vpack.c.b16 %v202, %v201
  %v253 = vpack.c.b16 %v204, %v203
  %v254 = vpack.c.b16 %v206, %v205
  %v255 = vpack.c.b16 %v208, %v207
  %v256 = vpack.c.b16 %v210, %v209
  %v257 = vpack.c.b16 %v212, %v211
  %v258 = vpack.c.b16 %v214, %v213
  %v259 = vpack.c.b16 %v216, %v215
  %v260 = vpack.c.b16 %v218, %v217
  %v261 = vpack.c.b16 %v220, %v219
  %v262 = vpack.c.b16 %v222, %v221
  %v263 = vpack.c.b16 %v224, %v223
  %v264 = vpack.c.b16 %v226, %v225
  %v265 = vpack.c.b16 %v228, %v227
  %v266 = vpack.c.b16 %v230, %v229
  %v267 = vpack.c.b16 %v232, %v231
  %v268 = vpack.c.b16 %v234, %v233
  %v269 = vpack.c.b16 %v236, %v235
  %v270 = vpack.c.b16 %v238, %v237
  %v319 = vunpack.c.l.b16 %v91
  %v320 = vunpack.c.l.b16 %v92
  %v321 = vunpack.c.l.b16 %v93
  %v322 = vunpack.c.l.b16 %v94
  %v323 = vunpack.c.l.b16 %v95
  %v324 = vunpack.c.l.b16 %v96
  %v325 = vunpack.c.l.b16 %v97
  %v326 = vunpack.c.l.b16 %v98
  %v327 = vunpack.c.l.b16 %v99
  %v328 = vunpack.c.l.b16 %v100
  %v329 = vunpack.c.l.b16 %v101
  %v330 = vunpack.c.l.b16 %v102
  %v331 = vunpack.c.l.b16 %v103
  %v332 = vunpack.c.l.b16 %v104
  %v333 = vunpack.c.l.b16 %v105
  %v334 = vunpack.c.l.b16 %v106
  %v335 = vpack.c.b16 %v320, %v319
  %v336 = vpack.c.b16 %v322, %v321
  %v337 = vpack.c.b16 %v324, %v323
  %v338 = vpack.c.b16 %v326, %v325
  %v339 = vpack.c.b16 %v328, %v327
  %v340 = vpack.c.b16 %v330, %v329
  %v341 = vpack.c.b16 %v332, %v331
  %v342 = vpack.c.b16 %v334, %v333
  %351 = vmatprep.subr.bf16.mxu0 0
  %352 = vmatpush1.bf16.msra.mxu0 %v335
  %353 = vmatprep.subr.bf16.mxu0 0
  %354 = vmatpush1.bf16.msra.mxu0 %v336
  %355 = vmatprep.subr.bf16.mxu0 0
  %356 = vmatpush1.bf16.msra.mxu0 %v337
  %357 = vmatprep.subr.bf16.mxu0 0
  %358 = vmatpush1.bf16.msra.mxu0 %v338
  %359 = vmatprep.subr.bf16.mxu0 0
  %360 = vmatpush1.bf16.msra.mxu0 %v339
  %361 = vmatprep.subr.bf16.mxu0 0
  %362 = vmatpush1.bf16.msra.mxu0 %v340
  %363 = vmatprep.subr.bf16.mxu0 0
  %364 = vmatpush1.bf16.msra.mxu0 %v341
  %365 = vmatprep.subr.bf16.mxu0 0
  %366 = vmatpush1.bf16.msra.mxu0 %v342
  %367 = vmatprep.subr.bf16.mxu0 0
  %368 = vmatpush1.bf16.msra.mxu0 0
  %369 = vmatprep.subr.bf16.mxu0 0
  %370 = vmatpush1.bf16.msra.mxu0 0
  %371 = vmatprep.subr.bf16.mxu0 0
  %372 = vmatpush1.bf16.msra.mxu0 0
  %373 = vmatprep.subr.bf16.mxu0 0
  %374 = vmatpush1.bf16.msra.mxu0 0
  %375 = vmatprep.subr.bf16.mxu0 0
  %376 = vmatpush1.bf16.msra.mxu0 0
  %377 = vmatprep.subr.bf16.mxu0 0
  %378 = vmatpush1.bf16.msra.mxu0 0
  %379 = vmatprep.subr.bf16.mxu0 0
  %380 = vmatpush1.bf16.msra.mxu0 0
  %381 = vmatprep.subr.bf16.mxu0 0
  %382 = vmatpush1.bf16.msra.mxu0 0
  %383 = vmatprep.mubr.bf16.mxu0 0
  %384 = vmatmul.mubr.bf16.gmra.mrb[0].mxu0 %v239
  %v385 = vpop.f32.mrb[0].mxu0
  %v386 = vadd.f32 %v110, %v385
  %v387 = vpop.f32.mrb[0].mxu0
  %v388 = vpop.f32.mrb[0].mxu0
  %v389 = vadd.f32 %v110, %v388
  %v390 = vpop.f32.mrb[0].mxu0
  %391 = vmatprep.mubr.bf16.mxu0 0
  %392 = vmatmul.mubr.bf16.gmra.mrb[0].mxu0 %v240
  %v393 = vpop.f32.mrb[0].mxu0
  %v394 = vadd.f32 %v110, %v393
  %v395 = vpop.f32.mrb[0].mxu0
  %v396 = vpop.f32.mrb[0].mxu0
  %v397 = vadd.f32 %v110, %v396
  %v398 = vpop.f32.mrb[0].mxu0
  %399 = vmatprep.mubr.bf16.mxu0 0
  %400 = vmatmul.mubr.bf16.gmra.mrb[0].mxu0 %v241
  %v401 = vpop.f32.mrb[0].mxu0
  %v402 = vadd.f32 %v110, %v401
  %v403 = vpop.f32.mrb[0].mxu0
  %v404 = vpop.f32.mrb[0].mxu0
  %v405 = vadd.f32 %v110, %v404
  %v406 = vpop.f32.mrb[0].mxu0
  %407 = vmatprep.mubr.bf16.mxu0 0
  %408 = vmatmul.mubr.bf16.gmra.mrb[0].mxu0 %v242
  %v409 = vpop.f32.mrb[0].mxu0
  %v410 = vadd.f32 %v110, %v409
  %v411 = vpop.f32.mrb[0].mxu0
  %v412 = vpop.f32.mrb[0].mxu0
  %v413 = vadd.f32 %v110, %v412
  %v414 = vpop.f32.mrb[0].mxu0
  %415 = vmatprep.mubr.bf16.mxu0 0
  %416 = vmatmul.mubr.bf16.gmra.mrb[0].mxu0 %v243
  %v417 = vpop.f32.mrb[0].mxu0
  %v418 = vadd.f32 %v110, %v417
  %v419 = vpop.f32.mrb[0].mxu0
  %v420 = vpop.f32.mrb[0].mxu0
  %v421 = vadd.f32 %v110, %v420
  %v422 = vpop.f32.mrb[0].mxu0
  %423 = vmatprep.mubr.bf16.mxu0 0
  %424 = vmatmul.mubr.bf16.gmra.mrb[0].mxu0 %v244
  %v425 = vpop.f32.mrb[0].mxu0
  %v426 = vadd.f32 %v110, %v425
  %v427 = vpop.f32.mrb[0].mxu0
  %v428 = vpop.f32.mrb[0].mxu0
  %v429 = vadd.f32 %v110, %v428
  %v430 = vpop.f32.mrb[0].mxu0
  %431 = vmatprep.mubr.bf16.mxu0 0
  %432 = vmatmul.mubr.bf16.gmra.mrb[0].mxu0 %v245
  %v433 = vpop.f32.mrb[0].mxu0
  %v434 = vadd.f32 %v110, %v433
  %v435 = vpop.f32.mrb[0].mxu0
  %v436 = vpop.f32.mrb[0].mxu0
  %v437 = vadd.f32 %v110, %v436
  %v438 = vpop.f32.mrb[0].mxu0
  %439 = vmatprep.mubr.bf16.mxu0 0
  %440 = vmatmul.mubr.bf16.gmra.mrb[0].mxu0 %v246
  %v441 = vpop.f32.mrb[0].mxu0
  %v442 = vadd.f32 %v110, %v441
  %v443 = vpop.f32.mrb[0].mxu0
  %v444 = vpop.f32.mrb[0].mxu0
  %v445 = vadd.f32 %v110, %v444
  %v446 = vpop.f32.mrb[0].mxu0
  %447 = vmatprep.mubr.bf16.mxu0 0
  %448 = vmatmul.mubr.bf16.gmra.mrb[0].mxu0 %v247
  %v449 = vpop.f32.mrb[0].mxu0
  %v450 = vadd.f32 %v110, %v449
  %v451 = vpop.f32.mrb[0].mxu0
  %v452 = vpop.f32.mrb[0].mxu0
  %v453 = vadd.f32 %v110, %v452
  %v454 = vpop.f32.mrb[0].mxu0
  %455 = vmatprep.mubr.bf16.mxu0 0
  %456 = vmatmul.mubr.bf16.gmra.mrb[0].mxu0 %v248
  %v457 = vpop.f32.mrb[0].mxu0
  %v458 = vadd.f32 %v110, %v457
  %v459 = vpop.f32.mrb[0].mxu0
  %v460 = vpop.f32.mrb[0].mxu0
  %v461 = vadd.f32 %v110, %v460
  %v462 = vpop.f32.mrb[0].mxu0
  %463 = vmatprep.mubr.bf16.mxu0 0
  %464 = vmatmul.mubr.bf16.gmra.mrb[0].mxu0 %v249
  %v465 = vpop.f32.mrb[0].mxu0
  %v466 = vadd.f32 %v110, %v465
  %v467 = vpop.f32.mrb[0].mxu0
  %v468 = vpop.f32.mrb[0].mxu0
  %v469 = vadd.f32 %v110, %v468
  %v470 = vpop.f32.mrb[0].mxu0
  %471 = vmatprep.mubr.bf16.mxu0 0
  %472 = vmatmul.mubr.bf16.gmra.mrb[0].mxu0 %v250
  %v473 = vpop.f32.mrb[0].mxu0
  %v474 = vadd.f32 %v110, %v473
  %v475 = vpop.f32.mrb[0].mxu0
  %v476 = vpop.f32.mrb[0].mxu0
  %v477 = vadd.f32 %v110, %v476
  %v478 = vpop.f32.mrb[0].mxu0
  %479 = vmatprep.mubr.bf16.mxu0 0
  %480 = vmatmul.mubr.bf16.gmra.mrb[0].mxu0 %v251
  %v481 = vpop.f32.mrb[0].mxu0
  %v482 = vadd.f32 %v110, %v481
  %v483 = vpop.f32.mrb[0].mxu0
  %v484 = vpop.f32.mrb[0].mxu0
  %v485 = vadd.f32 %v110, %v484
  %v486 = vpop.f32.mrb[0].mxu0
  %487 = vmatprep.mubr.bf16.mxu0 0
  %488 = vmatmul.mubr.bf16.gmra.mrb[0].mxu0 %v252
  %v489 = vpop.f32.mrb[0].mxu0
  %v490 = vadd.f32 %v110, %v489
  %v491 = vpop.f32.mrb[0].mxu0
  %v492 = vpop.f32.mrb[0].mxu0
  %v493 = vadd.f32 %v110, %v492
  %v494 = vpop.f32.mrb[0].mxu0
  %495 = vmatprep.mubr.bf16.mxu0 0
  %496 = vmatmul.mubr.bf16.gmra.mrb[0].mxu0 %v253
  %v497 = vpop.f32.mrb[0].mxu0
  %v498 = vadd.f32 %v110, %v497
  %v499 = vpop.f32.mrb[0].mxu0
  %v500 = vpop.f32.mrb[0].mxu0
  %v501 = vadd.f32 %v110, %v500
  %v502 = vpop.f32.mrb[0].mxu0
  %503 = vmatprep.mubr.bf16.mxu0 0
  %504 = vmatmul.mubr.bf16.gmra.mrb[0].mxu0 %v254
  %v505 = vpop.f32.mrb[0].mxu0
  %v506 = vadd.f32 %v110, %v505
  %v507 = vpop.f32.mrb[0].mxu0
  %v508 = vpop.f32.mrb[0].mxu0
  %v509 = vadd.f32 %v110, %v508
  %v510 = vpop.f32.mrb[0].mxu0
  %511 = vmatprep.mubr.bf16.mxu0 0
  %512 = vmatmul.mubr.bf16.gmra.mrb[0].mxu0 %v255
  %v513 = vpop.f32.mrb[0].mxu0
  %v514 = vadd.f32 %v110, %v513
  %v515 = vpop.f32.mrb[0].mxu0
  %v516 = vpop.f32.mrb[0].mxu0
  %v517 = vadd.f32 %v110, %v516
  %v518 = vpop.f32.mrb[0].mxu0
  %519 = vmatprep.mubr.bf16.mxu0 0
  %520 = vmatmul.mubr.bf16.gmra.mrb[0].mxu0 %v256
  %v521 = vpop.f32.mrb[0].mxu0
  %v522 = vadd.f32 %v110, %v521
  %v523 = vpop.f32.mrb[0].mxu0
  %v524 = vpop.f32.mrb[0].mxu0
  %v525 = vadd.f32 %v110, %v524
  %v526 = vpop.f32.mrb[0].mxu0
  %527 = vmatprep.mubr.bf16.mxu0 0
  %528 = vmatmul.mubr.bf16.gmra.mrb[0].mxu0 %v257
  %v529 = vpop.f32.mrb[0].mxu0
  %v530 = vadd.f32 %v110, %v529
  %v531 = vpop.f32.mrb[0].mxu0
  %v532 = vpop.f32.mrb[0].mxu0
  %v533 = vadd.f32 %v110, %v532
  %v534 = vpop.f32.mrb[0].mxu0
  %535 = vmatprep.mubr.bf16.mxu0 0
  %536 = vmatmul.mubr.bf16.gmra.mrb[0].mxu0 %v258
  %v537 = vpop.f32.mrb[0].mxu0
  %v538 = vadd.f32 %v110, %v537
  %v539 = vpop.f32.mrb[0].mxu0
  %v540 = vpop.f32.mrb[0].mxu0
  %v541 = vadd.f32 %v110, %v540
  %v542 = vpop.f32.mrb[0].mxu0
  %543 = vmatprep.mubr.bf16.mxu0 0
  %544 = vmatmul.mubr.bf16.gmra.mrb[0].mxu0 %v259
  %v545 = vpop.f32.mrb[0].mxu0
  %v546 = vadd.f32 %v110, %v545
  %v547 = vpop.f32.mrb[0].mxu0
  %v548 = vpop.f32.mrb[0].mxu0
  %v549 = vadd.f32 %v110, %v548
  %v550 = vpop.f32.mrb[0].mxu0
  %551 = vmatprep.mubr.bf16.mxu0 0
  %552 = vmatmul.mubr.bf16.gmra.mrb[0].mxu0 %v260
  %v553 = vpop.f32.mrb[0].mxu0
  %v554 = vadd.f32 %v110, %v553
  %v555 = vpop.f32.mrb[0].mxu0
  %v556 = vpop.f32.mrb[0].mxu0
  %v557 = vadd.f32 %v110, %v556
  %v558 = vpop.f32.mrb[0].mxu0
  %559 = vmatprep.mubr.bf16.mxu0 0
  %560 = vmatmul.mubr.bf16.gmra.mrb[0].mxu0 %v261
  %v561 = vpop.f32.mrb[0].mxu0
  %v562 = vadd.f32 %v110, %v561
  %v563 = vpop.f32.mrb[0].mxu0
  %v564 = vpop.f32.mrb[0].mxu0
  %v565 = vadd.f32 %v110, %v564
  %v566 = vpop.f32.mrb[0].mxu0
  %567 = vmatprep.mubr.bf16.mxu0 0
  %568 = vmatmul.mubr.bf16.gmra.mrb[0].mxu0 %v262
  %v569 = vpop.f32.mrb[0].mxu0
  %v570 = vadd.f32 %v110, %v569
  %v571 = vpop.f32.mrb[0].mxu0
  %v572 = vpop.f32.mrb[0].mxu0
  %v573 = vadd.f32 %v110, %v572
  %v574 = vpop.f32.mrb[0].mxu0
  %575 = vmatprep.mubr.bf16.mxu0 0
  %576 = vmatmul.mubr.bf16.gmra.mrb[0].mxu0 %v263
  %v577 = vpop.f32.mrb[0].mxu0
  %v578 = vadd.f32 %v110, %v577
  %v579 = vpop.f32.mrb[0].mxu0
  %v580 = vpop.f32.mrb[0].mxu0
  %v581 = vadd.f32 %v110, %v580
  %v582 = vpop.f32.mrb[0].mxu0
  %583 = vmatprep.mubr.bf16.mxu0 0
  %584 = vmatmul.mubr.bf16.gmra.mrb[0].mxu0 %v264
  %v585 = vpop.f32.mrb[0].mxu0
  %v586 = vadd.f32 %v110, %v585
  %v587 = vpop.f32.mrb[0].mxu0
  %v588 = vpop.f32.mrb[0].mxu0
  %v589 = vadd.f32 %v110, %v588
  %v590 = vpop.f32.mrb[0].mxu0
  %591 = vmatprep.mubr.bf16.mxu0 0
  %592 = vmatmul.mubr.bf16.gmra.mrb[0].mxu0 %v265
  %v593 = vpop.f32.mrb[0].mxu0
  %v594 = vadd.f32 %v110, %v593
  %v595 = vpop.f32.mrb[0].mxu0
  %v596 = vpop.f32.mrb[0].mxu0
  %v597 = vadd.f32 %v110, %v596
  %v598 = vpop.f32.mrb[0].mxu0
  %599 = vmatprep.mubr.bf16.mxu0 0
  %600 = vmatmul.mubr.bf16.gmra.mrb[0].mxu0 %v266
  %v601 = vpop.f32.mrb[0].mxu0
  %v602 = vadd.f32 %v110, %v601
  %v603 = vpop.f32.mrb[0].mxu0
  %v604 = vpop.f32.mrb[0].mxu0
  %v605 = vadd.f32 %v110, %v604
  %v606 = vpop.f32.mrb[0].mxu0
  %607 = vmatprep.mubr.bf16.mxu0 0
  %608 = vmatmul.mubr.bf16.gmra.mrb[0].mxu0 %v267
  %v609 = vpop.f32.mrb[0].mxu0
  %v610 = vadd.f32 %v110, %v609
  %v611 = vpop.f32.mrb[0].mxu0
  %v612 = vpop.f32.mrb[0].mxu0
  %v613 = vadd.f32 %v110, %v612
  %v614 = vpop.f32.mrb[0].mxu0
  %615 = vmatprep.mubr.bf16.mxu0 0
  %616 = vmatmul.mubr.bf16.gmra.mrb[0].mxu0 %v268
  %v617 = vpop.f32.mrb[0].mxu0
  %v618 = vadd.f32 %v110, %v617
  %v619 = vpop.f32.mrb[0].mxu0
  %v620 = vpop.f32.mrb[0].mxu0
  %v621 = vadd.f32 %v110, %v620
  %v622 = vpop.f32.mrb[0].mxu0
  %623 = vmatprep.mubr.bf16.mxu0 0
  %624 = vmatmul.mubr.bf16.gmra.mrb[0].mxu0 %v269
  %v625 = vpop.f32.mrb[0].mxu0
  %v626 = vadd.f32 %v110, %v625
  %v627 = vpop.f32.mrb[0].mxu0
  %v628 = vpop.f32.mrb[0].mxu0
  %v629 = vadd.f32 %v110, %v628
  %v630 = vpop.f32.mrb[0].mxu0
  %631 = vmatprep.mubr.bf16.mxu0 0
  %632 = vmatmul.mubr.bf16.gmra.mrb[0].mxu0 %v270
  %v633 = vpop.f32.mrb[0].mxu0
  %v634 = vadd.f32 %v110, %v633
  %v635 = vpop.f32.mrb[0].mxu0
  %v636 = vpop.f32.mrb[0].mxu0
  %v637 = vadd.f32 %v110, %v636
  %v638 = vpop.f32.mrb[0].mxu0
  %639 = vdwg.mxu0
  %640 = vadd.xlane.f32.xlu0 %v386
  %v641 = vpop.xlane.xlu0 %640
  %642 = vadd.xlane.f32.xlu0 %v389
  %v643 = vpop.xlane.xlu0 %642
  %644 = vadd.xlane.f32.xlu0 %v394
  %v645 = vpop.xlane.xlu0 %644
  %646 = vadd.xlane.f32.xlu0 %v397
  %v647 = vpop.xlane.xlu0 %646
  %648 = vadd.xlane.f32.xlu0 %v402
  %v649 = vpop.xlane.xlu0 %648
  %650 = vadd.xlane.f32.xlu0 %v405
  %v651 = vpop.xlane.xlu0 %650
  %652 = vadd.xlane.f32.xlu0 %v410
  %v653 = vpop.xlane.xlu0 %652
  %654 = vadd.xlane.f32.xlu0 %v413
  %v655 = vpop.xlane.xlu0 %654
  %656 = vadd.xlane.f32.xlu0 %v418
  %v657 = vpop.xlane.xlu0 %656
  %658 = vadd.xlane.f32.xlu0 %v421
  %v659 = vpop.xlane.xlu0 %658
  %660 = vadd.xlane.f32.xlu0 %v426
  %v661 = vpop.xlane.xlu0 %660
  %662 = vadd.xlane.f32.xlu0 %v429
  %v663 = vpop.xlane.xlu0 %662
  %664 = vadd.xlane.f32.xlu0 %v434
  %v665 = vpop.xlane.xlu0 %664
  %666 = vadd.xlane.f32.xlu0 %v437
  %v667 = vpop.xlane.xlu0 %666
  %668 = vadd.xlane.f32.xlu0 %v442
  %v669 = vpop.xlane.xlu0 %668
  %670 = vadd.xlane.f32.xlu0 %v445
  %v671 = vpop.xlane.xlu0 %670
  %672 = vadd.xlane.f32.xlu0 %v450
  %v673 = vpop.xlane.xlu0 %672
  %674 = vadd.xlane.f32.xlu0 %v453
  %v675 = vpop.xlane.xlu0 %674
  %676 = vadd.xlane.f32.xlu0 %v458
  %v677 = vpop.xlane.xlu0 %676
  %678 = vadd.xlane.f32.xlu0 %v461
  %v679 = vpop.xlane.xlu0 %678
  %680 = vadd.xlane.f32.xlu0 %v466
  %v681 = vpop.xlane.xlu0 %680
  %682 = vadd.xlane.f32.xlu0 %v469
  %v683 = vpop.xlane.xlu0 %682
  %684 = vadd.xlane.f32.xlu0 %v474
  %v685 = vpop.xlane.xlu0 %684
  %686 = vadd.xlane.f32.xlu0 %v477
  %v687 = vpop.xlane.xlu0 %686
  %688 = vadd.xlane.f32.xlu0 %v482
  %v689 = vpop.xlane.xlu0 %688
  %690 = vadd.xlane.f32.xlu0 %v485
  %v691 = vpop.xlane.xlu0 %690
  %692 = vadd.xlane.f32.xlu0 %v490
  %v693 = vpop.xlane.xlu0 %692
  %694 = vadd.xlane.f32.xlu0 %v493
  %v695 = vpop.xlane.xlu0 %694
  %696 = vadd.xlane.f32.xlu0 %v498
  %v697 = vpop.xlane.xlu0 %696
  %698 = vadd.xlane.f32.xlu0 %v501
  %v699 = vpop.xlane.xlu0 %698
  %700 = vadd.xlane.f32.xlu0 %v506
  %v701 = vpop.xlane.xlu0 %700
  %702 = vadd.xlane.f32.xlu0 %v509
  %v703 = vpop.xlane.xlu0 %702
  %704 = vadd.xlane.f32.xlu0 %v514
  %v705 = vpop.xlane.xlu0 %704
  %706 = vadd.xlane.f32.xlu0 %v517
  %v707 = vpop.xlane.xlu0 %706
  %708 = vadd.xlane.f32.xlu0 %v522
  %v709 = vpop.xlane.xlu0 %708
  %710 = vadd.xlane.f32.xlu0 %v525
  %v711 = vpop.xlane.xlu0 %710
  %712 = vadd.xlane.f32.xlu0 %v530
  %v713 = vpop.xlane.xlu0 %712
  %714 = vadd.xlane.f32.xlu0 %v533
  %v715 = vpop.xlane.xlu0 %714
  %716 = vadd.xlane.f32.xlu0 %v538
  %v717 = vpop.xlane.xlu0 %716
  %718 = vadd.xlane.f32.xlu0 %v541
  %v719 = vpop.xlane.xlu0 %718
  %720 = vadd.xlane.f32.xlu0 %v546
  %v721 = vpop.xlane.xlu0 %720
  %722 = vadd.xlane.f32.xlu0 %v549
  %v723 = vpop.xlane.xlu0 %722
  %724 = vadd.xlane.f32.xlu0 %v554
  %v725 = vpop.xlane.xlu0 %724
  %726 = vadd.xlane.f32.xlu0 %v557
  %v727 = vpop.xlane.xlu0 %726
  %728 = vadd.xlane.f32.xlu0 %v562
  %v729 = vpop.xlane.xlu0 %728
  %730 = vadd.xlane.f32.xlu0 %v565
  %v731 = vpop.xlane.xlu0 %730
  %732 = vadd.xlane.f32.xlu0 %v570
  %v733 = vpop.xlane.xlu0 %732
  %734 = vadd.xlane.f32.xlu0 %v573
  %v735 = vpop.xlane.xlu0 %734
  %736 = vadd.xlane.f32.xlu0 %v578
  %v737 = vpop.xlane.xlu0 %736
  %738 = vadd.xlane.f32.xlu0 %v581
  %v739 = vpop.xlane.xlu0 %738
  %740 = vadd.xlane.f32.xlu0 %v586
  %v741 = vpop.xlane.xlu0 %740
  %742 = vadd.xlane.f32.xlu0 %v589
  %v743 = vpop.xlane.xlu0 %742
  %744 = vadd.xlane.f32.xlu0 %v594
  %v745 = vpop.xlane.xlu0 %744
  %746 = vadd.xlane.f32.xlu0 %v597
  %v747 = vpop.xlane.xlu0 %746
  %748 = vadd.xlane.f32.xlu0 %v602
  %v749 = vpop.xlane.xlu0 %748
  %750 = vadd.xlane.f32.xlu0 %v605
  %v751 = vpop.xlane.xlu0 %750
  %752 = vadd.xlane.f32.xlu0 %v610
  %v753 = vpop.xlane.xlu0 %752
  %754 = vadd.xlane.f32.xlu0 %v613
  %v755 = vpop.xlane.xlu0 %754
  %756 = vadd.xlane.f32.xlu0 %v618
  %v757 = vpop.xlane.xlu0 %756
  %758 = vadd.xlane.f32.xlu0 %v621
  %v759 = vpop.xlane.xlu0 %758
  %760 = vadd.xlane.f32.xlu0 %v626
  %v761 = vpop.xlane.xlu0 %760
  %762 = vadd.xlane.f32.xlu0 %v629
  %v763 = vpop.xlane.xlu0 %762
  %764 = vadd.xlane.f32.xlu0 %v634
  %v765 = vpop.xlane.xlu0 %764
  %766 = vadd.xlane.f32.xlu0 %v637
  %v767 = vpop.xlane.xlu0 %766
  %v768 = vrcp.pop 128.0
  %v769 = vmul.f32 %v641, %v768
  %v770 = vmul.f32 %v643, %v768
  %v771 = vmul.f32 %v645, %v768
  %v772 = vmul.f32 %v647, %v768
  %v773 = vmul.f32 %v649, %v768
  %v774 = vmul.f32 %v651, %v768
  %v775 = vmul.f32 %v653, %v768
  %v776 = vmul.f32 %v655, %v768
  %v777 = vmul.f32 %v657, %v768
  %v778 = vmul.f32 %v659, %v768
  %v779 = vmul.f32 %v661, %v768
  %v780 = vmul.f32 %v663, %v768
  %v781 = vmul.f32 %v665, %v768
  %v782 = vmul.f32 %v667, %v768
  %v783 = vmul.f32 %v669, %v768
  %v784 = vmul.f32 %v671, %v768
  %v785 = vmul.f32 %v673, %v768
  %v786 = vmul.f32 %v675, %v768
  %v787 = vmul.f32 %v677, %v768
  %v788 = vmul.f32 %v679, %v768
  %v789 = vmul.f32 %v681, %v768
  %v790 = vmul.f32 %v683, %v768
  %v791 = vmul.f32 %v685, %v768
  %v792 = vmul.f32 %v687, %v768
  %v793 = vmul.f32 %v689, %v768
  %v794 = vmul.f32 %v691, %v768
  %v795 = vmul.f32 %v693, %v768
  %v796 = vmul.f32 %v695, %v768
  %v797 = vmul.f32 %v697, %v768
  %v798 = vmul.f32 %v699, %v768
  %v799 = vmul.f32 %v701, %v768
  %v800 = vmul.f32 %v703, %v768
  %v801 = vmul.f32 %v705, %v768
  %v802 = vmul.f32 %v707, %v768
  %v803 = vmul.f32 %v709, %v768
  %v804 = vmul.f32 %v711, %v768
  %v805 = vmul.f32 %v713, %v768
  %v806 = vmul.f32 %v715, %v768
  %v807 = vmul.f32 %v717, %v768
  %v808 = vmul.f32 %v719, %v768
  %v809 = vmul.f32 %v721, %v768
  %v810 = vmul.f32 %v723, %v768
  %v811 = vmul.f32 %v725, %v768
  %v812 = vmul.f32 %v727, %v768
  %v813 = vmul.f32 %v729, %v768
  %v814 = vmul.f32 %v731, %v768
  %v815 = vmul.f32 %v733, %v768
  %v816 = vmul.f32 %v735, %v768
  %v817 = vmul.f32 %v737, %v768
  %v818 = vmul.f32 %v739, %v768
  %v819 = vmul.f32 %v741, %v768
  %v820 = vmul.f32 %v743, %v768
  %v821 = vmul.f32 %v745, %v768
  %v822 = vmul.f32 %v747, %v768
  %v823 = vmul.f32 %v749, %v768
  %v824 = vmul.f32 %v751, %v768
  %v825 = vmul.f32 %v753, %v768
  %v826 = vmul.f32 %v755, %v768
  %v827 = vmul.f32 %v757, %v768
  %v828 = vmul.f32 %v759, %v768
  %v829 = vmul.f32 %v761, %v768
  %v830 = vmul.f32 %v763, %v768
  %v831 = vmul.f32 %v765, %v768
  %v832 = vmul.f32 %v767, %v768
  %v833 = vmul.f32 %v386, %v386
  %v834 = vmul.f32 %v389, %v389
  %v835 = vmul.f32 %v394, %v394
  %v836 = vmul.f32 %v397, %v397
  %v837 = vmul.f32 %v402, %v402
  %v838 = vmul.f32 %v405, %v405
  %v839 = vmul.f32 %v410, %v410
  %v840 = vmul.f32 %v413, %v413
  %v841 = vmul.f32 %v418, %v418
  %v842 = vmul.f32 %v421, %v421
  %v843 = vmul.f32 %v426, %v426
  %v844 = vmul.f32 %v429, %v429
  %v845 = vmul.f32 %v434, %v434
  %v846 = vmul.f32 %v437, %v437
  %v847 = vmul.f32 %v442, %v442
  %v848 = vmul.f32 %v445, %v445
  %v849 = vmul.f32 %v450, %v450
  %v850 = vmul.f32 %v453, %v453
  %v851 = vmul.f32 %v458, %v458
  %v852 = vmul.f32 %v461, %v461
  %v853 = vmul.f32 %v466, %v466
  %v854 = vmul.f32 %v469, %v469
  %v855 = vmul.f32 %v474, %v474
  %v856 = vmul.f32 %v477, %v477
  %v857 = vmul.f32 %v482, %v482
  %v858 = vmul.f32 %v485, %v485
  %v859 = vmul.f32 %v490, %v490
  %v860 = vmul.f32 %v493, %v493
  %v861 = vmul.f32 %v498, %v498
  %v862 = vmul.f32 %v501, %v501
  %v863 = vmul.f32 %v506, %v506
  %v864 = vmul.f32 %v509, %v509
  %v865 = vmul.f32 %v514, %v514
  %v866 = vmul.f32 %v517, %v517
  %v867 = vmul.f32 %v522, %v522
  %v868 = vmul.f32 %v525, %v525
  %v869 = vmul.f32 %v530, %v530
  %v870 = vmul.f32 %v533, %v533
  %v871 = vmul.f32 %v538, %v538
  %v872 = vmul.f32 %v541, %v541
  %v873 = vmul.f32 %v546, %v546
  %v874 = vmul.f32 %v549, %v549
  %v875 = vmul.f32 %v554, %v554
  %v876 = vmul.f32 %v557, %v557
  %v877 = vmul.f32 %v562, %v562
  %v878 = vmul.f32 %v565, %v565
  %v879 = vmul.f32 %v570, %v570
  %v880 = vmul.f32 %v573, %v573
  %v881 = vmul.f32 %v578, %v578
  %v882 = vmul.f32 %v581, %v581
  %v883 = vmul.f32 %v586, %v586
  %v884 = vmul.f32 %v589, %v589
  %v885 = vmul.f32 %v594, %v594
  %v886 = vmul.f32 %v597, %v597
  %v887 = vmul.f32 %v602, %v602
  %v888 = vmul.f32 %v605, %v605
  %v889 = vmul.f32 %v610, %v610
  %v890 = vmul.f32 %v613, %v613
  %v891 = vmul.f32 %v618, %v618
  %v892 = vmul.f32 %v621, %v621
  %v893 = vmul.f32 %v626, %v626
  %v894 = vmul.f32 %v629, %v629
  %v895 = vmul.f32 %v634, %v634
  %v896 = vmul.f32 %v637, %v637
  %897 = vadd.xlane.f32.xlu0 %v833
  %v898 = vpop.xlane.xlu0 %897
  %899 = vadd.xlane.f32.xlu0 %v834
  %v900 = vpop.xlane.xlu0 %899
  %901 = vadd.xlane.f32.xlu0 %v835
  %v902 = vpop.xlane.xlu0 %901
  %903 = vadd.xlane.f32.xlu0 %v836
  %v904 = vpop.xlane.xlu0 %903
  %905 = vadd.xlane.f32.xlu0 %v837
  %v906 = vpop.xlane.xlu0 %905
  %907 = vadd.xlane.f32.xlu0 %v838
  %v908 = vpop.xlane.xlu0 %907
  %909 = vadd.xlane.f32.xlu0 %v839
  %v910 = vpop.xlane.xlu0 %909
  %911 = vadd.xlane.f32.xlu0 %v840
  %v912 = vpop.xlane.xlu0 %911
  %913 = vadd.xlane.f32.xlu0 %v841
  %v914 = vpop.xlane.xlu0 %913
  %915 = vadd.xlane.f32.xlu0 %v842
  %v916 = vpop.xlane.xlu0 %915
  %917 = vadd.xlane.f32.xlu0 %v843
  %v918 = vpop.xlane.xlu0 %917
  %919 = vadd.xlane.f32.xlu0 %v844
  %v920 = vpop.xlane.xlu0 %919
  %921 = vadd.xlane.f32.xlu0 %v845
  %v922 = vpop.xlane.xlu0 %921
  %923 = vadd.xlane.f32.xlu0 %v846
  %v924 = vpop.xlane.xlu0 %923
  %925 = vadd.xlane.f32.xlu0 %v847
  %v926 = vpop.xlane.xlu0 %925
  %927 = vadd.xlane.f32.xlu0 %v848
  %v928 = vpop.xlane.xlu0 %927
  %929 = vadd.xlane.f32.xlu0 %v849
  %v930 = vpop.xlane.xlu0 %929
  %931 = vadd.xlane.f32.xlu0 %v850
  %v932 = vpop.xlane.xlu0 %931
  %933 = vadd.xlane.f32.xlu0 %v851
  %v934 = vpop.xlane.xlu0 %933
  %935 = vadd.xlane.f32.xlu0 %v852
  %v936 = vpop.xlane.xlu0 %935
  %937 = vadd.xlane.f32.xlu0 %v853
  %v938 = vpop.xlane.xlu0 %937
  %939 = vadd.xlane.f32.xlu0 %v854
  %v940 = vpop.xlane.xlu0 %939
  %941 = vadd.xlane.f32.xlu0 %v855
  %v942 = vpop.xlane.xlu0 %941
  %943 = vadd.xlane.f32.xlu0 %v856
  %v944 = vpop.xlane.xlu0 %943
  %945 = vadd.xlane.f32.xlu0 %v857
  %v946 = vpop.xlane.xlu0 %945
  %947 = vadd.xlane.f32.xlu0 %v858
  %v948 = vpop.xlane.xlu0 %947
  %949 = vadd.xlane.f32.xlu0 %v859
  %v950 = vpop.xlane.xlu0 %949
  %951 = vadd.xlane.f32.xlu0 %v860
  %v952 = vpop.xlane.xlu0 %951
  %953 = vadd.xlane.f32.xlu0 %v861
  %v954 = vpop.xlane.xlu0 %953
  %955 = vadd.xlane.f32.xlu0 %v862
  %v956 = vpop.xlane.xlu0 %955
  %957 = vadd.xlane.f32.xlu0 %v863
  %v958 = vpop.xlane.xlu0 %957
  %959 = vadd.xlane.f32.xlu0 %v864
  %v960 = vpop.xlane.xlu0 %959
  %961 = vadd.xlane.f32.xlu0 %v865
  %v962 = vpop.xlane.xlu0 %961
  %963 = vadd.xlane.f32.xlu0 %v866
  %v964 = vpop.xlane.xlu0 %963
  %965 = vadd.xlane.f32.xlu0 %v867
  %v966 = vpop.xlane.xlu0 %965
  %967 = vadd.xlane.f32.xlu0 %v868
  %v968 = vpop.xlane.xlu0 %967
  %969 = vadd.xlane.f32.xlu0 %v869
  %v970 = vpop.xlane.xlu0 %969
  %971 = vadd.xlane.f32.xlu0 %v870
  %v972 = vpop.xlane.xlu0 %971
  %973 = vadd.xlane.f32.xlu0 %v871
  %v974 = vpop.xlane.xlu0 %973
  %975 = vadd.xlane.f32.xlu0 %v872
  %v976 = vpop.xlane.xlu0 %975
  %977 = vadd.xlane.f32.xlu0 %v873
  %v978 = vpop.xlane.xlu0 %977
  %979 = vadd.xlane.f32.xlu0 %v874
  %v980 = vpop.xlane.xlu0 %979
  %981 = vadd.xlane.f32.xlu0 %v875
  %v982 = vpop.xlane.xlu0 %981
  %983 = vadd.xlane.f32.xlu0 %v876
  %v984 = vpop.xlane.xlu0 %983
  %985 = vadd.xlane.f32.xlu0 %v877
  %v986 = vpop.xlane.xlu0 %985
  %987 = vadd.xlane.f32.xlu0 %v878
  %v988 = vpop.xlane.xlu0 %987
  %989 = vadd.xlane.f32.xlu0 %v879
  %v990 = vpop.xlane.xlu0 %989
  %991 = vadd.xlane.f32.xlu0 %v880
  %v992 = vpop.xlane.xlu0 %991
  %993 = vadd.xlane.f32.xlu0 %v881
  %v994 = vpop.xlane.xlu0 %993
  %995 = vadd.xlane.f32.xlu0 %v882
  %v996 = vpop.xlane.xlu0 %995
  %997 = vadd.xlane.f32.xlu0 %v883
  %v998 = vpop.xlane.xlu0 %997
  %999 = vadd.xlane.f32.xlu0 %v884
  %v1000 = vpop.xlane.xlu0 %999
  %1001 = vadd.xlane.f32.xlu0 %v885
  %v1002 = vpop.xlane.xlu0 %1001
  %1003 = vadd.xlane.f32.xlu0 %v886
  %v1004 = vpop.xlane.xlu0 %1003
  %1005 = vadd.xlane.f32.xlu0 %v887
  %v1006 = vpop.xlane.xlu0 %1005
  %1007 = vadd.xlane.f32.xlu0 %v888
  %v1008 = vpop.xlane.xlu0 %1007
  %1009 = vadd.xlane.f32.xlu0 %v889
  %v1010 = vpop.xlane.xlu0 %1009
  %1011 = vadd.xlane.f32.xlu0 %v890
  %v1012 = vpop.xlane.xlu0 %1011
  %1013 = vadd.xlane.f32.xlu0 %v891
  %v1014 = vpop.xlane.xlu0 %1013
  %1015 = vadd.xlane.f32.xlu0 %v892
  %v1016 = vpop.xlane.xlu0 %1015
  %1017 = vadd.xlane.f32.xlu0 %v893
  %v1018 = vpop.xlane.xlu0 %1017
  %1019 = vadd.xlane.f32.xlu0 %v894
  %v1020 = vpop.xlane.xlu0 %1019
  %1021 = vadd.xlane.f32.xlu0 %v895
  %v1022 = vpop.xlane.xlu0 %1021
  %1023 = vadd.xlane.f32.xlu0 %v896
  %v1024 = vpop.xlane.xlu0 %1023
  %v1025 = vmul.f32 %v898, %v768
  %v1026 = vmul.f32 %v900, %v768
  %v1027 = vmul.f32 %v902, %v768
  %v1028 = vmul.f32 %v904, %v768
  %v1029 = vmul.f32 %v906, %v768
  %v1030 = vmul.f32 %v908, %v768
  %v1031 = vmul.f32 %v910, %v768
  %v1032 = vmul.f32 %v912, %v768
  %v1033 = vmul.f32 %v914, %v768
  %v1034 = vmul.f32 %v916, %v768
  %v1035 = vmul.f32 %v918, %v768
  %v1036 = vmul.f32 %v920, %v768
  %v1037 = vmul.f32 %v922, %v768
  %v1038 = vmul.f32 %v924, %v768
  %v1039 = vmul.f32 %v926, %v768
  %v1040 = vmul.f32 %v928, %v768
  %v1041 = vmul.f32 %v930, %v768
  %v1042 = vmul.f32 %v932, %v768
  %v1043 = vmul.f32 %v934, %v768
  %v1044 = vmul.f32 %v936, %v768
  %v1045 = vmul.f32 %v938, %v768
  %v1046 = vmul.f32 %v940, %v768
  %v1047 = vmul.f32 %v942, %v768
  %v1048 = vmul.f32 %v944, %v768
  %v1049 = vmul.f32 %v946, %v768
  %v1050 = vmul.f32 %v948, %v768
  %v1051 = vmul.f32 %v950, %v768
  %v1052 = vmul.f32 %v952, %v768
  %v1053 = vmul.f32 %v954, %v768
  %v1054 = vmul.f32 %v956, %v768
  %v1055 = vmul.f32 %v958, %v768
  %v1056 = vmul.f32 %v960, %v768
  %v1057 = vmul.f32 %v962, %v768
  %v1058 = vmul.f32 %v964, %v768
  %v1059 = vmul.f32 %v966, %v768
  %v1060 = vmul.f32 %v968, %v768
  %v1061 = vmul.f32 %v970, %v768
  %v1062 = vmul.f32 %v972, %v768
  %v1063 = vmul.f32 %v974, %v768
  %v1064 = vmul.f32 %v976, %v768
  %v1065 = vmul.f32 %v978, %v768
  %v1066 = vmul.f32 %v980, %v768
  %v1067 = vmul.f32 %v982, %v768
  %v1068 = vmul.f32 %v984, %v768
  %v1069 = vmul.f32 %v986, %v768
  %v1070 = vmul.f32 %v988, %v768
  %v1071 = vmul.f32 %v990, %v768
  %v1072 = vmul.f32 %v992, %v768
  %v1073 = vmul.f32 %v994, %v768
  %v1074 = vmul.f32 %v996, %v768
  %v1075 = vmul.f32 %v998, %v768
  %v1076 = vmul.f32 %v1000, %v768
  %v1077 = vmul.f32 %v1002, %v768
  %v1078 = vmul.f32 %v1004, %v768
  %v1079 = vmul.f32 %v1006, %v768
  %v1080 = vmul.f32 %v1008, %v768
  %v1081 = vmul.f32 %v1010, %v768
  %v1082 = vmul.f32 %v1012, %v768
  %v1083 = vmul.f32 %v1014, %v768
  %v1084 = vmul.f32 %v1016, %v768
  %v1085 = vmul.f32 %v1018, %v768
  %v1086 = vmul.f32 %v1020, %v768
  %v1087 = vmul.f32 %v1022, %v768
  %v1088 = vmul.f32 %v1024, %v768
  %v1089 = vsub.f32 %v386, %v769
  %v1090 = vsub.f32 %v389, %v770
  %v1091 = vsub.f32 %v394, %v771
  %v1092 = vsub.f32 %v397, %v772
  %v1093 = vsub.f32 %v402, %v773
  %v1094 = vsub.f32 %v405, %v774
  %v1095 = vsub.f32 %v410, %v775
  %v1096 = vsub.f32 %v413, %v776
  %v1097 = vsub.f32 %v418, %v777
  %v1098 = vsub.f32 %v421, %v778
  %v1099 = vsub.f32 %v426, %v779
  %v1100 = vsub.f32 %v429, %v780
  %v1101 = vsub.f32 %v434, %v781
  %v1102 = vsub.f32 %v437, %v782
  %v1103 = vsub.f32 %v442, %v783
  %v1104 = vsub.f32 %v445, %v784
  %v1105 = vsub.f32 %v450, %v785
  %v1106 = vsub.f32 %v453, %v786
  %v1107 = vsub.f32 %v458, %v787
  %v1108 = vsub.f32 %v461, %v788
  %v1109 = vsub.f32 %v466, %v789
  %v1110 = vsub.f32 %v469, %v790
  %v1111 = vsub.f32 %v474, %v791
  %v1112 = vsub.f32 %v477, %v792
  %v1113 = vsub.f32 %v482, %v793
  %v1114 = vsub.f32 %v485, %v794
  %v1115 = vsub.f32 %v490, %v795
  %v1116 = vsub.f32 %v493, %v796
  %v1117 = vsub.f32 %v498, %v797
  %v1118 = vsub.f32 %v501, %v798
  %v1119 = vsub.f32 %v506, %v799
  %v1120 = vsub.f32 %v509, %v800
  %v1121 = vsub.f32 %v514, %v801
  %v1122 = vsub.f32 %v517, %v802
  %v1123 = vsub.f32 %v522, %v803
  %v1124 = vsub.f32 %v525, %v804
  %v1125 = vsub.f32 %v530, %v805
  %v1126 = vsub.f32 %v533, %v806
  %v1127 = vsub.f32 %v538, %v807
  %v1128 = vsub.f32 %v541, %v808
  %v1129 = vsub.f32 %v546, %v809
  %v1130 = vsub.f32 %v549, %v810
  %v1131 = vsub.f32 %v554, %v811
  %v1132 = vsub.f32 %v557, %v812
  %v1133 = vsub.f32 %v562, %v813
  %v1134 = vsub.f32 %v565, %v814
  %v1135 = vsub.f32 %v570, %v815
  %v1136 = vsub.f32 %v573, %v816
  %v1137 = vsub.f32 %v578, %v817
  %v1138 = vsub.f32 %v581, %v818
  %v1139 = vsub.f32 %v586, %v819
  %v1140 = vsub.f32 %v589, %v820
  %v1141 = vsub.f32 %v594, %v821
  %v1142 = vsub.f32 %v597, %v822
  %v1143 = vsub.f32 %v602, %v823
  %v1144 = vsub.f32 %v605, %v824
  %v1145 = vsub.f32 %v610, %v825
  %v1146 = vsub.f32 %v613, %v826
  %v1147 = vsub.f32 %v618, %v827
  %v1148 = vsub.f32 %v621, %v828
  %v1149 = vsub.f32 %v626, %v829
  %v1150 = vsub.f32 %v629, %v830
  %v1151 = vsub.f32 %v634, %v831
  %v1152 = vsub.f32 %v637, %v832
  %v1153 = vmul.f32 %v769, %v769
  %v1154 = vmul.f32 %v770, %v770
  %v1155 = vmul.f32 %v771, %v771
  %v1156 = vmul.f32 %v772, %v772
  %v1157 = vmul.f32 %v773, %v773
  %v1158 = vmul.f32 %v774, %v774
  %v1159 = vmul.f32 %v775, %v775
  %v1160 = vmul.f32 %v776, %v776
  %v1161 = vmul.f32 %v777, %v777
  %v1162 = vmul.f32 %v778, %v778
  %v1163 = vmul.f32 %v779, %v779
  %v1164 = vmul.f32 %v780, %v780
  %v1165 = vmul.f32 %v781, %v781
  %v1166 = vmul.f32 %v782, %v782
  %v1167 = vmul.f32 %v783, %v783
  %v1168 = vmul.f32 %v784, %v784
  %v1169 = vmul.f32 %v785, %v785
  %v1170 = vmul.f32 %v786, %v786
  %v1171 = vmul.f32 %v787, %v787
  %v1172 = vmul.f32 %v788, %v788
  %v1173 = vmul.f32 %v789, %v789
  %v1174 = vmul.f32 %v790, %v790
  %v1175 = vmul.f32 %v791, %v791
  %v1176 = vmul.f32 %v792, %v792
  %v1177 = vmul.f32 %v793, %v793
  %v1178 = vmul.f32 %v794, %v794
  %v1179 = vmul.f32 %v795, %v795
  %v1180 = vmul.f32 %v796, %v796
  %v1181 = vmul.f32 %v797, %v797
  %v1182 = vmul.f32 %v798, %v798
  %v1183 = vmul.f32 %v799, %v799
  %v1184 = vmul.f32 %v800, %v800
  %v1185 = vmul.f32 %v801, %v801
  %v1186 = vmul.f32 %v802, %v802
  %v1187 = vmul.f32 %v803, %v803
  %v1188 = vmul.f32 %v804, %v804
  %v1189 = vmul.f32 %v805, %v805
  %v1190 = vmul.f32 %v806, %v806
  %v1191 = vmul.f32 %v807, %v807
  %v1192 = vmul.f32 %v808, %v808
  %v1193 = vmul.f32 %v809, %v809
  %v1194 = vmul.f32 %v810, %v810
  %v1195 = vmul.f32 %v811, %v811
  %v1196 = vmul.f32 %v812, %v812
  %v1197 = vmul.f32 %v813, %v813
  %v1198 = vmul.f32 %v814, %v814
  %v1199 = vmul.f32 %v815, %v815
  %v1200 = vmul.f32 %v816, %v816
  %v1201 = vmul.f32 %v817, %v817
  %v1202 = vmul.f32 %v818, %v818
  %v1203 = vmul.f32 %v819, %v819
  %v1204 = vmul.f32 %v820, %v820
  %v1205 = vmul.f32 %v821, %v821
  %v1206 = vmul.f32 %v822, %v822
  %v1207 = vmul.f32 %v823, %v823
  %v1208 = vmul.f32 %v824, %v824
  %v1209 = vmul.f32 %v825, %v825
  %v1210 = vmul.f32 %v826, %v826
  %v1211 = vmul.f32 %v827, %v827
  %v1212 = vmul.f32 %v828, %v828
  %v1213 = vmul.f32 %v829, %v829
  %v1214 = vmul.f32 %v830, %v830
  %v1215 = vmul.f32 %v831, %v831
  %v1216 = vmul.f32 %v832, %v832
  %v1217 = vsub.f32 %v1025, %v1153
  %v1218 = vsub.f32 %v1026, %v1154
  %v1219 = vsub.f32 %v1027, %v1155
  %v1220 = vsub.f32 %v1028, %v1156
  %v1221 = vsub.f32 %v1029, %v1157
  %v1222 = vsub.f32 %v1030, %v1158
  %v1223 = vsub.f32 %v1031, %v1159
  %v1224 = vsub.f32 %v1032, %v1160
  %v1225 = vsub.f32 %v1033, %v1161
  %v1226 = vsub.f32 %v1034, %v1162
  %v1227 = vsub.f32 %v1035, %v1163
  %v1228 = vsub.f32 %v1036, %v1164
  %v1229 = vsub.f32 %v1037, %v1165
  %v1230 = vsub.f32 %v1038, %v1166
  %v1231 = vsub.f32 %v1039, %v1167
  %v1232 = vsub.f32 %v1040, %v1168
  %v1233 = vsub.f32 %v1041, %v1169
  %v1234 = vsub.f32 %v1042, %v1170
  %v1235 = vsub.f32 %v1043, %v1171
  %v1236 = vsub.f32 %v1044, %v1172
  %v1237 = vsub.f32 %v1045, %v1173
  %v1238 = vsub.f32 %v1046, %v1174
  %v1239 = vsub.f32 %v1047, %v1175
  %v1240 = vsub.f32 %v1048, %v1176
  %v1241 = vsub.f32 %v1049, %v1177
  %v1242 = vsub.f32 %v1050, %v1178
  %v1243 = vsub.f32 %v1051, %v1179
  %v1244 = vsub.f32 %v1052, %v1180
  %v1245 = vsub.f32 %v1053, %v1181
  %v1246 = vsub.f32 %v1054, %v1182
  %v1247 = vsub.f32 %v1055, %v1183
  %v1248 = vsub.f32 %v1056, %v1184
  %v1249 = vsub.f32 %v1057, %v1185
  %v1250 = vsub.f32 %v1058, %v1186
  %v1251 = vsub.f32 %v1059, %v1187
  %v1252 = vsub.f32 %v1060, %v1188
  %v1253 = vsub.f32 %v1061, %v1189
  %v1254 = vsub.f32 %v1062, %v1190
  %v1255 = vsub.f32 %v1063, %v1191
  %v1256 = vsub.f32 %v1064, %v1192
  %v1257 = vsub.f32 %v1065, %v1193
  %v1258 = vsub.f32 %v1066, %v1194
  %v1259 = vsub.f32 %v1067, %v1195
  %v1260 = vsub.f32 %v1068, %v1196
  %v1261 = vsub.f32 %v1069, %v1197
  %v1262 = vsub.f32 %v1070, %v1198
  %v1263 = vsub.f32 %v1071, %v1199
  %v1264 = vsub.f32 %v1072, %v1200
  %v1265 = vsub.f32 %v1073, %v1201
  %v1266 = vsub.f32 %v1074, %v1202
  %v1267 = vsub.f32 %v1075, %v1203
  %v1268 = vsub.f32 %v1076, %v1204
  %v1269 = vsub.f32 %v1077, %v1205
  %v1270 = vsub.f32 %v1078, %v1206
  %v1271 = vsub.f32 %v1079, %v1207
  %v1272 = vsub.f32 %v1080, %v1208
  %v1273 = vsub.f32 %v1081, %v1209
  %v1274 = vsub.f32 %v1082, %v1210
  %v1275 = vsub.f32 %v1083, %v1211
  %v1276 = vsub.f32 %v1084, %v1212
  %v1277 = vsub.f32 %v1085, %v1213
  %v1278 = vsub.f32 %v1086, %v1214
  %v1279 = vsub.f32 %v1087, %v1215
  %v1280 = vsub.f32 %v1088, %v1216
  %v1281 = vadd.f32 %v1217, 1e-05
  %v1282 = vadd.f32 %v1218, 1e-05
  %v1283 = vadd.f32 %v1219, 1e-05
  %v1284 = vadd.f32 %v1220, 1e-05
  %v1285 = vadd.f32 %v1221, 1e-05
  %v1286 = vadd.f32 %v1222, 1e-05
  %v1287 = vadd.f32 %v1223, 1e-05
  %v1288 = vadd.f32 %v1224, 1e-05
  %v1289 = vadd.f32 %v1225, 1e-05
  %v1290 = vadd.f32 %v1226, 1e-05
  %v1291 = vadd.f32 %v1227, 1e-05
  %v1292 = vadd.f32 %v1228, 1e-05
  %v1293 = vadd.f32 %v1229, 1e-05
  %v1294 = vadd.f32 %v1230, 1e-05
  %v1295 = vadd.f32 %v1231, 1e-05
  %v1296 = vadd.f32 %v1232, 1e-05
  %v1297 = vadd.f32 %v1233, 1e-05
  %v1298 = vadd.f32 %v1234, 1e-05
  %v1299 = vadd.f32 %v1235, 1e-05
  %v1300 = vadd.f32 %v1236, 1e-05
  %v1301 = vadd.f32 %v1237, 1e-05
  %v1302 = vadd.f32 %v1238, 1e-05
  %v1303 = vadd.f32 %v1239, 1e-05
  %v1304 = vadd.f32 %v1240, 1e-05
  %v1305 = vadd.f32 %v1241, 1e-05
  %v1306 = vadd.f32 %v1242, 1e-05
  %v1307 = vadd.f32 %v1243, 1e-05
  %v1308 = vadd.f32 %v1244, 1e-05
  %v1309 = vadd.f32 %v1245, 1e-05
  %v1310 = vadd.f32 %v1246, 1e-05
  %v1311 = vadd.f32 %v1247, 1e-05
  %v1312 = vadd.f32 %v1248, 1e-05
  %v1313 = vadd.f32 %v1249, 1e-05
  %v1314 = vadd.f32 %v1250, 1e-05
  %v1315 = vadd.f32 %v1251, 1e-05
  %v1316 = vadd.f32 %v1252, 1e-05
  %v1317 = vadd.f32 %v1253, 1e-05
  %v1318 = vadd.f32 %v1254, 1e-05
  %v1319 = vadd.f32 %v1255, 1e-05
  %v1320 = vadd.f32 %v1256, 1e-05
  %v1321 = vadd.f32 %v1257, 1e-05
  %v1322 = vadd.f32 %v1258, 1e-05
  %v1323 = vadd.f32 %v1259, 1e-05
  %v1324 = vadd.f32 %v1260, 1e-05
  %v1325 = vadd.f32 %v1261, 1e-05
  %v1326 = vadd.f32 %v1262, 1e-05
  %v1327 = vadd.f32 %v1263, 1e-05
  %v1328 = vadd.f32 %v1264, 1e-05
  %v1329 = vadd.f32 %v1265, 1e-05
  %v1330 = vadd.f32 %v1266, 1e-05
  %v1331 = vadd.f32 %v1267, 1e-05
  %v1332 = vadd.f32 %v1268, 1e-05
  %v1333 = vadd.f32 %v1269, 1e-05
  %v1334 = vadd.f32 %v1270, 1e-05
  %v1335 = vadd.f32 %v1271, 1e-05
  %v1336 = vadd.f32 %v1272, 1e-05
  %v1337 = vadd.f32 %v1273, 1e-05
  %v1338 = vadd.f32 %v1274, 1e-05
  %v1339 = vadd.f32 %v1275, 1e-05
  %v1340 = vadd.f32 %v1276, 1e-05
  %v1341 = vadd.f32 %v1277, 1e-05
  %v1342 = vadd.f32 %v1278, 1e-05
  %v1343 = vadd.f32 %v1279, 1e-05
  %v1344 = vadd.f32 %v1280, 1e-05
  %v1345 = vrsqrt.pop %v1281
  %v1346 = vrsqrt.pop %v1282
  %v1347 = vrsqrt.pop %v1283
  %v1348 = vrsqrt.pop %v1284
  %v1349 = vrsqrt.pop %v1285
  %v1350 = vrsqrt.pop %v1286
  %v1351 = vrsqrt.pop %v1287
  %v1352 = vrsqrt.pop %v1288
  %v1353 = vrsqrt.pop %v1289
  %v1354 = vrsqrt.pop %v1290
  %v1355 = vrsqrt.pop %v1291
  %v1356 = vrsqrt.pop %v1292
  %v1357 = vrsqrt.pop %v1293
  %v1358 = vrsqrt.pop %v1294
  %v1359 = vrsqrt.pop %v1295
  %v1360 = vrsqrt.pop %v1296
  %v1361 = vrsqrt.pop %v1297
  %v1362 = vrsqrt.pop %v1298
  %v1363 = vrsqrt.pop %v1299
  %v1364 = vrsqrt.pop %v1300
  %v1365 = vrsqrt.pop %v1301
  %v1366 = vrsqrt.pop %v1302
  %v1367 = vrsqrt.pop %v1303
  %v1368 = vrsqrt.pop %v1304
  %v1369 = vrsqrt.pop %v1305
  %v1370 = vrsqrt.pop %v1306
  %v1371 = vrsqrt.pop %v1307
  %v1372 = vrsqrt.pop %v1308
  %v1373 = vrsqrt.pop %v1309
  %v1374 = vrsqrt.pop %v1310
  %v1375 = vrsqrt.pop %v1311
  %v1376 = vrsqrt.pop %v1312
  %v1377 = vrsqrt.pop %v1313
  %v1378 = vrsqrt.pop %v1314
  %v1379 = vrsqrt.pop %v1315
  %v1380 = vrsqrt.pop %v1316
  %v1381 = vrsqrt.pop %v1317
  %v1382 = vrsqrt.pop %v1318
  %v1383 = vrsqrt.pop %v1319
  %v1384 = vrsqrt.pop %v1320
  %v1385 = vrsqrt.pop %v1321
  %v1386 = vrsqrt.pop %v1322
  %v1387 = vrsqrt.pop %v1323
  %v1388 = vrsqrt.pop %v1324
  %v1389 = vrsqrt.pop %v1325
  %v1390 = vrsqrt.pop %v1326
  %v1391 = vrsqrt.pop %v1327
  %v1392 = vrsqrt.pop %v1328
  %v1393 = vrsqrt.pop %v1329
  %v1394 = vrsqrt.pop %v1330
  %v1395 = vrsqrt.pop %v1331
  %v1396 = vrsqrt.pop %v1332
  %v1397 = vrsqrt.pop %v1333
  %v1398 = vrsqrt.pop %v1334
  %v1399 = vrsqrt.pop %v1335
  %v1400 = vrsqrt.pop %v1336
  %v1401 = vrsqrt.pop %v1337
  %v1402 = vrsqrt.pop %v1338
  %v1403 = vrsqrt.pop %v1339
  %v1404 = vrsqrt.pop %v1340
  %v1405 = vrsqrt.pop %v1341
  %v1406 = vrsqrt.pop %v1342
  %v1407 = vrsqrt.pop %v1343
  %v1408 = vrsqrt.pop %v1344
  %v1409 = vmul.f32 %v1089, %v1345
  %v1410 = vmul.f32 %v1090, %v1346
  %v1411 = vmul.f32 %v1091, %v1347
  %v1412 = vmul.f32 %v1092, %v1348
  %v1413 = vmul.f32 %v1093, %v1349
  %v1414 = vmul.f32 %v1094, %v1350
  %v1415 = vmul.f32 %v1095, %v1351
  %v1416 = vmul.f32 %v1096, %v1352
  %v1417 = vmul.f32 %v1097, %v1353
  %v1418 = vmul.f32 %v1098, %v1354
  %v1419 = vmul.f32 %v1099, %v1355
  %v1420 = vmul.f32 %v1100, %v1356
  %v1421 = vmul.f32 %v1101, %v1357
  %v1422 = vmul.f32 %v1102, %v1358
  %v1423 = vmul.f32 %v1103, %v1359
  %v1424 = vmul.f32 %v1104, %v1360
  %v1425 = vmul.f32 %v1105, %v1361
  %v1426 = vmul.f32 %v1106, %v1362
  %v1427 = vmul.f32 %v1107, %v1363
  %v1428 = vmul.f32 %v1108, %v1364
  %v1429 = vmul.f32 %v1109, %v1365
  %v1430 = vmul.f32 %v1110, %v1366
  %v1431 = vmul.f32 %v1111, %v1367
  %v1432 = vmul.f32 %v1112, %v1368
  %v1433 = vmul.f32 %v1113, %v1369
  %v1434 = vmul.f32 %v1114, %v1370
  %v1435 = vmul.f32 %v1115, %v1371
  %v1436 = vmul.f32 %v1116, %v1372
  %v1437 = vmul.f32 %v1117, %v1373
  %v1438 = vmul.f32 %v1118, %v1374
  %v1439 = vmul.f32 %v1119, %v1375
  %v1440 = vmul.f32 %v1120, %v1376
  %v1441 = vmul.f32 %v1121, %v1377
  %v1442 = vmul.f32 %v1122, %v1378
  %v1443 = vmul.f32 %v1123, %v1379
  %v1444 = vmul.f32 %v1124, %v1380
  %v1445 = vmul.f32 %v1125, %v1381
  %v1446 = vmul.f32 %v1126, %v1382
  %v1447 = vmul.f32 %v1127, %v1383
  %v1448 = vmul.f32 %v1128, %v1384
  %v1449 = vmul.f32 %v1129, %v1385
  %v1450 = vmul.f32 %v1130, %v1386
  %v1451 = vmul.f32 %v1131, %v1387
  %v1452 = vmul.f32 %v1132, %v1388
  %v1453 = vmul.f32 %v1133, %v1389
  %v1454 = vmul.f32 %v1134, %v1390
  %v1455 = vmul.f32 %v1135, %v1391
  %v1456 = vmul.f32 %v1136, %v1392
  %v1457 = vmul.f32 %v1137, %v1393
  %v1458 = vmul.f32 %v1138, %v1394
  %v1459 = vmul.f32 %v1139, %v1395
  %v1460 = vmul.f32 %v1140, %v1396
  %v1461 = vmul.f32 %v1141, %v1397
  %v1462 = vmul.f32 %v1142, %v1398
  %v1463 = vmul.f32 %v1143, %v1399
  %v1464 = vmul.f32 %v1144, %v1400
  %v1465 = vmul.f32 %v1145, %v1401
  %v1466 = vmul.f32 %v1146, %v1402
  %v1467 = vmul.f32 %v1147, %v1403
  %v1468 = vmul.f32 %v1148, %v1404
  %v1469 = vmul.f32 %v1149, %v1405
  %v1470 = vmul.f32 %v1150, %v1406
  %v1471 = vmul.f32 %v1151, %v1407
  %v1472 = vmul.f32 %v1152, %v1408
  %v1473 = vlaneseq
  %v1474 = vshrl.u32 %v1473, 7
  %v1475 = vsub.s32 1, %v1474
  %v1476 = vrot.slane %v88, %v1475
  %v1477 = vmul.f32 %v1409, %v1476
  %v1478 = vmul.f32 %v1410, %v1476
  %v1479 = vmul.f32 %v1411, %v1476
  %v1480 = vmul.f32 %v1412, %v1476
  %v1481 = vmul.f32 %v1413, %v1476
  %v1482 = vmul.f32 %v1414, %v1476
  %v1483 = vmul.f32 %v1415, %v1476
  %v1484 = vmul.f32 %v1416, %v1476
  %v1485 = vmul.f32 %v1417, %v1476
  %v1486 = vmul.f32 %v1418, %v1476
  %v1487 = vmul.f32 %v1419, %v1476
  %v1488 = vmul.f32 %v1420, %v1476
  %v1489 = vmul.f32 %v1421, %v1476
  %v1490 = vmul.f32 %v1422, %v1476
  %v1491 = vmul.f32 %v1423, %v1476
  %v1492 = vmul.f32 %v1424, %v1476
  %v1493 = vmul.f32 %v1425, %v1476
  %v1494 = vmul.f32 %v1426, %v1476
  %v1495 = vmul.f32 %v1427, %v1476
  %v1496 = vmul.f32 %v1428, %v1476
  %v1497 = vmul.f32 %v1429, %v1476
  %v1498 = vmul.f32 %v1430, %v1476
  %v1499 = vmul.f32 %v1431, %v1476
  %v1500 = vmul.f32 %v1432, %v1476
  %v1501 = vmul.f32 %v1433, %v1476
  %v1502 = vmul.f32 %v1434, %v1476
  %v1503 = vmul.f32 %v1435, %v1476
  %v1504 = vmul.f32 %v1436, %v1476
  %v1505 = vmul.f32 %v1437, %v1476
  %v1506 = vmul.f32 %v1438, %v1476
  %v1507 = vmul.f32 %v1439, %v1476
  %v1508 = vmul.f32 %v1440, %v1476
  %v1509 = vmul.f32 %v1441, %v1476
  %v1510 = vmul.f32 %v1442, %v1476
  %v1511 = vmul.f32 %v1443, %v1476
  %v1512 = vmul.f32 %v1444, %v1476
  %v1513 = vmul.f32 %v1445, %v1476
  %v1514 = vmul.f32 %v1446, %v1476
  %v1515 = vmul.f32 %v1447, %v1476
  %v1516 = vmul.f32 %v1448, %v1476
  %v1517 = vmul.f32 %v1449, %v1476
  %v1518 = vmul.f32 %v1450, %v1476
  %v1519 = vmul.f32 %v1451, %v1476
  %v1520 = vmul.f32 %v1452, %v1476
  %v1521 = vmul.f32 %v1453, %v1476
  %v1522 = vmul.f32 %v1454, %v1476
  %v1523 = vmul.f32 %v1455, %v1476
  %v1524 = vmul.f32 %v1456, %v1476
  %v1525 = vmul.f32 %v1457, %v1476
  %v1526 = vmul.f32 %v1458, %v1476
  %v1527 = vmul.f32 %v1459, %v1476
  %v1528 = vmul.f32 %v1460, %v1476
  %v1529 = vmul.f32 %v1461, %v1476
  %v1530 = vmul.f32 %v1462, %v1476
  %v1531 = vmul.f32 %v1463, %v1476
  %v1532 = vmul.f32 %v1464, %v1476
  %v1533 = vmul.f32 %v1465, %v1476
  %v1534 = vmul.f32 %v1466, %v1476
  %v1535 = vmul.f32 %v1467, %v1476
  %v1536 = vmul.f32 %v1468, %v1476
  %v1537 = vmul.f32 %v1469, %v1476
  %v1538 = vmul.f32 %v1470, %v1476
  %v1539 = vmul.f32 %v1471, %v1476
  %v1540 = vmul.f32 %v1472, %v1476
  %v1541 = vlaneseq
  %v1542 = vshrl.u32 %v1541, 7
  %v1543 = vsub.s32 2, %v1542
  %v1544 = vrot.slane %v88, %v1543
  %v1545 = vadd.f32 %v1477, %v1544
  %v1546 = vadd.f32 %v1478, %v1544
  %v1547 = vadd.f32 %v1479, %v1544
  %v1548 = vadd.f32 %v1480, %v1544
  %v1549 = vadd.f32 %v1481, %v1544
  %v1550 = vadd.f32 %v1482, %v1544
  %v1551 = vadd.f32 %v1483, %v1544
  %v1552 = vadd.f32 %v1484, %v1544
  %v1553 = vadd.f32 %v1485, %v1544
  %v1554 = vadd.f32 %v1486, %v1544
  %v1555 = vadd.f32 %v1487, %v1544
  %v1556 = vadd.f32 %v1488, %v1544
  %v1557 = vadd.f32 %v1489, %v1544
  %v1558 = vadd.f32 %v1490, %v1544
  %v1559 = vadd.f32 %v1491, %v1544
  %v1560 = vadd.f32 %v1492, %v1544
  %v1561 = vadd.f32 %v1493, %v1544
  %v1562 = vadd.f32 %v1494, %v1544
  %v1563 = vadd.f32 %v1495, %v1544
  %v1564 = vadd.f32 %v1496, %v1544
  %v1565 = vadd.f32 %v1497, %v1544
  %v1566 = vadd.f32 %v1498, %v1544
  %v1567 = vadd.f32 %v1499, %v1544
  %v1568 = vadd.f32 %v1500, %v1544
  %v1569 = vadd.f32 %v1501, %v1544
  %v1570 = vadd.f32 %v1502, %v1544
  %v1571 = vadd.f32 %v1503, %v1544
  %v1572 = vadd.f32 %v1504, %v1544
  %v1573 = vadd.f32 %v1505, %v1544
  %v1574 = vadd.f32 %v1506, %v1544
  %v1575 = vadd.f32 %v1507, %v1544
  %v1576 = vadd.f32 %v1508, %v1544
  %v1577 = vadd.f32 %v1509, %v1544
  %v1578 = vadd.f32 %v1510, %v1544
  %v1579 = vadd.f32 %v1511, %v1544
  %v1580 = vadd.f32 %v1512, %v1544
  %v1581 = vadd.f32 %v1513, %v1544
  %v1582 = vadd.f32 %v1514, %v1544
  %v1583 = vadd.f32 %v1515, %v1544
  %v1584 = vadd.f32 %v1516, %v1544
  %v1585 = vadd.f32 %v1517, %v1544
  %v1586 = vadd.f32 %v1518, %v1544
  %v1587 = vadd.f32 %v1519, %v1544
  %v1588 = vadd.f32 %v1520, %v1544
  %v1589 = vadd.f32 %v1521, %v1544
  %v1590 = vadd.f32 %v1522, %v1544
  %v1591 = vadd.f32 %v1523, %v1544
  %v1592 = vadd.f32 %v1524, %v1544
  %v1593 = vadd.f32 %v1525, %v1544
  %v1594 = vadd.f32 %v1526, %v1544
  %v1595 = vadd.f32 %v1527, %v1544
  %v1596 = vadd.f32 %v1528, %v1544
  %v1597 = vadd.f32 %v1529, %v1544
  %v1598 = vadd.f32 %v1530, %v1544
  %v1599 = vadd.f32 %v1531, %v1544
  %v1600 = vadd.f32 %v1532, %v1544
  %v1601 = vadd.f32 %v1533, %v1544
  %v1602 = vadd.f32 %v1534, %v1544
  %v1603 = vadd.f32 %v1535, %v1544
  %v1604 = vadd.f32 %v1536, %v1544
  %v1605 = vadd.f32 %v1537, %v1544
  %v1606 = vadd.f32 %v1538, %v1544
  %v1607 = vadd.f32 %v1539, %v1544
  %v1608 = vadd.f32 %v1540, %v1544
  %v1609 = vmax.f32 %v1545, 0.0
  %v1610 = vmax.f32 %v1546, 0.0
  %v1611 = vmax.f32 %v1547, 0.0
  %v1612 = vmax.f32 %v1548, 0.0
  %v1613 = vmax.f32 %v1549, 0.0
  %v1614 = vmax.f32 %v1550, 0.0
  %v1615 = vmax.f32 %v1551, 0.0
  %v1616 = vmax.f32 %v1552, 0.0
  %v1617 = vmax.f32 %v1553, 0.0
  %v1618 = vmax.f32 %v1554, 0.0
  %v1619 = vmax.f32 %v1555, 0.0
  %v1620 = vmax.f32 %v1556, 0.0
  %v1621 = vmax.f32 %v1557, 0.0
  %v1622 = vmax.f32 %v1558, 0.0
  %v1623 = vmax.f32 %v1559, 0.0
  %v1624 = vmax.f32 %v1560, 0.0
  %v1625 = vmax.f32 %v1561, 0.0
  %v1626 = vmax.f32 %v1562, 0.0
  %v1627 = vmax.f32 %v1563, 0.0
  %v1628 = vmax.f32 %v1564, 0.0
  %v1629 = vmax.f32 %v1565, 0.0
  %v1630 = vmax.f32 %v1566, 0.0
  %v1631 = vmax.f32 %v1567, 0.0
  %v1632 = vmax.f32 %v1568, 0.0
  %v1633 = vmax.f32 %v1569, 0.0
  %v1634 = vmax.f32 %v1570, 0.0
  %v1635 = vmax.f32 %v1571, 0.0
  %v1636 = vmax.f32 %v1572, 0.0
  %v1637 = vmax.f32 %v1573, 0.0
  %v1638 = vmax.f32 %v1574, 0.0
  %v1639 = vmax.f32 %v1575, 0.0
  %v1640 = vmax.f32 %v1576, 0.0
  %v1641 = vmax.f32 %v1577, 0.0
  %v1642 = vmax.f32 %v1578, 0.0
  %v1643 = vmax.f32 %v1579, 0.0
  %v1644 = vmax.f32 %v1580, 0.0
  %v1645 = vmax.f32 %v1581, 0.0
  %v1646 = vmax.f32 %v1582, 0.0
  %v1647 = vmax.f32 %v1583, 0.0
  %v1648 = vmax.f32 %v1584, 0.0
  %v1649 = vmax.f32 %v1585, 0.0
  %v1650 = vmax.f32 %v1586, 0.0
  %v1651 = vmax.f32 %v1587, 0.0
  %v1652 = vmax.f32 %v1588, 0.0
  %v1653 = vmax.f32 %v1589, 0.0
  %v1654 = vmax.f32 %v1590, 0.0
  %v1655 = vmax.f32 %v1591, 0.0
  %v1656 = vmax.f32 %v1592, 0.0
  %v1657 = vmax.f32 %v1593, 0.0
  %v1658 = vmax.f32 %v1594, 0.0
  %v1659 = vmax.f32 %v1595, 0.0
  %v1660 = vmax.f32 %v1596, 0.0
  %v1661 = vmax.f32 %v1597, 0.0
  %v1662 = vmax.f32 %v1598, 0.0
  %v1663 = vmax.f32 %v1599, 0.0
  %v1664 = vmax.f32 %v1600, 0.0
  %v1665 = vmax.f32 %v1601, 0.0
  %v1666 = vmax.f32 %v1602, 0.0
  %v1667 = vmax.f32 %v1603, 0.0
  %v1668 = vmax.f32 %v1604, 0.0
  %v1669 = vmax.f32 %v1605, 0.0
  %v1670 = vmax.f32 %v1606, 0.0
  %v1671 = vmax.f32 %v1607, 0.0
  %v1672 = vmax.f32 %v1608, 0.0
  %v1673 = vpack.c.bf16 %v1610, %v1609
  %v1674 = vpack.c.bf16 %v1612, %v1611
  %v1675 = vpack.c.bf16 %v1614, %v1613
  %v1676 = vpack.c.bf16 %v1616, %v1615
  %v1677 = vpack.c.bf16 %v1618, %v1617
  %v1678 = vpack.c.bf16 %v1620, %v1619
  %v1679 = vpack.c.bf16 %v1622, %v1621
  %v1680 = vpack.c.bf16 %v1624, %v1623
  %v1681 = vpack.c.bf16 %v1626, %v1625
  %v1682 = vpack.c.bf16 %v1628, %v1627
  %v1683 = vpack.c.bf16 %v1630, %v1629
  %v1684 = vpack.c.bf16 %v1632, %v1631
  %v1685 = vpack.c.bf16 %v1634, %v1633
  %v1686 = vpack.c.bf16 %v1636, %v1635
  %v1687 = vpack.c.bf16 %v1638, %v1637
  %v1688 = vpack.c.bf16 %v1640, %v1639
  %v1689 = vpack.c.bf16 %v1642, %v1641
  %v1690 = vpack.c.bf16 %v1644, %v1643
  %v1691 = vpack.c.bf16 %v1646, %v1645
  %v1692 = vpack.c.bf16 %v1648, %v1647
  %v1693 = vpack.c.bf16 %v1650, %v1649
  %v1694 = vpack.c.bf16 %v1652, %v1651
  %v1695 = vpack.c.bf16 %v1654, %v1653
  %v1696 = vpack.c.bf16 %v1656, %v1655
  %v1697 = vpack.c.bf16 %v1658, %v1657
  %v1698 = vpack.c.bf16 %v1660, %v1659
  %v1699 = vpack.c.bf16 %v1662, %v1661
  %v1700 = vpack.c.bf16 %v1664, %v1663
  %v1701 = vpack.c.bf16 %v1666, %v1665
  %v1702 = vpack.c.bf16 %v1668, %v1667
  %v1703 = vpack.c.bf16 %v1670, %v1669
  %v1704 = vpack.c.bf16 %v1672, %v1671
  %v1705 = vld [vmem:[%s2] sm:$0xff]
  %v1706 = vld [vmem:[%s2 + $0x8] sm:$0xff]
  %v1707 = vld [vmem:[%s2 + $0x10] sm:$0xff]
  %v1708 = vld [vmem:[%s2 + $0x18] sm:$0xff]
  %v1709 = vld [vmem:[%s2 + $0x20] sm:$0xff]
  %v1710 = vld [vmem:[%s2 + $0x28] sm:$0xff]
  %v1711 = vld [vmem:[%s2 + $0x30] sm:$0xff]
  %v1712 = vld [vmem:[%s2 + $0x38] sm:$0xff]
  %v1713 = vld [vmem:[%s2 + $0x40] sm:$0xff]
  %v1714 = vld [vmem:[%s2 + $0x48] sm:$0xff]
  %v1715 = vld [vmem:[%s2 + $0x50] sm:$0xff]
  %v1716 = vld [vmem:[%s2 + $0x58] sm:$0xff]
  %v1717 = vld [vmem:[%s2 + $0x60] sm:$0xff]
  %v1718 = vld [vmem:[%s2 + $0x68] sm:$0xff]
  %v1719 = vld [vmem:[%s2 + $0x70] sm:$0xff]
  %v1720 = vld [vmem:[%s2 + $0x78] sm:$0xff]
  %v1721 = vlaneseq
  %v1722 = vshrl.u32 %v1721, 7
  %v1723 = vsub.s32 0, %v1722
  %v1724 = vrot.slane %v89, %v1723
  %v1725 = vlaneseq
  %v1726 = vshrl.u32 %v1725, 7
  %v1727 = vsub.s32 0, %v1726
  %v1728 = vrot.slane %v90, %v1727
  %v1745 = vunpack.c.l.b16 %v1705
  %v1746 = vunpack.c.h.b16 %v1705
  %v1747 = vunpack.c.l.b16 %v1706
  %v1748 = vunpack.c.h.b16 %v1706
  %v1749 = vunpack.c.l.b16 %v1707
  %v1750 = vunpack.c.h.b16 %v1707
  %v1751 = vunpack.c.l.b16 %v1708
  %v1752 = vunpack.c.h.b16 %v1708
  %v1753 = vunpack.c.l.b16 %v1709
  %v1754 = vunpack.c.h.b16 %v1709
  %v1755 = vunpack.c.l.b16 %v1710
  %v1756 = vunpack.c.h.b16 %v1710
  %v1757 = vunpack.c.l.b16 %v1711
  %v1758 = vunpack.c.h.b16 %v1711
  %v1759 = vunpack.c.l.b16 %v1712
  %v1760 = vunpack.c.h.b16 %v1712
  %v1761 = vunpack.c.l.b16 %v1713
  %v1762 = vunpack.c.h.b16 %v1713
  %v1763 = vunpack.c.l.b16 %v1714
  %v1764 = vunpack.c.h.b16 %v1714
  %v1765 = vunpack.c.l.b16 %v1715
  %v1766 = vunpack.c.h.b16 %v1715
  %v1767 = vunpack.c.l.b16 %v1716
  %v1768 = vunpack.c.h.b16 %v1716
  %v1769 = vunpack.c.l.b16 %v1717
  %v1770 = vunpack.c.h.b16 %v1717
  %v1771 = vunpack.c.l.b16 %v1718
  %v1772 = vunpack.c.h.b16 %v1718
  %v1773 = vunpack.c.l.b16 %v1719
  %v1774 = vunpack.c.h.b16 %v1719
  %v1775 = vunpack.c.l.b16 %v1720
  %v1776 = vunpack.c.h.b16 %v1720
  %v1777 = vpack.c.b16 %v1747, %v1745
  %v1778 = vpack.c.b16 %v1748, %v1746
  %v1779 = vpack.c.b16 %v1751, %v1749
  %v1780 = vpack.c.b16 %v1752, %v1750
  %v1781 = vpack.c.b16 %v1755, %v1753
  %v1782 = vpack.c.b16 %v1756, %v1754
  %v1783 = vpack.c.b16 %v1759, %v1757
  %v1784 = vpack.c.b16 %v1760, %v1758
  %v1785 = vpack.c.b16 %v1763, %v1761
  %v1786 = vpack.c.b16 %v1764, %v1762
  %v1787 = vpack.c.b16 %v1767, %v1765
  %v1788 = vpack.c.b16 %v1768, %v1766
  %v1789 = vpack.c.b16 %v1771, %v1769
  %v1790 = vpack.c.b16 %v1772, %v1770
  %v1791 = vpack.c.b16 %v1775, %v1773
  %v1792 = vpack.c.b16 %v1776, %v1774
  %1809 = vmatprep.subr.bf16.mxu0 %v1778
  %1810 = vmatpush1.bf16.msra.mxu0 %v1777
  %1811 = vmatprep.subr.bf16.mxu0 %v1780
  %1812 = vmatpush1.bf16.msra.mxu0 %v1779
  %1813 = vmatprep.subr.bf16.mxu0 %v1782
  %1814 = vmatpush1.bf16.msra.mxu0 %v1781
  %1815 = vmatprep.subr.bf16.mxu0 %v1784
  %1816 = vmatpush1.bf16.msra.mxu0 %v1783
  %1817 = vmatprep.subr.bf16.mxu0 %v1786
  %1818 = vmatpush1.bf16.msra.mxu0 %v1785
  %1819 = vmatprep.subr.bf16.mxu0 %v1788
  %1820 = vmatpush1.bf16.msra.mxu0 %v1787
  %1821 = vmatprep.subr.bf16.mxu0 %v1790
  %1822 = vmatpush1.bf16.msra.mxu0 %v1789
  %1823 = vmatprep.subr.bf16.mxu0 %v1792
  %1824 = vmatpush1.bf16.msra.mxu0 %v1791
  %1825 = vmatprep.subr.bf16.mxu0 0
  %1826 = vmatpush1.bf16.msra.mxu0 0
  %1827 = vmatprep.subr.bf16.mxu0 0
  %1828 = vmatpush1.bf16.msra.mxu0 0
  %1829 = vmatprep.subr.bf16.mxu0 0
  %1830 = vmatpush1.bf16.msra.mxu0 0
  %1831 = vmatprep.subr.bf16.mxu0 0
  %1832 = vmatpush1.bf16.msra.mxu0 0
  %1833 = vmatprep.subr.bf16.mxu0 0
  %1834 = vmatpush1.bf16.msra.mxu0 0
  %1835 = vmatprep.subr.bf16.mxu0 0
  %1836 = vmatpush1.bf16.msra.mxu0 0
  %1837 = vmatprep.subr.bf16.mxu0 0
  %1838 = vmatpush1.bf16.msra.mxu0 0
  %1839 = vmatprep.subr.bf16.mxu0 0
  %1840 = vmatpush1.bf16.msra.mxu0 0
  %1841 = vmatprep.mubr.bf16.mxu0 0
  %1842 = vmatmul.mubr.bf16.gmra.mrb[0].mxu0 %v1673
  %v1843 = vpop.f32.mrb[0].mxu0
  %v1844 = vadd.f32 %v1724, %v1843
  %v1845 = vpop.f32.mrb[0].mxu0
  %v1846 = vadd.f32 %v1728, %v1845
  %v1847 = vpop.f32.mrb[0].mxu0
  %v1848 = vadd.f32 %v1724, %v1847
  %v1849 = vpop.f32.mrb[0].mxu0
  %v1850 = vadd.f32 %v1728, %v1849
  %1851 = vmatprep.mubr.bf16.mxu0 0
  %1852 = vmatmul.mubr.bf16.gmra.mrb[0].mxu0 %v1674
  %v1853 = vpop.f32.mrb[0].mxu0
  %v1854 = vadd.f32 %v1724, %v1853
  %v1855 = vpop.f32.mrb[0].mxu0
  %v1856 = vadd.f32 %v1728, %v1855
  %v1857 = vpop.f32.mrb[0].mxu0
  %v1858 = vadd.f32 %v1724, %v1857
  %v1859 = vpop.f32.mrb[0].mxu0
  %v1860 = vadd.f32 %v1728, %v1859
  %1861 = vmatprep.mubr.bf16.mxu0 0
  %1862 = vmatmul.mubr.bf16.gmra.mrb[0].mxu0 %v1675
  %v1863 = vpop.f32.mrb[0].mxu0
  %v1864 = vadd.f32 %v1724, %v1863
  %v1865 = vpop.f32.mrb[0].mxu0
  %v1866 = vadd.f32 %v1728, %v1865
  %v1867 = vpop.f32.mrb[0].mxu0
  %v1868 = vadd.f32 %v1724, %v1867
  %v1869 = vpop.f32.mrb[0].mxu0
  %v1870 = vadd.f32 %v1728, %v1869
  %1871 = vmatprep.mubr.bf16.mxu0 0
  %1872 = vmatmul.mubr.bf16.gmra.mrb[0].mxu0 %v1676
  %v1873 = vpop.f32.mrb[0].mxu0
  %v1874 = vadd.f32 %v1724, %v1873
  %v1875 = vpop.f32.mrb[0].mxu0
  %v1876 = vadd.f32 %v1728, %v1875
  %v1877 = vpop.f32.mrb[0].mxu0
  %v1878 = vadd.f32 %v1724, %v1877
  %v1879 = vpop.f32.mrb[0].mxu0
  %v1880 = vadd.f32 %v1728, %v1879
  %1881 = vmatprep.mubr.bf16.mxu0 0
  %1882 = vmatmul.mubr.bf16.gmra.mrb[0].mxu0 %v1677
  %v1883 = vpop.f32.mrb[0].mxu0
  %v1884 = vadd.f32 %v1724, %v1883
  %v1885 = vpop.f32.mrb[0].mxu0
  %v1886 = vadd.f32 %v1728, %v1885
  %v1887 = vpop.f32.mrb[0].mxu0
  %v1888 = vadd.f32 %v1724, %v1887
  %v1889 = vpop.f32.mrb[0].mxu0
  %v1890 = vadd.f32 %v1728, %v1889
  %1891 = vmatprep.mubr.bf16.mxu0 0
  %1892 = vmatmul.mubr.bf16.gmra.mrb[0].mxu0 %v1678
  %v1893 = vpop.f32.mrb[0].mxu0
  %v1894 = vadd.f32 %v1724, %v1893
  %v1895 = vpop.f32.mrb[0].mxu0
  %v1896 = vadd.f32 %v1728, %v1895
  %v1897 = vpop.f32.mrb[0].mxu0
  %v1898 = vadd.f32 %v1724, %v1897
  %v1899 = vpop.f32.mrb[0].mxu0
  %v1900 = vadd.f32 %v1728, %v1899
  %1901 = vmatprep.mubr.bf16.mxu0 0
  %1902 = vmatmul.mubr.bf16.gmra.mrb[0].mxu0 %v1679
  %v1903 = vpop.f32.mrb[0].mxu0
  %v1904 = vadd.f32 %v1724, %v1903
  %v1905 = vpop.f32.mrb[0].mxu0
  %v1906 = vadd.f32 %v1728, %v1905
  %v1907 = vpop.f32.mrb[0].mxu0
  %v1908 = vadd.f32 %v1724, %v1907
  %v1909 = vpop.f32.mrb[0].mxu0
  %v1910 = vadd.f32 %v1728, %v1909
  %1911 = vmatprep.mubr.bf16.mxu0 0
  %1912 = vmatmul.mubr.bf16.gmra.mrb[0].mxu0 %v1680
  %v1913 = vpop.f32.mrb[0].mxu0
  %v1914 = vadd.f32 %v1724, %v1913
  %v1915 = vpop.f32.mrb[0].mxu0
  %v1916 = vadd.f32 %v1728, %v1915
  %v1917 = vpop.f32.mrb[0].mxu0
  %v1918 = vadd.f32 %v1724, %v1917
  %v1919 = vpop.f32.mrb[0].mxu0
  %v1920 = vadd.f32 %v1728, %v1919
  %1921 = vmatprep.mubr.bf16.mxu0 0
  %1922 = vmatmul.mubr.bf16.gmra.mrb[0].mxu0 %v1681
  %v1923 = vpop.f32.mrb[0].mxu0
  %v1924 = vadd.f32 %v1724, %v1923
  %v1925 = vpop.f32.mrb[0].mxu0
  %v1926 = vadd.f32 %v1728, %v1925
  %v1927 = vpop.f32.mrb[0].mxu0
  %v1928 = vadd.f32 %v1724, %v1927
  %v1929 = vpop.f32.mrb[0].mxu0
  %v1930 = vadd.f32 %v1728, %v1929
  %1931 = vmatprep.mubr.bf16.mxu0 0
  %1932 = vmatmul.mubr.bf16.gmra.mrb[0].mxu0 %v1682
  %v1933 = vpop.f32.mrb[0].mxu0
  %v1934 = vadd.f32 %v1724, %v1933
  %v1935 = vpop.f32.mrb[0].mxu0
  %v1936 = vadd.f32 %v1728, %v1935
  %v1937 = vpop.f32.mrb[0].mxu0
  %v1938 = vadd.f32 %v1724, %v1937
  %v1939 = vpop.f32.mrb[0].mxu0
  %v1940 = vadd.f32 %v1728, %v1939
  %1941 = vmatprep.mubr.bf16.mxu0 0
  %1942 = vmatmul.mubr.bf16.gmra.mrb[0].mxu0 %v1683
  %v1943 = vpop.f32.mrb[0].mxu0
  %v1944 = vadd.f32 %v1724, %v1943
  %v1945 = vpop.f32.mrb[0].mxu0
  %v1946 = vadd.f32 %v1728, %v1945
  %v1947 = vpop.f32.mrb[0].mxu0
  %v1948 = vadd.f32 %v1724, %v1947
  %v1949 = vpop.f32.mrb[0].mxu0
  %v1950 = vadd.f32 %v1728, %v1949
  %1951 = vmatprep.mubr.bf16.mxu0 0
  %1952 = vmatmul.mubr.bf16.gmra.mrb[0].mxu0 %v1684
  %v1953 = vpop.f32.mrb[0].mxu0
  %v1954 = vadd.f32 %v1724, %v1953
  %v1955 = vpop.f32.mrb[0].mxu0
  %v1956 = vadd.f32 %v1728, %v1955
  %v1957 = vpop.f32.mrb[0].mxu0
  %v1958 = vadd.f32 %v1724, %v1957
  %v1959 = vpop.f32.mrb[0].mxu0
  %v1960 = vadd.f32 %v1728, %v1959
  %1961 = vmatprep.mubr.bf16.mxu0 0
  %1962 = vmatmul.mubr.bf16.gmra.mrb[0].mxu0 %v1685
  %v1963 = vpop.f32.mrb[0].mxu0
  %v1964 = vadd.f32 %v1724, %v1963
  %v1965 = vpop.f32.mrb[0].mxu0
  %v1966 = vadd.f32 %v1728, %v1965
  %v1967 = vpop.f32.mrb[0].mxu0
  %v1968 = vadd.f32 %v1724, %v1967
  %v1969 = vpop.f32.mrb[0].mxu0
  %v1970 = vadd.f32 %v1728, %v1969
  %1971 = vmatprep.mubr.bf16.mxu0 0
  %1972 = vmatmul.mubr.bf16.gmra.mrb[0].mxu0 %v1686
  %v1973 = vpop.f32.mrb[0].mxu0
  %v1974 = vadd.f32 %v1724, %v1973
  %v1975 = vpop.f32.mrb[0].mxu0
  %v1976 = vadd.f32 %v1728, %v1975
  %v1977 = vpop.f32.mrb[0].mxu0
  %v1978 = vadd.f32 %v1724, %v1977
  %v1979 = vpop.f32.mrb[0].mxu0
  %v1980 = vadd.f32 %v1728, %v1979
  %1981 = vmatprep.mubr.bf16.mxu0 0
  %1982 = vmatmul.mubr.bf16.gmra.mrb[0].mxu0 %v1687
  %v1983 = vpop.f32.mrb[0].mxu0
  %v1984 = vadd.f32 %v1724, %v1983
  %v1985 = vpop.f32.mrb[0].mxu0
  %v1986 = vadd.f32 %v1728, %v1985
  %v1987 = vpop.f32.mrb[0].mxu0
  %v1988 = vadd.f32 %v1724, %v1987
  %v1989 = vpop.f32.mrb[0].mxu0
  %v1990 = vadd.f32 %v1728, %v1989
  %1991 = vmatprep.mubr.bf16.mxu0 0
  %1992 = vmatmul.mubr.bf16.gmra.mrb[0].mxu0 %v1688
  %v1993 = vpop.f32.mrb[0].mxu0
  %v1994 = vadd.f32 %v1724, %v1993
  %v1995 = vpop.f32.mrb[0].mxu0
  %v1996 = vadd.f32 %v1728, %v1995
  %v1997 = vpop.f32.mrb[0].mxu0
  %v1998 = vadd.f32 %v1724, %v1997
  %v1999 = vpop.f32.mrb[0].mxu0
  %v2000 = vadd.f32 %v1728, %v1999
  %2001 = vmatprep.mubr.bf16.mxu0 0
  %2002 = vmatmul.mubr.bf16.gmra.mrb[0].mxu0 %v1689
  %v2003 = vpop.f32.mrb[0].mxu0
  %v2004 = vadd.f32 %v1724, %v2003
  %v2005 = vpop.f32.mrb[0].mxu0
  %v2006 = vadd.f32 %v1728, %v2005
  %v2007 = vpop.f32.mrb[0].mxu0
  %v2008 = vadd.f32 %v1724, %v2007
  %v2009 = vpop.f32.mrb[0].mxu0
  %v2010 = vadd.f32 %v1728, %v2009
  %2011 = vmatprep.mubr.bf16.mxu0 0
  %2012 = vmatmul.mubr.bf16.gmra.mrb[0].mxu0 %v1690
  %v2013 = vpop.f32.mrb[0].mxu0
  %v2014 = vadd.f32 %v1724, %v2013
  %v2015 = vpop.f32.mrb[0].mxu0
  %v2016 = vadd.f32 %v1728, %v2015
  %v2017 = vpop.f32.mrb[0].mxu0
  %v2018 = vadd.f32 %v1724, %v2017
  %v2019 = vpop.f32.mrb[0].mxu0
  %v2020 = vadd.f32 %v1728, %v2019
  %2021 = vmatprep.mubr.bf16.mxu0 0
  %2022 = vmatmul.mubr.bf16.gmra.mrb[0].mxu0 %v1691
  %v2023 = vpop.f32.mrb[0].mxu0
  %v2024 = vadd.f32 %v1724, %v2023
  %v2025 = vpop.f32.mrb[0].mxu0
  %v2026 = vadd.f32 %v1728, %v2025
  %v2027 = vpop.f32.mrb[0].mxu0
  %v2028 = vadd.f32 %v1724, %v2027
  %v2029 = vpop.f32.mrb[0].mxu0
  %v2030 = vadd.f32 %v1728, %v2029
  %2031 = vmatprep.mubr.bf16.mxu0 0
  %2032 = vmatmul.mubr.bf16.gmra.mrb[0].mxu0 %v1692
  %v2033 = vpop.f32.mrb[0].mxu0
  %v2034 = vadd.f32 %v1724, %v2033
  %v2035 = vpop.f32.mrb[0].mxu0
  %v2036 = vadd.f32 %v1728, %v2035
  %v2037 = vpop.f32.mrb[0].mxu0
  %v2038 = vadd.f32 %v1724, %v2037
  %v2039 = vpop.f32.mrb[0].mxu0
  %v2040 = vadd.f32 %v1728, %v2039
  %2041 = vmatprep.mubr.bf16.mxu0 0
  %2042 = vmatmul.mubr.bf16.gmra.mrb[0].mxu0 %v1693
  %v2043 = vpop.f32.mrb[0].mxu0
  %v2044 = vadd.f32 %v1724, %v2043
  %v2045 = vpop.f32.mrb[0].mxu0
  %v2046 = vadd.f32 %v1728, %v2045
  %v2047 = vpop.f32.mrb[0].mxu0
  %v2048 = vadd.f32 %v1724, %v2047
  %v2049 = vpop.f32.mrb[0].mxu0
  %v2050 = vadd.f32 %v1728, %v2049
  %2051 = vmatprep.mubr.bf16.mxu0 0
  %2052 = vmatmul.mubr.bf16.gmra.mrb[0].mxu0 %v1694
  %v2053 = vpop.f32.mrb[0].mxu0
  %v2054 = vadd.f32 %v1724, %v2053
  %v2055 = vpop.f32.mrb[0].mxu0
  %v2056 = vadd.f32 %v1728, %v2055
  %v2057 = vpop.f32.mrb[0].mxu0
  %v2058 = vadd.f32 %v1724, %v2057
  %v2059 = vpop.f32.mrb[0].mxu0
  %v2060 = vadd.f32 %v1728, %v2059
  %2061 = vmatprep.mubr.bf16.mxu0 0
  %2062 = vmatmul.mubr.bf16.gmra.mrb[0].mxu0 %v1695
  %v2063 = vpop.f32.mrb[0].mxu0
  %v2064 = vadd.f32 %v1724, %v2063
  %v2065 = vpop.f32.mrb[0].mxu0
  %v2066 = vadd.f32 %v1728, %v2065
  %v2067 = vpop.f32.mrb[0].mxu0
  %v2068 = vadd.f32 %v1724, %v2067
  %v2069 = vpop.f32.mrb[0].mxu0
  %v2070 = vadd.f32 %v1728, %v2069
  %2071 = vmatprep.mubr.bf16.mxu0 0
  %2072 = vmatmul.mubr.bf16.gmra.mrb[0].mxu0 %v1696
  %v2073 = vpop.f32.mrb[0].mxu0
  %v2074 = vadd.f32 %v1724, %v2073
  %v2075 = vpop.f32.mrb[0].mxu0
  %v2076 = vadd.f32 %v1728, %v2075
  %v2077 = vpop.f32.mrb[0].mxu0
  %v2078 = vadd.f32 %v1724, %v2077
  %v2079 = vpop.f32.mrb[0].mxu0
  %v2080 = vadd.f32 %v1728, %v2079
  %2081 = vmatprep.mubr.bf16.mxu0 0
  %2082 = vmatmul.mubr.bf16.gmra.mrb[0].mxu0 %v1697
  %v2083 = vpop.f32.mrb[0].mxu0
  %v2084 = vadd.f32 %v1724, %v2083
  %v2085 = vpop.f32.mrb[0].mxu0
  %v2086 = vadd.f32 %v1728, %v2085
  %v2087 = vpop.f32.mrb[0].mxu0
  %v2088 = vadd.f32 %v1724, %v2087
  %v2089 = vpop.f32.mrb[0].mxu0
  %v2090 = vadd.f32 %v1728, %v2089
  %2091 = vmatprep.mubr.bf16.mxu0 0
  %2092 = vmatmul.mubr.bf16.gmra.mrb[0].mxu0 %v1698
  %v2093 = vpop.f32.mrb[0].mxu0
  %v2094 = vadd.f32 %v1724, %v2093
  %v2095 = vpop.f32.mrb[0].mxu0
  %v2096 = vadd.f32 %v1728, %v2095
  %v2097 = vpop.f32.mrb[0].mxu0
  %v2098 = vadd.f32 %v1724, %v2097
  %v2099 = vpop.f32.mrb[0].mxu0
  %v2100 = vadd.f32 %v1728, %v2099
  %2101 = vmatprep.mubr.bf16.mxu0 0
  %2102 = vmatmul.mubr.bf16.gmra.mrb[0].mxu0 %v1699
  %v2103 = vpop.f32.mrb[0].mxu0
  %v2104 = vadd.f32 %v1724, %v2103
  %v2105 = vpop.f32.mrb[0].mxu0
  %v2106 = vadd.f32 %v1728, %v2105
  %v2107 = vpop.f32.mrb[0].mxu0
  %v2108 = vadd.f32 %v1724, %v2107
  %v2109 = vpop.f32.mrb[0].mxu0
  %v2110 = vadd.f32 %v1728, %v2109
  %2111 = vmatprep.mubr.bf16.mxu0 0
  %2112 = vmatmul.mubr.bf16.gmra.mrb[0].mxu0 %v1700
  %v2113 = vpop.f32.mrb[0].mxu0
  %v2114 = vadd.f32 %v1724, %v2113
  %v2115 = vpop.f32.mrb[0].mxu0
  %v2116 = vadd.f32 %v1728, %v2115
  %v2117 = vpop.f32.mrb[0].mxu0
  %v2118 = vadd.f32 %v1724, %v2117
  %v2119 = vpop.f32.mrb[0].mxu0
  %v2120 = vadd.f32 %v1728, %v2119
  %2121 = vmatprep.mubr.bf16.mxu0 0
  %2122 = vmatmul.mubr.bf16.gmra.mrb[0].mxu0 %v1701
  %v2123 = vpop.f32.mrb[0].mxu0
  %v2124 = vadd.f32 %v1724, %v2123
  %v2125 = vpop.f32.mrb[0].mxu0
  %v2126 = vadd.f32 %v1728, %v2125
  %v2127 = vpop.f32.mrb[0].mxu0
  %v2128 = vadd.f32 %v1724, %v2127
  %v2129 = vpop.f32.mrb[0].mxu0
  %v2130 = vadd.f32 %v1728, %v2129
  %2131 = vmatprep.mubr.bf16.mxu0 0
  %2132 = vmatmul.mubr.bf16.gmra.mrb[0].mxu0 %v1702
  %v2133 = vpop.f32.mrb[0].mxu0
  %v2134 = vadd.f32 %v1724, %v2133
  %v2135 = vpop.f32.mrb[0].mxu0
  %v2136 = vadd.f32 %v1728, %v2135
  %v2137 = vpop.f32.mrb[0].mxu0
  %v2138 = vadd.f32 %v1724, %v2137
  %v2139 = vpop.f32.mrb[0].mxu0
  %v2140 = vadd.f32 %v1728, %v2139
  %2141 = vmatprep.mubr.bf16.mxu0 0
  %2142 = vmatmul.mubr.bf16.gmra.mrb[0].mxu0 %v1703
  %v2143 = vpop.f32.mrb[0].mxu0
  %v2144 = vadd.f32 %v1724, %v2143
  %v2145 = vpop.f32.mrb[0].mxu0
  %v2146 = vadd.f32 %v1728, %v2145
  %v2147 = vpop.f32.mrb[0].mxu0
  %v2148 = vadd.f32 %v1724, %v2147
  %v2149 = vpop.f32.mrb[0].mxu0
  %v2150 = vadd.f32 %v1728, %v2149
  %2151 = vmatprep.mubr.bf16.mxu0 0
  %2152 = vmatmul.mubr.bf16.gmra.mrb[0].mxu0 %v1704
  %v2153 = vpop.f32.mrb[0].mxu0
  %v2154 = vadd.f32 %v1724, %v2153
  %v2155 = vpop.f32.mrb[0].mxu0
  %v2156 = vadd.f32 %v1728, %v2155
  %v2157 = vpop.f32.mrb[0].mxu0
  %v2158 = vadd.f32 %v1724, %v2157
  %v2159 = vpop.f32.mrb[0].mxu0
  %v2160 = vadd.f32 %v1728, %v2159
  %2161 = vdwg.mxu0
  %v2162 = vadd.f32 %v1844, %v1846
  %2163 = vadd.xlane.f32.xlu0 %v2162
  %v2164 = vpop.xlane.xlu0 %2163
  %v2165 = vadd.f32 %v1848, %v1850
  %2166 = vadd.xlane.f32.xlu0 %v2165
  %v2167 = vpop.xlane.xlu0 %2166
  %v2168 = vadd.f32 %v1854, %v1856
  %2169 = vadd.xlane.f32.xlu0 %v2168
  %v2170 = vpop.xlane.xlu0 %2169
  %v2171 = vadd.f32 %v1858, %v1860
  %2172 = vadd.xlane.f32.xlu0 %v2171
  %v2173 = vpop.xlane.xlu0 %2172
  %v2174 = vadd.f32 %v1864, %v1866
  %2175 = vadd.xlane.f32.xlu0 %v2174
  %v2176 = vpop.xlane.xlu0 %2175
  %v2177 = vadd.f32 %v1868, %v1870
  %2178 = vadd.xlane.f32.xlu0 %v2177
  %v2179 = vpop.xlane.xlu0 %2178
  %v2180 = vadd.f32 %v1874, %v1876
  %2181 = vadd.xlane.f32.xlu0 %v2180
  %v2182 = vpop.xlane.xlu0 %2181
  %v2183 = vadd.f32 %v1878, %v1880
  %2184 = vadd.xlane.f32.xlu0 %v2183
  %v2185 = vpop.xlane.xlu0 %2184
  %v2186 = vadd.f32 %v1884, %v1886
  %2187 = vadd.xlane.f32.xlu0 %v2186
  %v2188 = vpop.xlane.xlu0 %2187
  %v2189 = vadd.f32 %v1888, %v1890
  %2190 = vadd.xlane.f32.xlu0 %v2189
  %v2191 = vpop.xlane.xlu0 %2190
  %v2192 = vadd.f32 %v1894, %v1896
  %2193 = vadd.xlane.f32.xlu0 %v2192
  %v2194 = vpop.xlane.xlu0 %2193
  %v2195 = vadd.f32 %v1898, %v1900
  %2196 = vadd.xlane.f32.xlu0 %v2195
  %v2197 = vpop.xlane.xlu0 %2196
  %v2198 = vadd.f32 %v1904, %v1906
  %2199 = vadd.xlane.f32.xlu0 %v2198
  %v2200 = vpop.xlane.xlu0 %2199
  %v2201 = vadd.f32 %v1908, %v1910
  %2202 = vadd.xlane.f32.xlu0 %v2201
  %v2203 = vpop.xlane.xlu0 %2202
  %v2204 = vadd.f32 %v1914, %v1916
  %2205 = vadd.xlane.f32.xlu0 %v2204
  %v2206 = vpop.xlane.xlu0 %2205
  %v2207 = vadd.f32 %v1918, %v1920
  %2208 = vadd.xlane.f32.xlu0 %v2207
  %v2209 = vpop.xlane.xlu0 %2208
  %v2210 = vadd.f32 %v1924, %v1926
  %2211 = vadd.xlane.f32.xlu0 %v2210
  %v2212 = vpop.xlane.xlu0 %2211
  %v2213 = vadd.f32 %v1928, %v1930
  %2214 = vadd.xlane.f32.xlu0 %v2213
  %v2215 = vpop.xlane.xlu0 %2214
  %v2216 = vadd.f32 %v1934, %v1936
  %2217 = vadd.xlane.f32.xlu0 %v2216
  %v2218 = vpop.xlane.xlu0 %2217
  %v2219 = vadd.f32 %v1938, %v1940
  %2220 = vadd.xlane.f32.xlu0 %v2219
  %v2221 = vpop.xlane.xlu0 %2220
  %v2222 = vadd.f32 %v1944, %v1946
  %2223 = vadd.xlane.f32.xlu0 %v2222
  %v2224 = vpop.xlane.xlu0 %2223
  %v2225 = vadd.f32 %v1948, %v1950
  %2226 = vadd.xlane.f32.xlu0 %v2225
  %v2227 = vpop.xlane.xlu0 %2226
  %v2228 = vadd.f32 %v1954, %v1956
  %2229 = vadd.xlane.f32.xlu0 %v2228
  %v2230 = vpop.xlane.xlu0 %2229
  %v2231 = vadd.f32 %v1958, %v1960
  %2232 = vadd.xlane.f32.xlu0 %v2231
  %v2233 = vpop.xlane.xlu0 %2232
  %v2234 = vadd.f32 %v1964, %v1966
  %2235 = vadd.xlane.f32.xlu0 %v2234
  %v2236 = vpop.xlane.xlu0 %2235
  %v2237 = vadd.f32 %v1968, %v1970
  %2238 = vadd.xlane.f32.xlu0 %v2237
  %v2239 = vpop.xlane.xlu0 %2238
  %v2240 = vadd.f32 %v1974, %v1976
  %2241 = vadd.xlane.f32.xlu0 %v2240
  %v2242 = vpop.xlane.xlu0 %2241
  %v2243 = vadd.f32 %v1978, %v1980
  %2244 = vadd.xlane.f32.xlu0 %v2243
  %v2245 = vpop.xlane.xlu0 %2244
  %v2246 = vadd.f32 %v1984, %v1986
  %2247 = vadd.xlane.f32.xlu0 %v2246
  %v2248 = vpop.xlane.xlu0 %2247
  %v2249 = vadd.f32 %v1988, %v1990
  %2250 = vadd.xlane.f32.xlu0 %v2249
  %v2251 = vpop.xlane.xlu0 %2250
  %v2252 = vadd.f32 %v1994, %v1996
  %2253 = vadd.xlane.f32.xlu0 %v2252
  %v2254 = vpop.xlane.xlu0 %2253
  %v2255 = vadd.f32 %v1998, %v2000
  %2256 = vadd.xlane.f32.xlu0 %v2255
  %v2257 = vpop.xlane.xlu0 %2256
  %v2258 = vadd.f32 %v2004, %v2006
  %2259 = vadd.xlane.f32.xlu0 %v2258
  %v2260 = vpop.xlane.xlu0 %2259
  %v2261 = vadd.f32 %v2008, %v2010
  %2262 = vadd.xlane.f32.xlu0 %v2261
  %v2263 = vpop.xlane.xlu0 %2262
  %v2264 = vadd.f32 %v2014, %v2016
  %2265 = vadd.xlane.f32.xlu0 %v2264
  %v2266 = vpop.xlane.xlu0 %2265
  %v2267 = vadd.f32 %v2018, %v2020
  %2268 = vadd.xlane.f32.xlu0 %v2267
  %v2269 = vpop.xlane.xlu0 %2268
  %v2270 = vadd.f32 %v2024, %v2026
  %2271 = vadd.xlane.f32.xlu0 %v2270
  %v2272 = vpop.xlane.xlu0 %2271
  %v2273 = vadd.f32 %v2028, %v2030
  %2274 = vadd.xlane.f32.xlu0 %v2273
  %v2275 = vpop.xlane.xlu0 %2274
  %v2276 = vadd.f32 %v2034, %v2036
  %2277 = vadd.xlane.f32.xlu0 %v2276
  %v2278 = vpop.xlane.xlu0 %2277
  %v2279 = vadd.f32 %v2038, %v2040
  %2280 = vadd.xlane.f32.xlu0 %v2279
  %v2281 = vpop.xlane.xlu0 %2280
  %v2282 = vadd.f32 %v2044, %v2046
  %2283 = vadd.xlane.f32.xlu0 %v2282
  %v2284 = vpop.xlane.xlu0 %2283
  %v2285 = vadd.f32 %v2048, %v2050
  %2286 = vadd.xlane.f32.xlu0 %v2285
  %v2287 = vpop.xlane.xlu0 %2286
  %v2288 = vadd.f32 %v2054, %v2056
  %2289 = vadd.xlane.f32.xlu0 %v2288
  %v2290 = vpop.xlane.xlu0 %2289
  %v2291 = vadd.f32 %v2058, %v2060
  %2292 = vadd.xlane.f32.xlu0 %v2291
  %v2293 = vpop.xlane.xlu0 %2292
  %v2294 = vadd.f32 %v2064, %v2066
  %2295 = vadd.xlane.f32.xlu0 %v2294
  %v2296 = vpop.xlane.xlu0 %2295
  %v2297 = vadd.f32 %v2068, %v2070
  %2298 = vadd.xlane.f32.xlu0 %v2297
  %v2299 = vpop.xlane.xlu0 %2298
  %v2300 = vadd.f32 %v2074, %v2076
  %2301 = vadd.xlane.f32.xlu0 %v2300
  %v2302 = vpop.xlane.xlu0 %2301
  %v2303 = vadd.f32 %v2078, %v2080
  %2304 = vadd.xlane.f32.xlu0 %v2303
  %v2305 = vpop.xlane.xlu0 %2304
  %v2306 = vadd.f32 %v2084, %v2086
  %2307 = vadd.xlane.f32.xlu0 %v2306
  %v2308 = vpop.xlane.xlu0 %2307
  %v2309 = vadd.f32 %v2088, %v2090
  %2310 = vadd.xlane.f32.xlu0 %v2309
  %v2311 = vpop.xlane.xlu0 %2310
  %v2312 = vadd.f32 %v2094, %v2096
  %2313 = vadd.xlane.f32.xlu0 %v2312
  %v2314 = vpop.xlane.xlu0 %2313
  %v2315 = vadd.f32 %v2098, %v2100
  %2316 = vadd.xlane.f32.xlu0 %v2315
  %v2317 = vpop.xlane.xlu0 %2316
  %v2318 = vadd.f32 %v2104, %v2106
  %2319 = vadd.xlane.f32.xlu0 %v2318
  %v2320 = vpop.xlane.xlu0 %2319
  %v2321 = vadd.f32 %v2108, %v2110
  %2322 = vadd.xlane.f32.xlu0 %v2321
  %v2323 = vpop.xlane.xlu0 %2322
  %v2324 = vadd.f32 %v2114, %v2116
  %2325 = vadd.xlane.f32.xlu0 %v2324
  %v2326 = vpop.xlane.xlu0 %2325
  %v2327 = vadd.f32 %v2118, %v2120
  %2328 = vadd.xlane.f32.xlu0 %v2327
  %v2329 = vpop.xlane.xlu0 %2328
  %v2330 = vadd.f32 %v2124, %v2126
  %2331 = vadd.xlane.f32.xlu0 %v2330
  %v2332 = vpop.xlane.xlu0 %2331
  %v2333 = vadd.f32 %v2128, %v2130
  %2334 = vadd.xlane.f32.xlu0 %v2333
  %v2335 = vpop.xlane.xlu0 %2334
  %v2336 = vadd.f32 %v2134, %v2136
  %2337 = vadd.xlane.f32.xlu0 %v2336
  %v2338 = vpop.xlane.xlu0 %2337
  %v2339 = vadd.f32 %v2138, %v2140
  %2340 = vadd.xlane.f32.xlu0 %v2339
  %v2341 = vpop.xlane.xlu0 %2340
  %v2342 = vadd.f32 %v2144, %v2146
  %2343 = vadd.xlane.f32.xlu0 %v2342
  %v2344 = vpop.xlane.xlu0 %2343
  %v2345 = vadd.f32 %v2148, %v2150
  %2346 = vadd.xlane.f32.xlu0 %v2345
  %v2347 = vpop.xlane.xlu0 %2346
  %v2348 = vadd.f32 %v2154, %v2156
  %2349 = vadd.xlane.f32.xlu0 %v2348
  %v2350 = vpop.xlane.xlu0 %2349
  %v2351 = vadd.f32 %v2158, %v2160
  %2352 = vadd.xlane.f32.xlu0 %v2351
  %v2353 = vpop.xlane.xlu0 %2352
  %v2354 = vrcp.pop 256.0
  %v2355 = vmul.f32 %v2164, %v2354
  %v2356 = vmul.f32 %v2167, %v2354
  %v2357 = vmul.f32 %v2170, %v2354
  %v2358 = vmul.f32 %v2173, %v2354
  %v2359 = vmul.f32 %v2176, %v2354
  %v2360 = vmul.f32 %v2179, %v2354
  %v2361 = vmul.f32 %v2182, %v2354
  %v2362 = vmul.f32 %v2185, %v2354
  %v2363 = vmul.f32 %v2188, %v2354
  %v2364 = vmul.f32 %v2191, %v2354
  %v2365 = vmul.f32 %v2194, %v2354
  %v2366 = vmul.f32 %v2197, %v2354
  %v2367 = vmul.f32 %v2200, %v2354
  %v2368 = vmul.f32 %v2203, %v2354
  %v2369 = vmul.f32 %v2206, %v2354
  %v2370 = vmul.f32 %v2209, %v2354
  %v2371 = vmul.f32 %v2212, %v2354
  %v2372 = vmul.f32 %v2215, %v2354
  %v2373 = vmul.f32 %v2218, %v2354
  %v2374 = vmul.f32 %v2221, %v2354
  %v2375 = vmul.f32 %v2224, %v2354
  %v2376 = vmul.f32 %v2227, %v2354
  %v2377 = vmul.f32 %v2230, %v2354
  %v2378 = vmul.f32 %v2233, %v2354
  %v2379 = vmul.f32 %v2236, %v2354
  %v2380 = vmul.f32 %v2239, %v2354
  %v2381 = vmul.f32 %v2242, %v2354
  %v2382 = vmul.f32 %v2245, %v2354
  %v2383 = vmul.f32 %v2248, %v2354
  %v2384 = vmul.f32 %v2251, %v2354
  %v2385 = vmul.f32 %v2254, %v2354
  %v2386 = vmul.f32 %v2257, %v2354
  %v2387 = vmul.f32 %v2260, %v2354
  %v2388 = vmul.f32 %v2263, %v2354
  %v2389 = vmul.f32 %v2266, %v2354
  %v2390 = vmul.f32 %v2269, %v2354
  %v2391 = vmul.f32 %v2272, %v2354
  %v2392 = vmul.f32 %v2275, %v2354
  %v2393 = vmul.f32 %v2278, %v2354
  %v2394 = vmul.f32 %v2281, %v2354
  %v2395 = vmul.f32 %v2284, %v2354
  %v2396 = vmul.f32 %v2287, %v2354
  %v2397 = vmul.f32 %v2290, %v2354
  %v2398 = vmul.f32 %v2293, %v2354
  %v2399 = vmul.f32 %v2296, %v2354
  %v2400 = vmul.f32 %v2299, %v2354
  %v2401 = vmul.f32 %v2302, %v2354
  %v2402 = vmul.f32 %v2305, %v2354
  %v2403 = vmul.f32 %v2308, %v2354
  %v2404 = vmul.f32 %v2311, %v2354
  %v2405 = vmul.f32 %v2314, %v2354
  %v2406 = vmul.f32 %v2317, %v2354
  %v2407 = vmul.f32 %v2320, %v2354
  %v2408 = vmul.f32 %v2323, %v2354
  %v2409 = vmul.f32 %v2326, %v2354
  %v2410 = vmul.f32 %v2329, %v2354
  %v2411 = vmul.f32 %v2332, %v2354
  %v2412 = vmul.f32 %v2335, %v2354
  %v2413 = vmul.f32 %v2338, %v2354
  %v2414 = vmul.f32 %v2341, %v2354
  %v2415 = vmul.f32 %v2344, %v2354
  %v2416 = vmul.f32 %v2347, %v2354
  %v2417 = vmul.f32 %v2350, %v2354
  %v2418 = vmul.f32 %v2353, %v2354
  %v2419 = vmul.f32 %v1844, %v1844
  %v2420 = vmul.f32 %v1846, %v1846
  %v2421 = vmul.f32 %v1848, %v1848
  %v2422 = vmul.f32 %v1850, %v1850
  %v2423 = vmul.f32 %v1854, %v1854
  %v2424 = vmul.f32 %v1856, %v1856
  %v2425 = vmul.f32 %v1858, %v1858
  %v2426 = vmul.f32 %v1860, %v1860
  %v2427 = vmul.f32 %v1864, %v1864
  %v2428 = vmul.f32 %v1866, %v1866
  %v2429 = vmul.f32 %v1868, %v1868
  %v2430 = vmul.f32 %v1870, %v1870
  %v2431 = vmul.f32 %v1874, %v1874
  %v2432 = vmul.f32 %v1876, %v1876
  %v2433 = vmul.f32 %v1878, %v1878
  %v2434 = vmul.f32 %v1880, %v1880
  %v2435 = vmul.f32 %v1884, %v1884
  %v2436 = vmul.f32 %v1886, %v1886
  %v2437 = vmul.f32 %v1888, %v1888
  %v2438 = vmul.f32 %v1890, %v1890
  %v2439 = vmul.f32 %v1894, %v1894
  %v2440 = vmul.f32 %v1896, %v1896
  %v2441 = vmul.f32 %v1898, %v1898
  %v2442 = vmul.f32 %v1900, %v1900
  %v2443 = vmul.f32 %v1904, %v1904
  %v2444 = vmul.f32 %v1906, %v1906
  %v2445 = vmul.f32 %v1908, %v1908
  %v2446 = vmul.f32 %v1910, %v1910
  %v2447 = vmul.f32 %v1914, %v1914
  %v2448 = vmul.f32 %v1916, %v1916
  %v2449 = vmul.f32 %v1918, %v1918
  %v2450 = vmul.f32 %v1920, %v1920
  %v2451 = vmul.f32 %v1924, %v1924
  %v2452 = vmul.f32 %v1926, %v1926
  %v2453 = vmul.f32 %v1928, %v1928
  %v2454 = vmul.f32 %v1930, %v1930
  %v2455 = vmul.f32 %v1934, %v1934
  %v2456 = vmul.f32 %v1936, %v1936
  %v2457 = vmul.f32 %v1938, %v1938
  %v2458 = vmul.f32 %v1940, %v1940
  %v2459 = vmul.f32 %v1944, %v1944
  %v2460 = vmul.f32 %v1946, %v1946
  %v2461 = vmul.f32 %v1948, %v1948
  %v2462 = vmul.f32 %v1950, %v1950
  %v2463 = vmul.f32 %v1954, %v1954
  %v2464 = vmul.f32 %v1956, %v1956
  %v2465 = vmul.f32 %v1958, %v1958
  %v2466 = vmul.f32 %v1960, %v1960
  %v2467 = vmul.f32 %v1964, %v1964
  %v2468 = vmul.f32 %v1966, %v1966
  %v2469 = vmul.f32 %v1968, %v1968
  %v2470 = vmul.f32 %v1970, %v1970
  %v2471 = vmul.f32 %v1974, %v1974
  %v2472 = vmul.f32 %v1976, %v1976
  %v2473 = vmul.f32 %v1978, %v1978
  %v2474 = vmul.f32 %v1980, %v1980
  %v2475 = vmul.f32 %v1984, %v1984
  %v2476 = vmul.f32 %v1986, %v1986
  %v2477 = vmul.f32 %v1988, %v1988
  %v2478 = vmul.f32 %v1990, %v1990
  %v2479 = vmul.f32 %v1994, %v1994
  %v2480 = vmul.f32 %v1996, %v1996
  %v2481 = vmul.f32 %v1998, %v1998
  %v2482 = vmul.f32 %v2000, %v2000
  %v2483 = vmul.f32 %v2004, %v2004
  %v2484 = vmul.f32 %v2006, %v2006
  %v2485 = vmul.f32 %v2008, %v2008
  %v2486 = vmul.f32 %v2010, %v2010
  %v2487 = vmul.f32 %v2014, %v2014
  %v2488 = vmul.f32 %v2016, %v2016
  %v2489 = vmul.f32 %v2018, %v2018
  %v2490 = vmul.f32 %v2020, %v2020
  %v2491 = vmul.f32 %v2024, %v2024
  %v2492 = vmul.f32 %v2026, %v2026
  %v2493 = vmul.f32 %v2028, %v2028
  %v2494 = vmul.f32 %v2030, %v2030
  %v2495 = vmul.f32 %v2034, %v2034
  %v2496 = vmul.f32 %v2036, %v2036
  %v2497 = vmul.f32 %v2038, %v2038
  %v2498 = vmul.f32 %v2040, %v2040
  %v2499 = vmul.f32 %v2044, %v2044
  %v2500 = vmul.f32 %v2046, %v2046
  %v2501 = vmul.f32 %v2048, %v2048
  %v2502 = vmul.f32 %v2050, %v2050
  %v2503 = vmul.f32 %v2054, %v2054
  %v2504 = vmul.f32 %v2056, %v2056
  %v2505 = vmul.f32 %v2058, %v2058
  %v2506 = vmul.f32 %v2060, %v2060
  %v2507 = vmul.f32 %v2064, %v2064
  %v2508 = vmul.f32 %v2066, %v2066
  %v2509 = vmul.f32 %v2068, %v2068
  %v2510 = vmul.f32 %v2070, %v2070
  %v2511 = vmul.f32 %v2074, %v2074
  %v2512 = vmul.f32 %v2076, %v2076
  %v2513 = vmul.f32 %v2078, %v2078
  %v2514 = vmul.f32 %v2080, %v2080
  %v2515 = vmul.f32 %v2084, %v2084
  %v2516 = vmul.f32 %v2086, %v2086
  %v2517 = vmul.f32 %v2088, %v2088
  %v2518 = vmul.f32 %v2090, %v2090
  %v2519 = vmul.f32 %v2094, %v2094
  %v2520 = vmul.f32 %v2096, %v2096
  %v2521 = vmul.f32 %v2098, %v2098
  %v2522 = vmul.f32 %v2100, %v2100
  %v2523 = vmul.f32 %v2104, %v2104
  %v2524 = vmul.f32 %v2106, %v2106
  %v2525 = vmul.f32 %v2108, %v2108
  %v2526 = vmul.f32 %v2110, %v2110
  %v2527 = vmul.f32 %v2114, %v2114
  %v2528 = vmul.f32 %v2116, %v2116
  %v2529 = vmul.f32 %v2118, %v2118
  %v2530 = vmul.f32 %v2120, %v2120
  %v2531 = vmul.f32 %v2124, %v2124
  %v2532 = vmul.f32 %v2126, %v2126
  %v2533 = vmul.f32 %v2128, %v2128
  %v2534 = vmul.f32 %v2130, %v2130
  %v2535 = vmul.f32 %v2134, %v2134
  %v2536 = vmul.f32 %v2136, %v2136
  %v2537 = vmul.f32 %v2138, %v2138
  %v2538 = vmul.f32 %v2140, %v2140
  %v2539 = vmul.f32 %v2144, %v2144
  %v2540 = vmul.f32 %v2146, %v2146
  %v2541 = vmul.f32 %v2148, %v2148
  %v2542 = vmul.f32 %v2150, %v2150
  %v2543 = vmul.f32 %v2154, %v2154
  %v2544 = vmul.f32 %v2156, %v2156
  %v2545 = vmul.f32 %v2158, %v2158
  %v2546 = vmul.f32 %v2160, %v2160
  %v2547 = vadd.f32 %v2419, %v2420
  %2548 = vadd.xlane.f32.xlu0 %v2547
  %v2549 = vpop.xlane.xlu0 %2548
  %v2550 = vadd.f32 %v2421, %v2422
  %2551 = vadd.xlane.f32.xlu0 %v2550
  %v2552 = vpop.xlane.xlu0 %2551
  %v2553 = vadd.f32 %v2423, %v2424
  %2554 = vadd.xlane.f32.xlu0 %v2553
  %v2555 = vpop.xlane.xlu0 %2554
  %v2556 = vadd.f32 %v2425, %v2426
  %2557 = vadd.xlane.f32.xlu0 %v2556
  %v2558 = vpop.xlane.xlu0 %2557
  %v2559 = vadd.f32 %v2427, %v2428
  %2560 = vadd.xlane.f32.xlu0 %v2559
  %v2561 = vpop.xlane.xlu0 %2560
  %v2562 = vadd.f32 %v2429, %v2430
  %2563 = vadd.xlane.f32.xlu0 %v2562
  %v2564 = vpop.xlane.xlu0 %2563
  %v2565 = vadd.f32 %v2431, %v2432
  %2566 = vadd.xlane.f32.xlu0 %v2565
  %v2567 = vpop.xlane.xlu0 %2566
  %v2568 = vadd.f32 %v2433, %v2434
  %2569 = vadd.xlane.f32.xlu0 %v2568
  %v2570 = vpop.xlane.xlu0 %2569
  %v2571 = vadd.f32 %v2435, %v2436
  %2572 = vadd.xlane.f32.xlu0 %v2571
  %v2573 = vpop.xlane.xlu0 %2572
  %v2574 = vadd.f32 %v2437, %v2438
  %2575 = vadd.xlane.f32.xlu0 %v2574
  %v2576 = vpop.xlane.xlu0 %2575
  %v2577 = vadd.f32 %v2439, %v2440
  %2578 = vadd.xlane.f32.xlu0 %v2577
  %v2579 = vpop.xlane.xlu0 %2578
  %v2580 = vadd.f32 %v2441, %v2442
  %2581 = vadd.xlane.f32.xlu0 %v2580
  %v2582 = vpop.xlane.xlu0 %2581
  %v2583 = vadd.f32 %v2443, %v2444
  %2584 = vadd.xlane.f32.xlu0 %v2583
  %v2585 = vpop.xlane.xlu0 %2584
  %v2586 = vadd.f32 %v2445, %v2446
  %2587 = vadd.xlane.f32.xlu0 %v2586
  %v2588 = vpop.xlane.xlu0 %2587
  %v2589 = vadd.f32 %v2447, %v2448
  %2590 = vadd.xlane.f32.xlu0 %v2589
  %v2591 = vpop.xlane.xlu0 %2590
  %v2592 = vadd.f32 %v2449, %v2450
  %2593 = vadd.xlane.f32.xlu0 %v2592
  %v2594 = vpop.xlane.xlu0 %2593
  %v2595 = vadd.f32 %v2451, %v2452
  %2596 = vadd.xlane.f32.xlu0 %v2595
  %v2597 = vpop.xlane.xlu0 %2596
  %v2598 = vadd.f32 %v2453, %v2454
  %2599 = vadd.xlane.f32.xlu0 %v2598
  %v2600 = vpop.xlane.xlu0 %2599
  %v2601 = vadd.f32 %v2455, %v2456
  %2602 = vadd.xlane.f32.xlu0 %v2601
  %v2603 = vpop.xlane.xlu0 %2602
  %v2604 = vadd.f32 %v2457, %v2458
  %2605 = vadd.xlane.f32.xlu0 %v2604
  %v2606 = vpop.xlane.xlu0 %2605
  %v2607 = vadd.f32 %v2459, %v2460
  %2608 = vadd.xlane.f32.xlu0 %v2607
  %v2609 = vpop.xlane.xlu0 %2608
  %v2610 = vadd.f32 %v2461, %v2462
  %2611 = vadd.xlane.f32.xlu0 %v2610
  %v2612 = vpop.xlane.xlu0 %2611
  %v2613 = vadd.f32 %v2463, %v2464
  %2614 = vadd.xlane.f32.xlu0 %v2613
  %v2615 = vpop.xlane.xlu0 %2614
  %v2616 = vadd.f32 %v2465, %v2466
  %2617 = vadd.xlane.f32.xlu0 %v2616
  %v2618 = vpop.xlane.xlu0 %2617
  %v2619 = vadd.f32 %v2467, %v2468
  %2620 = vadd.xlane.f32.xlu0 %v2619
  %v2621 = vpop.xlane.xlu0 %2620
  %v2622 = vadd.f32 %v2469, %v2470
  %2623 = vadd.xlane.f32.xlu0 %v2622
  %v2624 = vpop.xlane.xlu0 %2623
  %v2625 = vadd.f32 %v2471, %v2472
  %2626 = vadd.xlane.f32.xlu0 %v2625
  %v2627 = vpop.xlane.xlu0 %2626
  %v2628 = vadd.f32 %v2473, %v2474
  %2629 = vadd.xlane.f32.xlu0 %v2628
  %v2630 = vpop.xlane.xlu0 %2629
  %v2631 = vadd.f32 %v2475, %v2476
  %2632 = vadd.xlane.f32.xlu0 %v2631
  %v2633 = vpop.xlane.xlu0 %2632
  %v2634 = vadd.f32 %v2477, %v2478
  %2635 = vadd.xlane.f32.xlu0 %v2634
  %v2636 = vpop.xlane.xlu0 %2635
  %v2637 = vadd.f32 %v2479, %v2480
  %2638 = vadd.xlane.f32.xlu0 %v2637
  %v2639 = vpop.xlane.xlu0 %2638
  %v2640 = vadd.f32 %v2481, %v2482
  %2641 = vadd.xlane.f32.xlu0 %v2640
  %v2642 = vpop.xlane.xlu0 %2641
  %v2643 = vadd.f32 %v2483, %v2484
  %2644 = vadd.xlane.f32.xlu0 %v2643
  %v2645 = vpop.xlane.xlu0 %2644
  %v2646 = vadd.f32 %v2485, %v2486
  %2647 = vadd.xlane.f32.xlu0 %v2646
  %v2648 = vpop.xlane.xlu0 %2647
  %v2649 = vadd.f32 %v2487, %v2488
  %2650 = vadd.xlane.f32.xlu0 %v2649
  %v2651 = vpop.xlane.xlu0 %2650
  %v2652 = vadd.f32 %v2489, %v2490
  %2653 = vadd.xlane.f32.xlu0 %v2652
  %v2654 = vpop.xlane.xlu0 %2653
  %v2655 = vadd.f32 %v2491, %v2492
  %2656 = vadd.xlane.f32.xlu0 %v2655
  %v2657 = vpop.xlane.xlu0 %2656
  %v2658 = vadd.f32 %v2493, %v2494
  %2659 = vadd.xlane.f32.xlu0 %v2658
  %v2660 = vpop.xlane.xlu0 %2659
  %v2661 = vadd.f32 %v2495, %v2496
  %2662 = vadd.xlane.f32.xlu0 %v2661
  %v2663 = vpop.xlane.xlu0 %2662
  %v2664 = vadd.f32 %v2497, %v2498
  %2665 = vadd.xlane.f32.xlu0 %v2664
  %v2666 = vpop.xlane.xlu0 %2665
  %v2667 = vadd.f32 %v2499, %v2500
  %2668 = vadd.xlane.f32.xlu0 %v2667
  %v2669 = vpop.xlane.xlu0 %2668
  %v2670 = vadd.f32 %v2501, %v2502
  %2671 = vadd.xlane.f32.xlu0 %v2670
  %v2672 = vpop.xlane.xlu0 %2671
  %v2673 = vadd.f32 %v2503, %v2504
  %2674 = vadd.xlane.f32.xlu0 %v2673
  %v2675 = vpop.xlane.xlu0 %2674
  %v2676 = vadd.f32 %v2505, %v2506
  %2677 = vadd.xlane.f32.xlu0 %v2676
  %v2678 = vpop.xlane.xlu0 %2677
  %v2679 = vadd.f32 %v2507, %v2508
  %2680 = vadd.xlane.f32.xlu0 %v2679
  %v2681 = vpop.xlane.xlu0 %2680
  %v2682 = vadd.f32 %v2509, %v2510
  %2683 = vadd.xlane.f32.xlu0 %v2682
  %v2684 = vpop.xlane.xlu0 %2683
  %v2685 = vadd.f32 %v2511, %v2512
  %2686 = vadd.xlane.f32.xlu0 %v2685
  %v2687 = vpop.xlane.xlu0 %2686
  %v2688 = vadd.f32 %v2513, %v2514
  %2689 = vadd.xlane.f32.xlu0 %v2688
  %v2690 = vpop.xlane.xlu0 %2689
  %v2691 = vadd.f32 %v2515, %v2516
  %2692 = vadd.xlane.f32.xlu0 %v2691
  %v2693 = vpop.xlane.xlu0 %2692
  %v2694 = vadd.f32 %v2517, %v2518
  %2695 = vadd.xlane.f32.xlu0 %v2694
  %v2696 = vpop.xlane.xlu0 %2695
  %v2697 = vadd.f32 %v2519, %v2520
  %2698 = vadd.xlane.f32.xlu0 %v2697
  %v2699 = vpop.xlane.xlu0 %2698
  %v2700 = vadd.f32 %v2521, %v2522
  %2701 = vadd.xlane.f32.xlu0 %v2700
  %v2702 = vpop.xlane.xlu0 %2701
  %v2703 = vadd.f32 %v2523, %v2524
  %2704 = vadd.xlane.f32.xlu0 %v2703
  %v2705 = vpop.xlane.xlu0 %2704
  %v2706 = vadd.f32 %v2525, %v2526
  %2707 = vadd.xlane.f32.xlu0 %v2706
  %v2708 = vpop.xlane.xlu0 %2707
  %v2709 = vadd.f32 %v2527, %v2528
  %2710 = vadd.xlane.f32.xlu0 %v2709
  %v2711 = vpop.xlane.xlu0 %2710
  %v2712 = vadd.f32 %v2529, %v2530
  %2713 = vadd.xlane.f32.xlu0 %v2712
  %v2714 = vpop.xlane.xlu0 %2713
  %v2715 = vadd.f32 %v2531, %v2532
  %2716 = vadd.xlane.f32.xlu0 %v2715
  %v2717 = vpop.xlane.xlu0 %2716
  %v2718 = vadd.f32 %v2533, %v2534
  %2719 = vadd.xlane.f32.xlu0 %v2718
  %v2720 = vpop.xlane.xlu0 %2719
  %v2721 = vadd.f32 %v2535, %v2536
  %2722 = vadd.xlane.f32.xlu0 %v2721
  %v2723 = vpop.xlane.xlu0 %2722
  %v2724 = vadd.f32 %v2537, %v2538
  %2725 = vadd.xlane.f32.xlu0 %v2724
  %v2726 = vpop.xlane.xlu0 %2725
  %v2727 = vadd.f32 %v2539, %v2540
  %2728 = vadd.xlane.f32.xlu0 %v2727
  %v2729 = vpop.xlane.xlu0 %2728
  %v2730 = vadd.f32 %v2541, %v2542
  %2731 = vadd.xlane.f32.xlu0 %v2730
  %v2732 = vpop.xlane.xlu0 %2731
  %v2733 = vadd.f32 %v2543, %v2544
  %2734 = vadd.xlane.f32.xlu0 %v2733
  %v2735 = vpop.xlane.xlu0 %2734
  %v2736 = vadd.f32 %v2545, %v2546
  %2737 = vadd.xlane.f32.xlu0 %v2736
  %v2738 = vpop.xlane.xlu0 %2737
  %v2739 = vmul.f32 %v2549, %v2354
  %v2740 = vmul.f32 %v2552, %v2354
  %v2741 = vmul.f32 %v2555, %v2354
  %v2742 = vmul.f32 %v2558, %v2354
  %v2743 = vmul.f32 %v2561, %v2354
  %v2744 = vmul.f32 %v2564, %v2354
  %v2745 = vmul.f32 %v2567, %v2354
  %v2746 = vmul.f32 %v2570, %v2354
  %v2747 = vmul.f32 %v2573, %v2354
  %v2748 = vmul.f32 %v2576, %v2354
  %v2749 = vmul.f32 %v2579, %v2354
  %v2750 = vmul.f32 %v2582, %v2354
  %v2751 = vmul.f32 %v2585, %v2354
  %v2752 = vmul.f32 %v2588, %v2354
  %v2753 = vmul.f32 %v2591, %v2354
  %v2754 = vmul.f32 %v2594, %v2354
  %v2755 = vmul.f32 %v2597, %v2354
  %v2756 = vmul.f32 %v2600, %v2354
  %v2757 = vmul.f32 %v2603, %v2354
  %v2758 = vmul.f32 %v2606, %v2354
  %v2759 = vmul.f32 %v2609, %v2354
  %v2760 = vmul.f32 %v2612, %v2354
  %v2761 = vmul.f32 %v2615, %v2354
  %v2762 = vmul.f32 %v2618, %v2354
  %v2763 = vmul.f32 %v2621, %v2354
  %v2764 = vmul.f32 %v2624, %v2354
  %v2765 = vmul.f32 %v2627, %v2354
  %v2766 = vmul.f32 %v2630, %v2354
  %v2767 = vmul.f32 %v2633, %v2354
  %v2768 = vmul.f32 %v2636, %v2354
  %v2769 = vmul.f32 %v2639, %v2354
  %v2770 = vmul.f32 %v2642, %v2354
  %v2771 = vmul.f32 %v2645, %v2354
  %v2772 = vmul.f32 %v2648, %v2354
  %v2773 = vmul.f32 %v2651, %v2354
  %v2774 = vmul.f32 %v2654, %v2354
  %v2775 = vmul.f32 %v2657, %v2354
  %v2776 = vmul.f32 %v2660, %v2354
  %v2777 = vmul.f32 %v2663, %v2354
  %v2778 = vmul.f32 %v2666, %v2354
  %v2779 = vmul.f32 %v2669, %v2354
  %v2780 = vmul.f32 %v2672, %v2354
  %v2781 = vmul.f32 %v2675, %v2354
  %v2782 = vmul.f32 %v2678, %v2354
  %v2783 = vmul.f32 %v2681, %v2354
  %v2784 = vmul.f32 %v2684, %v2354
  %v2785 = vmul.f32 %v2687, %v2354
  %v2786 = vmul.f32 %v2690, %v2354
  %v2787 = vmul.f32 %v2693, %v2354
  %v2788 = vmul.f32 %v2696, %v2354
  %v2789 = vmul.f32 %v2699, %v2354
  %v2790 = vmul.f32 %v2702, %v2354
  %v2791 = vmul.f32 %v2705, %v2354
  %v2792 = vmul.f32 %v2708, %v2354
  %v2793 = vmul.f32 %v2711, %v2354
  %v2794 = vmul.f32 %v2714, %v2354
  %v2795 = vmul.f32 %v2717, %v2354
  %v2796 = vmul.f32 %v2720, %v2354
  %v2797 = vmul.f32 %v2723, %v2354
  %v2798 = vmul.f32 %v2726, %v2354
  %v2799 = vmul.f32 %v2729, %v2354
  %v2800 = vmul.f32 %v2732, %v2354
  %v2801 = vmul.f32 %v2735, %v2354
  %v2802 = vmul.f32 %v2738, %v2354
  %v2803 = vsub.f32 %v1844, %v2355
  %v2804 = vsub.f32 %v1846, %v2355
  %v2805 = vsub.f32 %v1848, %v2356
  %v2806 = vsub.f32 %v1850, %v2356
  %v2807 = vsub.f32 %v1854, %v2357
  %v2808 = vsub.f32 %v1856, %v2357
  %v2809 = vsub.f32 %v1858, %v2358
  %v2810 = vsub.f32 %v1860, %v2358
  %v2811 = vsub.f32 %v1864, %v2359
  %v2812 = vsub.f32 %v1866, %v2359
  %v2813 = vsub.f32 %v1868, %v2360
  %v2814 = vsub.f32 %v1870, %v2360
  %v2815 = vsub.f32 %v1874, %v2361
  %v2816 = vsub.f32 %v1876, %v2361
  %v2817 = vsub.f32 %v1878, %v2362
  %v2818 = vsub.f32 %v1880, %v2362
  %v2819 = vsub.f32 %v1884, %v2363
  %v2820 = vsub.f32 %v1886, %v2363
  %v2821 = vsub.f32 %v1888, %v2364
  %v2822 = vsub.f32 %v1890, %v2364
  %v2823 = vsub.f32 %v1894, %v2365
  %v2824 = vsub.f32 %v1896, %v2365
  %v2825 = vsub.f32 %v1898, %v2366
  %v2826 = vsub.f32 %v1900, %v2366
  %v2827 = vsub.f32 %v1904, %v2367
  %v2828 = vsub.f32 %v1906, %v2367
  %v2829 = vsub.f32 %v1908, %v2368
  %v2830 = vsub.f32 %v1910, %v2368
  %v2831 = vsub.f32 %v1914, %v2369
  %v2832 = vsub.f32 %v1916, %v2369
  %v2833 = vsub.f32 %v1918, %v2370
  %v2834 = vsub.f32 %v1920, %v2370
  %v2835 = vsub.f32 %v1924, %v2371
  %v2836 = vsub.f32 %v1926, %v2371
  %v2837 = vsub.f32 %v1928, %v2372
  %v2838 = vsub.f32 %v1930, %v2372
  %v2839 = vsub.f32 %v1934, %v2373
  %v2840 = vsub.f32 %v1936, %v2373
  %v2841 = vsub.f32 %v1938, %v2374
  %v2842 = vsub.f32 %v1940, %v2374
  %v2843 = vsub.f32 %v1944, %v2375
  %v2844 = vsub.f32 %v1946, %v2375
  %v2845 = vsub.f32 %v1948, %v2376
  %v2846 = vsub.f32 %v1950, %v2376
  %v2847 = vsub.f32 %v1954, %v2377
  %v2848 = vsub.f32 %v1956, %v2377
  %v2849 = vsub.f32 %v1958, %v2378
  %v2850 = vsub.f32 %v1960, %v2378
  %v2851 = vsub.f32 %v1964, %v2379
  %v2852 = vsub.f32 %v1966, %v2379
  %v2853 = vsub.f32 %v1968, %v2380
  %v2854 = vsub.f32 %v1970, %v2380
  %v2855 = vsub.f32 %v1974, %v2381
  %v2856 = vsub.f32 %v1976, %v2381
  %v2857 = vsub.f32 %v1978, %v2382
  %v2858 = vsub.f32 %v1980, %v2382
  %v2859 = vsub.f32 %v1984, %v2383
  %v2860 = vsub.f32 %v1986, %v2383
  %v2861 = vsub.f32 %v1988, %v2384
  %v2862 = vsub.f32 %v1990, %v2384
  %v2863 = vsub.f32 %v1994, %v2385
  %v2864 = vsub.f32 %v1996, %v2385
  %v2865 = vsub.f32 %v1998, %v2386
  %v2866 = vsub.f32 %v2000, %v2386
  %v2867 = vsub.f32 %v2004, %v2387
  %v2868 = vsub.f32 %v2006, %v2387
  %v2869 = vsub.f32 %v2008, %v2388
  %v2870 = vsub.f32 %v2010, %v2388
  %v2871 = vsub.f32 %v2014, %v2389
  %v2872 = vsub.f32 %v2016, %v2389
  %v2873 = vsub.f32 %v2018, %v2390
  %v2874 = vsub.f32 %v2020, %v2390
  %v2875 = vsub.f32 %v2024, %v2391
  %v2876 = vsub.f32 %v2026, %v2391
  %v2877 = vsub.f32 %v2028, %v2392
  %v2878 = vsub.f32 %v2030, %v2392
  %v2879 = vsub.f32 %v2034, %v2393
  %v2880 = vsub.f32 %v2036, %v2393
  %v2881 = vsub.f32 %v2038, %v2394
  %v2882 = vsub.f32 %v2040, %v2394
  %v2883 = vsub.f32 %v2044, %v2395
  %v2884 = vsub.f32 %v2046, %v2395
  %v2885 = vsub.f32 %v2048, %v2396
  %v2886 = vsub.f32 %v2050, %v2396
  %v2887 = vsub.f32 %v2054, %v2397
  %v2888 = vsub.f32 %v2056, %v2397
  %v2889 = vsub.f32 %v2058, %v2398
  %v2890 = vsub.f32 %v2060, %v2398
  %v2891 = vsub.f32 %v2064, %v2399
  %v2892 = vsub.f32 %v2066, %v2399
  %v2893 = vsub.f32 %v2068, %v2400
  %v2894 = vsub.f32 %v2070, %v2400
  %v2895 = vsub.f32 %v2074, %v2401
  %v2896 = vsub.f32 %v2076, %v2401
  %v2897 = vsub.f32 %v2078, %v2402
  %v2898 = vsub.f32 %v2080, %v2402
  %v2899 = vsub.f32 %v2084, %v2403
  %v2900 = vsub.f32 %v2086, %v2403
  %v2901 = vsub.f32 %v2088, %v2404
  %v2902 = vsub.f32 %v2090, %v2404
  %v2903 = vsub.f32 %v2094, %v2405
  %v2904 = vsub.f32 %v2096, %v2405
  %v2905 = vsub.f32 %v2098, %v2406
  %v2906 = vsub.f32 %v2100, %v2406
  %v2907 = vsub.f32 %v2104, %v2407
  %v2908 = vsub.f32 %v2106, %v2407
  %v2909 = vsub.f32 %v2108, %v2408
  %v2910 = vsub.f32 %v2110, %v2408
  %v2911 = vsub.f32 %v2114, %v2409
  %v2912 = vsub.f32 %v2116, %v2409
  %v2913 = vsub.f32 %v2118, %v2410
  %v2914 = vsub.f32 %v2120, %v2410
  %v2915 = vsub.f32 %v2124, %v2411
  %v2916 = vsub.f32 %v2126, %v2411
  %v2917 = vsub.f32 %v2128, %v2412
  %v2918 = vsub.f32 %v2130, %v2412
  %v2919 = vsub.f32 %v2134, %v2413
  %v2920 = vsub.f32 %v2136, %v2413
  %v2921 = vsub.f32 %v2138, %v2414
  %v2922 = vsub.f32 %v2140, %v2414
  %v2923 = vsub.f32 %v2144, %v2415
  %v2924 = vsub.f32 %v2146, %v2415
  %v2925 = vsub.f32 %v2148, %v2416
  %v2926 = vsub.f32 %v2150, %v2416
  %v2927 = vsub.f32 %v2154, %v2417
  %v2928 = vsub.f32 %v2156, %v2417
  %v2929 = vsub.f32 %v2158, %v2418
  %v2930 = vsub.f32 %v2160, %v2418
  %v2931 = vmul.f32 %v2355, %v2355
  %v2932 = vmul.f32 %v2356, %v2356
  %v2933 = vmul.f32 %v2357, %v2357
  %v2934 = vmul.f32 %v2358, %v2358
  %v2935 = vmul.f32 %v2359, %v2359
  %v2936 = vmul.f32 %v2360, %v2360
  %v2937 = vmul.f32 %v2361, %v2361
  %v2938 = vmul.f32 %v2362, %v2362
  %v2939 = vmul.f32 %v2363, %v2363
  %v2940 = vmul.f32 %v2364, %v2364
  %v2941 = vmul.f32 %v2365, %v2365
  %v2942 = vmul.f32 %v2366, %v2366
  %v2943 = vmul.f32 %v2367, %v2367
  %v2944 = vmul.f32 %v2368, %v2368
  %v2945 = vmul.f32 %v2369, %v2369
  %v2946 = vmul.f32 %v2370, %v2370
  %v2947 = vmul.f32 %v2371, %v2371
  %v2948 = vmul.f32 %v2372, %v2372
  %v2949 = vmul.f32 %v2373, %v2373
  %v2950 = vmul.f32 %v2374, %v2374
  %v2951 = vmul.f32 %v2375, %v2375
  %v2952 = vmul.f32 %v2376, %v2376
  %v2953 = vmul.f32 %v2377, %v2377
  %v2954 = vmul.f32 %v2378, %v2378
  %v2955 = vmul.f32 %v2379, %v2379
  %v2956 = vmul.f32 %v2380, %v2380
  %v2957 = vmul.f32 %v2381, %v2381
  %v2958 = vmul.f32 %v2382, %v2382
  %v2959 = vmul.f32 %v2383, %v2383
  %v2960 = vmul.f32 %v2384, %v2384
  %v2961 = vmul.f32 %v2385, %v2385
  %v2962 = vmul.f32 %v2386, %v2386
  %v2963 = vmul.f32 %v2387, %v2387
  %v2964 = vmul.f32 %v2388, %v2388
  %v2965 = vmul.f32 %v2389, %v2389
  %v2966 = vmul.f32 %v2390, %v2390
  %v2967 = vmul.f32 %v2391, %v2391
  %v2968 = vmul.f32 %v2392, %v2392
  %v2969 = vmul.f32 %v2393, %v2393
  %v2970 = vmul.f32 %v2394, %v2394
  %v2971 = vmul.f32 %v2395, %v2395
  %v2972 = vmul.f32 %v2396, %v2396
  %v2973 = vmul.f32 %v2397, %v2397
  %v2974 = vmul.f32 %v2398, %v2398
  %v2975 = vmul.f32 %v2399, %v2399
  %v2976 = vmul.f32 %v2400, %v2400
  %v2977 = vmul.f32 %v2401, %v2401
  %v2978 = vmul.f32 %v2402, %v2402
  %v2979 = vmul.f32 %v2403, %v2403
  %v2980 = vmul.f32 %v2404, %v2404
  %v2981 = vmul.f32 %v2405, %v2405
  %v2982 = vmul.f32 %v2406, %v2406
  %v2983 = vmul.f32 %v2407, %v2407
  %v2984 = vmul.f32 %v2408, %v2408
  %v2985 = vmul.f32 %v2409, %v2409
  %v2986 = vmul.f32 %v2410, %v2410
  %v2987 = vmul.f32 %v2411, %v2411
  %v2988 = vmul.f32 %v2412, %v2412
  %v2989 = vmul.f32 %v2413, %v2413
  %v2990 = vmul.f32 %v2414, %v2414
  %v2991 = vmul.f32 %v2415, %v2415
  %v2992 = vmul.f32 %v2416, %v2416
  %v2993 = vmul.f32 %v2417, %v2417
  %v2994 = vmul.f32 %v2418, %v2418
  %v2995 = vsub.f32 %v2739, %v2931
  %v2996 = vsub.f32 %v2740, %v2932
  %v2997 = vsub.f32 %v2741, %v2933
  %v2998 = vsub.f32 %v2742, %v2934
  %v2999 = vsub.f32 %v2743, %v2935
  %v3000 = vsub.f32 %v2744, %v2936
  %v3001 = vsub.f32 %v2745, %v2937
  %v3002 = vsub.f32 %v2746, %v2938
  %v3003 = vsub.f32 %v2747, %v2939
  %v3004 = vsub.f32 %v2748, %v2940
  %v3005 = vsub.f32 %v2749, %v2941
  %v3006 = vsub.f32 %v2750, %v2942
  %v3007 = vsub.f32 %v2751, %v2943
  %v3008 = vsub.f32 %v2752, %v2944
  %v3009 = vsub.f32 %v2753, %v2945
  %v3010 = vsub.f32 %v2754, %v2946
  %v3011 = vsub.f32 %v2755, %v2947
  %v3012 = vsub.f32 %v2756, %v2948
  %v3013 = vsub.f32 %v2757, %v2949
  %v3014 = vsub.f32 %v2758, %v2950
  %v3015 = vsub.f32 %v2759, %v2951
  %v3016 = vsub.f32 %v2760, %v2952
  %v3017 = vsub.f32 %v2761, %v2953
  %v3018 = vsub.f32 %v2762, %v2954
  %v3019 = vsub.f32 %v2763, %v2955
  %v3020 = vsub.f32 %v2764, %v2956
  %v3021 = vsub.f32 %v2765, %v2957
  %v3022 = vsub.f32 %v2766, %v2958
  %v3023 = vsub.f32 %v2767, %v2959
  %v3024 = vsub.f32 %v2768, %v2960
  %v3025 = vsub.f32 %v2769, %v2961
  %v3026 = vsub.f32 %v2770, %v2962
  %v3027 = vsub.f32 %v2771, %v2963
  %v3028 = vsub.f32 %v2772, %v2964
  %v3029 = vsub.f32 %v2773, %v2965
  %v3030 = vsub.f32 %v2774, %v2966
  %v3031 = vsub.f32 %v2775, %v2967
  %v3032 = vsub.f32 %v2776, %v2968
  %v3033 = vsub.f32 %v2777, %v2969
  %v3034 = vsub.f32 %v2778, %v2970
  %v3035 = vsub.f32 %v2779, %v2971
  %v3036 = vsub.f32 %v2780, %v2972
  %v3037 = vsub.f32 %v2781, %v2973
  %v3038 = vsub.f32 %v2782, %v2974
  %v3039 = vsub.f32 %v2783, %v2975
  %v3040 = vsub.f32 %v2784, %v2976
  %v3041 = vsub.f32 %v2785, %v2977
  %v3042 = vsub.f32 %v2786, %v2978
  %v3043 = vsub.f32 %v2787, %v2979
  %v3044 = vsub.f32 %v2788, %v2980
  %v3045 = vsub.f32 %v2789, %v2981
  %v3046 = vsub.f32 %v2790, %v2982
  %v3047 = vsub.f32 %v2791, %v2983
  %v3048 = vsub.f32 %v2792, %v2984
  %v3049 = vsub.f32 %v2793, %v2985
  %v3050 = vsub.f32 %v2794, %v2986
  %v3051 = vsub.f32 %v2795, %v2987
  %v3052 = vsub.f32 %v2796, %v2988
  %v3053 = vsub.f32 %v2797, %v2989
  %v3054 = vsub.f32 %v2798, %v2990
  %v3055 = vsub.f32 %v2799, %v2991
  %v3056 = vsub.f32 %v2800, %v2992
  %v3057 = vsub.f32 %v2801, %v2993
  %v3058 = vsub.f32 %v2802, %v2994
  %v3059 = vadd.f32 %v2995, 1e-05
  %v3060 = vadd.f32 %v2996, 1e-05
  %v3061 = vadd.f32 %v2997, 1e-05
  %v3062 = vadd.f32 %v2998, 1e-05
  %v3063 = vadd.f32 %v2999, 1e-05
  %v3064 = vadd.f32 %v3000, 1e-05
  %v3065 = vadd.f32 %v3001, 1e-05
  %v3066 = vadd.f32 %v3002, 1e-05
  %v3067 = vadd.f32 %v3003, 1e-05
  %v3068 = vadd.f32 %v3004, 1e-05
  %v3069 = vadd.f32 %v3005, 1e-05
  %v3070 = vadd.f32 %v3006, 1e-05
  %v3071 = vadd.f32 %v3007, 1e-05
  %v3072 = vadd.f32 %v3008, 1e-05
  %v3073 = vadd.f32 %v3009, 1e-05
  %v3074 = vadd.f32 %v3010, 1e-05
  %v3075 = vadd.f32 %v3011, 1e-05
  %v3076 = vadd.f32 %v3012, 1e-05
  %v3077 = vadd.f32 %v3013, 1e-05
  %v3078 = vadd.f32 %v3014, 1e-05
  %v3079 = vadd.f32 %v3015, 1e-05
  %v3080 = vadd.f32 %v3016, 1e-05
  %v3081 = vadd.f32 %v3017, 1e-05
  %v3082 = vadd.f32 %v3018, 1e-05
  %v3083 = vadd.f32 %v3019, 1e-05
  %v3084 = vadd.f32 %v3020, 1e-05
  %v3085 = vadd.f32 %v3021, 1e-05
  %v3086 = vadd.f32 %v3022, 1e-05
  %v3087 = vadd.f32 %v3023, 1e-05
  %v3088 = vadd.f32 %v3024, 1e-05
  %v3089 = vadd.f32 %v3025, 1e-05
  %v3090 = vadd.f32 %v3026, 1e-05
  %v3091 = vadd.f32 %v3027, 1e-05
  %v3092 = vadd.f32 %v3028, 1e-05
  %v3093 = vadd.f32 %v3029, 1e-05
  %v3094 = vadd.f32 %v3030, 1e-05
  %v3095 = vadd.f32 %v3031, 1e-05
  %v3096 = vadd.f32 %v3032, 1e-05
  %v3097 = vadd.f32 %v3033, 1e-05
  %v3098 = vadd.f32 %v3034, 1e-05
  %v3099 = vadd.f32 %v3035, 1e-05
  %v3100 = vadd.f32 %v3036, 1e-05
  %v3101 = vadd.f32 %v3037, 1e-05
  %v3102 = vadd.f32 %v3038, 1e-05
  %v3103 = vadd.f32 %v3039, 1e-05
  %v3104 = vadd.f32 %v3040, 1e-05
  %v3105 = vadd.f32 %v3041, 1e-05
  %v3106 = vadd.f32 %v3042, 1e-05
  %v3107 = vadd.f32 %v3043, 1e-05
  %v3108 = vadd.f32 %v3044, 1e-05
  %v3109 = vadd.f32 %v3045, 1e-05
  %v3110 = vadd.f32 %v3046, 1e-05
  %v3111 = vadd.f32 %v3047, 1e-05
  %v3112 = vadd.f32 %v3048, 1e-05
  %v3113 = vadd.f32 %v3049, 1e-05
  %v3114 = vadd.f32 %v3050, 1e-05
  %v3115 = vadd.f32 %v3051, 1e-05
  %v3116 = vadd.f32 %v3052, 1e-05
  %v3117 = vadd.f32 %v3053, 1e-05
  %v3118 = vadd.f32 %v3054, 1e-05
  %v3119 = vadd.f32 %v3055, 1e-05
  %v3120 = vadd.f32 %v3056, 1e-05
  %v3121 = vadd.f32 %v3057, 1e-05
  %v3122 = vadd.f32 %v3058, 1e-05
  %v3123 = vrsqrt.pop %v3059
  %v3124 = vrsqrt.pop %v3060
  %v3125 = vrsqrt.pop %v3061
  %v3126 = vrsqrt.pop %v3062
  %v3127 = vrsqrt.pop %v3063
  %v3128 = vrsqrt.pop %v3064
  %v3129 = vrsqrt.pop %v3065
  %v3130 = vrsqrt.pop %v3066
  %v3131 = vrsqrt.pop %v3067
  %v3132 = vrsqrt.pop %v3068
  %v3133 = vrsqrt.pop %v3069
  %v3134 = vrsqrt.pop %v3070
  %v3135 = vrsqrt.pop %v3071
  %v3136 = vrsqrt.pop %v3072
  %v3137 = vrsqrt.pop %v3073
  %v3138 = vrsqrt.pop %v3074
  %v3139 = vrsqrt.pop %v3075
  %v3140 = vrsqrt.pop %v3076
  %v3141 = vrsqrt.pop %v3077
  %v3142 = vrsqrt.pop %v3078
  %v3143 = vrsqrt.pop %v3079
  %v3144 = vrsqrt.pop %v3080
  %v3145 = vrsqrt.pop %v3081
  %v3146 = vrsqrt.pop %v3082
  %v3147 = vrsqrt.pop %v3083
  %v3148 = vrsqrt.pop %v3084
  %v3149 = vrsqrt.pop %v3085
  %v3150 = vrsqrt.pop %v3086
  %v3151 = vrsqrt.pop %v3087
  %v3152 = vrsqrt.pop %v3088
  %v3153 = vrsqrt.pop %v3089
  %v3154 = vrsqrt.pop %v3090
  %v3155 = vrsqrt.pop %v3091
  %v3156 = vrsqrt.pop %v3092
  %v3157 = vrsqrt.pop %v3093
  %v3158 = vrsqrt.pop %v3094
  %v3159 = vrsqrt.pop %v3095
  %v3160 = vrsqrt.pop %v3096
  %v3161 = vrsqrt.pop %v3097
  %v3162 = vrsqrt.pop %v3098
  %v3163 = vrsqrt.pop %v3099
  %v3164 = vrsqrt.pop %v3100
  %v3165 = vrsqrt.pop %v3101
  %v3166 = vrsqrt.pop %v3102
  %v3167 = vrsqrt.pop %v3103
  %v3168 = vrsqrt.pop %v3104
  %v3169 = vrsqrt.pop %v3105
  %v3170 = vrsqrt.pop %v3106
  %v3171 = vrsqrt.pop %v3107
  %v3172 = vrsqrt.pop %v3108
  %v3173 = vrsqrt.pop %v3109
  %v3174 = vrsqrt.pop %v3110
  %v3175 = vrsqrt.pop %v3111
  %v3176 = vrsqrt.pop %v3112
  %v3177 = vrsqrt.pop %v3113
  %v3178 = vrsqrt.pop %v3114
  %v3179 = vrsqrt.pop %v3115
  %v3180 = vrsqrt.pop %v3116
  %v3181 = vrsqrt.pop %v3117
  %v3182 = vrsqrt.pop %v3118
  %v3183 = vrsqrt.pop %v3119
  %v3184 = vrsqrt.pop %v3120
  %v3185 = vrsqrt.pop %v3121
  %v3186 = vrsqrt.pop %v3122
  %v3187 = vmul.f32 %v2803, %v3123
  %v3188 = vmul.f32 %v2804, %v3123
  %v3189 = vmul.f32 %v2805, %v3124
  %v3190 = vmul.f32 %v2806, %v3124
  %v3191 = vmul.f32 %v2807, %v3125
  %v3192 = vmul.f32 %v2808, %v3125
  %v3193 = vmul.f32 %v2809, %v3126
  %v3194 = vmul.f32 %v2810, %v3126
  %v3195 = vmul.f32 %v2811, %v3127
  %v3196 = vmul.f32 %v2812, %v3127
  %v3197 = vmul.f32 %v2813, %v3128
  %v3198 = vmul.f32 %v2814, %v3128
  %v3199 = vmul.f32 %v2815, %v3129
  %v3200 = vmul.f32 %v2816, %v3129
  %v3201 = vmul.f32 %v2817, %v3130
  %v3202 = vmul.f32 %v2818, %v3130
  %v3203 = vmul.f32 %v2819, %v3131
  %v3204 = vmul.f32 %v2820, %v3131
  %v3205 = vmul.f32 %v2821, %v3132
  %v3206 = vmul.f32 %v2822, %v3132
  %v3207 = vmul.f32 %v2823, %v3133
  %v3208 = vmul.f32 %v2824, %v3133
  %v3209 = vmul.f32 %v2825, %v3134
  %v3210 = vmul.f32 %v2826, %v3134
  %v3211 = vmul.f32 %v2827, %v3135
  %v3212 = vmul.f32 %v2828, %v3135
  %v3213 = vmul.f32 %v2829, %v3136
  %v3214 = vmul.f32 %v2830, %v3136
  %v3215 = vmul.f32 %v2831, %v3137
  %v3216 = vmul.f32 %v2832, %v3137
  %v3217 = vmul.f32 %v2833, %v3138
  %v3218 = vmul.f32 %v2834, %v3138
  %v3219 = vmul.f32 %v2835, %v3139
  %v3220 = vmul.f32 %v2836, %v3139
  %v3221 = vmul.f32 %v2837, %v3140
  %v3222 = vmul.f32 %v2838, %v3140
  %v3223 = vmul.f32 %v2839, %v3141
  %v3224 = vmul.f32 %v2840, %v3141
  %v3225 = vmul.f32 %v2841, %v3142
  %v3226 = vmul.f32 %v2842, %v3142
  %v3227 = vmul.f32 %v2843, %v3143
  %v3228 = vmul.f32 %v2844, %v3143
  %v3229 = vmul.f32 %v2845, %v3144
  %v3230 = vmul.f32 %v2846, %v3144
  %v3231 = vmul.f32 %v2847, %v3145
  %v3232 = vmul.f32 %v2848, %v3145
  %v3233 = vmul.f32 %v2849, %v3146
  %v3234 = vmul.f32 %v2850, %v3146
  %v3235 = vmul.f32 %v2851, %v3147
  %v3236 = vmul.f32 %v2852, %v3147
  %v3237 = vmul.f32 %v2853, %v3148
  %v3238 = vmul.f32 %v2854, %v3148
  %v3239 = vmul.f32 %v2855, %v3149
  %v3240 = vmul.f32 %v2856, %v3149
  %v3241 = vmul.f32 %v2857, %v3150
  %v3242 = vmul.f32 %v2858, %v3150
  %v3243 = vmul.f32 %v2859, %v3151
  %v3244 = vmul.f32 %v2860, %v3151
  %v3245 = vmul.f32 %v2861, %v3152
  %v3246 = vmul.f32 %v2862, %v3152
  %v3247 = vmul.f32 %v2863, %v3153
  %v3248 = vmul.f32 %v2864, %v3153
  %v3249 = vmul.f32 %v2865, %v3154
  %v3250 = vmul.f32 %v2866, %v3154
  %v3251 = vmul.f32 %v2867, %v3155
  %v3252 = vmul.f32 %v2868, %v3155
  %v3253 = vmul.f32 %v2869, %v3156
  %v3254 = vmul.f32 %v2870, %v3156
  %v3255 = vmul.f32 %v2871, %v3157
  %v3256 = vmul.f32 %v2872, %v3157
  %v3257 = vmul.f32 %v2873, %v3158
  %v3258 = vmul.f32 %v2874, %v3158
  %v3259 = vmul.f32 %v2875, %v3159
  %v3260 = vmul.f32 %v2876, %v3159
  %v3261 = vmul.f32 %v2877, %v3160
  %v3262 = vmul.f32 %v2878, %v3160
  %v3263 = vmul.f32 %v2879, %v3161
  %v3264 = vmul.f32 %v2880, %v3161
  %v3265 = vmul.f32 %v2881, %v3162
  %v3266 = vmul.f32 %v2882, %v3162
  %v3267 = vmul.f32 %v2883, %v3163
  %v3268 = vmul.f32 %v2884, %v3163
  %v3269 = vmul.f32 %v2885, %v3164
  %v3270 = vmul.f32 %v2886, %v3164
  %v3271 = vmul.f32 %v2887, %v3165
  %v3272 = vmul.f32 %v2888, %v3165
  %v3273 = vmul.f32 %v2889, %v3166
  %v3274 = vmul.f32 %v2890, %v3166
  %v3275 = vmul.f32 %v2891, %v3167
  %v3276 = vmul.f32 %v2892, %v3167
  %v3277 = vmul.f32 %v2893, %v3168
  %v3278 = vmul.f32 %v2894, %v3168
  %v3279 = vmul.f32 %v2895, %v3169
  %v3280 = vmul.f32 %v2896, %v3169
  %v3281 = vmul.f32 %v2897, %v3170
  %v3282 = vmul.f32 %v2898, %v3170
  %v3283 = vmul.f32 %v2899, %v3171
  %v3284 = vmul.f32 %v2900, %v3171
  %v3285 = vmul.f32 %v2901, %v3172
  %v3286 = vmul.f32 %v2902, %v3172
  %v3287 = vmul.f32 %v2903, %v3173
  %v3288 = vmul.f32 %v2904, %v3173
  %v3289 = vmul.f32 %v2905, %v3174
  %v3290 = vmul.f32 %v2906, %v3174
  %v3291 = vmul.f32 %v2907, %v3175
  %v3292 = vmul.f32 %v2908, %v3175
  %v3293 = vmul.f32 %v2909, %v3176
  %v3294 = vmul.f32 %v2910, %v3176
  %v3295 = vmul.f32 %v2911, %v3177
  %v3296 = vmul.f32 %v2912, %v3177
  %v3297 = vmul.f32 %v2913, %v3178
  %v3298 = vmul.f32 %v2914, %v3178
  %v3299 = vmul.f32 %v2915, %v3179
  %v3300 = vmul.f32 %v2916, %v3179
  %v3301 = vmul.f32 %v2917, %v3180
  %v3302 = vmul.f32 %v2918, %v3180
  %v3303 = vmul.f32 %v2919, %v3181
  %v3304 = vmul.f32 %v2920, %v3181
  %v3305 = vmul.f32 %v2921, %v3182
  %v3306 = vmul.f32 %v2922, %v3182
  %v3307 = vmul.f32 %v2923, %v3183
  %v3308 = vmul.f32 %v2924, %v3183
  %v3309 = vmul.f32 %v2925, %v3184
  %v3310 = vmul.f32 %v2926, %v3184
  %v3311 = vmul.f32 %v2927, %v3185
  %v3312 = vmul.f32 %v2928, %v3185
  %v3313 = vmul.f32 %v2929, %v3186
  %v3314 = vmul.f32 %v2930, %v3186
  %v3315 = vlaneseq
  %v3316 = vshrl.u32 %v3315, 7
  %v3317 = vsub.s32 1, %v3316
  %v3318 = vrot.slane %v89, %v3317
  %v3319 = vlaneseq
  %v3320 = vshrl.u32 %v3319, 7
  %v3321 = vsub.s32 1, %v3320
  %v3322 = vrot.slane %v90, %v3321
  %v3323 = vmul.f32 %v3187, %v3318
  %v3324 = vmul.f32 %v3188, %v3322
  %v3325 = vmul.f32 %v3189, %v3318
  %v3326 = vmul.f32 %v3190, %v3322
  %v3327 = vmul.f32 %v3191, %v3318
  %v3328 = vmul.f32 %v3192, %v3322
  %v3329 = vmul.f32 %v3193, %v3318
  %v3330 = vmul.f32 %v3194, %v3322
  %v3331 = vmul.f32 %v3195, %v3318
  %v3332 = vmul.f32 %v3196, %v3322
  %v3333 = vmul.f32 %v3197, %v3318
  %v3334 = vmul.f32 %v3198, %v3322
  %v3335 = vmul.f32 %v3199, %v3318
  %v3336 = vmul.f32 %v3200, %v3322
  %v3337 = vmul.f32 %v3201, %v3318
  %v3338 = vmul.f32 %v3202, %v3322
  %v3339 = vmul.f32 %v3203, %v3318
  %v3340 = vmul.f32 %v3204, %v3322
  %v3341 = vmul.f32 %v3205, %v3318
  %v3342 = vmul.f32 %v3206, %v3322
  %v3343 = vmul.f32 %v3207, %v3318
  %v3344 = vmul.f32 %v3208, %v3322
  %v3345 = vmul.f32 %v3209, %v3318
  %v3346 = vmul.f32 %v3210, %v3322
  %v3347 = vmul.f32 %v3211, %v3318
  %v3348 = vmul.f32 %v3212, %v3322
  %v3349 = vmul.f32 %v3213, %v3318
  %v3350 = vmul.f32 %v3214, %v3322
  %v3351 = vmul.f32 %v3215, %v3318
  %v3352 = vmul.f32 %v3216, %v3322
  %v3353 = vmul.f32 %v3217, %v3318
  %v3354 = vmul.f32 %v3218, %v3322
  %v3355 = vmul.f32 %v3219, %v3318
  %v3356 = vmul.f32 %v3220, %v3322
  %v3357 = vmul.f32 %v3221, %v3318
  %v3358 = vmul.f32 %v3222, %v3322
  %v3359 = vmul.f32 %v3223, %v3318
  %v3360 = vmul.f32 %v3224, %v3322
  %v3361 = vmul.f32 %v3225, %v3318
  %v3362 = vmul.f32 %v3226, %v3322
  %v3363 = vmul.f32 %v3227, %v3318
  %v3364 = vmul.f32 %v3228, %v3322
  %v3365 = vmul.f32 %v3229, %v3318
  %v3366 = vmul.f32 %v3230, %v3322
  %v3367 = vmul.f32 %v3231, %v3318
  %v3368 = vmul.f32 %v3232, %v3322
  %v3369 = vmul.f32 %v3233, %v3318
  %v3370 = vmul.f32 %v3234, %v3322
  %v3371 = vmul.f32 %v3235, %v3318
  %v3372 = vmul.f32 %v3236, %v3322
  %v3373 = vmul.f32 %v3237, %v3318
  %v3374 = vmul.f32 %v3238, %v3322
  %v3375 = vmul.f32 %v3239, %v3318
  %v3376 = vmul.f32 %v3240, %v3322
  %v3377 = vmul.f32 %v3241, %v3318
  %v3378 = vmul.f32 %v3242, %v3322
  %v3379 = vmul.f32 %v3243, %v3318
  %v3380 = vmul.f32 %v3244, %v3322
  %v3381 = vmul.f32 %v3245, %v3318
  %v3382 = vmul.f32 %v3246, %v3322
  %v3383 = vmul.f32 %v3247, %v3318
  %v3384 = vmul.f32 %v3248, %v3322
  %v3385 = vmul.f32 %v3249, %v3318
  %v3386 = vmul.f32 %v3250, %v3322
  %v3387 = vmul.f32 %v3251, %v3318
  %v3388 = vmul.f32 %v3252, %v3322
  %v3389 = vmul.f32 %v3253, %v3318
  %v3390 = vmul.f32 %v3254, %v3322
  %v3391 = vmul.f32 %v3255, %v3318
  %v3392 = vmul.f32 %v3256, %v3322
  %v3393 = vmul.f32 %v3257, %v3318
  %v3394 = vmul.f32 %v3258, %v3322
  %v3395 = vmul.f32 %v3259, %v3318
  %v3396 = vmul.f32 %v3260, %v3322
  %v3397 = vmul.f32 %v3261, %v3318
  %v3398 = vmul.f32 %v3262, %v3322
  %v3399 = vmul.f32 %v3263, %v3318
  %v3400 = vmul.f32 %v3264, %v3322
  %v3401 = vmul.f32 %v3265, %v3318
  %v3402 = vmul.f32 %v3266, %v3322
  %v3403 = vmul.f32 %v3267, %v3318
  %v3404 = vmul.f32 %v3268, %v3322
  %v3405 = vmul.f32 %v3269, %v3318
  %v3406 = vmul.f32 %v3270, %v3322
  %v3407 = vmul.f32 %v3271, %v3318
  %v3408 = vmul.f32 %v3272, %v3322
  %v3409 = vmul.f32 %v3273, %v3318
  %v3410 = vmul.f32 %v3274, %v3322
  %v3411 = vmul.f32 %v3275, %v3318
  %v3412 = vmul.f32 %v3276, %v3322
  %v3413 = vmul.f32 %v3277, %v3318
  %v3414 = vmul.f32 %v3278, %v3322
  %v3415 = vmul.f32 %v3279, %v3318
  %v3416 = vmul.f32 %v3280, %v3322
  %v3417 = vmul.f32 %v3281, %v3318
  %v3418 = vmul.f32 %v3282, %v3322
  %v3419 = vmul.f32 %v3283, %v3318
  %v3420 = vmul.f32 %v3284, %v3322
  %v3421 = vmul.f32 %v3285, %v3318
  %v3422 = vmul.f32 %v3286, %v3322
  %v3423 = vmul.f32 %v3287, %v3318
  %v3424 = vmul.f32 %v3288, %v3322
  %v3425 = vmul.f32 %v3289, %v3318
  %v3426 = vmul.f32 %v3290, %v3322
  %v3427 = vmul.f32 %v3291, %v3318
  %v3428 = vmul.f32 %v3292, %v3322
  %v3429 = vmul.f32 %v3293, %v3318
  %v3430 = vmul.f32 %v3294, %v3322
  %v3431 = vmul.f32 %v3295, %v3318
  %v3432 = vmul.f32 %v3296, %v3322
  %v3433 = vmul.f32 %v3297, %v3318
  %v3434 = vmul.f32 %v3298, %v3322
  %v3435 = vmul.f32 %v3299, %v3318
  %v3436 = vmul.f32 %v3300, %v3322
  %v3437 = vmul.f32 %v3301, %v3318
  %v3438 = vmul.f32 %v3302, %v3322
  %v3439 = vmul.f32 %v3303, %v3318
  %v3440 = vmul.f32 %v3304, %v3322
  %v3441 = vmul.f32 %v3305, %v3318
  %v3442 = vmul.f32 %v3306, %v3322
  %v3443 = vmul.f32 %v3307, %v3318
  %v3444 = vmul.f32 %v3308, %v3322
  %v3445 = vmul.f32 %v3309, %v3318
  %v3446 = vmul.f32 %v3310, %v3322
  %v3447 = vmul.f32 %v3311, %v3318
  %v3448 = vmul.f32 %v3312, %v3322
  %v3449 = vmul.f32 %v3313, %v3318
  %v3450 = vmul.f32 %v3314, %v3322
  %v3451 = vlaneseq
  %v3452 = vshrl.u32 %v3451, 7
  %v3453 = vsub.s32 2, %v3452
  %v3454 = vrot.slane %v89, %v3453
  %v3455 = vlaneseq
  %v3456 = vshrl.u32 %v3455, 7
  %v3457 = vsub.s32 2, %v3456
  %v3458 = vrot.slane %v90, %v3457
  %v3459 = vadd.f32 %v3323, %v3454
  %v3460 = vadd.f32 %v3324, %v3458
  %v3461 = vadd.f32 %v3325, %v3454
  %v3462 = vadd.f32 %v3326, %v3458
  %v3463 = vadd.f32 %v3327, %v3454
  %v3464 = vadd.f32 %v3328, %v3458
  %v3465 = vadd.f32 %v3329, %v3454
  %v3466 = vadd.f32 %v3330, %v3458
  %v3467 = vadd.f32 %v3331, %v3454
  %v3468 = vadd.f32 %v3332, %v3458
  %v3469 = vadd.f32 %v3333, %v3454
  %v3470 = vadd.f32 %v3334, %v3458
  %v3471 = vadd.f32 %v3335, %v3454
  %v3472 = vadd.f32 %v3336, %v3458
  %v3473 = vadd.f32 %v3337, %v3454
  %v3474 = vadd.f32 %v3338, %v3458
  %v3475 = vadd.f32 %v3339, %v3454
  %v3476 = vadd.f32 %v3340, %v3458
  %v3477 = vadd.f32 %v3341, %v3454
  %v3478 = vadd.f32 %v3342, %v3458
  %v3479 = vadd.f32 %v3343, %v3454
  %v3480 = vadd.f32 %v3344, %v3458
  %v3481 = vadd.f32 %v3345, %v3454
  %v3482 = vadd.f32 %v3346, %v3458
  %v3483 = vadd.f32 %v3347, %v3454
  %v3484 = vadd.f32 %v3348, %v3458
  %v3485 = vadd.f32 %v3349, %v3454
  %v3486 = vadd.f32 %v3350, %v3458
  %v3487 = vadd.f32 %v3351, %v3454
  %v3488 = vadd.f32 %v3352, %v3458
  %v3489 = vadd.f32 %v3353, %v3454
  %v3490 = vadd.f32 %v3354, %v3458
  %v3491 = vadd.f32 %v3355, %v3454
  %v3492 = vadd.f32 %v3356, %v3458
  %v3493 = vadd.f32 %v3357, %v3454
  %v3494 = vadd.f32 %v3358, %v3458
  %v3495 = vadd.f32 %v3359, %v3454
  %v3496 = vadd.f32 %v3360, %v3458
  %v3497 = vadd.f32 %v3361, %v3454
  %v3498 = vadd.f32 %v3362, %v3458
  %v3499 = vadd.f32 %v3363, %v3454
  %v3500 = vadd.f32 %v3364, %v3458
  %v3501 = vadd.f32 %v3365, %v3454
  %v3502 = vadd.f32 %v3366, %v3458
  %v3503 = vadd.f32 %v3367, %v3454
  %v3504 = vadd.f32 %v3368, %v3458
  %v3505 = vadd.f32 %v3369, %v3454
  %v3506 = vadd.f32 %v3370, %v3458
  %v3507 = vadd.f32 %v3371, %v3454
  %v3508 = vadd.f32 %v3372, %v3458
  %v3509 = vadd.f32 %v3373, %v3454
  %v3510 = vadd.f32 %v3374, %v3458
  %v3511 = vadd.f32 %v3375, %v3454
  %v3512 = vadd.f32 %v3376, %v3458
  %v3513 = vadd.f32 %v3377, %v3454
  %v3514 = vadd.f32 %v3378, %v3458
  %v3515 = vadd.f32 %v3379, %v3454
  %v3516 = vadd.f32 %v3380, %v3458
  %v3517 = vadd.f32 %v3381, %v3454
  %v3518 = vadd.f32 %v3382, %v3458
  %v3519 = vadd.f32 %v3383, %v3454
  %v3520 = vadd.f32 %v3384, %v3458
  %v3521 = vadd.f32 %v3385, %v3454
  %v3522 = vadd.f32 %v3386, %v3458
  %v3523 = vadd.f32 %v3387, %v3454
  %v3524 = vadd.f32 %v3388, %v3458
  %v3525 = vadd.f32 %v3389, %v3454
  %v3526 = vadd.f32 %v3390, %v3458
  %v3527 = vadd.f32 %v3391, %v3454
  %v3528 = vadd.f32 %v3392, %v3458
  %v3529 = vadd.f32 %v3393, %v3454
  %v3530 = vadd.f32 %v3394, %v3458
  %v3531 = vadd.f32 %v3395, %v3454
  %v3532 = vadd.f32 %v3396, %v3458
  %v3533 = vadd.f32 %v3397, %v3454
  %v3534 = vadd.f32 %v3398, %v3458
  %v3535 = vadd.f32 %v3399, %v3454
  %v3536 = vadd.f32 %v3400, %v3458
  %v3537 = vadd.f32 %v3401, %v3454
  %v3538 = vadd.f32 %v3402, %v3458
  %v3539 = vadd.f32 %v3403, %v3454
  %v3540 = vadd.f32 %v3404, %v3458
  %v3541 = vadd.f32 %v3405, %v3454
  %v3542 = vadd.f32 %v3406, %v3458
  %v3543 = vadd.f32 %v3407, %v3454
  %v3544 = vadd.f32 %v3408, %v3458
  %v3545 = vadd.f32 %v3409, %v3454
  %v3546 = vadd.f32 %v3410, %v3458
  %v3547 = vadd.f32 %v3411, %v3454
  %v3548 = vadd.f32 %v3412, %v3458
  %v3549 = vadd.f32 %v3413, %v3454
  %v3550 = vadd.f32 %v3414, %v3458
  %v3551 = vadd.f32 %v3415, %v3454
  %v3552 = vadd.f32 %v3416, %v3458
  %v3553 = vadd.f32 %v3417, %v3454
  %v3554 = vadd.f32 %v3418, %v3458
  %v3555 = vadd.f32 %v3419, %v3454
  %v3556 = vadd.f32 %v3420, %v3458
  %v3557 = vadd.f32 %v3421, %v3454
  %v3558 = vadd.f32 %v3422, %v3458
  %v3559 = vadd.f32 %v3423, %v3454
  %v3560 = vadd.f32 %v3424, %v3458
  %v3561 = vadd.f32 %v3425, %v3454
  %v3562 = vadd.f32 %v3426, %v3458
  %v3563 = vadd.f32 %v3427, %v3454
  %v3564 = vadd.f32 %v3428, %v3458
  %v3565 = vadd.f32 %v3429, %v3454
  %v3566 = vadd.f32 %v3430, %v3458
  %v3567 = vadd.f32 %v3431, %v3454
  %v3568 = vadd.f32 %v3432, %v3458
  %v3569 = vadd.f32 %v3433, %v3454
  %v3570 = vadd.f32 %v3434, %v3458
  %v3571 = vadd.f32 %v3435, %v3454
  %v3572 = vadd.f32 %v3436, %v3458
  %v3573 = vadd.f32 %v3437, %v3454
  %v3574 = vadd.f32 %v3438, %v3458
  %v3575 = vadd.f32 %v3439, %v3454
  %v3576 = vadd.f32 %v3440, %v3458
  %v3577 = vadd.f32 %v3441, %v3454
  %v3578 = vadd.f32 %v3442, %v3458
  %v3579 = vadd.f32 %v3443, %v3454
  %v3580 = vadd.f32 %v3444, %v3458
  %v3581 = vadd.f32 %v3445, %v3454
  %v3582 = vadd.f32 %v3446, %v3458
  %v3583 = vadd.f32 %v3447, %v3454
  %v3584 = vadd.f32 %v3448, %v3458
  %v3585 = vadd.f32 %v3449, %v3454
  %v3586 = vadd.f32 %v3450, %v3458
  %v3587 = vmax.f32 %v3459, 0.0
  %v3588 = vmax.f32 %v3460, 0.0
  %v3589 = vmax.f32 %v3461, 0.0
  %v3590 = vmax.f32 %v3462, 0.0
  %v3591 = vmax.f32 %v3463, 0.0
  %v3592 = vmax.f32 %v3464, 0.0
  %v3593 = vmax.f32 %v3465, 0.0
  %v3594 = vmax.f32 %v3466, 0.0
  %v3595 = vmax.f32 %v3467, 0.0
  %v3596 = vmax.f32 %v3468, 0.0
  %v3597 = vmax.f32 %v3469, 0.0
  %v3598 = vmax.f32 %v3470, 0.0
  %v3599 = vmax.f32 %v3471, 0.0
  %v3600 = vmax.f32 %v3472, 0.0
  %v3601 = vmax.f32 %v3473, 0.0
  %v3602 = vmax.f32 %v3474, 0.0
  %v3603 = vmax.f32 %v3475, 0.0
  %v3604 = vmax.f32 %v3476, 0.0
  %v3605 = vmax.f32 %v3477, 0.0
  %v3606 = vmax.f32 %v3478, 0.0
  %v3607 = vmax.f32 %v3479, 0.0
  %v3608 = vmax.f32 %v3480, 0.0
  %v3609 = vmax.f32 %v3481, 0.0
  %v3610 = vmax.f32 %v3482, 0.0
  %v3611 = vmax.f32 %v3483, 0.0
  %v3612 = vmax.f32 %v3484, 0.0
  %v3613 = vmax.f32 %v3485, 0.0
  %v3614 = vmax.f32 %v3486, 0.0
  %v3615 = vmax.f32 %v3487, 0.0
  %v3616 = vmax.f32 %v3488, 0.0
  %v3617 = vmax.f32 %v3489, 0.0
  %v3618 = vmax.f32 %v3490, 0.0
  %v3619 = vmax.f32 %v3491, 0.0
  %v3620 = vmax.f32 %v3492, 0.0
  %v3621 = vmax.f32 %v3493, 0.0
  %v3622 = vmax.f32 %v3494, 0.0
  %v3623 = vmax.f32 %v3495, 0.0
  %v3624 = vmax.f32 %v3496, 0.0
  %v3625 = vmax.f32 %v3497, 0.0
  %v3626 = vmax.f32 %v3498, 0.0
  %v3627 = vmax.f32 %v3499, 0.0
  %v3628 = vmax.f32 %v3500, 0.0
  %v3629 = vmax.f32 %v3501, 0.0
  %v3630 = vmax.f32 %v3502, 0.0
  %v3631 = vmax.f32 %v3503, 0.0
  %v3632 = vmax.f32 %v3504, 0.0
  %v3633 = vmax.f32 %v3505, 0.0
  %v3634 = vmax.f32 %v3506, 0.0
  %v3635 = vmax.f32 %v3507, 0.0
  %v3636 = vmax.f32 %v3508, 0.0
  %v3637 = vmax.f32 %v3509, 0.0
  %v3638 = vmax.f32 %v3510, 0.0
  %v3639 = vmax.f32 %v3511, 0.0
  %v3640 = vmax.f32 %v3512, 0.0
  %v3641 = vmax.f32 %v3513, 0.0
  %v3642 = vmax.f32 %v3514, 0.0
  %v3643 = vmax.f32 %v3515, 0.0
  %v3644 = vmax.f32 %v3516, 0.0
  %v3645 = vmax.f32 %v3517, 0.0
  %v3646 = vmax.f32 %v3518, 0.0
  %v3647 = vmax.f32 %v3519, 0.0
  %v3648 = vmax.f32 %v3520, 0.0
  %v3649 = vmax.f32 %v3521, 0.0
  %v3650 = vmax.f32 %v3522, 0.0
  %v3651 = vmax.f32 %v3523, 0.0
  %v3652 = vmax.f32 %v3524, 0.0
  %v3653 = vmax.f32 %v3525, 0.0
  %v3654 = vmax.f32 %v3526, 0.0
  %v3655 = vmax.f32 %v3527, 0.0
  %v3656 = vmax.f32 %v3528, 0.0
  %v3657 = vmax.f32 %v3529, 0.0
  %v3658 = vmax.f32 %v3530, 0.0
  %v3659 = vmax.f32 %v3531, 0.0
  %v3660 = vmax.f32 %v3532, 0.0
  %v3661 = vmax.f32 %v3533, 0.0
  %v3662 = vmax.f32 %v3534, 0.0
  %v3663 = vmax.f32 %v3535, 0.0
  %v3664 = vmax.f32 %v3536, 0.0
  %v3665 = vmax.f32 %v3537, 0.0
  %v3666 = vmax.f32 %v3538, 0.0
  %v3667 = vmax.f32 %v3539, 0.0
  %v3668 = vmax.f32 %v3540, 0.0
  %v3669 = vmax.f32 %v3541, 0.0
  %v3670 = vmax.f32 %v3542, 0.0
  %v3671 = vmax.f32 %v3543, 0.0
  %v3672 = vmax.f32 %v3544, 0.0
  %v3673 = vmax.f32 %v3545, 0.0
  %v3674 = vmax.f32 %v3546, 0.0
  %v3675 = vmax.f32 %v3547, 0.0
  %v3676 = vmax.f32 %v3548, 0.0
  %v3677 = vmax.f32 %v3549, 0.0
  %v3678 = vmax.f32 %v3550, 0.0
  %v3679 = vmax.f32 %v3551, 0.0
  %v3680 = vmax.f32 %v3552, 0.0
  %v3681 = vmax.f32 %v3553, 0.0
  %v3682 = vmax.f32 %v3554, 0.0
  %v3683 = vmax.f32 %v3555, 0.0
  %v3684 = vmax.f32 %v3556, 0.0
  %v3685 = vmax.f32 %v3557, 0.0
  %v3686 = vmax.f32 %v3558, 0.0
  %v3687 = vmax.f32 %v3559, 0.0
  %v3688 = vmax.f32 %v3560, 0.0
  %v3689 = vmax.f32 %v3561, 0.0
  %v3690 = vmax.f32 %v3562, 0.0
  %v3691 = vmax.f32 %v3563, 0.0
  %v3692 = vmax.f32 %v3564, 0.0
  %v3693 = vmax.f32 %v3565, 0.0
  %v3694 = vmax.f32 %v3566, 0.0
  %v3695 = vmax.f32 %v3567, 0.0
  %v3696 = vmax.f32 %v3568, 0.0
  %v3697 = vmax.f32 %v3569, 0.0
  %v3698 = vmax.f32 %v3570, 0.0
  %v3699 = vmax.f32 %v3571, 0.0
  %v3700 = vmax.f32 %v3572, 0.0
  %v3701 = vmax.f32 %v3573, 0.0
  %v3702 = vmax.f32 %v3574, 0.0
  %v3703 = vmax.f32 %v3575, 0.0
  %v3704 = vmax.f32 %v3576, 0.0
  %v3705 = vmax.f32 %v3577, 0.0
  %v3706 = vmax.f32 %v3578, 0.0
  %v3707 = vmax.f32 %v3579, 0.0
  %v3708 = vmax.f32 %v3580, 0.0
  %v3709 = vmax.f32 %v3581, 0.0
  %v3710 = vmax.f32 %v3582, 0.0
  %v3711 = vmax.f32 %v3583, 0.0
  %v3712 = vmax.f32 %v3584, 0.0
  %v3713 = vmax.f32 %v3585, 0.0
  %v3714 = vmax.f32 %v3586, 0.0
  %v3715 = vpack.c.bf16 %v3589, %v3587
  %v3716 = vpack.c.bf16 %v3590, %v3588
  %v3717 = vpack.c.bf16 %v3593, %v3591
  %v3718 = vpack.c.bf16 %v3594, %v3592
  %v3719 = vpack.c.bf16 %v3597, %v3595
  %v3720 = vpack.c.bf16 %v3598, %v3596
  %v3721 = vpack.c.bf16 %v3601, %v3599
  %v3722 = vpack.c.bf16 %v3602, %v3600
  %v3723 = vpack.c.bf16 %v3605, %v3603
  %v3724 = vpack.c.bf16 %v3606, %v3604
  %v3725 = vpack.c.bf16 %v3609, %v3607
  %v3726 = vpack.c.bf16 %v3610, %v3608
  %v3727 = vpack.c.bf16 %v3613, %v3611
  %v3728 = vpack.c.bf16 %v3614, %v3612
  %v3729 = vpack.c.bf16 %v3617, %v3615
  %v3730 = vpack.c.bf16 %v3618, %v3616
  %v3731 = vpack.c.bf16 %v3621, %v3619
  %v3732 = vpack.c.bf16 %v3622, %v3620
  %v3733 = vpack.c.bf16 %v3625, %v3623
  %v3734 = vpack.c.bf16 %v3626, %v3624
  %v3735 = vpack.c.bf16 %v3629, %v3627
  %v3736 = vpack.c.bf16 %v3630, %v3628
  %v3737 = vpack.c.bf16 %v3633, %v3631
  %v3738 = vpack.c.bf16 %v3634, %v3632
  %v3739 = vpack.c.bf16 %v3637, %v3635
  %v3740 = vpack.c.bf16 %v3638, %v3636
  %v3741 = vpack.c.bf16 %v3641, %v3639
  %v3742 = vpack.c.bf16 %v3642, %v3640
  %v3743 = vpack.c.bf16 %v3645, %v3643
  %v3744 = vpack.c.bf16 %v3646, %v3644
  %v3745 = vpack.c.bf16 %v3649, %v3647
  %v3746 = vpack.c.bf16 %v3650, %v3648
  %v3747 = vpack.c.bf16 %v3653, %v3651
  %v3748 = vpack.c.bf16 %v3654, %v3652
  %v3749 = vpack.c.bf16 %v3657, %v3655
  %v3750 = vpack.c.bf16 %v3658, %v3656
  %v3751 = vpack.c.bf16 %v3661, %v3659
  %v3752 = vpack.c.bf16 %v3662, %v3660
  %v3753 = vpack.c.bf16 %v3665, %v3663
  %v3754 = vpack.c.bf16 %v3666, %v3664
  %v3755 = vpack.c.bf16 %v3669, %v3667
  %v3756 = vpack.c.bf16 %v3670, %v3668
  %v3757 = vpack.c.bf16 %v3673, %v3671
  %v3758 = vpack.c.bf16 %v3674, %v3672
  %v3759 = vpack.c.bf16 %v3677, %v3675
  %v3760 = vpack.c.bf16 %v3678, %v3676
  %v3761 = vpack.c.bf16 %v3681, %v3679
  %v3762 = vpack.c.bf16 %v3682, %v3680
  %v3763 = vpack.c.bf16 %v3685, %v3683
  %v3764 = vpack.c.bf16 %v3686, %v3684
  %v3765 = vpack.c.bf16 %v3689, %v3687
  %v3766 = vpack.c.bf16 %v3690, %v3688
  %v3767 = vpack.c.bf16 %v3693, %v3691
  %v3768 = vpack.c.bf16 %v3694, %v3692
  %v3769 = vpack.c.bf16 %v3697, %v3695
  %v3770 = vpack.c.bf16 %v3698, %v3696
  %v3771 = vpack.c.bf16 %v3701, %v3699
  %v3772 = vpack.c.bf16 %v3702, %v3700
  %v3773 = vpack.c.bf16 %v3705, %v3703
  %v3774 = vpack.c.bf16 %v3706, %v3704
  %v3775 = vpack.c.bf16 %v3709, %v3707
  %v3776 = vpack.c.bf16 %v3710, %v3708
  %v3777 = vpack.c.bf16 %v3713, %v3711
  %v3778 = vpack.c.bf16 %v3714, %v3712
  %v3779 = vld [vmem:[%s3] sm:$0xff]
  %v3780 = vld [vmem:[%s3 + $0x8] sm:$0xff]
  %v3781 = vld [vmem:[%s3 + $0x10] sm:$0xff]
  %v3782 = vld [vmem:[%s3 + $0x18] sm:$0xff]
  %v3783 = vld [vmem:[%s3 + $0x20] sm:$0xff]
  %v3784 = vld [vmem:[%s3 + $0x28] sm:$0xff]
  %v3785 = vld [vmem:[%s3 + $0x30] sm:$0xff]
  %v3786 = vld [vmem:[%s3 + $0x38] sm:$0xff]
  %v3787 = vld [vmem:[%s3 + $0x40] sm:$0xff]
  %v3788 = vld [vmem:[%s3 + $0x48] sm:$0xff]
  %v3789 = vld [vmem:[%s3 + $0x50] sm:$0xff]
  %v3790 = vld [vmem:[%s3 + $0x58] sm:$0xff]
  %v3791 = vld [vmem:[%s3 + $0x60] sm:$0xff]
  %v3792 = vld [vmem:[%s3 + $0x68] sm:$0xff]
  %v3793 = vld [vmem:[%s3 + $0x70] sm:$0xff]
  %v3794 = vld [vmem:[%s3 + $0x78] sm:$0xff]
  %v3795 = vld [vmem:[%s3 + $0x80] sm:$0xff]
  %v3796 = vld [vmem:[%s3 + $0x88] sm:$0xff]
  %v3797 = vld [vmem:[%s3 + $0x90] sm:$0xff]
  %v3798 = vld [vmem:[%s3 + $0x98] sm:$0xff]
  %v3799 = vld [vmem:[%s3 + $0xa0] sm:$0xff]
  %v3800 = vld [vmem:[%s3 + $0xa8] sm:$0xff]
  %v3801 = vld [vmem:[%s3 + $0xb0] sm:$0xff]
  %v3802 = vld [vmem:[%s3 + $0xb8] sm:$0xff]
  %v3803 = vld [vmem:[%s3 + $0xc0] sm:$0xff]
  %v3804 = vld [vmem:[%s3 + $0xc8] sm:$0xff]
  %v3805 = vld [vmem:[%s3 + $0xd0] sm:$0xff]
  %v3806 = vld [vmem:[%s3 + $0xd8] sm:$0xff]
  %v3807 = vld [vmem:[%s3 + $0xe0] sm:$0xff]
  %v3808 = vld [vmem:[%s3 + $0xe8] sm:$0xff]
  %v3809 = vld [vmem:[%s3 + $0xf0] sm:$0xff]
  %v3810 = vld [vmem:[%s3 + $0xf8] sm:$0xff]
  %v3811 = vlaneseq
  %v3812 = vshrl.u32 %v3811, 7
  %v3813 = vsub.s32 3, %v3812
  %v3814 = vrot.slane %v89, %v3813
  %v3815 = vlaneseq
  %v3816 = vshrl.u32 %v3815, 7
  %v3817 = vsub.s32 3, %v3816
  %v3818 = vrot.slane %v90, %v3817
  %v3851 = vunpack.c.l.b16 %v3779
  %v3852 = vunpack.c.h.b16 %v3779
  %v3853 = vunpack.c.l.b16 %v3780
  %v3854 = vunpack.c.h.b16 %v3780
  %v3855 = vunpack.c.l.b16 %v3781
  %v3856 = vunpack.c.h.b16 %v3781
  %v3857 = vunpack.c.l.b16 %v3782
  %v3858 = vunpack.c.h.b16 %v3782
  %v3859 = vunpack.c.l.b16 %v3783
  %v3860 = vunpack.c.h.b16 %v3783
  %v3861 = vunpack.c.l.b16 %v3784
  %v3862 = vunpack.c.h.b16 %v3784
  %v3863 = vunpack.c.l.b16 %v3785
  %v3864 = vunpack.c.h.b16 %v3785
  %v3865 = vunpack.c.l.b16 %v3786
  %v3866 = vunpack.c.h.b16 %v3786
  %v3867 = vunpack.c.l.b16 %v3787
  %v3868 = vunpack.c.h.b16 %v3787
  %v3869 = vunpack.c.l.b16 %v3788
  %v3870 = vunpack.c.h.b16 %v3788
  %v3871 = vunpack.c.l.b16 %v3789
  %v3872 = vunpack.c.h.b16 %v3789
  %v3873 = vunpack.c.l.b16 %v3790
  %v3874 = vunpack.c.h.b16 %v3790
  %v3875 = vunpack.c.l.b16 %v3791
  %v3876 = vunpack.c.h.b16 %v3791
  %v3877 = vunpack.c.l.b16 %v3792
  %v3878 = vunpack.c.h.b16 %v3792
  %v3879 = vunpack.c.l.b16 %v3793
  %v3880 = vunpack.c.h.b16 %v3793
  %v3881 = vunpack.c.l.b16 %v3794
  %v3882 = vunpack.c.h.b16 %v3794
  %v3883 = vunpack.c.l.b16 %v3795
  %v3884 = vunpack.c.h.b16 %v3795
  %v3885 = vunpack.c.l.b16 %v3796
  %v3886 = vunpack.c.h.b16 %v3796
  %v3887 = vunpack.c.l.b16 %v3797
  %v3888 = vunpack.c.h.b16 %v3797
  %v3889 = vunpack.c.l.b16 %v3798
  %v3890 = vunpack.c.h.b16 %v3798
  %v3891 = vunpack.c.l.b16 %v3799
  %v3892 = vunpack.c.h.b16 %v3799
  %v3893 = vunpack.c.l.b16 %v3800
  %v3894 = vunpack.c.h.b16 %v3800
  %v3895 = vunpack.c.l.b16 %v3801
  %v3896 = vunpack.c.h.b16 %v3801
  %v3897 = vunpack.c.l.b16 %v3802
  %v3898 = vunpack.c.h.b16 %v3802
  %v3899 = vunpack.c.l.b16 %v3803
  %v3900 = vunpack.c.h.b16 %v3803
  %v3901 = vunpack.c.l.b16 %v3804
  %v3902 = vunpack.c.h.b16 %v3804
  %v3903 = vunpack.c.l.b16 %v3805
  %v3904 = vunpack.c.h.b16 %v3805
  %v3905 = vunpack.c.l.b16 %v3806
  %v3906 = vunpack.c.h.b16 %v3806
  %v3907 = vunpack.c.l.b16 %v3807
  %v3908 = vunpack.c.h.b16 %v3807
  %v3909 = vunpack.c.l.b16 %v3808
  %v3910 = vunpack.c.h.b16 %v3808
  %v3911 = vunpack.c.l.b16 %v3809
  %v3912 = vunpack.c.h.b16 %v3809
  %v3913 = vunpack.c.l.b16 %v3810
  %v3914 = vunpack.c.h.b16 %v3810
  %v3915 = vpack.c.b16 %v3853, %v3851
  %v3916 = vpack.c.b16 %v3854, %v3852
  %v3917 = vpack.c.b16 %v3857, %v3855
  %v3918 = vpack.c.b16 %v3858, %v3856
  %v3919 = vpack.c.b16 %v3861, %v3859
  %v3920 = vpack.c.b16 %v3862, %v3860
  %v3921 = vpack.c.b16 %v3865, %v3863
  %v3922 = vpack.c.b16 %v3866, %v3864
  %v3923 = vpack.c.b16 %v3869, %v3867
  %v3924 = vpack.c.b16 %v3870, %v3868
  %v3925 = vpack.c.b16 %v3873, %v3871
  %v3926 = vpack.c.b16 %v3874, %v3872
  %v3927 = vpack.c.b16 %v3877, %v3875
  %v3928 = vpack.c.b16 %v3878, %v3876
  %v3929 = vpack.c.b16 %v3881, %v3879
  %v3930 = vpack.c.b16 %v3882, %v3880
  %v3931 = vpack.c.b16 %v3885, %v3883
  %v3932 = vpack.c.b16 %v3886, %v3884
  %v3933 = vpack.c.b16 %v3889, %v3887
  %v3934 = vpack.c.b16 %v3890, %v3888
  %v3935 = vpack.c.b16 %v3893, %v3891
  %v3936 = vpack.c.b16 %v3894, %v3892
  %v3937 = vpack.c.b16 %v3897, %v3895
  %v3938 = vpack.c.b16 %v3898, %v3896
  %v3939 = vpack.c.b16 %v3901, %v3899
  %v3940 = vpack.c.b16 %v3902, %v3900
  %v3941 = vpack.c.b16 %v3905, %v3903
  %v3942 = vpack.c.b16 %v3906, %v3904
  %v3943 = vpack.c.b16 %v3909, %v3907
  %v3944 = vpack.c.b16 %v3910, %v3908
  %v3945 = vpack.c.b16 %v3913, %v3911
  %v3946 = vpack.c.b16 %v3914, %v3912
  %3979 = vmatprep.subr.bf16.mxu0 %v3916
  %3980 = vmatpush1.bf16.msra.mxu0 %v3915
  %3981 = vmatprep.subr.bf16.mxu0 %v3918
  %3982 = vmatpush1.bf16.msra.mxu0 %v3917
  %3983 = vmatprep.subr.bf16.mxu0 %v3920
  %3984 = vmatpush1.bf16.msra.mxu0 %v3919
  %3985 = vmatprep.subr.bf16.mxu0 %v3922
  %3986 = vmatpush1.bf16.msra.mxu0 %v3921
  %3987 = vmatprep.subr.bf16.mxu0 %v3924
  %3988 = vmatpush1.bf16.msra.mxu0 %v3923
  %3989 = vmatprep.subr.bf16.mxu0 %v3926
  %3990 = vmatpush1.bf16.msra.mxu0 %v3925
  %3991 = vmatprep.subr.bf16.mxu0 %v3928
  %3992 = vmatpush1.bf16.msra.mxu0 %v3927
  %3993 = vmatprep.subr.bf16.mxu0 %v3930
  %3994 = vmatpush1.bf16.msra.mxu0 %v3929
  %3995 = vmatprep.subr.bf16.mxu0 %v3932
  %3996 = vmatpush1.bf16.msra.mxu0 %v3931
  %3997 = vmatprep.subr.bf16.mxu0 %v3934
  %3998 = vmatpush1.bf16.msra.mxu0 %v3933
  %3999 = vmatprep.subr.bf16.mxu0 %v3936
  %4000 = vmatpush1.bf16.msra.mxu0 %v3935
  %4001 = vmatprep.subr.bf16.mxu0 %v3938
  %4002 = vmatpush1.bf16.msra.mxu0 %v3937
  %4003 = vmatprep.subr.bf16.mxu0 %v3940
  %4004 = vmatpush1.bf16.msra.mxu0 %v3939
  %4005 = vmatprep.subr.bf16.mxu0 %v3942
  %4006 = vmatpush1.bf16.msra.mxu0 %v3941
  %4007 = vmatprep.subr.bf16.mxu0 %v3944
  %4008 = vmatpush1.bf16.msra.mxu0 %v3943
  %4009 = vmatprep.subr.bf16.mxu0 %v3946
  %4010 = vmatpush1.bf16.msra.mxu0 %v3945
  %4011 = vmatprep.mubr.bf16.mxu0 %v3716
  %4012 = vmatmul.mubr.bf16.gmra.mrb[0].mxu0 %v3715
  %v4013 = vpop.f32.mrb[0].mxu0
  %v4014 = vadd.f32 %v3814, %v4013
  %v4015 = vpop.f32.mrb[0].mxu0
  %v4016 = vadd.f32 %v3818, %v4015
  %v4017 = vpop.f32.mrb[0].mxu0
  %v4018 = vadd.f32 %v3814, %v4017
  %v4019 = vpop.f32.mrb[0].mxu0
  %v4020 = vadd.f32 %v3818, %v4019
  %4021 = vmatprep.mubr.bf16.mxu0 %v3718
  %4022 = vmatmul.mubr.bf16.gmra.mrb[0].mxu0 %v3717
  %v4023 = vpop.f32.mrb[0].mxu0
  %v4024 = vadd.f32 %v3814, %v4023
  %v4025 = vpop.f32.mrb[0].mxu0
  %v4026 = vadd.f32 %v3818, %v4025
  %v4027 = vpop.f32.mrb[0].mxu0
  %v4028 = vadd.f32 %v3814, %v4027
  %v4029 = vpop.f32.mrb[0].mxu0
  %v4030 = vadd.f32 %v3818, %v4029
  %4031 = vmatprep.mubr.bf16.mxu0 %v3720
  %4032 = vmatmul.mubr.bf16.gmra.mrb[0].mxu0 %v3719
  %v4033 = vpop.f32.mrb[0].mxu0
  %v4034 = vadd.f32 %v3814, %v4033
  %v4035 = vpop.f32.mrb[0].mxu0
  %v4036 = vadd.f32 %v3818, %v4035
  %v4037 = vpop.f32.mrb[0].mxu0
  %v4038 = vadd.f32 %v3814, %v4037
  %v4039 = vpop.f32.mrb[0].mxu0
  %v4040 = vadd.f32 %v3818, %v4039
  %4041 = vmatprep.mubr.bf16.mxu0 %v3722
  %4042 = vmatmul.mubr.bf16.gmra.mrb[0].mxu0 %v3721
  %v4043 = vpop.f32.mrb[0].mxu0
  %v4044 = vadd.f32 %v3814, %v4043
  %v4045 = vpop.f32.mrb[0].mxu0
  %v4046 = vadd.f32 %v3818, %v4045
  %v4047 = vpop.f32.mrb[0].mxu0
  %v4048 = vadd.f32 %v3814, %v4047
  %v4049 = vpop.f32.mrb[0].mxu0
  %v4050 = vadd.f32 %v3818, %v4049
  %4051 = vmatprep.mubr.bf16.mxu0 %v3724
  %4052 = vmatmul.mubr.bf16.gmra.mrb[0].mxu0 %v3723
  %v4053 = vpop.f32.mrb[0].mxu0
  %v4054 = vadd.f32 %v3814, %v4053
  %v4055 = vpop.f32.mrb[0].mxu0
  %v4056 = vadd.f32 %v3818, %v4055
  %v4057 = vpop.f32.mrb[0].mxu0
  %v4058 = vadd.f32 %v3814, %v4057
  %v4059 = vpop.f32.mrb[0].mxu0
  %v4060 = vadd.f32 %v3818, %v4059
  %4061 = vmatprep.mubr.bf16.mxu0 %v3726
  %4062 = vmatmul.mubr.bf16.gmra.mrb[0].mxu0 %v3725
  %v4063 = vpop.f32.mrb[0].mxu0
  %v4064 = vadd.f32 %v3814, %v4063
  %v4065 = vpop.f32.mrb[0].mxu0
  %v4066 = vadd.f32 %v3818, %v4065
  %v4067 = vpop.f32.mrb[0].mxu0
  %v4068 = vadd.f32 %v3814, %v4067
  %v4069 = vpop.f32.mrb[0].mxu0
  %v4070 = vadd.f32 %v3818, %v4069
  %4071 = vmatprep.mubr.bf16.mxu0 %v3728
  %4072 = vmatmul.mubr.bf16.gmra.mrb[0].mxu0 %v3727
  %v4073 = vpop.f32.mrb[0].mxu0
  %v4074 = vadd.f32 %v3814, %v4073
  %v4075 = vpop.f32.mrb[0].mxu0
  %v4076 = vadd.f32 %v3818, %v4075
  %v4077 = vpop.f32.mrb[0].mxu0
  %v4078 = vadd.f32 %v3814, %v4077
  %v4079 = vpop.f32.mrb[0].mxu0
  %v4080 = vadd.f32 %v3818, %v4079
  %4081 = vmatprep.mubr.bf16.mxu0 %v3730
  %4082 = vmatmul.mubr.bf16.gmra.mrb[0].mxu0 %v3729
  %v4083 = vpop.f32.mrb[0].mxu0
  %v4084 = vadd.f32 %v3814, %v4083
  %v4085 = vpop.f32.mrb[0].mxu0
  %v4086 = vadd.f32 %v3818, %v4085
  %v4087 = vpop.f32.mrb[0].mxu0
  %v4088 = vadd.f32 %v3814, %v4087
  %v4089 = vpop.f32.mrb[0].mxu0
  %v4090 = vadd.f32 %v3818, %v4089
  %4091 = vmatprep.mubr.bf16.mxu0 %v3732
  %4092 = vmatmul.mubr.bf16.gmra.mrb[0].mxu0 %v3731
  %v4093 = vpop.f32.mrb[0].mxu0
  %v4094 = vadd.f32 %v3814, %v4093
  %v4095 = vpop.f32.mrb[0].mxu0
  %v4096 = vadd.f32 %v3818, %v4095
  %v4097 = vpop.f32.mrb[0].mxu0
  %v4098 = vadd.f32 %v3814, %v4097
  %v4099 = vpop.f32.mrb[0].mxu0
  %v4100 = vadd.f32 %v3818, %v4099
  %4101 = vmatprep.mubr.bf16.mxu0 %v3734
  %4102 = vmatmul.mubr.bf16.gmra.mrb[0].mxu0 %v3733
  %v4103 = vpop.f32.mrb[0].mxu0
  %v4104 = vadd.f32 %v3814, %v4103
  %v4105 = vpop.f32.mrb[0].mxu0
  %v4106 = vadd.f32 %v3818, %v4105
  %v4107 = vpop.f32.mrb[0].mxu0
  %v4108 = vadd.f32 %v3814, %v4107
  %v4109 = vpop.f32.mrb[0].mxu0
  %v4110 = vadd.f32 %v3818, %v4109
  %4111 = vmatprep.mubr.bf16.mxu0 %v3736
  %4112 = vmatmul.mubr.bf16.gmra.mrb[0].mxu0 %v3735
  %v4113 = vpop.f32.mrb[0].mxu0
  %v4114 = vadd.f32 %v3814, %v4113
  %v4115 = vpop.f32.mrb[0].mxu0
  %v4116 = vadd.f32 %v3818, %v4115
  %v4117 = vpop.f32.mrb[0].mxu0
  %v4118 = vadd.f32 %v3814, %v4117
  %v4119 = vpop.f32.mrb[0].mxu0
  %v4120 = vadd.f32 %v3818, %v4119
  %4121 = vmatprep.mubr.bf16.mxu0 %v3738
  %4122 = vmatmul.mubr.bf16.gmra.mrb[0].mxu0 %v3737
  %v4123 = vpop.f32.mrb[0].mxu0
  %v4124 = vadd.f32 %v3814, %v4123
  %v4125 = vpop.f32.mrb[0].mxu0
  %v4126 = vadd.f32 %v3818, %v4125
  %v4127 = vpop.f32.mrb[0].mxu0
  %v4128 = vadd.f32 %v3814, %v4127
  %v4129 = vpop.f32.mrb[0].mxu0
  %v4130 = vadd.f32 %v3818, %v4129
  %4131 = vmatprep.mubr.bf16.mxu0 %v3740
  %4132 = vmatmul.mubr.bf16.gmra.mrb[0].mxu0 %v3739
  %v4133 = vpop.f32.mrb[0].mxu0
  %v4134 = vadd.f32 %v3814, %v4133
  %v4135 = vpop.f32.mrb[0].mxu0
  %v4136 = vadd.f32 %v3818, %v4135
  %v4137 = vpop.f32.mrb[0].mxu0
  %v4138 = vadd.f32 %v3814, %v4137
  %v4139 = vpop.f32.mrb[0].mxu0
  %v4140 = vadd.f32 %v3818, %v4139
  %4141 = vmatprep.mubr.bf16.mxu0 %v3742
  %4142 = vmatmul.mubr.bf16.gmra.mrb[0].mxu0 %v3741
  %v4143 = vpop.f32.mrb[0].mxu0
  %v4144 = vadd.f32 %v3814, %v4143
  %v4145 = vpop.f32.mrb[0].mxu0
  %v4146 = vadd.f32 %v3818, %v4145
  %v4147 = vpop.f32.mrb[0].mxu0
  %v4148 = vadd.f32 %v3814, %v4147
  %v4149 = vpop.f32.mrb[0].mxu0
  %v4150 = vadd.f32 %v3818, %v4149
  %4151 = vmatprep.mubr.bf16.mxu0 %v3744
  %4152 = vmatmul.mubr.bf16.gmra.mrb[0].mxu0 %v3743
  %v4153 = vpop.f32.mrb[0].mxu0
  %v4154 = vadd.f32 %v3814, %v4153
  %v4155 = vpop.f32.mrb[0].mxu0
  %v4156 = vadd.f32 %v3818, %v4155
  %v4157 = vpop.f32.mrb[0].mxu0
  %v4158 = vadd.f32 %v3814, %v4157
  %v4159 = vpop.f32.mrb[0].mxu0
  %v4160 = vadd.f32 %v3818, %v4159
  %4161 = vmatprep.mubr.bf16.mxu0 %v3746
  %4162 = vmatmul.mubr.bf16.gmra.mrb[0].mxu0 %v3745
  %v4163 = vpop.f32.mrb[0].mxu0
  %v4164 = vadd.f32 %v3814, %v4163
  %v4165 = vpop.f32.mrb[0].mxu0
  %v4166 = vadd.f32 %v3818, %v4165
  %v4167 = vpop.f32.mrb[0].mxu0
  %v4168 = vadd.f32 %v3814, %v4167
  %v4169 = vpop.f32.mrb[0].mxu0
  %v4170 = vadd.f32 %v3818, %v4169
  %4171 = vmatprep.mubr.bf16.mxu0 %v3748
  %4172 = vmatmul.mubr.bf16.gmra.mrb[0].mxu0 %v3747
  %v4173 = vpop.f32.mrb[0].mxu0
  %v4174 = vadd.f32 %v3814, %v4173
  %v4175 = vpop.f32.mrb[0].mxu0
  %v4176 = vadd.f32 %v3818, %v4175
  %v4177 = vpop.f32.mrb[0].mxu0
  %v4178 = vadd.f32 %v3814, %v4177
  %v4179 = vpop.f32.mrb[0].mxu0
  %v4180 = vadd.f32 %v3818, %v4179
  %4181 = vmatprep.mubr.bf16.mxu0 %v3750
  %4182 = vmatmul.mubr.bf16.gmra.mrb[0].mxu0 %v3749
  %v4183 = vpop.f32.mrb[0].mxu0
  %v4184 = vadd.f32 %v3814, %v4183
  %v4185 = vpop.f32.mrb[0].mxu0
  %v4186 = vadd.f32 %v3818, %v4185
  %v4187 = vpop.f32.mrb[0].mxu0
  %v4188 = vadd.f32 %v3814, %v4187
  %v4189 = vpop.f32.mrb[0].mxu0
  %v4190 = vadd.f32 %v3818, %v4189
  %4191 = vmatprep.mubr.bf16.mxu0 %v3752
  %4192 = vmatmul.mubr.bf16.gmra.mrb[0].mxu0 %v3751
  %v4193 = vpop.f32.mrb[0].mxu0
  %v4194 = vadd.f32 %v3814, %v4193
  %v4195 = vpop.f32.mrb[0].mxu0
  %v4196 = vadd.f32 %v3818, %v4195
  %v4197 = vpop.f32.mrb[0].mxu0
  %v4198 = vadd.f32 %v3814, %v4197
  %v4199 = vpop.f32.mrb[0].mxu0
  %v4200 = vadd.f32 %v3818, %v4199
  %4201 = vmatprep.mubr.bf16.mxu0 %v3754
  %4202 = vmatmul.mubr.bf16.gmra.mrb[0].mxu0 %v3753
  %v4203 = vpop.f32.mrb[0].mxu0
  %v4204 = vadd.f32 %v3814, %v4203
  %v4205 = vpop.f32.mrb[0].mxu0
  %v4206 = vadd.f32 %v3818, %v4205
  %v4207 = vpop.f32.mrb[0].mxu0
  %v4208 = vadd.f32 %v3814, %v4207
  %v4209 = vpop.f32.mrb[0].mxu0
  %v4210 = vadd.f32 %v3818, %v4209
  %4211 = vmatprep.mubr.bf16.mxu0 %v3756
  %4212 = vmatmul.mubr.bf16.gmra.mrb[0].mxu0 %v3755
  %v4213 = vpop.f32.mrb[0].mxu0
  %v4214 = vadd.f32 %v3814, %v4213
  %v4215 = vpop.f32.mrb[0].mxu0
  %v4216 = vadd.f32 %v3818, %v4215
  %v4217 = vpop.f32.mrb[0].mxu0
  %v4218 = vadd.f32 %v3814, %v4217
  %v4219 = vpop.f32.mrb[0].mxu0
  %v4220 = vadd.f32 %v3818, %v4219
  %4221 = vmatprep.mubr.bf16.mxu0 %v3758
  %4222 = vmatmul.mubr.bf16.gmra.mrb[0].mxu0 %v3757
  %v4223 = vpop.f32.mrb[0].mxu0
  %v4224 = vadd.f32 %v3814, %v4223
  %v4225 = vpop.f32.mrb[0].mxu0
  %v4226 = vadd.f32 %v3818, %v4225
  %v4227 = vpop.f32.mrb[0].mxu0
  %v4228 = vadd.f32 %v3814, %v4227
  %v4229 = vpop.f32.mrb[0].mxu0
  %v4230 = vadd.f32 %v3818, %v4229
  %4231 = vmatprep.mubr.bf16.mxu0 %v3760
  %4232 = vmatmul.mubr.bf16.gmra.mrb[0].mxu0 %v3759
  %v4233 = vpop.f32.mrb[0].mxu0
  %v4234 = vadd.f32 %v3814, %v4233
  %v4235 = vpop.f32.mrb[0].mxu0
  %v4236 = vadd.f32 %v3818, %v4235
  %v4237 = vpop.f32.mrb[0].mxu0
  %v4238 = vadd.f32 %v3814, %v4237
  %v4239 = vpop.f32.mrb[0].mxu0
  %v4240 = vadd.f32 %v3818, %v4239
  %4241 = vmatprep.mubr.bf16.mxu0 %v3762
  %4242 = vmatmul.mubr.bf16.gmra.mrb[0].mxu0 %v3761
  %v4243 = vpop.f32.mrb[0].mxu0
  %v4244 = vadd.f32 %v3814, %v4243
  %v4245 = vpop.f32.mrb[0].mxu0
  %v4246 = vadd.f32 %v3818, %v4245
  %v4247 = vpop.f32.mrb[0].mxu0
  %v4248 = vadd.f32 %v3814, %v4247
  %v4249 = vpop.f32.mrb[0].mxu0
  %v4250 = vadd.f32 %v3818, %v4249
  %4251 = vmatprep.mubr.bf16.mxu0 %v3764
  %4252 = vmatmul.mubr.bf16.gmra.mrb[0].mxu0 %v3763
  %v4253 = vpop.f32.mrb[0].mxu0
  %v4254 = vadd.f32 %v3814, %v4253
  %v4255 = vpop.f32.mrb[0].mxu0
  %v4256 = vadd.f32 %v3818, %v4255
  %v4257 = vpop.f32.mrb[0].mxu0
  %v4258 = vadd.f32 %v3814, %v4257
  %v4259 = vpop.f32.mrb[0].mxu0
  %v4260 = vadd.f32 %v3818, %v4259
  %4261 = vmatprep.mubr.bf16.mxu0 %v3766
  %4262 = vmatmul.mubr.bf16.gmra.mrb[0].mxu0 %v3765
  %v4263 = vpop.f32.mrb[0].mxu0
  %v4264 = vadd.f32 %v3814, %v4263
  %v4265 = vpop.f32.mrb[0].mxu0
  %v4266 = vadd.f32 %v3818, %v4265
  %v4267 = vpop.f32.mrb[0].mxu0
  %v4268 = vadd.f32 %v3814, %v4267
  %v4269 = vpop.f32.mrb[0].mxu0
  %v4270 = vadd.f32 %v3818, %v4269
  %4271 = vmatprep.mubr.bf16.mxu0 %v3768
  %4272 = vmatmul.mubr.bf16.gmra.mrb[0].mxu0 %v3767
  %v4273 = vpop.f32.mrb[0].mxu0
  %v4274 = vadd.f32 %v3814, %v4273
  %v4275 = vpop.f32.mrb[0].mxu0
  %v4276 = vadd.f32 %v3818, %v4275
  %v4277 = vpop.f32.mrb[0].mxu0
  %v4278 = vadd.f32 %v3814, %v4277
  %v4279 = vpop.f32.mrb[0].mxu0
  %v4280 = vadd.f32 %v3818, %v4279
  %4281 = vmatprep.mubr.bf16.mxu0 %v3770
  %4282 = vmatmul.mubr.bf16.gmra.mrb[0].mxu0 %v3769
  %v4283 = vpop.f32.mrb[0].mxu0
  %v4284 = vadd.f32 %v3814, %v4283
  %v4285 = vpop.f32.mrb[0].mxu0
  %v4286 = vadd.f32 %v3818, %v4285
  %v4287 = vpop.f32.mrb[0].mxu0
  %v4288 = vadd.f32 %v3814, %v4287
  %v4289 = vpop.f32.mrb[0].mxu0
  %v4290 = vadd.f32 %v3818, %v4289
  %4291 = vmatprep.mubr.bf16.mxu0 %v3772
  %4292 = vmatmul.mubr.bf16.gmra.mrb[0].mxu0 %v3771
  %v4293 = vpop.f32.mrb[0].mxu0
  %v4294 = vadd.f32 %v3814, %v4293
  %v4295 = vpop.f32.mrb[0].mxu0
  %v4296 = vadd.f32 %v3818, %v4295
  %v4297 = vpop.f32.mrb[0].mxu0
  %v4298 = vadd.f32 %v3814, %v4297
  %v4299 = vpop.f32.mrb[0].mxu0
  %v4300 = vadd.f32 %v3818, %v4299
  %4301 = vmatprep.mubr.bf16.mxu0 %v3774
  %4302 = vmatmul.mubr.bf16.gmra.mrb[0].mxu0 %v3773
  %v4303 = vpop.f32.mrb[0].mxu0
  %v4304 = vadd.f32 %v3814, %v4303
  %v4305 = vpop.f32.mrb[0].mxu0
  %v4306 = vadd.f32 %v3818, %v4305
  %v4307 = vpop.f32.mrb[0].mxu0
  %v4308 = vadd.f32 %v3814, %v4307
  %v4309 = vpop.f32.mrb[0].mxu0
  %v4310 = vadd.f32 %v3818, %v4309
  %4311 = vmatprep.mubr.bf16.mxu0 %v3776
  %4312 = vmatmul.mubr.bf16.gmra.mrb[0].mxu0 %v3775
  %v4313 = vpop.f32.mrb[0].mxu0
  %v4314 = vadd.f32 %v3814, %v4313
  %v4315 = vpop.f32.mrb[0].mxu0
  %v4316 = vadd.f32 %v3818, %v4315
  %v4317 = vpop.f32.mrb[0].mxu0
  %v4318 = vadd.f32 %v3814, %v4317
  %v4319 = vpop.f32.mrb[0].mxu0
  %v4320 = vadd.f32 %v3818, %v4319
  %4321 = vmatprep.mubr.bf16.mxu0 %v3778
  %4322 = vmatmul.mubr.bf16.gmra.mrb[0].mxu0 %v3777
  %v4323 = vpop.f32.mrb[0].mxu0
  %v4324 = vadd.f32 %v3814, %v4323
  %v4325 = vpop.f32.mrb[0].mxu0
  %v4326 = vadd.f32 %v3818, %v4325
  %v4327 = vpop.f32.mrb[0].mxu0
  %v4328 = vadd.f32 %v3814, %v4327
  %v4329 = vpop.f32.mrb[0].mxu0
  %v4330 = vadd.f32 %v3818, %v4329
  %4331 = vdwg.mxu0
  %4332 = vadd.xlane.f32.xlu0 %v4014
  %v4333 = vpop.xlane.xlu0 %4332
  %4334 = vadd.xlane.f32.xlu0 %v4018
  %v4335 = vpop.xlane.xlu0 %4334
  %4336 = vadd.xlane.f32.xlu0 %v4024
  %v4337 = vpop.xlane.xlu0 %4336
  %4338 = vadd.xlane.f32.xlu0 %v4028
  %v4339 = vpop.xlane.xlu0 %4338
  %4340 = vadd.xlane.f32.xlu0 %v4034
  %v4341 = vpop.xlane.xlu0 %4340
  %4342 = vadd.xlane.f32.xlu0 %v4038
  %v4343 = vpop.xlane.xlu0 %4342
  %4344 = vadd.xlane.f32.xlu0 %v4044
  %v4345 = vpop.xlane.xlu0 %4344
  %4346 = vadd.xlane.f32.xlu0 %v4048
  %v4347 = vpop.xlane.xlu0 %4346
  %4348 = vadd.xlane.f32.xlu0 %v4054
  %v4349 = vpop.xlane.xlu0 %4348
  %4350 = vadd.xlane.f32.xlu0 %v4058
  %v4351 = vpop.xlane.xlu0 %4350
  %4352 = vadd.xlane.f32.xlu0 %v4064
  %v4353 = vpop.xlane.xlu0 %4352
  %4354 = vadd.xlane.f32.xlu0 %v4068
  %v4355 = vpop.xlane.xlu0 %4354
  %4356 = vadd.xlane.f32.xlu0 %v4074
  %v4357 = vpop.xlane.xlu0 %4356
  %4358 = vadd.xlane.f32.xlu0 %v4078
  %v4359 = vpop.xlane.xlu0 %4358
  %4360 = vadd.xlane.f32.xlu0 %v4084
  %v4361 = vpop.xlane.xlu0 %4360
  %4362 = vadd.xlane.f32.xlu0 %v4088
  %v4363 = vpop.xlane.xlu0 %4362
  %4364 = vadd.xlane.f32.xlu0 %v4094
  %v4365 = vpop.xlane.xlu0 %4364
  %4366 = vadd.xlane.f32.xlu0 %v4098
  %v4367 = vpop.xlane.xlu0 %4366
  %4368 = vadd.xlane.f32.xlu0 %v4104
  %v4369 = vpop.xlane.xlu0 %4368
  %4370 = vadd.xlane.f32.xlu0 %v4108
  %v4371 = vpop.xlane.xlu0 %4370
  %4372 = vadd.xlane.f32.xlu0 %v4114
  %v4373 = vpop.xlane.xlu0 %4372
  %4374 = vadd.xlane.f32.xlu0 %v4118
  %v4375 = vpop.xlane.xlu0 %4374
  %4376 = vadd.xlane.f32.xlu0 %v4124
  %v4377 = vpop.xlane.xlu0 %4376
  %4378 = vadd.xlane.f32.xlu0 %v4128
  %v4379 = vpop.xlane.xlu0 %4378
  %4380 = vadd.xlane.f32.xlu0 %v4134
  %v4381 = vpop.xlane.xlu0 %4380
  %4382 = vadd.xlane.f32.xlu0 %v4138
  %v4383 = vpop.xlane.xlu0 %4382
  %4384 = vadd.xlane.f32.xlu0 %v4144
  %v4385 = vpop.xlane.xlu0 %4384
  %4386 = vadd.xlane.f32.xlu0 %v4148
  %v4387 = vpop.xlane.xlu0 %4386
  %4388 = vadd.xlane.f32.xlu0 %v4154
  %v4389 = vpop.xlane.xlu0 %4388
  %4390 = vadd.xlane.f32.xlu0 %v4158
  %v4391 = vpop.xlane.xlu0 %4390
  %4392 = vadd.xlane.f32.xlu0 %v4164
  %v4393 = vpop.xlane.xlu0 %4392
  %4394 = vadd.xlane.f32.xlu0 %v4168
  %v4395 = vpop.xlane.xlu0 %4394
  %4396 = vadd.xlane.f32.xlu0 %v4174
  %v4397 = vpop.xlane.xlu0 %4396
  %4398 = vadd.xlane.f32.xlu0 %v4178
  %v4399 = vpop.xlane.xlu0 %4398
  %4400 = vadd.xlane.f32.xlu0 %v4184
  %v4401 = vpop.xlane.xlu0 %4400
  %4402 = vadd.xlane.f32.xlu0 %v4188
  %v4403 = vpop.xlane.xlu0 %4402
  %4404 = vadd.xlane.f32.xlu0 %v4194
  %v4405 = vpop.xlane.xlu0 %4404
  %4406 = vadd.xlane.f32.xlu0 %v4198
  %v4407 = vpop.xlane.xlu0 %4406
  %4408 = vadd.xlane.f32.xlu0 %v4204
  %v4409 = vpop.xlane.xlu0 %4408
  %4410 = vadd.xlane.f32.xlu0 %v4208
  %v4411 = vpop.xlane.xlu0 %4410
  %4412 = vadd.xlane.f32.xlu0 %v4214
  %v4413 = vpop.xlane.xlu0 %4412
  %4414 = vadd.xlane.f32.xlu0 %v4218
  %v4415 = vpop.xlane.xlu0 %4414
  %4416 = vadd.xlane.f32.xlu0 %v4224
  %v4417 = vpop.xlane.xlu0 %4416
  %4418 = vadd.xlane.f32.xlu0 %v4228
  %v4419 = vpop.xlane.xlu0 %4418
  %4420 = vadd.xlane.f32.xlu0 %v4234
  %v4421 = vpop.xlane.xlu0 %4420
  %4422 = vadd.xlane.f32.xlu0 %v4238
  %v4423 = vpop.xlane.xlu0 %4422
  %4424 = vadd.xlane.f32.xlu0 %v4244
  %v4425 = vpop.xlane.xlu0 %4424
  %4426 = vadd.xlane.f32.xlu0 %v4248
  %v4427 = vpop.xlane.xlu0 %4426
  %4428 = vadd.xlane.f32.xlu0 %v4254
  %v4429 = vpop.xlane.xlu0 %4428
  %4430 = vadd.xlane.f32.xlu0 %v4258
  %v4431 = vpop.xlane.xlu0 %4430
  %4432 = vadd.xlane.f32.xlu0 %v4264
  %v4433 = vpop.xlane.xlu0 %4432
  %4434 = vadd.xlane.f32.xlu0 %v4268
  %v4435 = vpop.xlane.xlu0 %4434
  %4436 = vadd.xlane.f32.xlu0 %v4274
  %v4437 = vpop.xlane.xlu0 %4436
  %4438 = vadd.xlane.f32.xlu0 %v4278
  %v4439 = vpop.xlane.xlu0 %4438
  %4440 = vadd.xlane.f32.xlu0 %v4284
  %v4441 = vpop.xlane.xlu0 %4440
  %4442 = vadd.xlane.f32.xlu0 %v4288
  %v4443 = vpop.xlane.xlu0 %4442
  %4444 = vadd.xlane.f32.xlu0 %v4294
  %v4445 = vpop.xlane.xlu0 %4444
  %4446 = vadd.xlane.f32.xlu0 %v4298
  %v4447 = vpop.xlane.xlu0 %4446
  %4448 = vadd.xlane.f32.xlu0 %v4304
  %v4449 = vpop.xlane.xlu0 %4448
  %4450 = vadd.xlane.f32.xlu0 %v4308
  %v4451 = vpop.xlane.xlu0 %4450
  %4452 = vadd.xlane.f32.xlu0 %v4314
  %v4453 = vpop.xlane.xlu0 %4452
  %4454 = vadd.xlane.f32.xlu0 %v4318
  %v4455 = vpop.xlane.xlu0 %4454
  %4456 = vadd.xlane.f32.xlu0 %v4324
  %v4457 = vpop.xlane.xlu0 %4456
  %4458 = vadd.xlane.f32.xlu0 %v4328
  %v4459 = vpop.xlane.xlu0 %4458
  %v4460 = vmul.f32 %v4333, %v768
  %v4461 = vmul.f32 %v4335, %v768
  %v4462 = vmul.f32 %v4337, %v768
  %v4463 = vmul.f32 %v4339, %v768
  %v4464 = vmul.f32 %v4341, %v768
  %v4465 = vmul.f32 %v4343, %v768
  %v4466 = vmul.f32 %v4345, %v768
  %v4467 = vmul.f32 %v4347, %v768
  %v4468 = vmul.f32 %v4349, %v768
  %v4469 = vmul.f32 %v4351, %v768
  %v4470 = vmul.f32 %v4353, %v768
  %v4471 = vmul.f32 %v4355, %v768
  %v4472 = vmul.f32 %v4357, %v768
  %v4473 = vmul.f32 %v4359, %v768
  %v4474 = vmul.f32 %v4361, %v768
  %v4475 = vmul.f32 %v4363, %v768
  %v4476 = vmul.f32 %v4365, %v768
  %v4477 = vmul.f32 %v4367, %v768
  %v4478 = vmul.f32 %v4369, %v768
  %v4479 = vmul.f32 %v4371, %v768
  %v4480 = vmul.f32 %v4373, %v768
  %v4481 = vmul.f32 %v4375, %v768
  %v4482 = vmul.f32 %v4377, %v768
  %v4483 = vmul.f32 %v4379, %v768
  %v4484 = vmul.f32 %v4381, %v768
  %v4485 = vmul.f32 %v4383, %v768
  %v4486 = vmul.f32 %v4385, %v768
  %v4487 = vmul.f32 %v4387, %v768
  %v4488 = vmul.f32 %v4389, %v768
  %v4489 = vmul.f32 %v4391, %v768
  %v4490 = vmul.f32 %v4393, %v768
  %v4491 = vmul.f32 %v4395, %v768
  %v4492 = vmul.f32 %v4397, %v768
  %v4493 = vmul.f32 %v4399, %v768
  %v4494 = vmul.f32 %v4401, %v768
  %v4495 = vmul.f32 %v4403, %v768
  %v4496 = vmul.f32 %v4405, %v768
  %v4497 = vmul.f32 %v4407, %v768
  %v4498 = vmul.f32 %v4409, %v768
  %v4499 = vmul.f32 %v4411, %v768
  %v4500 = vmul.f32 %v4413, %v768
  %v4501 = vmul.f32 %v4415, %v768
  %v4502 = vmul.f32 %v4417, %v768
  %v4503 = vmul.f32 %v4419, %v768
  %v4504 = vmul.f32 %v4421, %v768
  %v4505 = vmul.f32 %v4423, %v768
  %v4506 = vmul.f32 %v4425, %v768
  %v4507 = vmul.f32 %v4427, %v768
  %v4508 = vmul.f32 %v4429, %v768
  %v4509 = vmul.f32 %v4431, %v768
  %v4510 = vmul.f32 %v4433, %v768
  %v4511 = vmul.f32 %v4435, %v768
  %v4512 = vmul.f32 %v4437, %v768
  %v4513 = vmul.f32 %v4439, %v768
  %v4514 = vmul.f32 %v4441, %v768
  %v4515 = vmul.f32 %v4443, %v768
  %v4516 = vmul.f32 %v4445, %v768
  %v4517 = vmul.f32 %v4447, %v768
  %v4518 = vmul.f32 %v4449, %v768
  %v4519 = vmul.f32 %v4451, %v768
  %v4520 = vmul.f32 %v4453, %v768
  %v4521 = vmul.f32 %v4455, %v768
  %v4522 = vmul.f32 %v4457, %v768
  %v4523 = vmul.f32 %v4459, %v768
  %v4524 = vmul.f32 %v4014, %v4014
  %v4525 = vmul.f32 %v4018, %v4018
  %v4526 = vmul.f32 %v4024, %v4024
  %v4527 = vmul.f32 %v4028, %v4028
  %v4528 = vmul.f32 %v4034, %v4034
  %v4529 = vmul.f32 %v4038, %v4038
  %v4530 = vmul.f32 %v4044, %v4044
  %v4531 = vmul.f32 %v4048, %v4048
  %v4532 = vmul.f32 %v4054, %v4054
  %v4533 = vmul.f32 %v4058, %v4058
  %v4534 = vmul.f32 %v4064, %v4064
  %v4535 = vmul.f32 %v4068, %v4068
  %v4536 = vmul.f32 %v4074, %v4074
  %v4537 = vmul.f32 %v4078, %v4078
  %v4538 = vmul.f32 %v4084, %v4084
  %v4539 = vmul.f32 %v4088, %v4088
  %v4540 = vmul.f32 %v4094, %v4094
  %v4541 = vmul.f32 %v4098, %v4098
  %v4542 = vmul.f32 %v4104, %v4104
  %v4543 = vmul.f32 %v4108, %v4108
  %v4544 = vmul.f32 %v4114, %v4114
  %v4545 = vmul.f32 %v4118, %v4118
  %v4546 = vmul.f32 %v4124, %v4124
  %v4547 = vmul.f32 %v4128, %v4128
  %v4548 = vmul.f32 %v4134, %v4134
  %v4549 = vmul.f32 %v4138, %v4138
  %v4550 = vmul.f32 %v4144, %v4144
  %v4551 = vmul.f32 %v4148, %v4148
  %v4552 = vmul.f32 %v4154, %v4154
  %v4553 = vmul.f32 %v4158, %v4158
  %v4554 = vmul.f32 %v4164, %v4164
  %v4555 = vmul.f32 %v4168, %v4168
  %v4556 = vmul.f32 %v4174, %v4174
  %v4557 = vmul.f32 %v4178, %v4178
  %v4558 = vmul.f32 %v4184, %v4184
  %v4559 = vmul.f32 %v4188, %v4188
  %v4560 = vmul.f32 %v4194, %v4194
  %v4561 = vmul.f32 %v4198, %v4198
  %v4562 = vmul.f32 %v4204, %v4204
  %v4563 = vmul.f32 %v4208, %v4208
  %v4564 = vmul.f32 %v4214, %v4214
  %v4565 = vmul.f32 %v4218, %v4218
  %v4566 = vmul.f32 %v4224, %v4224
  %v4567 = vmul.f32 %v4228, %v4228
  %v4568 = vmul.f32 %v4234, %v4234
  %v4569 = vmul.f32 %v4238, %v4238
  %v4570 = vmul.f32 %v4244, %v4244
  %v4571 = vmul.f32 %v4248, %v4248
  %v4572 = vmul.f32 %v4254, %v4254
  %v4573 = vmul.f32 %v4258, %v4258
  %v4574 = vmul.f32 %v4264, %v4264
  %v4575 = vmul.f32 %v4268, %v4268
  %v4576 = vmul.f32 %v4274, %v4274
  %v4577 = vmul.f32 %v4278, %v4278
  %v4578 = vmul.f32 %v4284, %v4284
  %v4579 = vmul.f32 %v4288, %v4288
  %v4580 = vmul.f32 %v4294, %v4294
  %v4581 = vmul.f32 %v4298, %v4298
  %v4582 = vmul.f32 %v4304, %v4304
  %v4583 = vmul.f32 %v4308, %v4308
  %v4584 = vmul.f32 %v4314, %v4314
  %v4585 = vmul.f32 %v4318, %v4318
  %v4586 = vmul.f32 %v4324, %v4324
  %v4587 = vmul.f32 %v4328, %v4328
  %4588 = vadd.xlane.f32.xlu0 %v4524
  %v4589 = vpop.xlane.xlu0 %4588
  %4590 = vadd.xlane.f32.xlu0 %v4525
  %v4591 = vpop.xlane.xlu0 %4590
  %4592 = vadd.xlane.f32.xlu0 %v4526
  %v4593 = vpop.xlane.xlu0 %4592
  %4594 = vadd.xlane.f32.xlu0 %v4527
  %v4595 = vpop.xlane.xlu0 %4594
  %4596 = vadd.xlane.f32.xlu0 %v4528
  %v4597 = vpop.xlane.xlu0 %4596
  %4598 = vadd.xlane.f32.xlu0 %v4529
  %v4599 = vpop.xlane.xlu0 %4598
  %4600 = vadd.xlane.f32.xlu0 %v4530
  %v4601 = vpop.xlane.xlu0 %4600
  %4602 = vadd.xlane.f32.xlu0 %v4531
  %v4603 = vpop.xlane.xlu0 %4602
  %4604 = vadd.xlane.f32.xlu0 %v4532
  %v4605 = vpop.xlane.xlu0 %4604
  %4606 = vadd.xlane.f32.xlu0 %v4533
  %v4607 = vpop.xlane.xlu0 %4606
  %4608 = vadd.xlane.f32.xlu0 %v4534
  %v4609 = vpop.xlane.xlu0 %4608
  %4610 = vadd.xlane.f32.xlu0 %v4535
  %v4611 = vpop.xlane.xlu0 %4610
  %4612 = vadd.xlane.f32.xlu0 %v4536
  %v4613 = vpop.xlane.xlu0 %4612
  %4614 = vadd.xlane.f32.xlu0 %v4537
  %v4615 = vpop.xlane.xlu0 %4614
  %4616 = vadd.xlane.f32.xlu0 %v4538
  %v4617 = vpop.xlane.xlu0 %4616
  %4618 = vadd.xlane.f32.xlu0 %v4539
  %v4619 = vpop.xlane.xlu0 %4618
  %4620 = vadd.xlane.f32.xlu0 %v4540
  %v4621 = vpop.xlane.xlu0 %4620
  %4622 = vadd.xlane.f32.xlu0 %v4541
  %v4623 = vpop.xlane.xlu0 %4622
  %4624 = vadd.xlane.f32.xlu0 %v4542
  %v4625 = vpop.xlane.xlu0 %4624
  %4626 = vadd.xlane.f32.xlu0 %v4543
  %v4627 = vpop.xlane.xlu0 %4626
  %4628 = vadd.xlane.f32.xlu0 %v4544
  %v4629 = vpop.xlane.xlu0 %4628
  %4630 = vadd.xlane.f32.xlu0 %v4545
  %v4631 = vpop.xlane.xlu0 %4630
  %4632 = vadd.xlane.f32.xlu0 %v4546
  %v4633 = vpop.xlane.xlu0 %4632
  %4634 = vadd.xlane.f32.xlu0 %v4547
  %v4635 = vpop.xlane.xlu0 %4634
  %4636 = vadd.xlane.f32.xlu0 %v4548
  %v4637 = vpop.xlane.xlu0 %4636
  %4638 = vadd.xlane.f32.xlu0 %v4549
  %v4639 = vpop.xlane.xlu0 %4638
  %4640 = vadd.xlane.f32.xlu0 %v4550
  %v4641 = vpop.xlane.xlu0 %4640
  %4642 = vadd.xlane.f32.xlu0 %v4551
  %v4643 = vpop.xlane.xlu0 %4642
  %4644 = vadd.xlane.f32.xlu0 %v4552
  %v4645 = vpop.xlane.xlu0 %4644
  %4646 = vadd.xlane.f32.xlu0 %v4553
  %v4647 = vpop.xlane.xlu0 %4646
  %4648 = vadd.xlane.f32.xlu0 %v4554
  %v4649 = vpop.xlane.xlu0 %4648
  %4650 = vadd.xlane.f32.xlu0 %v4555
  %v4651 = vpop.xlane.xlu0 %4650
  %4652 = vadd.xlane.f32.xlu0 %v4556
  %v4653 = vpop.xlane.xlu0 %4652
  %4654 = vadd.xlane.f32.xlu0 %v4557
  %v4655 = vpop.xlane.xlu0 %4654
  %4656 = vadd.xlane.f32.xlu0 %v4558
  %v4657 = vpop.xlane.xlu0 %4656
  %4658 = vadd.xlane.f32.xlu0 %v4559
  %v4659 = vpop.xlane.xlu0 %4658
  %4660 = vadd.xlane.f32.xlu0 %v4560
  %v4661 = vpop.xlane.xlu0 %4660
  %4662 = vadd.xlane.f32.xlu0 %v4561
  %v4663 = vpop.xlane.xlu0 %4662
  %4664 = vadd.xlane.f32.xlu0 %v4562
  %v4665 = vpop.xlane.xlu0 %4664
  %4666 = vadd.xlane.f32.xlu0 %v4563
  %v4667 = vpop.xlane.xlu0 %4666
  %4668 = vadd.xlane.f32.xlu0 %v4564
  %v4669 = vpop.xlane.xlu0 %4668
  %4670 = vadd.xlane.f32.xlu0 %v4565
  %v4671 = vpop.xlane.xlu0 %4670
  %4672 = vadd.xlane.f32.xlu0 %v4566
  %v4673 = vpop.xlane.xlu0 %4672
  %4674 = vadd.xlane.f32.xlu0 %v4567
  %v4675 = vpop.xlane.xlu0 %4674
  %4676 = vadd.xlane.f32.xlu0 %v4568
  %v4677 = vpop.xlane.xlu0 %4676
  %4678 = vadd.xlane.f32.xlu0 %v4569
  %v4679 = vpop.xlane.xlu0 %4678
  %4680 = vadd.xlane.f32.xlu0 %v4570
  %v4681 = vpop.xlane.xlu0 %4680
  %4682 = vadd.xlane.f32.xlu0 %v4571
  %v4683 = vpop.xlane.xlu0 %4682
  %4684 = vadd.xlane.f32.xlu0 %v4572
  %v4685 = vpop.xlane.xlu0 %4684
  %4686 = vadd.xlane.f32.xlu0 %v4573
  %v4687 = vpop.xlane.xlu0 %4686
  %4688 = vadd.xlane.f32.xlu0 %v4574
  %v4689 = vpop.xlane.xlu0 %4688
  %4690 = vadd.xlane.f32.xlu0 %v4575
  %v4691 = vpop.xlane.xlu0 %4690
  %4692 = vadd.xlane.f32.xlu0 %v4576
  %v4693 = vpop.xlane.xlu0 %4692
  %4694 = vadd.xlane.f32.xlu0 %v4577
  %v4695 = vpop.xlane.xlu0 %4694
  %4696 = vadd.xlane.f32.xlu0 %v4578
  %v4697 = vpop.xlane.xlu0 %4696
  %4698 = vadd.xlane.f32.xlu0 %v4579
  %v4699 = vpop.xlane.xlu0 %4698
  %4700 = vadd.xlane.f32.xlu0 %v4580
  %v4701 = vpop.xlane.xlu0 %4700
  %4702 = vadd.xlane.f32.xlu0 %v4581
  %v4703 = vpop.xlane.xlu0 %4702
  %4704 = vadd.xlane.f32.xlu0 %v4582
  %v4705 = vpop.xlane.xlu0 %4704
  %4706 = vadd.xlane.f32.xlu0 %v4583
  %v4707 = vpop.xlane.xlu0 %4706
  %4708 = vadd.xlane.f32.xlu0 %v4584
  %v4709 = vpop.xlane.xlu0 %4708
  %4710 = vadd.xlane.f32.xlu0 %v4585
  %v4711 = vpop.xlane.xlu0 %4710
  %4712 = vadd.xlane.f32.xlu0 %v4586
  %v4713 = vpop.xlane.xlu0 %4712
  %4714 = vadd.xlane.f32.xlu0 %v4587
  %v4715 = vpop.xlane.xlu0 %4714
  %v4716 = vmul.f32 %v4589, %v768
  %v4717 = vmul.f32 %v4591, %v768
  %v4718 = vmul.f32 %v4593, %v768
  %v4719 = vmul.f32 %v4595, %v768
  %v4720 = vmul.f32 %v4597, %v768
  %v4721 = vmul.f32 %v4599, %v768
  %v4722 = vmul.f32 %v4601, %v768
  %v4723 = vmul.f32 %v4603, %v768
  %v4724 = vmul.f32 %v4605, %v768
  %v4725 = vmul.f32 %v4607, %v768
  %v4726 = vmul.f32 %v4609, %v768
  %v4727 = vmul.f32 %v4611, %v768
  %v4728 = vmul.f32 %v4613, %v768
  %v4729 = vmul.f32 %v4615, %v768
  %v4730 = vmul.f32 %v4617, %v768
  %v4731 = vmul.f32 %v4619, %v768
  %v4732 = vmul.f32 %v4621, %v768
  %v4733 = vmul.f32 %v4623, %v768
  %v4734 = vmul.f32 %v4625, %v768
  %v4735 = vmul.f32 %v4627, %v768
  %v4736 = vmul.f32 %v4629, %v768
  %v4737 = vmul.f32 %v4631, %v768
  %v4738 = vmul.f32 %v4633, %v768
  %v4739 = vmul.f32 %v4635, %v768
  %v4740 = vmul.f32 %v4637, %v768
  %v4741 = vmul.f32 %v4639, %v768
  %v4742 = vmul.f32 %v4641, %v768
  %v4743 = vmul.f32 %v4643, %v768
  %v4744 = vmul.f32 %v4645, %v768
  %v4745 = vmul.f32 %v4647, %v768
  %v4746 = vmul.f32 %v4649, %v768
  %v4747 = vmul.f32 %v4651, %v768
  %v4748 = vmul.f32 %v4653, %v768
  %v4749 = vmul.f32 %v4655, %v768
  %v4750 = vmul.f32 %v4657, %v768
  %v4751 = vmul.f32 %v4659, %v768
  %v4752 = vmul.f32 %v4661, %v768
  %v4753 = vmul.f32 %v4663, %v768
  %v4754 = vmul.f32 %v4665, %v768
  %v4755 = vmul.f32 %v4667, %v768
  %v4756 = vmul.f32 %v4669, %v768
  %v4757 = vmul.f32 %v4671, %v768
  %v4758 = vmul.f32 %v4673, %v768
  %v4759 = vmul.f32 %v4675, %v768
  %v4760 = vmul.f32 %v4677, %v768
  %v4761 = vmul.f32 %v4679, %v768
  %v4762 = vmul.f32 %v4681, %v768
  %v4763 = vmul.f32 %v4683, %v768
  %v4764 = vmul.f32 %v4685, %v768
  %v4765 = vmul.f32 %v4687, %v768
  %v4766 = vmul.f32 %v4689, %v768
  %v4767 = vmul.f32 %v4691, %v768
  %v4768 = vmul.f32 %v4693, %v768
  %v4769 = vmul.f32 %v4695, %v768
  %v4770 = vmul.f32 %v4697, %v768
  %v4771 = vmul.f32 %v4699, %v768
  %v4772 = vmul.f32 %v4701, %v768
  %v4773 = vmul.f32 %v4703, %v768
  %v4774 = vmul.f32 %v4705, %v768
  %v4775 = vmul.f32 %v4707, %v768
  %v4776 = vmul.f32 %v4709, %v768
  %v4777 = vmul.f32 %v4711, %v768
  %v4778 = vmul.f32 %v4713, %v768
  %v4779 = vmul.f32 %v4715, %v768
  %v4780 = vsub.f32 %v4014, %v4460
  %v4781 = vsub.f32 %v4018, %v4461
  %v4782 = vsub.f32 %v4024, %v4462
  %v4783 = vsub.f32 %v4028, %v4463
  %v4784 = vsub.f32 %v4034, %v4464
  %v4785 = vsub.f32 %v4038, %v4465
  %v4786 = vsub.f32 %v4044, %v4466
  %v4787 = vsub.f32 %v4048, %v4467
  %v4788 = vsub.f32 %v4054, %v4468
  %v4789 = vsub.f32 %v4058, %v4469
  %v4790 = vsub.f32 %v4064, %v4470
  %v4791 = vsub.f32 %v4068, %v4471
  %v4792 = vsub.f32 %v4074, %v4472
  %v4793 = vsub.f32 %v4078, %v4473
  %v4794 = vsub.f32 %v4084, %v4474
  %v4795 = vsub.f32 %v4088, %v4475
  %v4796 = vsub.f32 %v4094, %v4476
  %v4797 = vsub.f32 %v4098, %v4477
  %v4798 = vsub.f32 %v4104, %v4478
  %v4799 = vsub.f32 %v4108, %v4479
  %v4800 = vsub.f32 %v4114, %v4480
  %v4801 = vsub.f32 %v4118, %v4481
  %v4802 = vsub.f32 %v4124, %v4482
  %v4803 = vsub.f32 %v4128, %v4483
  %v4804 = vsub.f32 %v4134, %v4484
  %v4805 = vsub.f32 %v4138, %v4485
  %v4806 = vsub.f32 %v4144, %v4486
  %v4807 = vsub.f32 %v4148, %v4487
  %v4808 = vsub.f32 %v4154, %v4488
  %v4809 = vsub.f32 %v4158, %v4489
  %v4810 = vsub.f32 %v4164, %v4490
  %v4811 = vsub.f32 %v4168, %v4491
  %v4812 = vsub.f32 %v4174, %v4492
  %v4813 = vsub.f32 %v4178, %v4493
  %v4814 = vsub.f32 %v4184, %v4494
  %v4815 = vsub.f32 %v4188, %v4495
  %v4816 = vsub.f32 %v4194, %v4496
  %v4817 = vsub.f32 %v4198, %v4497
  %v4818 = vsub.f32 %v4204, %v4498
  %v4819 = vsub.f32 %v4208, %v4499
  %v4820 = vsub.f32 %v4214, %v4500
  %v4821 = vsub.f32 %v4218, %v4501
  %v4822 = vsub.f32 %v4224, %v4502
  %v4823 = vsub.f32 %v4228, %v4503
  %v4824 = vsub.f32 %v4234, %v4504
  %v4825 = vsub.f32 %v4238, %v4505
  %v4826 = vsub.f32 %v4244, %v4506
  %v4827 = vsub.f32 %v4248, %v4507
  %v4828 = vsub.f32 %v4254, %v4508
  %v4829 = vsub.f32 %v4258, %v4509
  %v4830 = vsub.f32 %v4264, %v4510
  %v4831 = vsub.f32 %v4268, %v4511
  %v4832 = vsub.f32 %v4274, %v4512
  %v4833 = vsub.f32 %v4278, %v4513
  %v4834 = vsub.f32 %v4284, %v4514
  %v4835 = vsub.f32 %v4288, %v4515
  %v4836 = vsub.f32 %v4294, %v4516
  %v4837 = vsub.f32 %v4298, %v4517
  %v4838 = vsub.f32 %v4304, %v4518
  %v4839 = vsub.f32 %v4308, %v4519
  %v4840 = vsub.f32 %v4314, %v4520
  %v4841 = vsub.f32 %v4318, %v4521
  %v4842 = vsub.f32 %v4324, %v4522
  %v4843 = vsub.f32 %v4328, %v4523
  %v4844 = vmul.f32 %v4460, %v4460
  %v4845 = vmul.f32 %v4461, %v4461
  %v4846 = vmul.f32 %v4462, %v4462
  %v4847 = vmul.f32 %v4463, %v4463
  %v4848 = vmul.f32 %v4464, %v4464
  %v4849 = vmul.f32 %v4465, %v4465
  %v4850 = vmul.f32 %v4466, %v4466
  %v4851 = vmul.f32 %v4467, %v4467
  %v4852 = vmul.f32 %v4468, %v4468
  %v4853 = vmul.f32 %v4469, %v4469
  %v4854 = vmul.f32 %v4470, %v4470
  %v4855 = vmul.f32 %v4471, %v4471
  %v4856 = vmul.f32 %v4472, %v4472
  %v4857 = vmul.f32 %v4473, %v4473
  %v4858 = vmul.f32 %v4474, %v4474
  %v4859 = vmul.f32 %v4475, %v4475
  %v4860 = vmul.f32 %v4476, %v4476
  %v4861 = vmul.f32 %v4477, %v4477
  %v4862 = vmul.f32 %v4478, %v4478
  %v4863 = vmul.f32 %v4479, %v4479
  %v4864 = vmul.f32 %v4480, %v4480
  %v4865 = vmul.f32 %v4481, %v4481
  %v4866 = vmul.f32 %v4482, %v4482
  %v4867 = vmul.f32 %v4483, %v4483
  %v4868 = vmul.f32 %v4484, %v4484
  %v4869 = vmul.f32 %v4485, %v4485
  %v4870 = vmul.f32 %v4486, %v4486
  %v4871 = vmul.f32 %v4487, %v4487
  %v4872 = vmul.f32 %v4488, %v4488
  %v4873 = vmul.f32 %v4489, %v4489
  %v4874 = vmul.f32 %v4490, %v4490
  %v4875 = vmul.f32 %v4491, %v4491
  %v4876 = vmul.f32 %v4492, %v4492
  %v4877 = vmul.f32 %v4493, %v4493
  %v4878 = vmul.f32 %v4494, %v4494
  %v4879 = vmul.f32 %v4495, %v4495
  %v4880 = vmul.f32 %v4496, %v4496
  %v4881 = vmul.f32 %v4497, %v4497
  %v4882 = vmul.f32 %v4498, %v4498
  %v4883 = vmul.f32 %v4499, %v4499
  %v4884 = vmul.f32 %v4500, %v4500
  %v4885 = vmul.f32 %v4501, %v4501
  %v4886 = vmul.f32 %v4502, %v4502
  %v4887 = vmul.f32 %v4503, %v4503
  %v4888 = vmul.f32 %v4504, %v4504
  %v4889 = vmul.f32 %v4505, %v4505
  %v4890 = vmul.f32 %v4506, %v4506
  %v4891 = vmul.f32 %v4507, %v4507
  %v4892 = vmul.f32 %v4508, %v4508
  %v4893 = vmul.f32 %v4509, %v4509
  %v4894 = vmul.f32 %v4510, %v4510
  %v4895 = vmul.f32 %v4511, %v4511
  %v4896 = vmul.f32 %v4512, %v4512
  %v4897 = vmul.f32 %v4513, %v4513
  %v4898 = vmul.f32 %v4514, %v4514
  %v4899 = vmul.f32 %v4515, %v4515
  %v4900 = vmul.f32 %v4516, %v4516
  %v4901 = vmul.f32 %v4517, %v4517
  %v4902 = vmul.f32 %v4518, %v4518
  %v4903 = vmul.f32 %v4519, %v4519
  %v4904 = vmul.f32 %v4520, %v4520
  %v4905 = vmul.f32 %v4521, %v4521
  %v4906 = vmul.f32 %v4522, %v4522
  %v4907 = vmul.f32 %v4523, %v4523
  %v4908 = vsub.f32 %v4716, %v4844
  %v4909 = vsub.f32 %v4717, %v4845
  %v4910 = vsub.f32 %v4718, %v4846
  %v4911 = vsub.f32 %v4719, %v4847
  %v4912 = vsub.f32 %v4720, %v4848
  %v4913 = vsub.f32 %v4721, %v4849
  %v4914 = vsub.f32 %v4722, %v4850
  %v4915 = vsub.f32 %v4723, %v4851
  %v4916 = vsub.f32 %v4724, %v4852
  %v4917 = vsub.f32 %v4725, %v4853
  %v4918 = vsub.f32 %v4726, %v4854
  %v4919 = vsub.f32 %v4727, %v4855
  %v4920 = vsub.f32 %v4728, %v4856
  %v4921 = vsub.f32 %v4729, %v4857
  %v4922 = vsub.f32 %v4730, %v4858
  %v4923 = vsub.f32 %v4731, %v4859
  %v4924 = vsub.f32 %v4732, %v4860
  %v4925 = vsub.f32 %v4733, %v4861
  %v4926 = vsub.f32 %v4734, %v4862
  %v4927 = vsub.f32 %v4735, %v4863
  %v4928 = vsub.f32 %v4736, %v4864
  %v4929 = vsub.f32 %v4737, %v4865
  %v4930 = vsub.f32 %v4738, %v4866
  %v4931 = vsub.f32 %v4739, %v4867
  %v4932 = vsub.f32 %v4740, %v4868
  %v4933 = vsub.f32 %v4741, %v4869
  %v4934 = vsub.f32 %v4742, %v4870
  %v4935 = vsub.f32 %v4743, %v4871
  %v4936 = vsub.f32 %v4744, %v4872
  %v4937 = vsub.f32 %v4745, %v4873
  %v4938 = vsub.f32 %v4746, %v4874
  %v4939 = vsub.f32 %v4747, %v4875
  %v4940 = vsub.f32 %v4748, %v4876
  %v4941 = vsub.f32 %v4749, %v4877
  %v4942 = vsub.f32 %v4750, %v4878
  %v4943 = vsub.f32 %v4751, %v4879
  %v4944 = vsub.f32 %v4752, %v4880
  %v4945 = vsub.f32 %v4753, %v4881
  %v4946 = vsub.f32 %v4754, %v4882
  %v4947 = vsub.f32 %v4755, %v4883
  %v4948 = vsub.f32 %v4756, %v4884
  %v4949 = vsub.f32 %v4757, %v4885
  %v4950 = vsub.f32 %v4758, %v4886
  %v4951 = vsub.f32 %v4759, %v4887
  %v4952 = vsub.f32 %v4760, %v4888
  %v4953 = vsub.f32 %v4761, %v4889
  %v4954 = vsub.f32 %v4762, %v4890
  %v4955 = vsub.f32 %v4763, %v4891
  %v4956 = vsub.f32 %v4764, %v4892
  %v4957 = vsub.f32 %v4765, %v4893
  %v4958 = vsub.f32 %v4766, %v4894
  %v4959 = vsub.f32 %v4767, %v4895
  %v4960 = vsub.f32 %v4768, %v4896
  %v4961 = vsub.f32 %v4769, %v4897
  %v4962 = vsub.f32 %v4770, %v4898
  %v4963 = vsub.f32 %v4771, %v4899
  %v4964 = vsub.f32 %v4772, %v4900
  %v4965 = vsub.f32 %v4773, %v4901
  %v4966 = vsub.f32 %v4774, %v4902
  %v4967 = vsub.f32 %v4775, %v4903
  %v4968 = vsub.f32 %v4776, %v4904
  %v4969 = vsub.f32 %v4777, %v4905
  %v4970 = vsub.f32 %v4778, %v4906
  %v4971 = vsub.f32 %v4779, %v4907
  %v4972 = vadd.f32 %v4908, 1e-05
  %v4973 = vadd.f32 %v4909, 1e-05
  %v4974 = vadd.f32 %v4910, 1e-05
  %v4975 = vadd.f32 %v4911, 1e-05
  %v4976 = vadd.f32 %v4912, 1e-05
  %v4977 = vadd.f32 %v4913, 1e-05
  %v4978 = vadd.f32 %v4914, 1e-05
  %v4979 = vadd.f32 %v4915, 1e-05
  %v4980 = vadd.f32 %v4916, 1e-05
  %v4981 = vadd.f32 %v4917, 1e-05
  %v4982 = vadd.f32 %v4918, 1e-05
  %v4983 = vadd.f32 %v4919, 1e-05
  %v4984 = vadd.f32 %v4920, 1e-05
  %v4985 = vadd.f32 %v4921, 1e-05
  %v4986 = vadd.f32 %v4922, 1e-05
  %v4987 = vadd.f32 %v4923, 1e-05
  %v4988 = vadd.f32 %v4924, 1e-05
  %v4989 = vadd.f32 %v4925, 1e-05
  %v4990 = vadd.f32 %v4926, 1e-05
  %v4991 = vadd.f32 %v4927, 1e-05
  %v4992 = vadd.f32 %v4928, 1e-05
  %v4993 = vadd.f32 %v4929, 1e-05
  %v4994 = vadd.f32 %v4930, 1e-05
  %v4995 = vadd.f32 %v4931, 1e-05
  %v4996 = vadd.f32 %v4932, 1e-05
  %v4997 = vadd.f32 %v4933, 1e-05
  %v4998 = vadd.f32 %v4934, 1e-05
  %v4999 = vadd.f32 %v4935, 1e-05
  %v5000 = vadd.f32 %v4936, 1e-05
  %v5001 = vadd.f32 %v4937, 1e-05
  %v5002 = vadd.f32 %v4938, 1e-05
  %v5003 = vadd.f32 %v4939, 1e-05
  %v5004 = vadd.f32 %v4940, 1e-05
  %v5005 = vadd.f32 %v4941, 1e-05
  %v5006 = vadd.f32 %v4942, 1e-05
  %v5007 = vadd.f32 %v4943, 1e-05
  %v5008 = vadd.f32 %v4944, 1e-05
  %v5009 = vadd.f32 %v4945, 1e-05
  %v5010 = vadd.f32 %v4946, 1e-05
  %v5011 = vadd.f32 %v4947, 1e-05
  %v5012 = vadd.f32 %v4948, 1e-05
  %v5013 = vadd.f32 %v4949, 1e-05
  %v5014 = vadd.f32 %v4950, 1e-05
  %v5015 = vadd.f32 %v4951, 1e-05
  %v5016 = vadd.f32 %v4952, 1e-05
  %v5017 = vadd.f32 %v4953, 1e-05
  %v5018 = vadd.f32 %v4954, 1e-05
  %v5019 = vadd.f32 %v4955, 1e-05
  %v5020 = vadd.f32 %v4956, 1e-05
  %v5021 = vadd.f32 %v4957, 1e-05
  %v5022 = vadd.f32 %v4958, 1e-05
  %v5023 = vadd.f32 %v4959, 1e-05
  %v5024 = vadd.f32 %v4960, 1e-05
  %v5025 = vadd.f32 %v4961, 1e-05
  %v5026 = vadd.f32 %v4962, 1e-05
  %v5027 = vadd.f32 %v4963, 1e-05
  %v5028 = vadd.f32 %v4964, 1e-05
  %v5029 = vadd.f32 %v4965, 1e-05
  %v5030 = vadd.f32 %v4966, 1e-05
  %v5031 = vadd.f32 %v4967, 1e-05
  %v5032 = vadd.f32 %v4968, 1e-05
  %v5033 = vadd.f32 %v4969, 1e-05
  %v5034 = vadd.f32 %v4970, 1e-05
  %v5035 = vadd.f32 %v4971, 1e-05
  %v5036 = vrsqrt.pop %v4972
  %v5037 = vrsqrt.pop %v4973
  %v5038 = vrsqrt.pop %v4974
  %v5039 = vrsqrt.pop %v4975
  %v5040 = vrsqrt.pop %v4976
  %v5041 = vrsqrt.pop %v4977
  %v5042 = vrsqrt.pop %v4978
  %v5043 = vrsqrt.pop %v4979
  %v5044 = vrsqrt.pop %v4980
  %v5045 = vrsqrt.pop %v4981
  %v5046 = vrsqrt.pop %v4982
  %v5047 = vrsqrt.pop %v4983
  %v5048 = vrsqrt.pop %v4984
  %v5049 = vrsqrt.pop %v4985
  %v5050 = vrsqrt.pop %v4986
  %v5051 = vrsqrt.pop %v4987
  %v5052 = vrsqrt.pop %v4988
  %v5053 = vrsqrt.pop %v4989
  %v5054 = vrsqrt.pop %v4990
  %v5055 = vrsqrt.pop %v4991
  %v5056 = vrsqrt.pop %v4992
  %v5057 = vrsqrt.pop %v4993
  %v5058 = vrsqrt.pop %v4994
  %v5059 = vrsqrt.pop %v4995
  %v5060 = vrsqrt.pop %v4996
  %v5061 = vrsqrt.pop %v4997
  %v5062 = vrsqrt.pop %v4998
  %v5063 = vrsqrt.pop %v4999
  %v5064 = vrsqrt.pop %v5000
  %v5065 = vrsqrt.pop %v5001
  %v5066 = vrsqrt.pop %v5002
  %v5067 = vrsqrt.pop %v5003
  %v5068 = vrsqrt.pop %v5004
  %v5069 = vrsqrt.pop %v5005
  %v5070 = vrsqrt.pop %v5006
  %v5071 = vrsqrt.pop %v5007
  %v5072 = vrsqrt.pop %v5008
  %v5073 = vrsqrt.pop %v5009
  %v5074 = vrsqrt.pop %v5010
  %v5075 = vrsqrt.pop %v5011
  %v5076 = vrsqrt.pop %v5012
  %v5077 = vrsqrt.pop %v5013
  %v5078 = vrsqrt.pop %v5014
  %v5079 = vrsqrt.pop %v5015
  %v5080 = vrsqrt.pop %v5016
  %v5081 = vrsqrt.pop %v5017
  %v5082 = vrsqrt.pop %v5018
  %v5083 = vrsqrt.pop %v5019
  %v5084 = vrsqrt.pop %v5020
  %v5085 = vrsqrt.pop %v5021
  %v5086 = vrsqrt.pop %v5022
  %v5087 = vrsqrt.pop %v5023
  %v5088 = vrsqrt.pop %v5024
  %v5089 = vrsqrt.pop %v5025
  %v5090 = vrsqrt.pop %v5026
  %v5091 = vrsqrt.pop %v5027
  %v5092 = vrsqrt.pop %v5028
  %v5093 = vrsqrt.pop %v5029
  %v5094 = vrsqrt.pop %v5030
  %v5095 = vrsqrt.pop %v5031
  %v5096 = vrsqrt.pop %v5032
  %v5097 = vrsqrt.pop %v5033
  %v5098 = vrsqrt.pop %v5034
  %v5099 = vrsqrt.pop %v5035
  %v5100 = vmul.f32 %v4780, %v5036
  %v5101 = vmul.f32 %v4781, %v5037
  %v5102 = vmul.f32 %v4782, %v5038
  %v5103 = vmul.f32 %v4783, %v5039
  %v5104 = vmul.f32 %v4784, %v5040
  %v5105 = vmul.f32 %v4785, %v5041
  %v5106 = vmul.f32 %v4786, %v5042
  %v5107 = vmul.f32 %v4787, %v5043
  %v5108 = vmul.f32 %v4788, %v5044
  %v5109 = vmul.f32 %v4789, %v5045
  %v5110 = vmul.f32 %v4790, %v5046
  %v5111 = vmul.f32 %v4791, %v5047
  %v5112 = vmul.f32 %v4792, %v5048
  %v5113 = vmul.f32 %v4793, %v5049
  %v5114 = vmul.f32 %v4794, %v5050
  %v5115 = vmul.f32 %v4795, %v5051
  %v5116 = vmul.f32 %v4796, %v5052
  %v5117 = vmul.f32 %v4797, %v5053
  %v5118 = vmul.f32 %v4798, %v5054
  %v5119 = vmul.f32 %v4799, %v5055
  %v5120 = vmul.f32 %v4800, %v5056
  %v5121 = vmul.f32 %v4801, %v5057
  %v5122 = vmul.f32 %v4802, %v5058
  %v5123 = vmul.f32 %v4803, %v5059
  %v5124 = vmul.f32 %v4804, %v5060
  %v5125 = vmul.f32 %v4805, %v5061
  %v5126 = vmul.f32 %v4806, %v5062
  %v5127 = vmul.f32 %v4807, %v5063
  %v5128 = vmul.f32 %v4808, %v5064
  %v5129 = vmul.f32 %v4809, %v5065
  %v5130 = vmul.f32 %v4810, %v5066
  %v5131 = vmul.f32 %v4811, %v5067
  %v5132 = vmul.f32 %v4812, %v5068
  %v5133 = vmul.f32 %v4813, %v5069
  %v5134 = vmul.f32 %v4814, %v5070
  %v5135 = vmul.f32 %v4815, %v5071
  %v5136 = vmul.f32 %v4816, %v5072
  %v5137 = vmul.f32 %v4817, %v5073
  %v5138 = vmul.f32 %v4818, %v5074
  %v5139 = vmul.f32 %v4819, %v5075
  %v5140 = vmul.f32 %v4820, %v5076
  %v5141 = vmul.f32 %v4821, %v5077
  %v5142 = vmul.f32 %v4822, %v5078
  %v5143 = vmul.f32 %v4823, %v5079
  %v5144 = vmul.f32 %v4824, %v5080
  %v5145 = vmul.f32 %v4825, %v5081
  %v5146 = vmul.f32 %v4826, %v5082
  %v5147 = vmul.f32 %v4827, %v5083
  %v5148 = vmul.f32 %v4828, %v5084
  %v5149 = vmul.f32 %v4829, %v5085
  %v5150 = vmul.f32 %v4830, %v5086
  %v5151 = vmul.f32 %v4831, %v5087
  %v5152 = vmul.f32 %v4832, %v5088
  %v5153 = vmul.f32 %v4833, %v5089
  %v5154 = vmul.f32 %v4834, %v5090
  %v5155 = vmul.f32 %v4835, %v5091
  %v5156 = vmul.f32 %v4836, %v5092
  %v5157 = vmul.f32 %v4837, %v5093
  %v5158 = vmul.f32 %v4838, %v5094
  %v5159 = vmul.f32 %v4839, %v5095
  %v5160 = vmul.f32 %v4840, %v5096
  %v5161 = vmul.f32 %v4841, %v5097
  %v5162 = vmul.f32 %v4842, %v5098
  %v5163 = vmul.f32 %v4843, %v5099
  %v5164 = vlaneseq
  %v5165 = vshrl.u32 %v5164, 7
  %v5166 = vsub.s32 3, %v5165
  %v5167 = vrot.slane %v88, %v5166
  %v5168 = vmul.f32 %v5100, %v5167
  %v5169 = vmul.f32 %v5101, %v5167
  %v5170 = vmul.f32 %v5102, %v5167
  %v5171 = vmul.f32 %v5103, %v5167
  %v5172 = vmul.f32 %v5104, %v5167
  %v5173 = vmul.f32 %v5105, %v5167
  %v5174 = vmul.f32 %v5106, %v5167
  %v5175 = vmul.f32 %v5107, %v5167
  %v5176 = vmul.f32 %v5108, %v5167
  %v5177 = vmul.f32 %v5109, %v5167
  %v5178 = vmul.f32 %v5110, %v5167
  %v5179 = vmul.f32 %v5111, %v5167
  %v5180 = vmul.f32 %v5112, %v5167
  %v5181 = vmul.f32 %v5113, %v5167
  %v5182 = vmul.f32 %v5114, %v5167
  %v5183 = vmul.f32 %v5115, %v5167
  %v5184 = vmul.f32 %v5116, %v5167
  %v5185 = vmul.f32 %v5117, %v5167
  %v5186 = vmul.f32 %v5118, %v5167
  %v5187 = vmul.f32 %v5119, %v5167
  %v5188 = vmul.f32 %v5120, %v5167
  %v5189 = vmul.f32 %v5121, %v5167
  %v5190 = vmul.f32 %v5122, %v5167
  %v5191 = vmul.f32 %v5123, %v5167
  %v5192 = vmul.f32 %v5124, %v5167
  %v5193 = vmul.f32 %v5125, %v5167
  %v5194 = vmul.f32 %v5126, %v5167
  %v5195 = vmul.f32 %v5127, %v5167
  %v5196 = vmul.f32 %v5128, %v5167
  %v5197 = vmul.f32 %v5129, %v5167
  %v5198 = vmul.f32 %v5130, %v5167
  %v5199 = vmul.f32 %v5131, %v5167
  %v5200 = vmul.f32 %v5132, %v5167
  %v5201 = vmul.f32 %v5133, %v5167
  %v5202 = vmul.f32 %v5134, %v5167
  %v5203 = vmul.f32 %v5135, %v5167
  %v5204 = vmul.f32 %v5136, %v5167
  %v5205 = vmul.f32 %v5137, %v5167
  %v5206 = vmul.f32 %v5138, %v5167
  %v5207 = vmul.f32 %v5139, %v5167
  %v5208 = vmul.f32 %v5140, %v5167
  %v5209 = vmul.f32 %v5141, %v5167
  %v5210 = vmul.f32 %v5142, %v5167
  %v5211 = vmul.f32 %v5143, %v5167
  %v5212 = vmul.f32 %v5144, %v5167
  %v5213 = vmul.f32 %v5145, %v5167
  %v5214 = vmul.f32 %v5146, %v5167
  %v5215 = vmul.f32 %v5147, %v5167
  %v5216 = vmul.f32 %v5148, %v5167
  %v5217 = vmul.f32 %v5149, %v5167
  %v5218 = vmul.f32 %v5150, %v5167
  %v5219 = vmul.f32 %v5151, %v5167
  %v5220 = vmul.f32 %v5152, %v5167
  %v5221 = vmul.f32 %v5153, %v5167
  %v5222 = vmul.f32 %v5154, %v5167
  %v5223 = vmul.f32 %v5155, %v5167
  %v5224 = vmul.f32 %v5156, %v5167
  %v5225 = vmul.f32 %v5157, %v5167
  %v5226 = vmul.f32 %v5158, %v5167
  %v5227 = vmul.f32 %v5159, %v5167
  %v5228 = vmul.f32 %v5160, %v5167
  %v5229 = vmul.f32 %v5161, %v5167
  %v5230 = vmul.f32 %v5162, %v5167
  %v5231 = vmul.f32 %v5163, %v5167
  %v5232 = vlaneseq
  %v5233 = vshrl.u32 %v5232, 7
  %v5234 = vsub.s32 4, %v5233
  %v5235 = vrot.slane %v88, %v5234
  %v5236 = vadd.f32 %v5168, %v5235
  %v5237 = vadd.f32 %v5169, %v5235
  %v5238 = vadd.f32 %v5170, %v5235
  %v5239 = vadd.f32 %v5171, %v5235
  %v5240 = vadd.f32 %v5172, %v5235
  %v5241 = vadd.f32 %v5173, %v5235
  %v5242 = vadd.f32 %v5174, %v5235
  %v5243 = vadd.f32 %v5175, %v5235
  %v5244 = vadd.f32 %v5176, %v5235
  %v5245 = vadd.f32 %v5177, %v5235
  %v5246 = vadd.f32 %v5178, %v5235
  %v5247 = vadd.f32 %v5179, %v5235
  %v5248 = vadd.f32 %v5180, %v5235
  %v5249 = vadd.f32 %v5181, %v5235
  %v5250 = vadd.f32 %v5182, %v5235
  %v5251 = vadd.f32 %v5183, %v5235
  %v5252 = vadd.f32 %v5184, %v5235
  %v5253 = vadd.f32 %v5185, %v5235
  %v5254 = vadd.f32 %v5186, %v5235
  %v5255 = vadd.f32 %v5187, %v5235
  %v5256 = vadd.f32 %v5188, %v5235
  %v5257 = vadd.f32 %v5189, %v5235
  %v5258 = vadd.f32 %v5190, %v5235
  %v5259 = vadd.f32 %v5191, %v5235
  %v5260 = vadd.f32 %v5192, %v5235
  %v5261 = vadd.f32 %v5193, %v5235
  %v5262 = vadd.f32 %v5194, %v5235
  %v5263 = vadd.f32 %v5195, %v5235
  %v5264 = vadd.f32 %v5196, %v5235
  %v5265 = vadd.f32 %v5197, %v5235
  %v5266 = vadd.f32 %v5198, %v5235
  %v5267 = vadd.f32 %v5199, %v5235
  %v5268 = vadd.f32 %v5200, %v5235
  %v5269 = vadd.f32 %v5201, %v5235
  %v5270 = vadd.f32 %v5202, %v5235
  %v5271 = vadd.f32 %v5203, %v5235
  %v5272 = vadd.f32 %v5204, %v5235
  %v5273 = vadd.f32 %v5205, %v5235
  %v5274 = vadd.f32 %v5206, %v5235
  %v5275 = vadd.f32 %v5207, %v5235
  %v5276 = vadd.f32 %v5208, %v5235
  %v5277 = vadd.f32 %v5209, %v5235
  %v5278 = vadd.f32 %v5210, %v5235
  %v5279 = vadd.f32 %v5211, %v5235
  %v5280 = vadd.f32 %v5212, %v5235
  %v5281 = vadd.f32 %v5213, %v5235
  %v5282 = vadd.f32 %v5214, %v5235
  %v5283 = vadd.f32 %v5215, %v5235
  %v5284 = vadd.f32 %v5216, %v5235
  %v5285 = vadd.f32 %v5217, %v5235
  %v5286 = vadd.f32 %v5218, %v5235
  %v5287 = vadd.f32 %v5219, %v5235
  %v5288 = vadd.f32 %v5220, %v5235
  %v5289 = vadd.f32 %v5221, %v5235
  %v5290 = vadd.f32 %v5222, %v5235
  %v5291 = vadd.f32 %v5223, %v5235
  %v5292 = vadd.f32 %v5224, %v5235
  %v5293 = vadd.f32 %v5225, %v5235
  %v5294 = vadd.f32 %v5226, %v5235
  %v5295 = vadd.f32 %v5227, %v5235
  %v5296 = vadd.f32 %v5228, %v5235
  %v5297 = vadd.f32 %v5229, %v5235
  %v5298 = vadd.f32 %v5230, %v5235
  %v5299 = vadd.f32 %v5231, %v5235
  %v5300 = vmax.f32 %v5236, 0.0
  %v5301 = vmax.f32 %v5237, 0.0
  %v5302 = vmax.f32 %v5238, 0.0
  %v5303 = vmax.f32 %v5239, 0.0
  %v5304 = vmax.f32 %v5240, 0.0
  %v5305 = vmax.f32 %v5241, 0.0
  %v5306 = vmax.f32 %v5242, 0.0
  %v5307 = vmax.f32 %v5243, 0.0
  %v5308 = vmax.f32 %v5244, 0.0
  %v5309 = vmax.f32 %v5245, 0.0
  %v5310 = vmax.f32 %v5246, 0.0
  %v5311 = vmax.f32 %v5247, 0.0
  %v5312 = vmax.f32 %v5248, 0.0
  %v5313 = vmax.f32 %v5249, 0.0
  %v5314 = vmax.f32 %v5250, 0.0
  %v5315 = vmax.f32 %v5251, 0.0
  %v5316 = vmax.f32 %v5252, 0.0
  %v5317 = vmax.f32 %v5253, 0.0
  %v5318 = vmax.f32 %v5254, 0.0
  %v5319 = vmax.f32 %v5255, 0.0
  %v5320 = vmax.f32 %v5256, 0.0
  %v5321 = vmax.f32 %v5257, 0.0
  %v5322 = vmax.f32 %v5258, 0.0
  %v5323 = vmax.f32 %v5259, 0.0
  %v5324 = vmax.f32 %v5260, 0.0
  %v5325 = vmax.f32 %v5261, 0.0
  %v5326 = vmax.f32 %v5262, 0.0
  %v5327 = vmax.f32 %v5263, 0.0
  %v5328 = vmax.f32 %v5264, 0.0
  %v5329 = vmax.f32 %v5265, 0.0
  %v5330 = vmax.f32 %v5266, 0.0
  %v5331 = vmax.f32 %v5267, 0.0
  %v5332 = vmax.f32 %v5268, 0.0
  %v5333 = vmax.f32 %v5269, 0.0
  %v5334 = vmax.f32 %v5270, 0.0
  %v5335 = vmax.f32 %v5271, 0.0
  %v5336 = vmax.f32 %v5272, 0.0
  %v5337 = vmax.f32 %v5273, 0.0
  %v5338 = vmax.f32 %v5274, 0.0
  %v5339 = vmax.f32 %v5275, 0.0
  %v5340 = vmax.f32 %v5276, 0.0
  %v5341 = vmax.f32 %v5277, 0.0
  %v5342 = vmax.f32 %v5278, 0.0
  %v5343 = vmax.f32 %v5279, 0.0
  %v5344 = vmax.f32 %v5280, 0.0
  %v5345 = vmax.f32 %v5281, 0.0
  %v5346 = vmax.f32 %v5282, 0.0
  %v5347 = vmax.f32 %v5283, 0.0
  %v5348 = vmax.f32 %v5284, 0.0
  %v5349 = vmax.f32 %v5285, 0.0
  %v5350 = vmax.f32 %v5286, 0.0
  %v5351 = vmax.f32 %v5287, 0.0
  %v5352 = vmax.f32 %v5288, 0.0
  %v5353 = vmax.f32 %v5289, 0.0
  %v5354 = vmax.f32 %v5290, 0.0
  %v5355 = vmax.f32 %v5291, 0.0
  %v5356 = vmax.f32 %v5292, 0.0
  %v5357 = vmax.f32 %v5293, 0.0
  %v5358 = vmax.f32 %v5294, 0.0
  %v5359 = vmax.f32 %v5295, 0.0
  %v5360 = vmax.f32 %v5296, 0.0
  %v5361 = vmax.f32 %v5297, 0.0
  %v5362 = vmax.f32 %v5298, 0.0
  %v5363 = vmax.f32 %v5299, 0.0
  %5364 = vadd.xlane.f32.xlu0 %v4016
  %v5365 = vpop.xlane.xlu0 %5364
  %5366 = vadd.xlane.f32.xlu0 %v4020
  %v5367 = vpop.xlane.xlu0 %5366
  %5368 = vadd.xlane.f32.xlu0 %v4026
  %v5369 = vpop.xlane.xlu0 %5368
  %5370 = vadd.xlane.f32.xlu0 %v4030
  %v5371 = vpop.xlane.xlu0 %5370
  %5372 = vadd.xlane.f32.xlu0 %v4036
  %v5373 = vpop.xlane.xlu0 %5372
  %5374 = vadd.xlane.f32.xlu0 %v4040
  %v5375 = vpop.xlane.xlu0 %5374
  %5376 = vadd.xlane.f32.xlu0 %v4046
  %v5377 = vpop.xlane.xlu0 %5376
  %5378 = vadd.xlane.f32.xlu0 %v4050
  %v5379 = vpop.xlane.xlu0 %5378
  %5380 = vadd.xlane.f32.xlu0 %v4056
  %v5381 = vpop.xlane.xlu0 %5380
  %5382 = vadd.xlane.f32.xlu0 %v4060
  %v5383 = vpop.xlane.xlu0 %5382
  %5384 = vadd.xlane.f32.xlu0 %v4066
  %v5385 = vpop.xlane.xlu0 %5384
  %5386 = vadd.xlane.f32.xlu0 %v4070
  %v5387 = vpop.xlane.xlu0 %5386
  %5388 = vadd.xlane.f32.xlu0 %v4076
  %v5389 = vpop.xlane.xlu0 %5388
  %5390 = vadd.xlane.f32.xlu0 %v4080
  %v5391 = vpop.xlane.xlu0 %5390
  %5392 = vadd.xlane.f32.xlu0 %v4086
  %v5393 = vpop.xlane.xlu0 %5392
  %5394 = vadd.xlane.f32.xlu0 %v4090
  %v5395 = vpop.xlane.xlu0 %5394
  %5396 = vadd.xlane.f32.xlu0 %v4096
  %v5397 = vpop.xlane.xlu0 %5396
  %5398 = vadd.xlane.f32.xlu0 %v4100
  %v5399 = vpop.xlane.xlu0 %5398
  %5400 = vadd.xlane.f32.xlu0 %v4106
  %v5401 = vpop.xlane.xlu0 %5400
  %5402 = vadd.xlane.f32.xlu0 %v4110
  %v5403 = vpop.xlane.xlu0 %5402
  %5404 = vadd.xlane.f32.xlu0 %v4116
  %v5405 = vpop.xlane.xlu0 %5404
  %5406 = vadd.xlane.f32.xlu0 %v4120
  %v5407 = vpop.xlane.xlu0 %5406
  %5408 = vadd.xlane.f32.xlu0 %v4126
  %v5409 = vpop.xlane.xlu0 %5408
  %5410 = vadd.xlane.f32.xlu0 %v4130
  %v5411 = vpop.xlane.xlu0 %5410
  %5412 = vadd.xlane.f32.xlu0 %v4136
  %v5413 = vpop.xlane.xlu0 %5412
  %5414 = vadd.xlane.f32.xlu0 %v4140
  %v5415 = vpop.xlane.xlu0 %5414
  %5416 = vadd.xlane.f32.xlu0 %v4146
  %v5417 = vpop.xlane.xlu0 %5416
  %5418 = vadd.xlane.f32.xlu0 %v4150
  %v5419 = vpop.xlane.xlu0 %5418
  %5420 = vadd.xlane.f32.xlu0 %v4156
  %v5421 = vpop.xlane.xlu0 %5420
  %5422 = vadd.xlane.f32.xlu0 %v4160
  %v5423 = vpop.xlane.xlu0 %5422
  %5424 = vadd.xlane.f32.xlu0 %v4166
  %v5425 = vpop.xlane.xlu0 %5424
  %5426 = vadd.xlane.f32.xlu0 %v4170
  %v5427 = vpop.xlane.xlu0 %5426
  %5428 = vadd.xlane.f32.xlu0 %v4176
  %v5429 = vpop.xlane.xlu0 %5428
  %5430 = vadd.xlane.f32.xlu0 %v4180
  %v5431 = vpop.xlane.xlu0 %5430
  %5432 = vadd.xlane.f32.xlu0 %v4186
  %v5433 = vpop.xlane.xlu0 %5432
  %5434 = vadd.xlane.f32.xlu0 %v4190
  %v5435 = vpop.xlane.xlu0 %5434
  %5436 = vadd.xlane.f32.xlu0 %v4196
  %v5437 = vpop.xlane.xlu0 %5436
  %5438 = vadd.xlane.f32.xlu0 %v4200
  %v5439 = vpop.xlane.xlu0 %5438
  %5440 = vadd.xlane.f32.xlu0 %v4206
  %v5441 = vpop.xlane.xlu0 %5440
  %5442 = vadd.xlane.f32.xlu0 %v4210
  %v5443 = vpop.xlane.xlu0 %5442
  %5444 = vadd.xlane.f32.xlu0 %v4216
  %v5445 = vpop.xlane.xlu0 %5444
  %5446 = vadd.xlane.f32.xlu0 %v4220
  %v5447 = vpop.xlane.xlu0 %5446
  %5448 = vadd.xlane.f32.xlu0 %v4226
  %v5449 = vpop.xlane.xlu0 %5448
  %5450 = vadd.xlane.f32.xlu0 %v4230
  %v5451 = vpop.xlane.xlu0 %5450
  %5452 = vadd.xlane.f32.xlu0 %v4236
  %v5453 = vpop.xlane.xlu0 %5452
  %5454 = vadd.xlane.f32.xlu0 %v4240
  %v5455 = vpop.xlane.xlu0 %5454
  %5456 = vadd.xlane.f32.xlu0 %v4246
  %v5457 = vpop.xlane.xlu0 %5456
  %5458 = vadd.xlane.f32.xlu0 %v4250
  %v5459 = vpop.xlane.xlu0 %5458
  %5460 = vadd.xlane.f32.xlu0 %v4256
  %v5461 = vpop.xlane.xlu0 %5460
  %5462 = vadd.xlane.f32.xlu0 %v4260
  %v5463 = vpop.xlane.xlu0 %5462
  %5464 = vadd.xlane.f32.xlu0 %v4266
  %v5465 = vpop.xlane.xlu0 %5464
  %5466 = vadd.xlane.f32.xlu0 %v4270
  %v5467 = vpop.xlane.xlu0 %5466
  %5468 = vadd.xlane.f32.xlu0 %v4276
  %v5469 = vpop.xlane.xlu0 %5468
  %5470 = vadd.xlane.f32.xlu0 %v4280
  %v5471 = vpop.xlane.xlu0 %5470
  %5472 = vadd.xlane.f32.xlu0 %v4286
  %v5473 = vpop.xlane.xlu0 %5472
  %5474 = vadd.xlane.f32.xlu0 %v4290
  %v5475 = vpop.xlane.xlu0 %5474
  %5476 = vadd.xlane.f32.xlu0 %v4296
  %v5477 = vpop.xlane.xlu0 %5476
  %5478 = vadd.xlane.f32.xlu0 %v4300
  %v5479 = vpop.xlane.xlu0 %5478
  %5480 = vadd.xlane.f32.xlu0 %v4306
  %v5481 = vpop.xlane.xlu0 %5480
  %5482 = vadd.xlane.f32.xlu0 %v4310
  %v5483 = vpop.xlane.xlu0 %5482
  %5484 = vadd.xlane.f32.xlu0 %v4316
  %v5485 = vpop.xlane.xlu0 %5484
  %5486 = vadd.xlane.f32.xlu0 %v4320
  %v5487 = vpop.xlane.xlu0 %5486
  %5488 = vadd.xlane.f32.xlu0 %v4326
  %v5489 = vpop.xlane.xlu0 %5488
  %5490 = vadd.xlane.f32.xlu0 %v4330
  %v5491 = vpop.xlane.xlu0 %5490
  %v5492 = vmul.f32 %v5365, %v768
  %v5493 = vmul.f32 %v5367, %v768
  %v5494 = vmul.f32 %v5369, %v768
  %v5495 = vmul.f32 %v5371, %v768
  %v5496 = vmul.f32 %v5373, %v768
  %v5497 = vmul.f32 %v5375, %v768
  %v5498 = vmul.f32 %v5377, %v768
  %v5499 = vmul.f32 %v5379, %v768
  %v5500 = vmul.f32 %v5381, %v768
  %v5501 = vmul.f32 %v5383, %v768
  %v5502 = vmul.f32 %v5385, %v768
  %v5503 = vmul.f32 %v5387, %v768
  %v5504 = vmul.f32 %v5389, %v768
  %v5505 = vmul.f32 %v5391, %v768
  %v5506 = vmul.f32 %v5393, %v768
  %v5507 = vmul.f32 %v5395, %v768
  %v5508 = vmul.f32 %v5397, %v768
  %v5509 = vmul.f32 %v5399, %v768
  %v5510 = vmul.f32 %v5401, %v768
  %v5511 = vmul.f32 %v5403, %v768
  %v5512 = vmul.f32 %v5405, %v768
  %v5513 = vmul.f32 %v5407, %v768
  %v5514 = vmul.f32 %v5409, %v768
  %v5515 = vmul.f32 %v5411, %v768
  %v5516 = vmul.f32 %v5413, %v768
  %v5517 = vmul.f32 %v5415, %v768
  %v5518 = vmul.f32 %v5417, %v768
  %v5519 = vmul.f32 %v5419, %v768
  %v5520 = vmul.f32 %v5421, %v768
  %v5521 = vmul.f32 %v5423, %v768
  %v5522 = vmul.f32 %v5425, %v768
  %v5523 = vmul.f32 %v5427, %v768
  %v5524 = vmul.f32 %v5429, %v768
  %v5525 = vmul.f32 %v5431, %v768
  %v5526 = vmul.f32 %v5433, %v768
  %v5527 = vmul.f32 %v5435, %v768
  %v5528 = vmul.f32 %v5437, %v768
  %v5529 = vmul.f32 %v5439, %v768
  %v5530 = vmul.f32 %v5441, %v768
  %v5531 = vmul.f32 %v5443, %v768
  %v5532 = vmul.f32 %v5445, %v768
  %v5533 = vmul.f32 %v5447, %v768
  %v5534 = vmul.f32 %v5449, %v768
  %v5535 = vmul.f32 %v5451, %v768
  %v5536 = vmul.f32 %v5453, %v768
  %v5537 = vmul.f32 %v5455, %v768
  %v5538 = vmul.f32 %v5457, %v768
  %v5539 = vmul.f32 %v5459, %v768
  %v5540 = vmul.f32 %v5461, %v768
  %v5541 = vmul.f32 %v5463, %v768
  %v5542 = vmul.f32 %v5465, %v768
  %v5543 = vmul.f32 %v5467, %v768
  %v5544 = vmul.f32 %v5469, %v768
  %v5545 = vmul.f32 %v5471, %v768
  %v5546 = vmul.f32 %v5473, %v768
  %v5547 = vmul.f32 %v5475, %v768
  %v5548 = vmul.f32 %v5477, %v768
  %v5549 = vmul.f32 %v5479, %v768
  %v5550 = vmul.f32 %v5481, %v768
  %v5551 = vmul.f32 %v5483, %v768
  %v5552 = vmul.f32 %v5485, %v768
  %v5553 = vmul.f32 %v5487, %v768
  %v5554 = vmul.f32 %v5489, %v768
  %v5555 = vmul.f32 %v5491, %v768
  %v5556 = vmul.f32 %v4016, %v4016
  %v5557 = vmul.f32 %v4020, %v4020
  %v5558 = vmul.f32 %v4026, %v4026
  %v5559 = vmul.f32 %v4030, %v4030
  %v5560 = vmul.f32 %v4036, %v4036
  %v5561 = vmul.f32 %v4040, %v4040
  %v5562 = vmul.f32 %v4046, %v4046
  %v5563 = vmul.f32 %v4050, %v4050
  %v5564 = vmul.f32 %v4056, %v4056
  %v5565 = vmul.f32 %v4060, %v4060
  %v5566 = vmul.f32 %v4066, %v4066
  %v5567 = vmul.f32 %v4070, %v4070
  %v5568 = vmul.f32 %v4076, %v4076
  %v5569 = vmul.f32 %v4080, %v4080
  %v5570 = vmul.f32 %v4086, %v4086
  %v5571 = vmul.f32 %v4090, %v4090
  %v5572 = vmul.f32 %v4096, %v4096
  %v5573 = vmul.f32 %v4100, %v4100
  %v5574 = vmul.f32 %v4106, %v4106
  %v5575 = vmul.f32 %v4110, %v4110
  %v5576 = vmul.f32 %v4116, %v4116
  %v5577 = vmul.f32 %v4120, %v4120
  %v5578 = vmul.f32 %v4126, %v4126
  %v5579 = vmul.f32 %v4130, %v4130
  %v5580 = vmul.f32 %v4136, %v4136
  %v5581 = vmul.f32 %v4140, %v4140
  %v5582 = vmul.f32 %v4146, %v4146
  %v5583 = vmul.f32 %v4150, %v4150
  %v5584 = vmul.f32 %v4156, %v4156
  %v5585 = vmul.f32 %v4160, %v4160
  %v5586 = vmul.f32 %v4166, %v4166
  %v5587 = vmul.f32 %v4170, %v4170
  %v5588 = vmul.f32 %v4176, %v4176
  %v5589 = vmul.f32 %v4180, %v4180
  %v5590 = vmul.f32 %v4186, %v4186
  %v5591 = vmul.f32 %v4190, %v4190
  %v5592 = vmul.f32 %v4196, %v4196
  %v5593 = vmul.f32 %v4200, %v4200
  %v5594 = vmul.f32 %v4206, %v4206
  %v5595 = vmul.f32 %v4210, %v4210
  %v5596 = vmul.f32 %v4216, %v4216
  %v5597 = vmul.f32 %v4220, %v4220
  %v5598 = vmul.f32 %v4226, %v4226
  %v5599 = vmul.f32 %v4230, %v4230
  %v5600 = vmul.f32 %v4236, %v4236
  %v5601 = vmul.f32 %v4240, %v4240
  %v5602 = vmul.f32 %v4246, %v4246
  %v5603 = vmul.f32 %v4250, %v4250
  %v5604 = vmul.f32 %v4256, %v4256
  %v5605 = vmul.f32 %v4260, %v4260
  %v5606 = vmul.f32 %v4266, %v4266
  %v5607 = vmul.f32 %v4270, %v4270
  %v5608 = vmul.f32 %v4276, %v4276
  %v5609 = vmul.f32 %v4280, %v4280
  %v5610 = vmul.f32 %v4286, %v4286
  %v5611 = vmul.f32 %v4290, %v4290
  %v5612 = vmul.f32 %v4296, %v4296
  %v5613 = vmul.f32 %v4300, %v4300
  %v5614 = vmul.f32 %v4306, %v4306
  %v5615 = vmul.f32 %v4310, %v4310
  %v5616 = vmul.f32 %v4316, %v4316
  %v5617 = vmul.f32 %v4320, %v4320
  %v5618 = vmul.f32 %v4326, %v4326
  %v5619 = vmul.f32 %v4330, %v4330
  %5620 = vadd.xlane.f32.xlu0 %v5556
  %v5621 = vpop.xlane.xlu0 %5620
  %5622 = vadd.xlane.f32.xlu0 %v5557
  %v5623 = vpop.xlane.xlu0 %5622
  %5624 = vadd.xlane.f32.xlu0 %v5558
  %v5625 = vpop.xlane.xlu0 %5624
  %5626 = vadd.xlane.f32.xlu0 %v5559
  %v5627 = vpop.xlane.xlu0 %5626
  %5628 = vadd.xlane.f32.xlu0 %v5560
  %v5629 = vpop.xlane.xlu0 %5628
  %5630 = vadd.xlane.f32.xlu0 %v5561
  %v5631 = vpop.xlane.xlu0 %5630
  %5632 = vadd.xlane.f32.xlu0 %v5562
  %v5633 = vpop.xlane.xlu0 %5632
  %5634 = vadd.xlane.f32.xlu0 %v5563
  %v5635 = vpop.xlane.xlu0 %5634
  %5636 = vadd.xlane.f32.xlu0 %v5564
  %v5637 = vpop.xlane.xlu0 %5636
  %5638 = vadd.xlane.f32.xlu0 %v5565
  %v5639 = vpop.xlane.xlu0 %5638
  %5640 = vadd.xlane.f32.xlu0 %v5566
  %v5641 = vpop.xlane.xlu0 %5640
  %5642 = vadd.xlane.f32.xlu0 %v5567
  %v5643 = vpop.xlane.xlu0 %5642
  %5644 = vadd.xlane.f32.xlu0 %v5568
  %v5645 = vpop.xlane.xlu0 %5644
  %5646 = vadd.xlane.f32.xlu0 %v5569
  %v5647 = vpop.xlane.xlu0 %5646
  %5648 = vadd.xlane.f32.xlu0 %v5570
  %v5649 = vpop.xlane.xlu0 %5648
  %5650 = vadd.xlane.f32.xlu0 %v5571
  %v5651 = vpop.xlane.xlu0 %5650
  %5652 = vadd.xlane.f32.xlu0 %v5572
  %v5653 = vpop.xlane.xlu0 %5652
  %5654 = vadd.xlane.f32.xlu0 %v5573
  %v5655 = vpop.xlane.xlu0 %5654
  %5656 = vadd.xlane.f32.xlu0 %v5574
  %v5657 = vpop.xlane.xlu0 %5656
  %5658 = vadd.xlane.f32.xlu0 %v5575
  %v5659 = vpop.xlane.xlu0 %5658
  %5660 = vadd.xlane.f32.xlu0 %v5576
  %v5661 = vpop.xlane.xlu0 %5660
  %5662 = vadd.xlane.f32.xlu0 %v5577
  %v5663 = vpop.xlane.xlu0 %5662
  %5664 = vadd.xlane.f32.xlu0 %v5578
  %v5665 = vpop.xlane.xlu0 %5664
  %5666 = vadd.xlane.f32.xlu0 %v5579
  %v5667 = vpop.xlane.xlu0 %5666
  %5668 = vadd.xlane.f32.xlu0 %v5580
  %v5669 = vpop.xlane.xlu0 %5668
  %5670 = vadd.xlane.f32.xlu0 %v5581
  %v5671 = vpop.xlane.xlu0 %5670
  %5672 = vadd.xlane.f32.xlu0 %v5582
  %v5673 = vpop.xlane.xlu0 %5672
  %5674 = vadd.xlane.f32.xlu0 %v5583
  %v5675 = vpop.xlane.xlu0 %5674
  %5676 = vadd.xlane.f32.xlu0 %v5584
  %v5677 = vpop.xlane.xlu0 %5676
  %5678 = vadd.xlane.f32.xlu0 %v5585
  %v5679 = vpop.xlane.xlu0 %5678
  %5680 = vadd.xlane.f32.xlu0 %v5586
  %v5681 = vpop.xlane.xlu0 %5680
  %5682 = vadd.xlane.f32.xlu0 %v5587
  %v5683 = vpop.xlane.xlu0 %5682
  %5684 = vadd.xlane.f32.xlu0 %v5588
  %v5685 = vpop.xlane.xlu0 %5684
  %5686 = vadd.xlane.f32.xlu0 %v5589
  %v5687 = vpop.xlane.xlu0 %5686
  %5688 = vadd.xlane.f32.xlu0 %v5590
  %v5689 = vpop.xlane.xlu0 %5688
  %5690 = vadd.xlane.f32.xlu0 %v5591
  %v5691 = vpop.xlane.xlu0 %5690
  %5692 = vadd.xlane.f32.xlu0 %v5592
  %v5693 = vpop.xlane.xlu0 %5692
  %5694 = vadd.xlane.f32.xlu0 %v5593
  %v5695 = vpop.xlane.xlu0 %5694
  %5696 = vadd.xlane.f32.xlu0 %v5594
  %v5697 = vpop.xlane.xlu0 %5696
  %5698 = vadd.xlane.f32.xlu0 %v5595
  %v5699 = vpop.xlane.xlu0 %5698
  %5700 = vadd.xlane.f32.xlu0 %v5596
  %v5701 = vpop.xlane.xlu0 %5700
  %5702 = vadd.xlane.f32.xlu0 %v5597
  %v5703 = vpop.xlane.xlu0 %5702
  %5704 = vadd.xlane.f32.xlu0 %v5598
  %v5705 = vpop.xlane.xlu0 %5704
  %5706 = vadd.xlane.f32.xlu0 %v5599
  %v5707 = vpop.xlane.xlu0 %5706
  %5708 = vadd.xlane.f32.xlu0 %v5600
  %v5709 = vpop.xlane.xlu0 %5708
  %5710 = vadd.xlane.f32.xlu0 %v5601
  %v5711 = vpop.xlane.xlu0 %5710
  %5712 = vadd.xlane.f32.xlu0 %v5602
  %v5713 = vpop.xlane.xlu0 %5712
  %5714 = vadd.xlane.f32.xlu0 %v5603
  %v5715 = vpop.xlane.xlu0 %5714
  %5716 = vadd.xlane.f32.xlu0 %v5604
  %v5717 = vpop.xlane.xlu0 %5716
  %5718 = vadd.xlane.f32.xlu0 %v5605
  %v5719 = vpop.xlane.xlu0 %5718
  %5720 = vadd.xlane.f32.xlu0 %v5606
  %v5721 = vpop.xlane.xlu0 %5720
  %5722 = vadd.xlane.f32.xlu0 %v5607
  %v5723 = vpop.xlane.xlu0 %5722
  %5724 = vadd.xlane.f32.xlu0 %v5608
  %v5725 = vpop.xlane.xlu0 %5724
  %5726 = vadd.xlane.f32.xlu0 %v5609
  %v5727 = vpop.xlane.xlu0 %5726
  %5728 = vadd.xlane.f32.xlu0 %v5610
  %v5729 = vpop.xlane.xlu0 %5728
  %5730 = vadd.xlane.f32.xlu0 %v5611
  %v5731 = vpop.xlane.xlu0 %5730
  %5732 = vadd.xlane.f32.xlu0 %v5612
  %v5733 = vpop.xlane.xlu0 %5732
  %5734 = vadd.xlane.f32.xlu0 %v5613
  %v5735 = vpop.xlane.xlu0 %5734
  %5736 = vadd.xlane.f32.xlu0 %v5614
  %v5737 = vpop.xlane.xlu0 %5736
  %5738 = vadd.xlane.f32.xlu0 %v5615
  %v5739 = vpop.xlane.xlu0 %5738
  %5740 = vadd.xlane.f32.xlu0 %v5616
  %v5741 = vpop.xlane.xlu0 %5740
  %5742 = vadd.xlane.f32.xlu0 %v5617
  %v5743 = vpop.xlane.xlu0 %5742
  %5744 = vadd.xlane.f32.xlu0 %v5618
  %v5745 = vpop.xlane.xlu0 %5744
  %5746 = vadd.xlane.f32.xlu0 %v5619
  %v5747 = vpop.xlane.xlu0 %5746
  %v5748 = vmul.f32 %v5621, %v768
  %v5749 = vmul.f32 %v5623, %v768
  %v5750 = vmul.f32 %v5625, %v768
  %v5751 = vmul.f32 %v5627, %v768
  %v5752 = vmul.f32 %v5629, %v768
  %v5753 = vmul.f32 %v5631, %v768
  %v5754 = vmul.f32 %v5633, %v768
  %v5755 = vmul.f32 %v5635, %v768
  %v5756 = vmul.f32 %v5637, %v768
  %v5757 = vmul.f32 %v5639, %v768
  %v5758 = vmul.f32 %v5641, %v768
  %v5759 = vmul.f32 %v5643, %v768
  %v5760 = vmul.f32 %v5645, %v768
  %v5761 = vmul.f32 %v5647, %v768
  %v5762 = vmul.f32 %v5649, %v768
  %v5763 = vmul.f32 %v5651, %v768
  %v5764 = vmul.f32 %v5653, %v768
  %v5765 = vmul.f32 %v5655, %v768
  %v5766 = vmul.f32 %v5657, %v768
  %v5767 = vmul.f32 %v5659, %v768
  %v5768 = vmul.f32 %v5661, %v768
  %v5769 = vmul.f32 %v5663, %v768
  %v5770 = vmul.f32 %v5665, %v768
  %v5771 = vmul.f32 %v5667, %v768
  %v5772 = vmul.f32 %v5669, %v768
  %v5773 = vmul.f32 %v5671, %v768
  %v5774 = vmul.f32 %v5673, %v768
  %v5775 = vmul.f32 %v5675, %v768
  %v5776 = vmul.f32 %v5677, %v768
  %v5777 = vmul.f32 %v5679, %v768
  %v5778 = vmul.f32 %v5681, %v768
  %v5779 = vmul.f32 %v5683, %v768
  %v5780 = vmul.f32 %v5685, %v768
  %v5781 = vmul.f32 %v5687, %v768
  %v5782 = vmul.f32 %v5689, %v768
  %v5783 = vmul.f32 %v5691, %v768
  %v5784 = vmul.f32 %v5693, %v768
  %v5785 = vmul.f32 %v5695, %v768
  %v5786 = vmul.f32 %v5697, %v768
  %v5787 = vmul.f32 %v5699, %v768
  %v5788 = vmul.f32 %v5701, %v768
  %v5789 = vmul.f32 %v5703, %v768
  %v5790 = vmul.f32 %v5705, %v768
  %v5791 = vmul.f32 %v5707, %v768
  %v5792 = vmul.f32 %v5709, %v768
  %v5793 = vmul.f32 %v5711, %v768
  %v5794 = vmul.f32 %v5713, %v768
  %v5795 = vmul.f32 %v5715, %v768
  %v5796 = vmul.f32 %v5717, %v768
  %v5797 = vmul.f32 %v5719, %v768
  %v5798 = vmul.f32 %v5721, %v768
  %v5799 = vmul.f32 %v5723, %v768
  %v5800 = vmul.f32 %v5725, %v768
  %v5801 = vmul.f32 %v5727, %v768
  %v5802 = vmul.f32 %v5729, %v768
  %v5803 = vmul.f32 %v5731, %v768
  %v5804 = vmul.f32 %v5733, %v768
  %v5805 = vmul.f32 %v5735, %v768
  %v5806 = vmul.f32 %v5737, %v768
  %v5807 = vmul.f32 %v5739, %v768
  %v5808 = vmul.f32 %v5741, %v768
  %v5809 = vmul.f32 %v5743, %v768
  %v5810 = vmul.f32 %v5745, %v768
  %v5811 = vmul.f32 %v5747, %v768
  %v5812 = vsub.f32 %v4016, %v5492
  %v5813 = vsub.f32 %v4020, %v5493
  %v5814 = vsub.f32 %v4026, %v5494
  %v5815 = vsub.f32 %v4030, %v5495
  %v5816 = vsub.f32 %v4036, %v5496
  %v5817 = vsub.f32 %v4040, %v5497
  %v5818 = vsub.f32 %v4046, %v5498
  %v5819 = vsub.f32 %v4050, %v5499
  %v5820 = vsub.f32 %v4056, %v5500
  %v5821 = vsub.f32 %v4060, %v5501
  %v5822 = vsub.f32 %v4066, %v5502
  %v5823 = vsub.f32 %v4070, %v5503
  %v5824 = vsub.f32 %v4076, %v5504
  %v5825 = vsub.f32 %v4080, %v5505
  %v5826 = vsub.f32 %v4086, %v5506
  %v5827 = vsub.f32 %v4090, %v5507
  %v5828 = vsub.f32 %v4096, %v5508
  %v5829 = vsub.f32 %v4100, %v5509
  %v5830 = vsub.f32 %v4106, %v5510
  %v5831 = vsub.f32 %v4110, %v5511
  %v5832 = vsub.f32 %v4116, %v5512
  %v5833 = vsub.f32 %v4120, %v5513
  %v5834 = vsub.f32 %v4126, %v5514
  %v5835 = vsub.f32 %v4130, %v5515
  %v5836 = vsub.f32 %v4136, %v5516
  %v5837 = vsub.f32 %v4140, %v5517
  %v5838 = vsub.f32 %v4146, %v5518
  %v5839 = vsub.f32 %v4150, %v5519
  %v5840 = vsub.f32 %v4156, %v5520
  %v5841 = vsub.f32 %v4160, %v5521
  %v5842 = vsub.f32 %v4166, %v5522
  %v5843 = vsub.f32 %v4170, %v5523
  %v5844 = vsub.f32 %v4176, %v5524
  %v5845 = vsub.f32 %v4180, %v5525
  %v5846 = vsub.f32 %v4186, %v5526
  %v5847 = vsub.f32 %v4190, %v5527
  %v5848 = vsub.f32 %v4196, %v5528
  %v5849 = vsub.f32 %v4200, %v5529
  %v5850 = vsub.f32 %v4206, %v5530
  %v5851 = vsub.f32 %v4210, %v5531
  %v5852 = vsub.f32 %v4216, %v5532
  %v5853 = vsub.f32 %v4220, %v5533
  %v5854 = vsub.f32 %v4226, %v5534
  %v5855 = vsub.f32 %v4230, %v5535
  %v5856 = vsub.f32 %v4236, %v5536
  %v5857 = vsub.f32 %v4240, %v5537
  %v5858 = vsub.f32 %v4246, %v5538
  %v5859 = vsub.f32 %v4250, %v5539
  %v5860 = vsub.f32 %v4256, %v5540
  %v5861 = vsub.f32 %v4260, %v5541
  %v5862 = vsub.f32 %v4266, %v5542
  %v5863 = vsub.f32 %v4270, %v5543
  %v5864 = vsub.f32 %v4276, %v5544
  %v5865 = vsub.f32 %v4280, %v5545
  %v5866 = vsub.f32 %v4286, %v5546
  %v5867 = vsub.f32 %v4290, %v5547
  %v5868 = vsub.f32 %v4296, %v5548
  %v5869 = vsub.f32 %v4300, %v5549
  %v5870 = vsub.f32 %v4306, %v5550
  %v5871 = vsub.f32 %v4310, %v5551
  %v5872 = vsub.f32 %v4316, %v5552
  %v5873 = vsub.f32 %v4320, %v5553
  %v5874 = vsub.f32 %v4326, %v5554
  %v5875 = vsub.f32 %v4330, %v5555
  %v5876 = vmul.f32 %v5492, %v5492
  %v5877 = vmul.f32 %v5493, %v5493
  %v5878 = vmul.f32 %v5494, %v5494
  %v5879 = vmul.f32 %v5495, %v5495
  %v5880 = vmul.f32 %v5496, %v5496
  %v5881 = vmul.f32 %v5497, %v5497
  %v5882 = vmul.f32 %v5498, %v5498
  %v5883 = vmul.f32 %v5499, %v5499
  %v5884 = vmul.f32 %v5500, %v5500
  %v5885 = vmul.f32 %v5501, %v5501
  %v5886 = vmul.f32 %v5502, %v5502
  %v5887 = vmul.f32 %v5503, %v5503
  %v5888 = vmul.f32 %v5504, %v5504
  %v5889 = vmul.f32 %v5505, %v5505
  %v5890 = vmul.f32 %v5506, %v5506
  %v5891 = vmul.f32 %v5507, %v5507
  %v5892 = vmul.f32 %v5508, %v5508
  %v5893 = vmul.f32 %v5509, %v5509
  %v5894 = vmul.f32 %v5510, %v5510
  %v5895 = vmul.f32 %v5511, %v5511
  %v5896 = vmul.f32 %v5512, %v5512
  %v5897 = vmul.f32 %v5513, %v5513
  %v5898 = vmul.f32 %v5514, %v5514
  %v5899 = vmul.f32 %v5515, %v5515
  %v5900 = vmul.f32 %v5516, %v5516
  %v5901 = vmul.f32 %v5517, %v5517
  %v5902 = vmul.f32 %v5518, %v5518
  %v5903 = vmul.f32 %v5519, %v5519
  %v5904 = vmul.f32 %v5520, %v5520
  %v5905 = vmul.f32 %v5521, %v5521
  %v5906 = vmul.f32 %v5522, %v5522
  %v5907 = vmul.f32 %v5523, %v5523
  %v5908 = vmul.f32 %v5524, %v5524
  %v5909 = vmul.f32 %v5525, %v5525
  %v5910 = vmul.f32 %v5526, %v5526
  %v5911 = vmul.f32 %v5527, %v5527
  %v5912 = vmul.f32 %v5528, %v5528
  %v5913 = vmul.f32 %v5529, %v5529
  %v5914 = vmul.f32 %v5530, %v5530
  %v5915 = vmul.f32 %v5531, %v5531
  %v5916 = vmul.f32 %v5532, %v5532
  %v5917 = vmul.f32 %v5533, %v5533
  %v5918 = vmul.f32 %v5534, %v5534
  %v5919 = vmul.f32 %v5535, %v5535
  %v5920 = vmul.f32 %v5536, %v5536
  %v5921 = vmul.f32 %v5537, %v5537
  %v5922 = vmul.f32 %v5538, %v5538
  %v5923 = vmul.f32 %v5539, %v5539
  %v5924 = vmul.f32 %v5540, %v5540
  %v5925 = vmul.f32 %v5541, %v5541
  %v5926 = vmul.f32 %v5542, %v5542
  %v5927 = vmul.f32 %v5543, %v5543
  %v5928 = vmul.f32 %v5544, %v5544
  %v5929 = vmul.f32 %v5545, %v5545
  %v5930 = vmul.f32 %v5546, %v5546
  %v5931 = vmul.f32 %v5547, %v5547
  %v5932 = vmul.f32 %v5548, %v5548
  %v5933 = vmul.f32 %v5549, %v5549
  %v5934 = vmul.f32 %v5550, %v5550
  %v5935 = vmul.f32 %v5551, %v5551
  %v5936 = vmul.f32 %v5552, %v5552
  %v5937 = vmul.f32 %v5553, %v5553
  %v5938 = vmul.f32 %v5554, %v5554
  %v5939 = vmul.f32 %v5555, %v5555
  %v5940 = vsub.f32 %v5748, %v5876
  %v5941 = vsub.f32 %v5749, %v5877
  %v5942 = vsub.f32 %v5750, %v5878
  %v5943 = vsub.f32 %v5751, %v5879
  %v5944 = vsub.f32 %v5752, %v5880
  %v5945 = vsub.f32 %v5753, %v5881
  %v5946 = vsub.f32 %v5754, %v5882
  %v5947 = vsub.f32 %v5755, %v5883
  %v5948 = vsub.f32 %v5756, %v5884
  %v5949 = vsub.f32 %v5757, %v5885
  %v5950 = vsub.f32 %v5758, %v5886
  %v5951 = vsub.f32 %v5759, %v5887
  %v5952 = vsub.f32 %v5760, %v5888
  %v5953 = vsub.f32 %v5761, %v5889
  %v5954 = vsub.f32 %v5762, %v5890
  %v5955 = vsub.f32 %v5763, %v5891
  %v5956 = vsub.f32 %v5764, %v5892
  %v5957 = vsub.f32 %v5765, %v5893
  %v5958 = vsub.f32 %v5766, %v5894
  %v5959 = vsub.f32 %v5767, %v5895
  %v5960 = vsub.f32 %v5768, %v5896
  %v5961 = vsub.f32 %v5769, %v5897
  %v5962 = vsub.f32 %v5770, %v5898
  %v5963 = vsub.f32 %v5771, %v5899
  %v5964 = vsub.f32 %v5772, %v5900
  %v5965 = vsub.f32 %v5773, %v5901
  %v5966 = vsub.f32 %v5774, %v5902
  %v5967 = vsub.f32 %v5775, %v5903
  %v5968 = vsub.f32 %v5776, %v5904
  %v5969 = vsub.f32 %v5777, %v5905
  %v5970 = vsub.f32 %v5778, %v5906
  %v5971 = vsub.f32 %v5779, %v5907
  %v5972 = vsub.f32 %v5780, %v5908
  %v5973 = vsub.f32 %v5781, %v5909
  %v5974 = vsub.f32 %v5782, %v5910
  %v5975 = vsub.f32 %v5783, %v5911
  %v5976 = vsub.f32 %v5784, %v5912
  %v5977 = vsub.f32 %v5785, %v5913
  %v5978 = vsub.f32 %v5786, %v5914
  %v5979 = vsub.f32 %v5787, %v5915
  %v5980 = vsub.f32 %v5788, %v5916
  %v5981 = vsub.f32 %v5789, %v5917
  %v5982 = vsub.f32 %v5790, %v5918
  %v5983 = vsub.f32 %v5791, %v5919
  %v5984 = vsub.f32 %v5792, %v5920
  %v5985 = vsub.f32 %v5793, %v5921
  %v5986 = vsub.f32 %v5794, %v5922
  %v5987 = vsub.f32 %v5795, %v5923
  %v5988 = vsub.f32 %v5796, %v5924
  %v5989 = vsub.f32 %v5797, %v5925
  %v5990 = vsub.f32 %v5798, %v5926
  %v5991 = vsub.f32 %v5799, %v5927
  %v5992 = vsub.f32 %v5800, %v5928
  %v5993 = vsub.f32 %v5801, %v5929
  %v5994 = vsub.f32 %v5802, %v5930
  %v5995 = vsub.f32 %v5803, %v5931
  %v5996 = vsub.f32 %v5804, %v5932
  %v5997 = vsub.f32 %v5805, %v5933
  %v5998 = vsub.f32 %v5806, %v5934
  %v5999 = vsub.f32 %v5807, %v5935
  %v6000 = vsub.f32 %v5808, %v5936
  %v6001 = vsub.f32 %v5809, %v5937
  %v6002 = vsub.f32 %v5810, %v5938
  %v6003 = vsub.f32 %v5811, %v5939
  %v6004 = vadd.f32 %v5940, 1e-05
  %v6005 = vadd.f32 %v5941, 1e-05
  %v6006 = vadd.f32 %v5942, 1e-05
  %v6007 = vadd.f32 %v5943, 1e-05
  %v6008 = vadd.f32 %v5944, 1e-05
  %v6009 = vadd.f32 %v5945, 1e-05
  %v6010 = vadd.f32 %v5946, 1e-05
  %v6011 = vadd.f32 %v5947, 1e-05
  %v6012 = vadd.f32 %v5948, 1e-05
  %v6013 = vadd.f32 %v5949, 1e-05
  %v6014 = vadd.f32 %v5950, 1e-05
  %v6015 = vadd.f32 %v5951, 1e-05
  %v6016 = vadd.f32 %v5952, 1e-05
  %v6017 = vadd.f32 %v5953, 1e-05
  %v6018 = vadd.f32 %v5954, 1e-05
  %v6019 = vadd.f32 %v5955, 1e-05
  %v6020 = vadd.f32 %v5956, 1e-05
  %v6021 = vadd.f32 %v5957, 1e-05
  %v6022 = vadd.f32 %v5958, 1e-05
  %v6023 = vadd.f32 %v5959, 1e-05
  %v6024 = vadd.f32 %v5960, 1e-05
  %v6025 = vadd.f32 %v5961, 1e-05
  %v6026 = vadd.f32 %v5962, 1e-05
  %v6027 = vadd.f32 %v5963, 1e-05
  %v6028 = vadd.f32 %v5964, 1e-05
  %v6029 = vadd.f32 %v5965, 1e-05
  %v6030 = vadd.f32 %v5966, 1e-05
  %v6031 = vadd.f32 %v5967, 1e-05
  %v6032 = vadd.f32 %v5968, 1e-05
  %v6033 = vadd.f32 %v5969, 1e-05
  %v6034 = vadd.f32 %v5970, 1e-05
  %v6035 = vadd.f32 %v5971, 1e-05
  %v6036 = vadd.f32 %v5972, 1e-05
  %v6037 = vadd.f32 %v5973, 1e-05
  %v6038 = vadd.f32 %v5974, 1e-05
  %v6039 = vadd.f32 %v5975, 1e-05
  %v6040 = vadd.f32 %v5976, 1e-05
  %v6041 = vadd.f32 %v5977, 1e-05
  %v6042 = vadd.f32 %v5978, 1e-05
  %v6043 = vadd.f32 %v5979, 1e-05
  %v6044 = vadd.f32 %v5980, 1e-05
  %v6045 = vadd.f32 %v5981, 1e-05
  %v6046 = vadd.f32 %v5982, 1e-05
  %v6047 = vadd.f32 %v5983, 1e-05
  %v6048 = vadd.f32 %v5984, 1e-05
  %v6049 = vadd.f32 %v5985, 1e-05
  %v6050 = vadd.f32 %v5986, 1e-05
  %v6051 = vadd.f32 %v5987, 1e-05
  %v6052 = vadd.f32 %v5988, 1e-05
  %v6053 = vadd.f32 %v5989, 1e-05
  %v6054 = vadd.f32 %v5990, 1e-05
  %v6055 = vadd.f32 %v5991, 1e-05
  %v6056 = vadd.f32 %v5992, 1e-05
  %v6057 = vadd.f32 %v5993, 1e-05
  %v6058 = vadd.f32 %v5994, 1e-05
  %v6059 = vadd.f32 %v5995, 1e-05
  %v6060 = vadd.f32 %v5996, 1e-05
  %v6061 = vadd.f32 %v5997, 1e-05
  %v6062 = vadd.f32 %v5998, 1e-05
  %v6063 = vadd.f32 %v5999, 1e-05
  %v6064 = vadd.f32 %v6000, 1e-05
  %v6065 = vadd.f32 %v6001, 1e-05
  %v6066 = vadd.f32 %v6002, 1e-05
  %v6067 = vadd.f32 %v6003, 1e-05
  %v6068 = vrsqrt.pop %v6004
  %v6069 = vrsqrt.pop %v6005
  %v6070 = vrsqrt.pop %v6006
  %v6071 = vrsqrt.pop %v6007
  %v6072 = vrsqrt.pop %v6008
  %v6073 = vrsqrt.pop %v6009
  %v6074 = vrsqrt.pop %v6010
  %v6075 = vrsqrt.pop %v6011
  %v6076 = vrsqrt.pop %v6012
  %v6077 = vrsqrt.pop %v6013
  %v6078 = vrsqrt.pop %v6014
  %v6079 = vrsqrt.pop %v6015
  %v6080 = vrsqrt.pop %v6016
  %v6081 = vrsqrt.pop %v6017
  %v6082 = vrsqrt.pop %v6018
  %v6083 = vrsqrt.pop %v6019
  %v6084 = vrsqrt.pop %v6020
  %v6085 = vrsqrt.pop %v6021
  %v6086 = vrsqrt.pop %v6022
  %v6087 = vrsqrt.pop %v6023
  %v6088 = vrsqrt.pop %v6024
  %v6089 = vrsqrt.pop %v6025
  %v6090 = vrsqrt.pop %v6026
  %v6091 = vrsqrt.pop %v6027
  %v6092 = vrsqrt.pop %v6028
  %v6093 = vrsqrt.pop %v6029
  %v6094 = vrsqrt.pop %v6030
  %v6095 = vrsqrt.pop %v6031
  %v6096 = vrsqrt.pop %v6032
  %v6097 = vrsqrt.pop %v6033
  %v6098 = vrsqrt.pop %v6034
  %v6099 = vrsqrt.pop %v6035
  %v6100 = vrsqrt.pop %v6036
  %v6101 = vrsqrt.pop %v6037
  %v6102 = vrsqrt.pop %v6038
  %v6103 = vrsqrt.pop %v6039
  %v6104 = vrsqrt.pop %v6040
  %v6105 = vrsqrt.pop %v6041
  %v6106 = vrsqrt.pop %v6042
  %v6107 = vrsqrt.pop %v6043
  %v6108 = vrsqrt.pop %v6044
  %v6109 = vrsqrt.pop %v6045
  %v6110 = vrsqrt.pop %v6046
  %v6111 = vrsqrt.pop %v6047
  %v6112 = vrsqrt.pop %v6048
  %v6113 = vrsqrt.pop %v6049
  %v6114 = vrsqrt.pop %v6050
  %v6115 = vrsqrt.pop %v6051
  %v6116 = vrsqrt.pop %v6052
  %v6117 = vrsqrt.pop %v6053
  %v6118 = vrsqrt.pop %v6054
  %v6119 = vrsqrt.pop %v6055
  %v6120 = vrsqrt.pop %v6056
  %v6121 = vrsqrt.pop %v6057
  %v6122 = vrsqrt.pop %v6058
  %v6123 = vrsqrt.pop %v6059
  %v6124 = vrsqrt.pop %v6060
  %v6125 = vrsqrt.pop %v6061
  %v6126 = vrsqrt.pop %v6062
  %v6127 = vrsqrt.pop %v6063
  %v6128 = vrsqrt.pop %v6064
  %v6129 = vrsqrt.pop %v6065
  %v6130 = vrsqrt.pop %v6066
  %v6131 = vrsqrt.pop %v6067
  %v6132 = vmul.f32 %v5812, %v6068
  %v6133 = vmul.f32 %v5813, %v6069
  %v6134 = vmul.f32 %v5814, %v6070
  %v6135 = vmul.f32 %v5815, %v6071
  %v6136 = vmul.f32 %v5816, %v6072
  %v6137 = vmul.f32 %v5817, %v6073
  %v6138 = vmul.f32 %v5818, %v6074
  %v6139 = vmul.f32 %v5819, %v6075
  %v6140 = vmul.f32 %v5820, %v6076
  %v6141 = vmul.f32 %v5821, %v6077
  %v6142 = vmul.f32 %v5822, %v6078
  %v6143 = vmul.f32 %v5823, %v6079
  %v6144 = vmul.f32 %v5824, %v6080
  %v6145 = vmul.f32 %v5825, %v6081
  %v6146 = vmul.f32 %v5826, %v6082
  %v6147 = vmul.f32 %v5827, %v6083
  %v6148 = vmul.f32 %v5828, %v6084
  %v6149 = vmul.f32 %v5829, %v6085
  %v6150 = vmul.f32 %v5830, %v6086
  %v6151 = vmul.f32 %v5831, %v6087
  %v6152 = vmul.f32 %v5832, %v6088
  %v6153 = vmul.f32 %v5833, %v6089
  %v6154 = vmul.f32 %v5834, %v6090
  %v6155 = vmul.f32 %v5835, %v6091
  %v6156 = vmul.f32 %v5836, %v6092
  %v6157 = vmul.f32 %v5837, %v6093
  %v6158 = vmul.f32 %v5838, %v6094
  %v6159 = vmul.f32 %v5839, %v6095
  %v6160 = vmul.f32 %v5840, %v6096
  %v6161 = vmul.f32 %v5841, %v6097
  %v6162 = vmul.f32 %v5842, %v6098
  %v6163 = vmul.f32 %v5843, %v6099
  %v6164 = vmul.f32 %v5844, %v6100
  %v6165 = vmul.f32 %v5845, %v6101
  %v6166 = vmul.f32 %v5846, %v6102
  %v6167 = vmul.f32 %v5847, %v6103
  %v6168 = vmul.f32 %v5848, %v6104
  %v6169 = vmul.f32 %v5849, %v6105
  %v6170 = vmul.f32 %v5850, %v6106
  %v6171 = vmul.f32 %v5851, %v6107
  %v6172 = vmul.f32 %v5852, %v6108
  %v6173 = vmul.f32 %v5853, %v6109
  %v6174 = vmul.f32 %v5854, %v6110
  %v6175 = vmul.f32 %v5855, %v6111
  %v6176 = vmul.f32 %v5856, %v6112
  %v6177 = vmul.f32 %v5857, %v6113
  %v6178 = vmul.f32 %v5858, %v6114
  %v6179 = vmul.f32 %v5859, %v6115
  %v6180 = vmul.f32 %v5860, %v6116
  %v6181 = vmul.f32 %v5861, %v6117
  %v6182 = vmul.f32 %v5862, %v6118
  %v6183 = vmul.f32 %v5863, %v6119
  %v6184 = vmul.f32 %v5864, %v6120
  %v6185 = vmul.f32 %v5865, %v6121
  %v6186 = vmul.f32 %v5866, %v6122
  %v6187 = vmul.f32 %v5867, %v6123
  %v6188 = vmul.f32 %v5868, %v6124
  %v6189 = vmul.f32 %v5869, %v6125
  %v6190 = vmul.f32 %v5870, %v6126
  %v6191 = vmul.f32 %v5871, %v6127
  %v6192 = vmul.f32 %v5872, %v6128
  %v6193 = vmul.f32 %v5873, %v6129
  %v6194 = vmul.f32 %v5874, %v6130
  %v6195 = vmul.f32 %v5875, %v6131
  %v6196 = vlaneseq
  %v6197 = vshrl.u32 %v6196, 7
  %v6198 = vsub.s32 5, %v6197
  %v6199 = vrot.slane %v88, %v6198
  %v6200 = vmul.f32 %v6132, %v6199
  %v6201 = vmul.f32 %v6133, %v6199
  %v6202 = vmul.f32 %v6134, %v6199
  %v6203 = vmul.f32 %v6135, %v6199
  %v6204 = vmul.f32 %v6136, %v6199
  %v6205 = vmul.f32 %v6137, %v6199
  %v6206 = vmul.f32 %v6138, %v6199
  %v6207 = vmul.f32 %v6139, %v6199
  %v6208 = vmul.f32 %v6140, %v6199
  %v6209 = vmul.f32 %v6141, %v6199
  %v6210 = vmul.f32 %v6142, %v6199
  %v6211 = vmul.f32 %v6143, %v6199
  %v6212 = vmul.f32 %v6144, %v6199
  %v6213 = vmul.f32 %v6145, %v6199
  %v6214 = vmul.f32 %v6146, %v6199
  %v6215 = vmul.f32 %v6147, %v6199
  %v6216 = vmul.f32 %v6148, %v6199
  %v6217 = vmul.f32 %v6149, %v6199
  %v6218 = vmul.f32 %v6150, %v6199
  %v6219 = vmul.f32 %v6151, %v6199
  %v6220 = vmul.f32 %v6152, %v6199
  %v6221 = vmul.f32 %v6153, %v6199
  %v6222 = vmul.f32 %v6154, %v6199
  %v6223 = vmul.f32 %v6155, %v6199
  %v6224 = vmul.f32 %v6156, %v6199
  %v6225 = vmul.f32 %v6157, %v6199
  %v6226 = vmul.f32 %v6158, %v6199
  %v6227 = vmul.f32 %v6159, %v6199
  %v6228 = vmul.f32 %v6160, %v6199
  %v6229 = vmul.f32 %v6161, %v6199
  %v6230 = vmul.f32 %v6162, %v6199
  %v6231 = vmul.f32 %v6163, %v6199
  %v6232 = vmul.f32 %v6164, %v6199
  %v6233 = vmul.f32 %v6165, %v6199
  %v6234 = vmul.f32 %v6166, %v6199
  %v6235 = vmul.f32 %v6167, %v6199
  %v6236 = vmul.f32 %v6168, %v6199
  %v6237 = vmul.f32 %v6169, %v6199
  %v6238 = vmul.f32 %v6170, %v6199
  %v6239 = vmul.f32 %v6171, %v6199
  %v6240 = vmul.f32 %v6172, %v6199
  %v6241 = vmul.f32 %v6173, %v6199
  %v6242 = vmul.f32 %v6174, %v6199
  %v6243 = vmul.f32 %v6175, %v6199
  %v6244 = vmul.f32 %v6176, %v6199
  %v6245 = vmul.f32 %v6177, %v6199
  %v6246 = vmul.f32 %v6178, %v6199
  %v6247 = vmul.f32 %v6179, %v6199
  %v6248 = vmul.f32 %v6180, %v6199
  %v6249 = vmul.f32 %v6181, %v6199
  %v6250 = vmul.f32 %v6182, %v6199
  %v6251 = vmul.f32 %v6183, %v6199
  %v6252 = vmul.f32 %v6184, %v6199
  %v6253 = vmul.f32 %v6185, %v6199
  %v6254 = vmul.f32 %v6186, %v6199
  %v6255 = vmul.f32 %v6187, %v6199
  %v6256 = vmul.f32 %v6188, %v6199
  %v6257 = vmul.f32 %v6189, %v6199
  %v6258 = vmul.f32 %v6190, %v6199
  %v6259 = vmul.f32 %v6191, %v6199
  %v6260 = vmul.f32 %v6192, %v6199
  %v6261 = vmul.f32 %v6193, %v6199
  %v6262 = vmul.f32 %v6194, %v6199
  %v6263 = vmul.f32 %v6195, %v6199
  %v6264 = vlaneseq
  %v6265 = vshrl.u32 %v6264, 7
  %v6266 = vsub.s32 6, %v6265
  %v6267 = vrot.slane %v88, %v6266
  %v6268 = vadd.f32 %v6200, %v6267
  %v6269 = vadd.f32 %v6201, %v6267
  %v6270 = vadd.f32 %v6202, %v6267
  %v6271 = vadd.f32 %v6203, %v6267
  %v6272 = vadd.f32 %v6204, %v6267
  %v6273 = vadd.f32 %v6205, %v6267
  %v6274 = vadd.f32 %v6206, %v6267
  %v6275 = vadd.f32 %v6207, %v6267
  %v6276 = vadd.f32 %v6208, %v6267
  %v6277 = vadd.f32 %v6209, %v6267
  %v6278 = vadd.f32 %v6210, %v6267
  %v6279 = vadd.f32 %v6211, %v6267
  %v6280 = vadd.f32 %v6212, %v6267
  %v6281 = vadd.f32 %v6213, %v6267
  %v6282 = vadd.f32 %v6214, %v6267
  %v6283 = vadd.f32 %v6215, %v6267
  %v6284 = vadd.f32 %v6216, %v6267
  %v6285 = vadd.f32 %v6217, %v6267
  %v6286 = vadd.f32 %v6218, %v6267
  %v6287 = vadd.f32 %v6219, %v6267
  %v6288 = vadd.f32 %v6220, %v6267
  %v6289 = vadd.f32 %v6221, %v6267
  %v6290 = vadd.f32 %v6222, %v6267
  %v6291 = vadd.f32 %v6223, %v6267
  %v6292 = vadd.f32 %v6224, %v6267
  %v6293 = vadd.f32 %v6225, %v6267
  %v6294 = vadd.f32 %v6226, %v6267
  %v6295 = vadd.f32 %v6227, %v6267
  %v6296 = vadd.f32 %v6228, %v6267
  %v6297 = vadd.f32 %v6229, %v6267
  %v6298 = vadd.f32 %v6230, %v6267
  %v6299 = vadd.f32 %v6231, %v6267
  %v6300 = vadd.f32 %v6232, %v6267
  %v6301 = vadd.f32 %v6233, %v6267
  %v6302 = vadd.f32 %v6234, %v6267
  %v6303 = vadd.f32 %v6235, %v6267
  %v6304 = vadd.f32 %v6236, %v6267
  %v6305 = vadd.f32 %v6237, %v6267
  %v6306 = vadd.f32 %v6238, %v6267
  %v6307 = vadd.f32 %v6239, %v6267
  %v6308 = vadd.f32 %v6240, %v6267
  %v6309 = vadd.f32 %v6241, %v6267
  %v6310 = vadd.f32 %v6242, %v6267
  %v6311 = vadd.f32 %v6243, %v6267
  %v6312 = vadd.f32 %v6244, %v6267
  %v6313 = vadd.f32 %v6245, %v6267
  %v6314 = vadd.f32 %v6246, %v6267
  %v6315 = vadd.f32 %v6247, %v6267
  %v6316 = vadd.f32 %v6248, %v6267
  %v6317 = vadd.f32 %v6249, %v6267
  %v6318 = vadd.f32 %v6250, %v6267
  %v6319 = vadd.f32 %v6251, %v6267
  %v6320 = vadd.f32 %v6252, %v6267
  %v6321 = vadd.f32 %v6253, %v6267
  %v6322 = vadd.f32 %v6254, %v6267
  %v6323 = vadd.f32 %v6255, %v6267
  %v6324 = vadd.f32 %v6256, %v6267
  %v6325 = vadd.f32 %v6257, %v6267
  %v6326 = vadd.f32 %v6258, %v6267
  %v6327 = vadd.f32 %v6259, %v6267
  %v6328 = vadd.f32 %v6260, %v6267
  %v6329 = vadd.f32 %v6261, %v6267
  %v6330 = vadd.f32 %v6262, %v6267
  %v6331 = vadd.f32 %v6263, %v6267
  %v6332 = vmax.f32 %v6268, 0.0
  %v6333 = vmax.f32 %v6269, 0.0
  %v6334 = vmax.f32 %v6270, 0.0
  %v6335 = vmax.f32 %v6271, 0.0
  %v6336 = vmax.f32 %v6272, 0.0
  %v6337 = vmax.f32 %v6273, 0.0
  %v6338 = vmax.f32 %v6274, 0.0
  %v6339 = vmax.f32 %v6275, 0.0
  %v6340 = vmax.f32 %v6276, 0.0
  %v6341 = vmax.f32 %v6277, 0.0
  %v6342 = vmax.f32 %v6278, 0.0
  %v6343 = vmax.f32 %v6279, 0.0
  %v6344 = vmax.f32 %v6280, 0.0
  %v6345 = vmax.f32 %v6281, 0.0
  %v6346 = vmax.f32 %v6282, 0.0
  %v6347 = vmax.f32 %v6283, 0.0
  %v6348 = vmax.f32 %v6284, 0.0
  %v6349 = vmax.f32 %v6285, 0.0
  %v6350 = vmax.f32 %v6286, 0.0
  %v6351 = vmax.f32 %v6287, 0.0
  %v6352 = vmax.f32 %v6288, 0.0
  %v6353 = vmax.f32 %v6289, 0.0
  %v6354 = vmax.f32 %v6290, 0.0
  %v6355 = vmax.f32 %v6291, 0.0
  %v6356 = vmax.f32 %v6292, 0.0
  %v6357 = vmax.f32 %v6293, 0.0
  %v6358 = vmax.f32 %v6294, 0.0
  %v6359 = vmax.f32 %v6295, 0.0
  %v6360 = vmax.f32 %v6296, 0.0
  %v6361 = vmax.f32 %v6297, 0.0
  %v6362 = vmax.f32 %v6298, 0.0
  %v6363 = vmax.f32 %v6299, 0.0
  %v6364 = vmax.f32 %v6300, 0.0
  %v6365 = vmax.f32 %v6301, 0.0
  %v6366 = vmax.f32 %v6302, 0.0
  %v6367 = vmax.f32 %v6303, 0.0
  %v6368 = vmax.f32 %v6304, 0.0
  %v6369 = vmax.f32 %v6305, 0.0
  %v6370 = vmax.f32 %v6306, 0.0
  %v6371 = vmax.f32 %v6307, 0.0
  %v6372 = vmax.f32 %v6308, 0.0
  %v6373 = vmax.f32 %v6309, 0.0
  %v6374 = vmax.f32 %v6310, 0.0
  %v6375 = vmax.f32 %v6311, 0.0
  %v6376 = vmax.f32 %v6312, 0.0
  %v6377 = vmax.f32 %v6313, 0.0
  %v6378 = vmax.f32 %v6314, 0.0
  %v6379 = vmax.f32 %v6315, 0.0
  %v6380 = vmax.f32 %v6316, 0.0
  %v6381 = vmax.f32 %v6317, 0.0
  %v6382 = vmax.f32 %v6318, 0.0
  %v6383 = vmax.f32 %v6319, 0.0
  %v6384 = vmax.f32 %v6320, 0.0
  %v6385 = vmax.f32 %v6321, 0.0
  %v6386 = vmax.f32 %v6322, 0.0
  %v6387 = vmax.f32 %v6323, 0.0
  %v6388 = vmax.f32 %v6324, 0.0
  %v6389 = vmax.f32 %v6325, 0.0
  %v6390 = vmax.f32 %v6326, 0.0
  %v6391 = vmax.f32 %v6327, 0.0
  %v6392 = vmax.f32 %v6328, 0.0
  %v6393 = vmax.f32 %v6329, 0.0
  %v6394 = vmax.f32 %v6330, 0.0
  %v6395 = vmax.f32 %v6331, 0.0
  %v6396 = vpack.c.bf16 %v5301, %v5300
  %v6397 = vpack.c.bf16 %v5303, %v5302
  %v6398 = vpack.c.bf16 %v5305, %v5304
  %v6399 = vpack.c.bf16 %v5307, %v5306
  %v6400 = vpack.c.bf16 %v5309, %v5308
  %v6401 = vpack.c.bf16 %v5311, %v5310
  %v6402 = vpack.c.bf16 %v5313, %v5312
  %v6403 = vpack.c.bf16 %v5315, %v5314
  %v6404 = vpack.c.bf16 %v5317, %v5316
  %v6405 = vpack.c.bf16 %v5319, %v5318
  %v6406 = vpack.c.bf16 %v5321, %v5320
  %v6407 = vpack.c.bf16 %v5323, %v5322
  %v6408 = vpack.c.bf16 %v5325, %v5324
  %v6409 = vpack.c.bf16 %v5327, %v5326
  %v6410 = vpack.c.bf16 %v5329, %v5328
  %v6411 = vpack.c.bf16 %v5331, %v5330
  %v6412 = vpack.c.bf16 %v5333, %v5332
  %v6413 = vpack.c.bf16 %v5335, %v5334
  %v6414 = vpack.c.bf16 %v5337, %v5336
  %v6415 = vpack.c.bf16 %v5339, %v5338
  %v6416 = vpack.c.bf16 %v5341, %v5340
  %v6417 = vpack.c.bf16 %v5343, %v5342
  %v6418 = vpack.c.bf16 %v5345, %v5344
  %v6419 = vpack.c.bf16 %v5347, %v5346
  %v6420 = vpack.c.bf16 %v5349, %v5348
  %v6421 = vpack.c.bf16 %v5351, %v5350
  %v6422 = vpack.c.bf16 %v5353, %v5352
  %v6423 = vpack.c.bf16 %v5355, %v5354
  %v6424 = vpack.c.bf16 %v5357, %v5356
  %v6425 = vpack.c.bf16 %v5359, %v5358
  %v6426 = vpack.c.bf16 %v5361, %v5360
  %v6427 = vpack.c.bf16 %v5363, %v5362
  %v6428 = vld [vmem:[%s4] sm:$0xf]
  %v6429 = vld [vmem:[%s4 + $0x4] sm:$0xf]
  %v6430 = vld [vmem:[%s4 + $0x8] sm:$0xf]
  %v6431 = vld [vmem:[%s4 + $0xc] sm:$0xf]
  %v6432 = vld [vmem:[%s4 + $0x10] sm:$0xf]
  %v6433 = vld [vmem:[%s4 + $0x14] sm:$0xf]
  %v6434 = vld [vmem:[%s4 + $0x18] sm:$0xf]
  %v6435 = vld [vmem:[%s4 + $0x1c] sm:$0xf]
  %v6436 = vld [vmem:[%s4 + $0x20] sm:$0xf]
  %v6437 = vld [vmem:[%s4 + $0x24] sm:$0xf]
  %v6438 = vld [vmem:[%s4 + $0x28] sm:$0xf]
  %v6439 = vld [vmem:[%s4 + $0x2c] sm:$0xf]
  %v6440 = vld [vmem:[%s4 + $0x30] sm:$0xf]
  %v6441 = vld [vmem:[%s4 + $0x34] sm:$0xf]
  %v6442 = vld [vmem:[%s4 + $0x38] sm:$0xf]
  %v6443 = vld [vmem:[%s4 + $0x3c] sm:$0xf]
  %v6444 = vpack.c.bf16 %v6333, %v6332
  %v6445 = vpack.c.bf16 %v6335, %v6334
  %v6446 = vpack.c.bf16 %v6337, %v6336
  %v6447 = vpack.c.bf16 %v6339, %v6338
  %v6448 = vpack.c.bf16 %v6341, %v6340
  %v6449 = vpack.c.bf16 %v6343, %v6342
  %v6450 = vpack.c.bf16 %v6345, %v6344
  %v6451 = vpack.c.bf16 %v6347, %v6346
  %v6452 = vpack.c.bf16 %v6349, %v6348
  %v6453 = vpack.c.bf16 %v6351, %v6350
  %v6454 = vpack.c.bf16 %v6353, %v6352
  %v6455 = vpack.c.bf16 %v6355, %v6354
  %v6456 = vpack.c.bf16 %v6357, %v6356
  %v6457 = vpack.c.bf16 %v6359, %v6358
  %v6458 = vpack.c.bf16 %v6361, %v6360
  %v6459 = vpack.c.bf16 %v6363, %v6362
  %v6460 = vpack.c.bf16 %v6365, %v6364
  %v6461 = vpack.c.bf16 %v6367, %v6366
  %v6462 = vpack.c.bf16 %v6369, %v6368
  %v6463 = vpack.c.bf16 %v6371, %v6370
  %v6464 = vpack.c.bf16 %v6373, %v6372
  %v6465 = vpack.c.bf16 %v6375, %v6374
  %v6466 = vpack.c.bf16 %v6377, %v6376
  %v6467 = vpack.c.bf16 %v6379, %v6378
  %v6468 = vpack.c.bf16 %v6381, %v6380
  %v6469 = vpack.c.bf16 %v6383, %v6382
  %v6470 = vpack.c.bf16 %v6385, %v6384
  %v6471 = vpack.c.bf16 %v6387, %v6386
  %v6472 = vpack.c.bf16 %v6389, %v6388
  %v6473 = vpack.c.bf16 %v6391, %v6390
  %v6474 = vpack.c.bf16 %v6393, %v6392
  %v6475 = vpack.c.bf16 %v6395, %v6394
  %v6476 = vld [vmem:[%s4 + $0x40] sm:$0xf]
  %v6477 = vld [vmem:[%s4 + $0x44] sm:$0xf]
  %v6478 = vld [vmem:[%s4 + $0x48] sm:$0xf]
  %v6479 = vld [vmem:[%s4 + $0x4c] sm:$0xf]
  %v6480 = vld [vmem:[%s4 + $0x50] sm:$0xf]
  %v6481 = vld [vmem:[%s4 + $0x54] sm:$0xf]
  %v6482 = vld [vmem:[%s4 + $0x58] sm:$0xf]
  %v6483 = vld [vmem:[%s4 + $0x5c] sm:$0xf]
  %v6484 = vld [vmem:[%s4 + $0x60] sm:$0xf]
  %v6485 = vld [vmem:[%s4 + $0x64] sm:$0xf]
  %v6486 = vld [vmem:[%s4 + $0x68] sm:$0xf]
  %v6487 = vld [vmem:[%s4 + $0x6c] sm:$0xf]
  %v6488 = vld [vmem:[%s4 + $0x70] sm:$0xf]
  %v6489 = vld [vmem:[%s4 + $0x74] sm:$0xf]
  %v6490 = vld [vmem:[%s4 + $0x78] sm:$0xf]
  %v6491 = vld [vmem:[%s4 + $0x7c] sm:$0xf]
  %v6508 = vunpack.c.l.b16 %v6476
  %v6509 = vunpack.c.l.b16 %v6477
  %v6510 = vunpack.c.l.b16 %v6478
  %v6511 = vunpack.c.l.b16 %v6479
  %v6512 = vunpack.c.l.b16 %v6480
  %v6513 = vunpack.c.l.b16 %v6481
  %v6514 = vunpack.c.l.b16 %v6482
  %v6515 = vunpack.c.l.b16 %v6483
  %v6516 = vunpack.c.l.b16 %v6484
  %v6517 = vunpack.c.l.b16 %v6485
  %v6518 = vunpack.c.l.b16 %v6486
  %v6519 = vunpack.c.l.b16 %v6487
  %v6520 = vunpack.c.l.b16 %v6488
  %v6521 = vunpack.c.l.b16 %v6489
  %v6522 = vunpack.c.l.b16 %v6490
  %v6523 = vunpack.c.l.b16 %v6491
  %v6524 = vpack.c.b16 %v6509, %v6508
  %v6525 = vpack.c.b16 %v6511, %v6510
  %v6526 = vpack.c.b16 %v6513, %v6512
  %v6527 = vpack.c.b16 %v6515, %v6514
  %v6528 = vpack.c.b16 %v6517, %v6516
  %v6529 = vpack.c.b16 %v6519, %v6518
  %v6530 = vpack.c.b16 %v6521, %v6520
  %v6531 = vpack.c.b16 %v6523, %v6522
  %6540 = vmatprep.subr.bf16.mxu0 0
  %6541 = vmatpush1.bf16.msra.mxu0 %v6524
  %6542 = vmatprep.subr.bf16.mxu0 0
  %6543 = vmatpush1.bf16.msra.mxu0 %v6525
  %6544 = vmatprep.subr.bf16.mxu0 0
  %6545 = vmatpush1.bf16.msra.mxu0 %v6526
  %6546 = vmatprep.subr.bf16.mxu0 0
  %6547 = vmatpush1.bf16.msra.mxu0 %v6527
  %6548 = vmatprep.subr.bf16.mxu0 0
  %6549 = vmatpush1.bf16.msra.mxu0 %v6528
  %6550 = vmatprep.subr.bf16.mxu0 0
  %6551 = vmatpush1.bf16.msra.mxu0 %v6529
  %6552 = vmatprep.subr.bf16.mxu0 0
  %6553 = vmatpush1.bf16.msra.mxu0 %v6530
  %6554 = vmatprep.subr.bf16.mxu0 0
  %6555 = vmatpush1.bf16.msra.mxu0 %v6531
  %6556 = vmatprep.subr.bf16.mxu0 0
  %6557 = vmatpush1.bf16.msra.mxu0 0
  %6558 = vmatprep.subr.bf16.mxu0 0
  %6559 = vmatpush1.bf16.msra.mxu0 0
  %6560 = vmatprep.subr.bf16.mxu0 0
  %6561 = vmatpush1.bf16.msra.mxu0 0
  %6562 = vmatprep.subr.bf16.mxu0 0
  %6563 = vmatpush1.bf16.msra.mxu0 0
  %6564 = vmatprep.subr.bf16.mxu0 0
  %6565 = vmatpush1.bf16.msra.mxu0 0
  %6566 = vmatprep.subr.bf16.mxu0 0
  %6567 = vmatpush1.bf16.msra.mxu0 0
  %6568 = vmatprep.subr.bf16.mxu0 0
  %6569 = vmatpush1.bf16.msra.mxu0 0
  %6570 = vmatprep.subr.bf16.mxu0 0
  %6571 = vmatpush1.bf16.msra.mxu0 0
  %6572 = vmatprep.mubr.bf16.mxu0 0
  %6573 = vmatmul.mubr.bf16.gmra.mrb[0].mxu0 %v6444
  %v6574 = vpop.f32.mrb[0].mxu0
  %v6575 = vadd.f32 0.0, %v6574
  %v6576 = vpop.f32.mrb[0].mxu0
  %v6577 = vpop.f32.mrb[0].mxu0
  %v6578 = vadd.f32 0.0, %v6577
  %v6579 = vpop.f32.mrb[0].mxu0
  %6580 = vmatprep.mubr.bf16.mxu0 0
  %6581 = vmatmul.mubr.bf16.gmra.mrb[0].mxu0 %v6445
  %v6582 = vpop.f32.mrb[0].mxu0
  %v6583 = vadd.f32 0.0, %v6582
  %v6584 = vpop.f32.mrb[0].mxu0
  %v6585 = vpop.f32.mrb[0].mxu0
  %v6586 = vadd.f32 0.0, %v6585
  %v6587 = vpop.f32.mrb[0].mxu0
  %6588 = vmatprep.mubr.bf16.mxu0 0
  %6589 = vmatmul.mubr.bf16.gmra.mrb[0].mxu0 %v6446
  %v6590 = vpop.f32.mrb[0].mxu0
  %v6591 = vadd.f32 0.0, %v6590
  %v6592 = vpop.f32.mrb[0].mxu0
  %v6593 = vpop.f32.mrb[0].mxu0
  %v6594 = vadd.f32 0.0, %v6593
  %v6595 = vpop.f32.mrb[0].mxu0
  %6596 = vmatprep.mubr.bf16.mxu0 0
  %6597 = vmatmul.mubr.bf16.gmra.mrb[0].mxu0 %v6447
  %v6598 = vpop.f32.mrb[0].mxu0
  %v6599 = vadd.f32 0.0, %v6598
  %v6600 = vpop.f32.mrb[0].mxu0
  %v6601 = vpop.f32.mrb[0].mxu0
  %v6602 = vadd.f32 0.0, %v6601
  %v6603 = vpop.f32.mrb[0].mxu0
  %6604 = vmatprep.mubr.bf16.mxu0 0
  %6605 = vmatmul.mubr.bf16.gmra.mrb[0].mxu0 %v6448
  %v6606 = vpop.f32.mrb[0].mxu0
  %v6607 = vadd.f32 0.0, %v6606
  %v6608 = vpop.f32.mrb[0].mxu0
  %v6609 = vpop.f32.mrb[0].mxu0
  %v6610 = vadd.f32 0.0, %v6609
  %v6611 = vpop.f32.mrb[0].mxu0
  %6612 = vmatprep.mubr.bf16.mxu0 0
  %6613 = vmatmul.mubr.bf16.gmra.mrb[0].mxu0 %v6449
  %v6614 = vpop.f32.mrb[0].mxu0
  %v6615 = vadd.f32 0.0, %v6614
  %v6616 = vpop.f32.mrb[0].mxu0
  %v6617 = vpop.f32.mrb[0].mxu0
  %v6618 = vadd.f32 0.0, %v6617
  %v6619 = vpop.f32.mrb[0].mxu0
  %6620 = vmatprep.mubr.bf16.mxu0 0
  %6621 = vmatmul.mubr.bf16.gmra.mrb[0].mxu0 %v6450
  %v6622 = vpop.f32.mrb[0].mxu0
  %v6623 = vadd.f32 0.0, %v6622
  %v6624 = vpop.f32.mrb[0].mxu0
  %v6625 = vpop.f32.mrb[0].mxu0
  %v6626 = vadd.f32 0.0, %v6625
  %v6627 = vpop.f32.mrb[0].mxu0
  %6628 = vmatprep.mubr.bf16.mxu0 0
  %6629 = vmatmul.mubr.bf16.gmra.mrb[0].mxu0 %v6451
  %v6630 = vpop.f32.mrb[0].mxu0
  %v6631 = vadd.f32 0.0, %v6630
  %v6632 = vpop.f32.mrb[0].mxu0
  %v6633 = vpop.f32.mrb[0].mxu0
  %v6634 = vadd.f32 0.0, %v6633
  %v6635 = vpop.f32.mrb[0].mxu0
  %6636 = vmatprep.mubr.bf16.mxu0 0
  %6637 = vmatmul.mubr.bf16.gmra.mrb[0].mxu0 %v6452
  %v6638 = vpop.f32.mrb[0].mxu0
  %v6639 = vadd.f32 0.0, %v6638
  %v6640 = vpop.f32.mrb[0].mxu0
  %v6641 = vpop.f32.mrb[0].mxu0
  %v6642 = vadd.f32 0.0, %v6641
  %v6643 = vpop.f32.mrb[0].mxu0
  %6644 = vmatprep.mubr.bf16.mxu0 0
  %6645 = vmatmul.mubr.bf16.gmra.mrb[0].mxu0 %v6453
  %v6646 = vpop.f32.mrb[0].mxu0
  %v6647 = vadd.f32 0.0, %v6646
  %v6648 = vpop.f32.mrb[0].mxu0
  %v6649 = vpop.f32.mrb[0].mxu0
  %v6650 = vadd.f32 0.0, %v6649
  %v6651 = vpop.f32.mrb[0].mxu0
  %6652 = vmatprep.mubr.bf16.mxu0 0
  %6653 = vmatmul.mubr.bf16.gmra.mrb[0].mxu0 %v6454
  %v6654 = vpop.f32.mrb[0].mxu0
  %v6655 = vadd.f32 0.0, %v6654
  %v6656 = vpop.f32.mrb[0].mxu0
  %v6657 = vpop.f32.mrb[0].mxu0
  %v6658 = vadd.f32 0.0, %v6657
  %v6659 = vpop.f32.mrb[0].mxu0
  %6660 = vmatprep.mubr.bf16.mxu0 0
  %6661 = vmatmul.mubr.bf16.gmra.mrb[0].mxu0 %v6455
  %v6662 = vpop.f32.mrb[0].mxu0
  %v6663 = vadd.f32 0.0, %v6662
  %v6664 = vpop.f32.mrb[0].mxu0
  %v6665 = vpop.f32.mrb[0].mxu0
  %v6666 = vadd.f32 0.0, %v6665
  %v6667 = vpop.f32.mrb[0].mxu0
  %6668 = vmatprep.mubr.bf16.mxu0 0
  %6669 = vmatmul.mubr.bf16.gmra.mrb[0].mxu0 %v6456
  %v6670 = vpop.f32.mrb[0].mxu0
  %v6671 = vadd.f32 0.0, %v6670
  %v6672 = vpop.f32.mrb[0].mxu0
  %v6673 = vpop.f32.mrb[0].mxu0
  %v6674 = vadd.f32 0.0, %v6673
  %v6675 = vpop.f32.mrb[0].mxu0
  %6676 = vmatprep.mubr.bf16.mxu0 0
  %6677 = vmatmul.mubr.bf16.gmra.mrb[0].mxu0 %v6457
  %v6678 = vpop.f32.mrb[0].mxu0
  %v6679 = vadd.f32 0.0, %v6678
  %v6680 = vpop.f32.mrb[0].mxu0
  %v6681 = vpop.f32.mrb[0].mxu0
  %v6682 = vadd.f32 0.0, %v6681
  %v6683 = vpop.f32.mrb[0].mxu0
  %6684 = vmatprep.mubr.bf16.mxu0 0
  %6685 = vmatmul.mubr.bf16.gmra.mrb[0].mxu0 %v6458
  %v6686 = vpop.f32.mrb[0].mxu0
  %v6687 = vadd.f32 0.0, %v6686
  %v6688 = vpop.f32.mrb[0].mxu0
  %v6689 = vpop.f32.mrb[0].mxu0
  %v6690 = vadd.f32 0.0, %v6689
  %v6691 = vpop.f32.mrb[0].mxu0
  %6692 = vmatprep.mubr.bf16.mxu0 0
  %6693 = vmatmul.mubr.bf16.gmra.mrb[0].mxu0 %v6459
  %v6694 = vpop.f32.mrb[0].mxu0
  %v6695 = vadd.f32 0.0, %v6694
  %v6696 = vpop.f32.mrb[0].mxu0
  %v6697 = vpop.f32.mrb[0].mxu0
  %v6698 = vadd.f32 0.0, %v6697
  %v6699 = vpop.f32.mrb[0].mxu0
  %6700 = vmatprep.mubr.bf16.mxu0 0
  %6701 = vmatmul.mubr.bf16.gmra.mrb[0].mxu0 %v6460
  %v6702 = vpop.f32.mrb[0].mxu0
  %v6703 = vadd.f32 0.0, %v6702
  %v6704 = vpop.f32.mrb[0].mxu0
  %v6705 = vpop.f32.mrb[0].mxu0
  %v6706 = vadd.f32 0.0, %v6705
  %v6707 = vpop.f32.mrb[0].mxu0
  %6708 = vmatprep.mubr.bf16.mxu0 0
  %6709 = vmatmul.mubr.bf16.gmra.mrb[0].mxu0 %v6461
  %v6710 = vpop.f32.mrb[0].mxu0
  %v6711 = vadd.f32 0.0, %v6710
  %v6712 = vpop.f32.mrb[0].mxu0
  %v6713 = vpop.f32.mrb[0].mxu0
  %v6714 = vadd.f32 0.0, %v6713
  %v6715 = vpop.f32.mrb[0].mxu0
  %6716 = vmatprep.mubr.bf16.mxu0 0
  %6717 = vmatmul.mubr.bf16.gmra.mrb[0].mxu0 %v6462
  %v6718 = vpop.f32.mrb[0].mxu0
  %v6719 = vadd.f32 0.0, %v6718
  %v6720 = vpop.f32.mrb[0].mxu0
  %v6721 = vpop.f32.mrb[0].mxu0
  %v6722 = vadd.f32 0.0, %v6721
  %v6723 = vpop.f32.mrb[0].mxu0
  %6724 = vmatprep.mubr.bf16.mxu0 0
  %6725 = vmatmul.mubr.bf16.gmra.mrb[0].mxu0 %v6463
  %v6726 = vpop.f32.mrb[0].mxu0
  %v6727 = vadd.f32 0.0, %v6726
  %v6728 = vpop.f32.mrb[0].mxu0
  %v6729 = vpop.f32.mrb[0].mxu0
  %v6730 = vadd.f32 0.0, %v6729
  %v6731 = vpop.f32.mrb[0].mxu0
  %6732 = vmatprep.mubr.bf16.mxu0 0
  %6733 = vmatmul.mubr.bf16.gmra.mrb[0].mxu0 %v6464
  %v6734 = vpop.f32.mrb[0].mxu0
  %v6735 = vadd.f32 0.0, %v6734
  %v6736 = vpop.f32.mrb[0].mxu0
  %v6737 = vpop.f32.mrb[0].mxu0
  %v6738 = vadd.f32 0.0, %v6737
  %v6739 = vpop.f32.mrb[0].mxu0
  %6740 = vmatprep.mubr.bf16.mxu0 0
  %6741 = vmatmul.mubr.bf16.gmra.mrb[0].mxu0 %v6465
  %v6742 = vpop.f32.mrb[0].mxu0
  %v6743 = vadd.f32 0.0, %v6742
  %v6744 = vpop.f32.mrb[0].mxu0
  %v6745 = vpop.f32.mrb[0].mxu0
  %v6746 = vadd.f32 0.0, %v6745
  %v6747 = vpop.f32.mrb[0].mxu0
  %6748 = vmatprep.mubr.bf16.mxu0 0
  %6749 = vmatmul.mubr.bf16.gmra.mrb[0].mxu0 %v6466
  %v6750 = vpop.f32.mrb[0].mxu0
  %v6751 = vadd.f32 0.0, %v6750
  %v6752 = vpop.f32.mrb[0].mxu0
  %v6753 = vpop.f32.mrb[0].mxu0
  %v6754 = vadd.f32 0.0, %v6753
  %v6755 = vpop.f32.mrb[0].mxu0
  %6756 = vmatprep.mubr.bf16.mxu0 0
  %6757 = vmatmul.mubr.bf16.gmra.mrb[0].mxu0 %v6467
  %v6758 = vpop.f32.mrb[0].mxu0
  %v6759 = vadd.f32 0.0, %v6758
  %v6760 = vpop.f32.mrb[0].mxu0
  %v6761 = vpop.f32.mrb[0].mxu0
  %v6762 = vadd.f32 0.0, %v6761
  %v6763 = vpop.f32.mrb[0].mxu0
  %6764 = vmatprep.mubr.bf16.mxu0 0
  %6765 = vmatmul.mubr.bf16.gmra.mrb[0].mxu0 %v6468
  %v6766 = vpop.f32.mrb[0].mxu0
  %v6767 = vadd.f32 0.0, %v6766
  %v6768 = vpop.f32.mrb[0].mxu0
  %v6769 = vpop.f32.mrb[0].mxu0
  %v6770 = vadd.f32 0.0, %v6769
  %v6771 = vpop.f32.mrb[0].mxu0
  %6772 = vmatprep.mubr.bf16.mxu0 0
  %6773 = vmatmul.mubr.bf16.gmra.mrb[0].mxu0 %v6469
  %v6774 = vpop.f32.mrb[0].mxu0
  %v6775 = vadd.f32 0.0, %v6774
  %v6776 = vpop.f32.mrb[0].mxu0
  %v6777 = vpop.f32.mrb[0].mxu0
  %v6778 = vadd.f32 0.0, %v6777
  %v6779 = vpop.f32.mrb[0].mxu0
  %6780 = vmatprep.mubr.bf16.mxu0 0
  %6781 = vmatmul.mubr.bf16.gmra.mrb[0].mxu0 %v6470
  %v6782 = vpop.f32.mrb[0].mxu0
  %v6783 = vadd.f32 0.0, %v6782
  %v6784 = vpop.f32.mrb[0].mxu0
  %v6785 = vpop.f32.mrb[0].mxu0
  %v6786 = vadd.f32 0.0, %v6785
  %v6787 = vpop.f32.mrb[0].mxu0
  %6788 = vmatprep.mubr.bf16.mxu0 0
  %6789 = vmatmul.mubr.bf16.gmra.mrb[0].mxu0 %v6471
  %v6790 = vpop.f32.mrb[0].mxu0
  %v6791 = vadd.f32 0.0, %v6790
  %v6792 = vpop.f32.mrb[0].mxu0
  %v6793 = vpop.f32.mrb[0].mxu0
  %v6794 = vadd.f32 0.0, %v6793
  %v6795 = vpop.f32.mrb[0].mxu0
  %6796 = vmatprep.mubr.bf16.mxu0 0
  %6797 = vmatmul.mubr.bf16.gmra.mrb[0].mxu0 %v6472
  %v6798 = vpop.f32.mrb[0].mxu0
  %v6799 = vadd.f32 0.0, %v6798
  %v6800 = vpop.f32.mrb[0].mxu0
  %v6801 = vpop.f32.mrb[0].mxu0
  %v6802 = vadd.f32 0.0, %v6801
  %v6803 = vpop.f32.mrb[0].mxu0
  %6804 = vmatprep.mubr.bf16.mxu0 0
  %6805 = vmatmul.mubr.bf16.gmra.mrb[0].mxu0 %v6473
  %v6806 = vpop.f32.mrb[0].mxu0
  %v6807 = vadd.f32 0.0, %v6806
  %v6808 = vpop.f32.mrb[0].mxu0
  %v6809 = vpop.f32.mrb[0].mxu0
  %v6810 = vadd.f32 0.0, %v6809
  %v6811 = vpop.f32.mrb[0].mxu0
  %6812 = vmatprep.mubr.bf16.mxu0 0
  %6813 = vmatmul.mubr.bf16.gmra.mrb[0].mxu0 %v6474
  %v6814 = vpop.f32.mrb[0].mxu0
  %v6815 = vadd.f32 0.0, %v6814
  %v6816 = vpop.f32.mrb[0].mxu0
  %v6817 = vpop.f32.mrb[0].mxu0
  %v6818 = vadd.f32 0.0, %v6817
  %v6819 = vpop.f32.mrb[0].mxu0
  %6820 = vmatprep.mubr.bf16.mxu0 0
  %6821 = vmatmul.mubr.bf16.gmra.mrb[0].mxu0 %v6475
  %v6822 = vpop.f32.mrb[0].mxu0
  %v6823 = vadd.f32 0.0, %v6822
  %v6824 = vpop.f32.mrb[0].mxu0
  %v6825 = vpop.f32.mrb[0].mxu0
  %v6826 = vadd.f32 0.0, %v6825
  %v6827 = vpop.f32.mrb[0].mxu0
  %6828 = vdwg.mxu0
  %v6845 = vunpack.c.l.b16 %v6428
  %v6846 = vunpack.c.l.b16 %v6429
  %v6847 = vunpack.c.l.b16 %v6430
  %v6848 = vunpack.c.l.b16 %v6431
  %v6849 = vunpack.c.l.b16 %v6432
  %v6850 = vunpack.c.l.b16 %v6433
  %v6851 = vunpack.c.l.b16 %v6434
  %v6852 = vunpack.c.l.b16 %v6435
  %v6853 = vunpack.c.l.b16 %v6436
  %v6854 = vunpack.c.l.b16 %v6437
  %v6855 = vunpack.c.l.b16 %v6438
  %v6856 = vunpack.c.l.b16 %v6439
  %v6857 = vunpack.c.l.b16 %v6440
  %v6858 = vunpack.c.l.b16 %v6441
  %v6859 = vunpack.c.l.b16 %v6442
  %v6860 = vunpack.c.l.b16 %v6443
  %v6861 = vpack.c.b16 %v6846, %v6845
  %v6862 = vpack.c.b16 %v6848, %v6847
  %v6863 = vpack.c.b16 %v6850, %v6849
  %v6864 = vpack.c.b16 %v6852, %v6851
  %v6865 = vpack.c.b16 %v6854, %v6853
  %v6866 = vpack.c.b16 %v6856, %v6855
  %v6867 = vpack.c.b16 %v6858, %v6857
  %v6868 = vpack.c.b16 %v6860, %v6859
  %6877 = vmatprep.subr.bf16.mxu0 0
  %6878 = vmatpush1.bf16.msra.mxu0 %v6861
  %6879 = vmatprep.subr.bf16.mxu0 0
  %6880 = vmatpush1.bf16.msra.mxu0 %v6862
  %6881 = vmatprep.subr.bf16.mxu0 0
  %6882 = vmatpush1.bf16.msra.mxu0 %v6863
  %6883 = vmatprep.subr.bf16.mxu0 0
  %6884 = vmatpush1.bf16.msra.mxu0 %v6864
  %6885 = vmatprep.subr.bf16.mxu0 0
  %6886 = vmatpush1.bf16.msra.mxu0 %v6865
  %6887 = vmatprep.subr.bf16.mxu0 0
  %6888 = vmatpush1.bf16.msra.mxu0 %v6866
  %6889 = vmatprep.subr.bf16.mxu0 0
  %6890 = vmatpush1.bf16.msra.mxu0 %v6867
  %6891 = vmatprep.subr.bf16.mxu0 0
  %6892 = vmatpush1.bf16.msra.mxu0 %v6868
  %6893 = vmatprep.subr.bf16.mxu0 0
  %6894 = vmatpush1.bf16.msra.mxu0 0
  %6895 = vmatprep.subr.bf16.mxu0 0
  %6896 = vmatpush1.bf16.msra.mxu0 0
  %6897 = vmatprep.subr.bf16.mxu0 0
  %6898 = vmatpush1.bf16.msra.mxu0 0
  %6899 = vmatprep.subr.bf16.mxu0 0
  %6900 = vmatpush1.bf16.msra.mxu0 0
  %6901 = vmatprep.subr.bf16.mxu0 0
  %6902 = vmatpush1.bf16.msra.mxu0 0
  %6903 = vmatprep.subr.bf16.mxu0 0
  %6904 = vmatpush1.bf16.msra.mxu0 0
  %6905 = vmatprep.subr.bf16.mxu0 0
  %6906 = vmatpush1.bf16.msra.mxu0 0
  %6907 = vmatprep.subr.bf16.mxu0 0
  %6908 = vmatpush1.bf16.msra.mxu0 0
  %6909 = vmatprep.mubr.bf16.mxu0 0
  %6910 = vmatmul.mubr.bf16.gmra.mrb[0].mxu0 %v6396
  %v6911 = vpop.f32.mrb[0].mxu0
  %v6912 = vadd.f32 %v6575, %v6911
  %v6913 = vpop.f32.mrb[0].mxu0
  %v6914 = vpop.f32.mrb[0].mxu0
  %v6915 = vadd.f32 %v6578, %v6914
  %v6916 = vpop.f32.mrb[0].mxu0
  %6917 = vmatprep.mubr.bf16.mxu0 0
  %6918 = vmatmul.mubr.bf16.gmra.mrb[0].mxu0 %v6397
  %v6919 = vpop.f32.mrb[0].mxu0
  %v6920 = vadd.f32 %v6583, %v6919
  %v6921 = vpop.f32.mrb[0].mxu0
  %v6922 = vpop.f32.mrb[0].mxu0
  %v6923 = vadd.f32 %v6586, %v6922
  %v6924 = vpop.f32.mrb[0].mxu0
  %6925 = vmatprep.mubr.bf16.mxu0 0
  %6926 = vmatmul.mubr.bf16.gmra.mrb[0].mxu0 %v6398
  %v6927 = vpop.f32.mrb[0].mxu0
  %v6928 = vadd.f32 %v6591, %v6927
  %v6929 = vpop.f32.mrb[0].mxu0
  %v6930 = vpop.f32.mrb[0].mxu0
  %v6931 = vadd.f32 %v6594, %v6930
  %v6932 = vpop.f32.mrb[0].mxu0
  %6933 = vmatprep.mubr.bf16.mxu0 0
  %6934 = vmatmul.mubr.bf16.gmra.mrb[0].mxu0 %v6399
  %v6935 = vpop.f32.mrb[0].mxu0
  %v6936 = vadd.f32 %v6599, %v6935
  %v6937 = vpop.f32.mrb[0].mxu0
  %v6938 = vpop.f32.mrb[0].mxu0
  %v6939 = vadd.f32 %v6602, %v6938
  %v6940 = vpop.f32.mrb[0].mxu0
  %6941 = vmatprep.mubr.bf16.mxu0 0
  %6942 = vmatmul.mubr.bf16.gmra.mrb[0].mxu0 %v6400
  %v6943 = vpop.f32.mrb[0].mxu0
  %v6944 = vadd.f32 %v6607, %v6943
  %v6945 = vpop.f32.mrb[0].mxu0
  %v6946 = vpop.f32.mrb[0].mxu0
  %v6947 = vadd.f32 %v6610, %v6946
  %v6948 = vpop.f32.mrb[0].mxu0
  %6949 = vmatprep.mubr.bf16.mxu0 0
  %6950 = vmatmul.mubr.bf16.gmra.mrb[0].mxu0 %v6401
  %v6951 = vpop.f32.mrb[0].mxu0
  %v6952 = vadd.f32 %v6615, %v6951
  %v6953 = vpop.f32.mrb[0].mxu0
  %v6954 = vpop.f32.mrb[0].mxu0
  %v6955 = vadd.f32 %v6618, %v6954
  %v6956 = vpop.f32.mrb[0].mxu0
  %6957 = vmatprep.mubr.bf16.mxu0 0
  %6958 = vmatmul.mubr.bf16.gmra.mrb[0].mxu0 %v6402
  %v6959 = vpop.f32.mrb[0].mxu0
  %v6960 = vadd.f32 %v6623, %v6959
  %v6961 = vpop.f32.mrb[0].mxu0
  %v6962 = vpop.f32.mrb[0].mxu0
  %v6963 = vadd.f32 %v6626, %v6962
  %v6964 = vpop.f32.mrb[0].mxu0
  %6965 = vmatprep.mubr.bf16.mxu0 0
  %6966 = vmatmul.mubr.bf16.gmra.mrb[0].mxu0 %v6403
  %v6967 = vpop.f32.mrb[0].mxu0
  %v6968 = vadd.f32 %v6631, %v6967
  %v6969 = vpop.f32.mrb[0].mxu0
  %v6970 = vpop.f32.mrb[0].mxu0
  %v6971 = vadd.f32 %v6634, %v6970
  %v6972 = vpop.f32.mrb[0].mxu0
  %6973 = vmatprep.mubr.bf16.mxu0 0
  %6974 = vmatmul.mubr.bf16.gmra.mrb[0].mxu0 %v6404
  %v6975 = vpop.f32.mrb[0].mxu0
  %v6976 = vadd.f32 %v6639, %v6975
  %v6977 = vpop.f32.mrb[0].mxu0
  %v6978 = vpop.f32.mrb[0].mxu0
  %v6979 = vadd.f32 %v6642, %v6978
  %v6980 = vpop.f32.mrb[0].mxu0
  %6981 = vmatprep.mubr.bf16.mxu0 0
  %6982 = vmatmul.mubr.bf16.gmra.mrb[0].mxu0 %v6405
  %v6983 = vpop.f32.mrb[0].mxu0
  %v6984 = vadd.f32 %v6647, %v6983
  %v6985 = vpop.f32.mrb[0].mxu0
  %v6986 = vpop.f32.mrb[0].mxu0
  %v6987 = vadd.f32 %v6650, %v6986
  %v6988 = vpop.f32.mrb[0].mxu0
  %6989 = vmatprep.mubr.bf16.mxu0 0
  %6990 = vmatmul.mubr.bf16.gmra.mrb[0].mxu0 %v6406
  %v6991 = vpop.f32.mrb[0].mxu0
  %v6992 = vadd.f32 %v6655, %v6991
  %v6993 = vpop.f32.mrb[0].mxu0
  %v6994 = vpop.f32.mrb[0].mxu0
  %v6995 = vadd.f32 %v6658, %v6994
  %v6996 = vpop.f32.mrb[0].mxu0
  %6997 = vmatprep.mubr.bf16.mxu0 0
  %6998 = vmatmul.mubr.bf16.gmra.mrb[0].mxu0 %v6407
  %v6999 = vpop.f32.mrb[0].mxu0
  %v7000 = vadd.f32 %v6663, %v6999
  %v7001 = vpop.f32.mrb[0].mxu0
  %v7002 = vpop.f32.mrb[0].mxu0
  %v7003 = vadd.f32 %v6666, %v7002
  %v7004 = vpop.f32.mrb[0].mxu0
  %7005 = vmatprep.mubr.bf16.mxu0 0
  %7006 = vmatmul.mubr.bf16.gmra.mrb[0].mxu0 %v6408
  %v7007 = vpop.f32.mrb[0].mxu0
  %v7008 = vadd.f32 %v6671, %v7007
  %v7009 = vpop.f32.mrb[0].mxu0
  %v7010 = vpop.f32.mrb[0].mxu0
  %v7011 = vadd.f32 %v6674, %v7010
  %v7012 = vpop.f32.mrb[0].mxu0
  %7013 = vmatprep.mubr.bf16.mxu0 0
  %7014 = vmatmul.mubr.bf16.gmra.mrb[0].mxu0 %v6409
  %v7015 = vpop.f32.mrb[0].mxu0
  %v7016 = vadd.f32 %v6679, %v7015
  %v7017 = vpop.f32.mrb[0].mxu0
  %v7018 = vpop.f32.mrb[0].mxu0
  %v7019 = vadd.f32 %v6682, %v7018
  %v7020 = vpop.f32.mrb[0].mxu0
  %7021 = vmatprep.mubr.bf16.mxu0 0
  %7022 = vmatmul.mubr.bf16.gmra.mrb[0].mxu0 %v6410
  %v7023 = vpop.f32.mrb[0].mxu0
  %v7024 = vadd.f32 %v6687, %v7023
  %v7025 = vpop.f32.mrb[0].mxu0
  %v7026 = vpop.f32.mrb[0].mxu0
  %v7027 = vadd.f32 %v6690, %v7026
  %v7028 = vpop.f32.mrb[0].mxu0
  %7029 = vmatprep.mubr.bf16.mxu0 0
  %7030 = vmatmul.mubr.bf16.gmra.mrb[0].mxu0 %v6411
  %v7031 = vpop.f32.mrb[0].mxu0
  %v7032 = vadd.f32 %v6695, %v7031
  %v7033 = vpop.f32.mrb[0].mxu0
  %v7034 = vpop.f32.mrb[0].mxu0
  %v7035 = vadd.f32 %v6698, %v7034
  %v7036 = vpop.f32.mrb[0].mxu0
  %7037 = vmatprep.mubr.bf16.mxu0 0
  %7038 = vmatmul.mubr.bf16.gmra.mrb[0].mxu0 %v6412
  %v7039 = vpop.f32.mrb[0].mxu0
  %v7040 = vadd.f32 %v6703, %v7039
  %v7041 = vpop.f32.mrb[0].mxu0
  %v7042 = vpop.f32.mrb[0].mxu0
  %v7043 = vadd.f32 %v6706, %v7042
  %v7044 = vpop.f32.mrb[0].mxu0
  %7045 = vmatprep.mubr.bf16.mxu0 0
  %7046 = vmatmul.mubr.bf16.gmra.mrb[0].mxu0 %v6413
  %v7047 = vpop.f32.mrb[0].mxu0
  %v7048 = vadd.f32 %v6711, %v7047
  %v7049 = vpop.f32.mrb[0].mxu0
  %v7050 = vpop.f32.mrb[0].mxu0
  %v7051 = vadd.f32 %v6714, %v7050
  %v7052 = vpop.f32.mrb[0].mxu0
  %7053 = vmatprep.mubr.bf16.mxu0 0
  %7054 = vmatmul.mubr.bf16.gmra.mrb[0].mxu0 %v6414
  %v7055 = vpop.f32.mrb[0].mxu0
  %v7056 = vadd.f32 %v6719, %v7055
  %v7057 = vpop.f32.mrb[0].mxu0
  %v7058 = vpop.f32.mrb[0].mxu0
  %v7059 = vadd.f32 %v6722, %v7058
  %v7060 = vpop.f32.mrb[0].mxu0
  %7061 = vmatprep.mubr.bf16.mxu0 0
  %7062 = vmatmul.mubr.bf16.gmra.mrb[0].mxu0 %v6415
  %v7063 = vpop.f32.mrb[0].mxu0
  %v7064 = vadd.f32 %v6727, %v7063
  %v7065 = vpop.f32.mrb[0].mxu0
  %v7066 = vpop.f32.mrb[0].mxu0
  %v7067 = vadd.f32 %v6730, %v7066
  %v7068 = vpop.f32.mrb[0].mxu0
  %7069 = vmatprep.mubr.bf16.mxu0 0
  %7070 = vmatmul.mubr.bf16.gmra.mrb[0].mxu0 %v6416
  %v7071 = vpop.f32.mrb[0].mxu0
  %v7072 = vadd.f32 %v6735, %v7071
  %v7073 = vpop.f32.mrb[0].mxu0
  %v7074 = vpop.f32.mrb[0].mxu0
  %v7075 = vadd.f32 %v6738, %v7074
  %v7076 = vpop.f32.mrb[0].mxu0
  %7077 = vmatprep.mubr.bf16.mxu0 0
  %7078 = vmatmul.mubr.bf16.gmra.mrb[0].mxu0 %v6417
  %v7079 = vpop.f32.mrb[0].mxu0
  %v7080 = vadd.f32 %v6743, %v7079
  %v7081 = vpop.f32.mrb[0].mxu0
  %v7082 = vpop.f32.mrb[0].mxu0
  %v7083 = vadd.f32 %v6746, %v7082
  %v7084 = vpop.f32.mrb[0].mxu0
  %7085 = vmatprep.mubr.bf16.mxu0 0
  %7086 = vmatmul.mubr.bf16.gmra.mrb[0].mxu0 %v6418
  %v7087 = vpop.f32.mrb[0].mxu0
  %v7088 = vadd.f32 %v6751, %v7087
  %v7089 = vpop.f32.mrb[0].mxu0
  %v7090 = vpop.f32.mrb[0].mxu0
  %v7091 = vadd.f32 %v6754, %v7090
  %v7092 = vpop.f32.mrb[0].mxu0
  %7093 = vmatprep.mubr.bf16.mxu0 0
  %7094 = vmatmul.mubr.bf16.gmra.mrb[0].mxu0 %v6419
  %v7095 = vpop.f32.mrb[0].mxu0
  %v7096 = vadd.f32 %v6759, %v7095
  %v7097 = vpop.f32.mrb[0].mxu0
  %v7098 = vpop.f32.mrb[0].mxu0
  %v7099 = vadd.f32 %v6762, %v7098
  %v7100 = vpop.f32.mrb[0].mxu0
  %7101 = vmatprep.mubr.bf16.mxu0 0
  %7102 = vmatmul.mubr.bf16.gmra.mrb[0].mxu0 %v6420
  %v7103 = vpop.f32.mrb[0].mxu0
  %v7104 = vadd.f32 %v6767, %v7103
  %v7105 = vpop.f32.mrb[0].mxu0
  %v7106 = vpop.f32.mrb[0].mxu0
  %v7107 = vadd.f32 %v6770, %v7106
  %v7108 = vpop.f32.mrb[0].mxu0
  %7109 = vmatprep.mubr.bf16.mxu0 0
  %7110 = vmatmul.mubr.bf16.gmra.mrb[0].mxu0 %v6421
  %v7111 = vpop.f32.mrb[0].mxu0
  %v7112 = vadd.f32 %v6775, %v7111
  %v7113 = vpop.f32.mrb[0].mxu0
  %v7114 = vpop.f32.mrb[0].mxu0
  %v7115 = vadd.f32 %v6778, %v7114
  %v7116 = vpop.f32.mrb[0].mxu0
  %7117 = vmatprep.mubr.bf16.mxu0 0
  %7118 = vmatmul.mubr.bf16.gmra.mrb[0].mxu0 %v6422
  %v7119 = vpop.f32.mrb[0].mxu0
  %v7120 = vadd.f32 %v6783, %v7119
  %v7121 = vpop.f32.mrb[0].mxu0
  %v7122 = vpop.f32.mrb[0].mxu0
  %v7123 = vadd.f32 %v6786, %v7122
  %v7124 = vpop.f32.mrb[0].mxu0
  %7125 = vmatprep.mubr.bf16.mxu0 0
  %7126 = vmatmul.mubr.bf16.gmra.mrb[0].mxu0 %v6423
  %v7127 = vpop.f32.mrb[0].mxu0
  %v7128 = vadd.f32 %v6791, %v7127
  %v7129 = vpop.f32.mrb[0].mxu0
  %v7130 = vpop.f32.mrb[0].mxu0
  %v7131 = vadd.f32 %v6794, %v7130
  %v7132 = vpop.f32.mrb[0].mxu0
  %7133 = vmatprep.mubr.bf16.mxu0 0
  %7134 = vmatmul.mubr.bf16.gmra.mrb[0].mxu0 %v6424
  %v7135 = vpop.f32.mrb[0].mxu0
  %v7136 = vadd.f32 %v6799, %v7135
  %v7137 = vpop.f32.mrb[0].mxu0
  %v7138 = vpop.f32.mrb[0].mxu0
  %v7139 = vadd.f32 %v6802, %v7138
  %v7140 = vpop.f32.mrb[0].mxu0
  %7141 = vmatprep.mubr.bf16.mxu0 0
  %7142 = vmatmul.mubr.bf16.gmra.mrb[0].mxu0 %v6425
  %v7143 = vpop.f32.mrb[0].mxu0
  %v7144 = vadd.f32 %v6807, %v7143
  %v7145 = vpop.f32.mrb[0].mxu0
  %v7146 = vpop.f32.mrb[0].mxu0
  %v7147 = vadd.f32 %v6810, %v7146
  %v7148 = vpop.f32.mrb[0].mxu0
  %7149 = vmatprep.mubr.bf16.mxu0 0
  %7150 = vmatmul.mubr.bf16.gmra.mrb[0].mxu0 %v6426
  %v7151 = vpop.f32.mrb[0].mxu0
  %v7152 = vadd.f32 %v6815, %v7151
  %v7153 = vpop.f32.mrb[0].mxu0
  %v7154 = vpop.f32.mrb[0].mxu0
  %v7155 = vadd.f32 %v6818, %v7154
  %v7156 = vpop.f32.mrb[0].mxu0
  %7157 = vmatprep.mubr.bf16.mxu0 0
  %7158 = vmatmul.mubr.bf16.gmra.mrb[0].mxu0 %v6427
  %v7159 = vpop.f32.mrb[0].mxu0
  %v7160 = vadd.f32 %v6823, %v7159
  %v7161 = vpop.f32.mrb[0].mxu0
  %v7162 = vpop.f32.mrb[0].mxu0
  %v7163 = vadd.f32 %v6826, %v7162
  %v7164 = vpop.f32.mrb[0].mxu0
  %7165 = vdwg.mxu0
  %v7166 = vlaneseq
  %v7167 = vshrl.u32 %v7166, 7
  %v7168 = vsub.s32 7, %v7167
  %v7169 = vrot.slane %v88, %v7168
  %v7170 = vadd.f32 %v6912, %v7169
  %v7171 = vadd.f32 %v6915, %v7169
  %v7172 = vadd.f32 %v6920, %v7169
  %v7173 = vadd.f32 %v6923, %v7169
  %v7174 = vadd.f32 %v6928, %v7169
  %v7175 = vadd.f32 %v6931, %v7169
  %v7176 = vadd.f32 %v6936, %v7169
  %v7177 = vadd.f32 %v6939, %v7169
  %v7178 = vadd.f32 %v6944, %v7169
  %v7179 = vadd.f32 %v6947, %v7169
  %v7180 = vadd.f32 %v6952, %v7169
  %v7181 = vadd.f32 %v6955, %v7169
  %v7182 = vadd.f32 %v6960, %v7169
  %v7183 = vadd.f32 %v6963, %v7169
  %v7184 = vadd.f32 %v6968, %v7169
  %v7185 = vadd.f32 %v6971, %v7169
  %v7186 = vadd.f32 %v6976, %v7169
  %v7187 = vadd.f32 %v6979, %v7169
  %v7188 = vadd.f32 %v6984, %v7169
  %v7189 = vadd.f32 %v6987, %v7169
  %v7190 = vadd.f32 %v6992, %v7169
  %v7191 = vadd.f32 %v6995, %v7169
  %v7192 = vadd.f32 %v7000, %v7169
  %v7193 = vadd.f32 %v7003, %v7169
  %v7194 = vadd.f32 %v7008, %v7169
  %v7195 = vadd.f32 %v7011, %v7169
  %v7196 = vadd.f32 %v7016, %v7169
  %v7197 = vadd.f32 %v7019, %v7169
  %v7198 = vadd.f32 %v7024, %v7169
  %v7199 = vadd.f32 %v7027, %v7169
  %v7200 = vadd.f32 %v7032, %v7169
  %v7201 = vadd.f32 %v7035, %v7169
  %v7202 = vadd.f32 %v7040, %v7169
  %v7203 = vadd.f32 %v7043, %v7169
  %v7204 = vadd.f32 %v7048, %v7169
  %v7205 = vadd.f32 %v7051, %v7169
  %v7206 = vadd.f32 %v7056, %v7169
  %v7207 = vadd.f32 %v7059, %v7169
  %v7208 = vadd.f32 %v7064, %v7169
  %v7209 = vadd.f32 %v7067, %v7169
  %v7210 = vadd.f32 %v7072, %v7169
  %v7211 = vadd.f32 %v7075, %v7169
  %v7212 = vadd.f32 %v7080, %v7169
  %v7213 = vadd.f32 %v7083, %v7169
  %v7214 = vadd.f32 %v7088, %v7169
  %v7215 = vadd.f32 %v7091, %v7169
  %v7216 = vadd.f32 %v7096, %v7169
  %v7217 = vadd.f32 %v7099, %v7169
  %v7218 = vadd.f32 %v7104, %v7169
  %v7219 = vadd.f32 %v7107, %v7169
  %v7220 = vadd.f32 %v7112, %v7169
  %v7221 = vadd.f32 %v7115, %v7169
  %v7222 = vadd.f32 %v7120, %v7169
  %v7223 = vadd.f32 %v7123, %v7169
  %v7224 = vadd.f32 %v7128, %v7169
  %v7225 = vadd.f32 %v7131, %v7169
  %v7226 = vadd.f32 %v7136, %v7169
  %v7227 = vadd.f32 %v7139, %v7169
  %v7228 = vadd.f32 %v7144, %v7169
  %v7229 = vadd.f32 %v7147, %v7169
  %v7230 = vadd.f32 %v7152, %v7169
  %v7231 = vadd.f32 %v7155, %v7169
  %v7232 = vadd.f32 %v7160, %v7169
  %v7233 = vadd.f32 %v7163, %v7169
  %7234 = vst [vmem:[%s6] sm:$0xff] %v7170
  %7235 = vst [vmem:[%s6 + $0x8] sm:$0xff] %v7171
  %7236 = vst [vmem:[%s6 + $0x10] sm:$0xff] %v7172
  %7237 = vst [vmem:[%s6 + $0x18] sm:$0xff] %v7173
  %7238 = vst [vmem:[%s6 + $0x20] sm:$0xff] %v7174
  %7239 = vst [vmem:[%s6 + $0x28] sm:$0xff] %v7175
  %7240 = vst [vmem:[%s6 + $0x30] sm:$0xff] %v7176
  %7241 = vst [vmem:[%s6 + $0x38] sm:$0xff] %v7177
  %7242 = vst [vmem:[%s6 + $0x40] sm:$0xff] %v7178
  %7243 = vst [vmem:[%s6 + $0x48] sm:$0xff] %v7179
  %7244 = vst [vmem:[%s6 + $0x50] sm:$0xff] %v7180
  %7245 = vst [vmem:[%s6 + $0x58] sm:$0xff] %v7181
  %7246 = vst [vmem:[%s6 + $0x60] sm:$0xff] %v7182
  %7247 = vst [vmem:[%s6 + $0x68] sm:$0xff] %v7183
  %7248 = vst [vmem:[%s6 + $0x70] sm:$0xff] %v7184
  %7249 = vst [vmem:[%s6 + $0x78] sm:$0xff] %v7185
  %7250 = vst [vmem:[%s6 + $0x80] sm:$0xff] %v7186
  %7251 = vst [vmem:[%s6 + $0x88] sm:$0xff] %v7187
  %7252 = vst [vmem:[%s6 + $0x90] sm:$0xff] %v7188
  %7253 = vst [vmem:[%s6 + $0x98] sm:$0xff] %v7189
  %7254 = vst [vmem:[%s6 + $0xa0] sm:$0xff] %v7190
  %7255 = vst [vmem:[%s6 + $0xa8] sm:$0xff] %v7191
  %7256 = vst [vmem:[%s6 + $0xb0] sm:$0xff] %v7192
  %7257 = vst [vmem:[%s6 + $0xb8] sm:$0xff] %v7193
  %7258 = vst [vmem:[%s6 + $0xc0] sm:$0xff] %v7194
  %7259 = vst [vmem:[%s6 + $0xc8] sm:$0xff] %v7195
  %7260 = vst [vmem:[%s6 + $0xd0] sm:$0xff] %v7196
  %7261 = vst [vmem:[%s6 + $0xd8] sm:$0xff] %v7197
  %7262 = vst [vmem:[%s6 + $0xe0] sm:$0xff] %v7198
  %7263 = vst [vmem:[%s6 + $0xe8] sm:$0xff] %v7199
  %7264 = vst [vmem:[%s6 + $0xf0] sm:$0xff] %v7200
  %7265 = vst [vmem:[%s6 + $0xf8] sm:$0xff] %v7201
  %7266 = vst [vmem:[%s6 + $0x100] sm:$0xff] %v7202
  %7267 = vst [vmem:[%s6 + $0x108] sm:$0xff] %v7203
  %7268 = vst [vmem:[%s6 + $0x110] sm:$0xff] %v7204
  %7269 = vst [vmem:[%s6 + $0x118] sm:$0xff] %v7205
  %7270 = vst [vmem:[%s6 + $0x120] sm:$0xff] %v7206
  %7271 = vst [vmem:[%s6 + $0x128] sm:$0xff] %v7207
  %7272 = vst [vmem:[%s6 + $0x130] sm:$0xff] %v7208
  %7273 = vst [vmem:[%s6 + $0x138] sm:$0xff] %v7209
  %7274 = vst [vmem:[%s6 + $0x140] sm:$0xff] %v7210
  %7275 = vst [vmem:[%s6 + $0x148] sm:$0xff] %v7211
  %7276 = vst [vmem:[%s6 + $0x150] sm:$0xff] %v7212
  %7277 = vst [vmem:[%s6 + $0x158] sm:$0xff] %v7213
  %7278 = vst [vmem:[%s6 + $0x160] sm:$0xff] %v7214
  %7279 = vst [vmem:[%s6 + $0x168] sm:$0xff] %v7215
  %7280 = vst [vmem:[%s6 + $0x170] sm:$0xff] %v7216
  %7281 = vst [vmem:[%s6 + $0x178] sm:$0xff] %v7217
  %7282 = vst [vmem:[%s6 + $0x180] sm:$0xff] %v7218
  %7283 = vst [vmem:[%s6 + $0x188] sm:$0xff] %v7219
  %7284 = vst [vmem:[%s6 + $0x190] sm:$0xff] %v7220
  %7285 = vst [vmem:[%s6 + $0x198] sm:$0xff] %v7221
  %7286 = vst [vmem:[%s6 + $0x1a0] sm:$0xff] %v7222
  %7287 = vst [vmem:[%s6 + $0x1a8] sm:$0xff] %v7223
  %7288 = vst [vmem:[%s6 + $0x1b0] sm:$0xff] %v7224
  %7289 = vst [vmem:[%s6 + $0x1b8] sm:$0xff] %v7225
  %7290 = vst [vmem:[%s6 + $0x1c0] sm:$0xff] %v7226
  %7291 = vst [vmem:[%s6 + $0x1c8] sm:$0xff] %v7227
  %7292 = vst [vmem:[%s6 + $0x1d0] sm:$0xff] %v7228
  %7293 = vst [vmem:[%s6 + $0x1d8] sm:$0xff] %v7229
  %7294 = vst [vmem:[%s6 + $0x1e0] sm:$0xff] %v7230
  %7295 = vst [vmem:[%s6 + $0x1e8] sm:$0xff] %v7231
  %7296 = vst [vmem:[%s6 + $0x1f0] sm:$0xff] %v7232
  %7297 = vst [vmem:[%s6 + $0x1f8] sm:$0xff] %v7233
  // Predicated region
  $region26: #{_lambda_.1} parent=0 // pred_check
    _
  $region27: #{_lambda_.1} parent=0 // pred_check_branch
    %7299 = sbr.rel (0) target = $region29
  $region28: #{_lambda_.1} parent=0 // pred_region
    _
  $region29: #{_lambda_.1} parent=0 // pred_fallthru
    _
  // Predicated region
  $region30: #{_lambda_.1} parent=0 // pred_check
    _
  $region31: #{_lambda_.1} parent=0 // pred_check_branch
    %7301 = sbr.rel (0) target = $region33
  $region32: #{_lambda_.1} parent=0 // pred_region
    _
  $region33: #{_lambda_.1} parent=0 // pred_fallthru
    _

</llo_original>
